<compile_context>
chip_gen: v7x
topology: tpu7x:2x2x1
jax: 0.10.0
libtpu: 0.0.40
codegen_flags: <defaults>
</compile_context>

<pallas_src>
import numpy as np
import jax
import jax.numpy as jnp
from jax import lax
from jax.experimental import pallas as pl
from jax.experimental.pallas import tpu as pltpu

H = W = 7
P = H * W            # 49 spatial positions
CIN = 128
COUT = 32
C481 = 896           # channels of x481
NMID = 24            # number of 32-channel dense-block inputs
CCAT = C481 + NMID * COUT + COUT + COUT   # 1728 concat channels
SLAB = CCAT // 2     # 864 channels per grid step
CHUNK = 96           # slab-0 BN chunk (multiple of 8, divides 864)
EPS = 1e-5


# ---------------------------------------------------------------------------
# Host-side constants (built once at import time; zero per-call work).
# ---------------------------------------------------------------------------
def _build_sel():
    """sel[t, s, d] = 1 iff source pixel s is the tap-t neighbour of output pixel d
    (out-of-image neighbours match nothing => implements the zero padding)."""
    sel = np.zeros((9, P, P), np.float32)
    for t in range(9):
        kh, kw = divmod(t, 3)
        dh, dw = kh - 1, kw - 1
        for d in range(P):
            hd, wd = divmod(d, W)
            hs, ws = hd + dh, wd + dw
            if 0 <= hs < H and 0 <= ws < W:
                sel[t, hs * W + ws, d] = 1.0
    return sel


SEL = jnp.asarray(_build_sel())      # (9, 49, 49)


def _bn(x, g, b):
    """Training-mode BatchNorm on a channel-major (C, 49) slab, two-pass variance."""
    inv_n = 1.0 / P
    m = jnp.sum(x, axis=-1, keepdims=True) * inv_n          # (C, 1)
    xc = x - m
    var = jnp.sum(xc * xc, axis=-1, keepdims=True) * inv_n  # (C, 1)
    return xc * (lax.rsqrt(var + EPS) * g) + b


# ---------------------------------------------------------------------------
# Fused kernel: conv2d185 + concat + batchnorm2d188 (batch statistics).
# ---------------------------------------------------------------------------
def fused_kernel(*args):
    x481_ref = args[0]
    mid_refs = args[1:1 + NMID]
    x663_ref, x_ref, w_ref, sel_ref, gb_ref, o_ref, y_ref = args[1 + NMID:]

    slab = pl.program_id(0)

    # ---------------- slab 0: channels 0..863 (first 864 rows of x481) ----------------
    @pl.when(slab == 0)
    def _():
        for c in range(0, SLAB, CHUNK):
            o_ref[c:c + CHUNK, :] = _bn(x481_ref[c:c + CHUNK, :],
                                        gb_ref[c:c + CHUNK, 0:1],
                                        gb_ref[c:c + CHUNK, 1:2])

    # ---------------- slab 1: channels 864..1727 ----------------
    # local layout: [x481 tail (32) | 24 mids (768) | conv (32) | x663 (32)]
    @pl.when(slab == 1)
    def _():
        # conv2d185: one (288,128)@(128,49) MXU dot for all 9 taps' channel contractions,
        # staged in VMEM, then 9 tiny relocation dots with constant 0/1 masks.
        y_ref[...] = jnp.dot(w_ref[...], x_ref[...],
                             preferred_element_type=jnp.float32)        # (288, 49)
        conv = jnp.dot(y_ref[0:COUT, :], sel_ref[0],
                       preferred_element_type=jnp.float32)              # (32, 49)
        for t in range(1, 9):
            conv = conv + jnp.dot(y_ref[t * COUT:(t + 1) * COUT, :], sel_ref[t],
                                  preferred_element_type=jnp.float32)

        # x481 tail (global channels 864..895)
        o_ref[0:COUT, :] = _bn(x481_ref[C481 - COUT:C481, :],
                               gb_ref[0:COUT, 0:1], gb_ref[0:COUT, 1:2])

        # 24 dense-block mids
        for t, m_ref in enumerate(mid_refs):
            lo = COUT + t * COUT
            o_ref[lo:lo + COUT, :] = _bn(m_ref[...],
                                         gb_ref[lo:lo + COUT, 0:1],
                                         gb_ref[lo:lo + COUT, 1:2])

        # conv output (global channels 1664..1695)
        lo = COUT + NMID * COUT          # 800
        o_ref[lo:lo + COUT, :] = _bn(conv,
                                     gb_ref[lo:lo + COUT, 0:1],
                                     gb_ref[lo:lo + COUT, 1:2])

        # x663 (global channels 1696..1727)
        lo = lo + COUT                   # 832
        o_ref[lo:lo + COUT, :] = _bn(x663_ref[...],
                                     gb_ref[lo:lo + COUT, 0:1],
                                     gb_ref[lo:lo + COUT, 1:2])


def forward(x655, x481, mids, x663, w2d, gb):
    """x655/x481/mids/x663: NCHW f32 activations; w2d: pre-laid-out (288,128) conv weight;
    gb: packed (1728,2) [gamma | beta].  NCHW -> (C,49) reshapes are free views."""
    x481_2d = x481.reshape(C481, P)
    mids_2d = [m.reshape(COUT, P) for m in mids]
    x663_2d = x663.reshape(COUT, P)
    x_2d = x655.reshape(CIN, P)

    out2d = pl.pallas_call(
        fused_kernel,
        out_shape=jax.ShapeDtypeStruct((CCAT, P), jnp.float32),
        grid=(2,),
        in_specs=(
            [pl.BlockSpec((C481, P), lambda i: (0, 0))]
            + [pl.BlockSpec((COUT, P), lambda i: (0, 0))] * (NMID + 1)   # 24 mids + x663
            + [pl.BlockSpec((CIN, P), lambda i: (0, 0)),
               pl.BlockSpec((9 * COUT, CIN), lambda i: (0, 0)),
               pl.BlockSpec((9, P, P), lambda i: (0, 0, 0)),
               pl.BlockSpec((SLAB, 2), lambda i: (i, 0))]
        ),
        out_specs=pl.BlockSpec((SLAB, P), lambda i: (i, 0)),
        scratch_shapes=[pltpu.VMEM((9 * COUT, P), jnp.float32)],
        compiler_params=pltpu.CompilerParams(
            dimension_semantics=("parallel",),
        ),
    )(x481_2d, *mids_2d, x663_2d, x_2d, w2d, SEL, gb)

    return out2d.reshape(1, CCAT, H, W)      # free NCHW view


# ---------------------------------------------------------------------------
# Pure-JAX reference for verification.
# ---------------------------------------------------------------------------
def reference(x655, x481, mids, x663, conv_w, bn_gamma, bn_beta):
    x656 = lax.conv_general_dilated(
        x655, conv_w, window_strides=(1, 1), padding=((1, 1), (1, 1)),
        dimension_numbers=("NCHW", "OIHW", "NCHW"))
    cat = jnp.concatenate([x481] + mids + [x656, x663], axis=1)
    mean = jnp.mean(cat, axis=(0, 2, 3), keepdims=True)
    var = jnp.mean((cat - mean) ** 2, axis=(0, 2, 3), keepdims=True)
    g = bn_gamma.reshape(1, CCAT, 1, 1)
    b = bn_beta.reshape(1, CCAT, 1, 1)
    return (cat - mean) * lax.rsqrt(var + EPS) * g + b


if __name__ == "__main__":
    key = jax.random.PRNGKey(0)
    keys = jax.random.split(key, 32)

    x481 = jax.random.normal(keys[0], (1, C481, H, W), jnp.float32)
    mids = [jax.random.normal(keys[1 + i], (1, COUT, H, W), jnp.float32)
            for i in range(NMID)]
    x655 = jax.random.normal(keys[25], (1, CIN, H, W), jnp.float32)
    x663 = jax.random.normal(keys[26], (1, COUT, H, W), jnp.float32)

    conv_w = 0.05 * jax.random.normal(keys[27], (COUT, CIN, 3, 3), jnp.float32)
    bn_gamma = 1.0 + 0.01 * jax.random.normal(keys[28], (CCAT,), jnp.float32)
    bn_beta = 0.01 * jax.random.normal(keys[29], (CCAT,), jnp.float32)

    # One-time parameter prep (hoisted out of the per-call path):
    #   OIHW -> (tap, Cout, Cin) flattened to (288, 128); gamma/beta packed to (1728, 2).
    w2d = jnp.transpose(conv_w, (2, 3, 0, 1)).reshape(9 * COUT, CIN)
    gb = jnp.stack([bn_gamma, bn_beta], axis=1)

    fwd = jax.jit(forward)
    out = jax.block_until_ready(fwd(x655, x481, mids, x663, w2d, gb))

    ref = reference(x655, x481, mids, x663, conv_w, bn_gamma, bn_beta)
    assert out.shape == (1, CCAT, H, W), out.shape
    max_err = float(jnp.max(jnp.abs(out - ref)))
    assert jnp.allclose(out, ref, rtol=2e-3, atol=2e-3), max_err

    print("KERNEL_OK")
</pallas_src>

<mosaic_0001>
module attributes {stable_mosaic.version = 11 : i64} {
  func.func @fused_kernel(%arg0: i32, %arg1: memref<896x49xf32, #tpu.memory_space<vmem>>, %arg2: memref<32x49xf32, #tpu.memory_space<vmem>>, %arg3: memref<32x49xf32, #tpu.memory_space<vmem>>, %arg4: memref<32x49xf32, #tpu.memory_space<vmem>>, %arg5: memref<32x49xf32, #tpu.memory_space<vmem>>, %arg6: memref<32x49xf32, #tpu.memory_space<vmem>>, %arg7: memref<32x49xf32, #tpu.memory_space<vmem>>, %arg8: memref<32x49xf32, #tpu.memory_space<vmem>>, %arg9: memref<32x49xf32, #tpu.memory_space<vmem>>, %arg10: memref<32x49xf32, #tpu.memory_space<vmem>>, %arg11: memref<32x49xf32, #tpu.memory_space<vmem>>, %arg12: memref<32x49xf32, #tpu.memory_space<vmem>>, %arg13: memref<32x49xf32, #tpu.memory_space<vmem>>, %arg14: memref<32x49xf32, #tpu.memory_space<vmem>>, %arg15: memref<32x49xf32, #tpu.memory_space<vmem>>, %arg16: memref<32x49xf32, #tpu.memory_space<vmem>>, %arg17: memref<32x49xf32, #tpu.memory_space<vmem>>, %arg18: memref<32x49xf32, #tpu.memory_space<vmem>>, %arg19: memref<32x49xf32, #tpu.memory_space<vmem>>, %arg20: memref<32x49xf32, #tpu.memory_space<vmem>>, %arg21: memref<32x49xf32, #tpu.memory_space<vmem>>, %arg22: memref<32x49xf32, #tpu.memory_space<vmem>>, %arg23: memref<32x49xf32, #tpu.memory_space<vmem>>, %arg24: memref<32x49xf32, #tpu.memory_space<vmem>>, %arg25: memref<32x49xf32, #tpu.memory_space<vmem>>, %arg26: memref<32x49xf32, #tpu.memory_space<vmem>>, %arg27: memref<128x49xf32, #tpu.memory_space<vmem>>, %arg28: memref<288x128xf32, #tpu.memory_space<vmem>>, %arg29: memref<9x49x49xf32, #tpu.memory_space<vmem>>, %arg30: memref<864x2xf32, #tpu.memory_space<vmem>>, %arg31: memref<864x49xf32, #tpu.memory_space<vmem>>, %arg32: memref<288x49xf32, #tpu.memory_space<vmem>>) attributes {dimension_semantics = [#tpu.dimension_semantics<parallel>], iteration_bounds = array<i64: 2>, scalar_prefetch = 0 : i64, scratch_operands = 1 : i64, tpu.core_type = #tpu.core_type<tc>, window_params = [{pipeline_mode = #tpu.pipeline_mode<synchronous>, transform_indices = @transform_0, window_bounds = array<i64: 896, 49>}, {pipeline_mode = #tpu.pipeline_mode<synchronous>, transform_indices = @transform_1, window_bounds = array<i64: 32, 49>}, {pipeline_mode = #tpu.pipeline_mode<synchronous>, transform_indices = @transform_2, window_bounds = array<i64: 32, 49>}, {pipeline_mode = #tpu.pipeline_mode<synchronous>, transform_indices = @transform_3, window_bounds = array<i64: 32, 49>}, {pipeline_mode = #tpu.pipeline_mode<synchronous>, transform_indices = @transform_4, window_bounds = array<i64: 32, 49>}, {pipeline_mode = #tpu.pipeline_mode<synchronous>, transform_indices = @transform_5, window_bounds = array<i64: 32, 49>}, {pipeline_mode = #tpu.pipeline_mode<synchronous>, transform_indices = @transform_6, window_bounds = array<i64: 32, 49>}, {pipeline_mode = #tpu.pipeline_mode<synchronous>, transform_indices = @transform_7, window_bounds = array<i64: 32, 49>}, {pipeline_mode = #tpu.pipeline_mode<synchronous>, transform_indices = @transform_8, window_bounds = array<i64: 32, 49>}, {pipeline_mode = #tpu.pipeline_mode<synchronous>, transform_indices = @transform_9, window_bounds = array<i64: 32, 49>}, {pipeline_mode = #tpu.pipeline_mode<synchronous>, transform_indices = @transform_10, window_bounds = array<i64: 32, 49>}, {pipeline_mode = #tpu.pipeline_mode<synchronous>, transform_indices = @transform_11, window_bounds = array<i64: 32, 49>}, {pipeline_mode = #tpu.pipeline_mode<synchronous>, transform_indices = @transform_12, window_bounds = array<i64: 32, 49>}, {pipeline_mode = #tpu.pipeline_mode<synchronous>, transform_indices = @transform_13, window_bounds = array<i64: 32, 49>}, {pipeline_mode = #tpu.pipeline_mode<synchronous>, transform_indices = @transform_14, window_bounds = array<i64: 32, 49>}, {pipeline_mode = #tpu.pipeline_mode<synchronous>, transform_indices = @transform_15, window_bounds = array<i64: 32, 49>}, {pipeline_mode = #tpu.pipeline_mode<synchronous>, transform_indices = @transform_16, window_bounds = array<i64: 32, 49>}, {pipeline_mode = #tpu.pipeline_mode<synchronous>, transform_indices = @transform_17, window_bounds = array<i64: 32, 49>}, {pipeline_mode = #tpu.pipeline_mode<synchronous>, transform_indices = @transform_18, window_bounds = array<i64: 32, 49>}, {pipeline_mode = #tpu.pipeline_mode<synchronous>, transform_indices = @transform_19, window_bounds = array<i64: 32, 49>}, {pipeline_mode = #tpu.pipeline_mode<synchronous>, transform_indices = @transform_20, window_bounds = array<i64: 32, 49>}, {pipeline_mode = #tpu.pipeline_mode<synchronous>, transform_indices = @transform_21, window_bounds = array<i64: 32, 49>}, {pipeline_mode = #tpu.pipeline_mode<synchronous>, transform_indices = @transform_22, window_bounds = array<i64: 32, 49>}, {pipeline_mode = #tpu.pipeline_mode<synchronous>, transform_indices = @transform_23, window_bounds = array<i64: 32, 49>}, {pipeline_mode = #tpu.pipeline_mode<synchronous>, transform_indices = @transform_24, window_bounds = array<i64: 32, 49>}, {pipeline_mode = #tpu.pipeline_mode<synchronous>, transform_indices = @transform_25, window_bounds = array<i64: 32, 49>}, {pipeline_mode = #tpu.pipeline_mode<synchronous>, transform_indices = @transform_26, window_bounds = array<i64: 128, 49>}, {pipeline_mode = #tpu.pipeline_mode<synchronous>, transform_indices = @transform_27, window_bounds = array<i64: 288, 128>}, {pipeline_mode = #tpu.pipeline_mode<synchronous>, transform_indices = @transform_28, window_bounds = array<i64: 9, 49, 49>}, {transform_indices = @transform_29, window_bounds = array<i64: 864, 2>}, {transform_indices = @transform_30, window_bounds = array<i64: 864, 49>}]} {
    %c0_i32 = arith.constant 0 : i32
    %0 = arith.cmpi eq, %arg0, %c0_i32 : i32
    %1 = arith.extui %0 : i1 to i32
    %c0_i32_0 = arith.constant 0 : i32
    %2 = arith.cmpi ne, %1, %c0_i32_0 : i32
    scf.if %2 {
      %c0 = arith.constant 0 : index
      %c0_2 = arith.constant 0 : index
      %6 = vector.load %arg1[%c0, %c0_2] : memref<896x49xf32, #tpu.memory_space<vmem>>, vector<96x49xf32>
      %c0_3 = arith.constant 0 : index
      %c0_4 = arith.constant 0 : index
      %7 = vector.load %arg30[%c0_3, %c0_4] : memref<864x2xf32, #tpu.memory_space<vmem>>, vector<96x1xf32>
      %c0_5 = arith.constant 0 : index
      %c1 = arith.constant 1 : index
      %8 = vector.load %arg30[%c0_5, %c1] : memref<864x2xf32, #tpu.memory_space<vmem>>, vector<96x1xf32>
      %cst = arith.constant dense<0.000000e+00> : vector<96xf32>
      %9 = vector.multi_reduction <add>, %6, %cst [1] : vector<96x49xf32> to vector<96xf32>
      %10 = vector.shape_cast %9 : vector<96xf32> to vector<96x1xf32>
      %cst_6 = arith.constant 0.0204081628 : f32
      %11 = vector.broadcast %cst_6 : f32 to vector<96x1xf32>
      %12 = arith.mulf %10, %11 : vector<96x1xf32>
      %13 = vector.broadcast %12 : vector<96x1xf32> to vector<96x49xf32>
      %14 = arith.subf %6, %13 : vector<96x49xf32>
      %15 = arith.mulf %14, %14 : vector<96x49xf32>
      %cst_7 = arith.constant dense<0.000000e+00> : vector<96xf32>
      %16 = vector.multi_reduction <add>, %15, %cst_7 [1] : vector<96x49xf32> to vector<96xf32>
      %17 = vector.shape_cast %16 : vector<96xf32> to vector<96x1xf32>
      %cst_8 = arith.constant 0.0204081628 : f32
      %18 = vector.broadcast %cst_8 : f32 to vector<96x1xf32>
      %19 = arith.mulf %17, %18 : vector<96x1xf32>
      %cst_9 = arith.constant 9.99999974E-6 : f32
      %20 = vector.broadcast %cst_9 : f32 to vector<96x1xf32>
      %21 = arith.addf %19, %20 : vector<96x1xf32>
      %22 = math.rsqrt %21 : vector<96x1xf32>
      %23 = arith.mulf %22, %7 : vector<96x1xf32>
      %24 = vector.broadcast %23 : vector<96x1xf32> to vector<96x49xf32>
      %25 = arith.mulf %14, %24 : vector<96x49xf32>
      %26 = vector.broadcast %8 : vector<96x1xf32> to vector<96x49xf32>
      %27 = arith.addf %25, %26 : vector<96x49xf32>
      %c0_10 = arith.constant 0 : index
      %c0_11 = arith.constant 0 : index
      %28 = vector.load %arg31[%c0_10, %c0_11] : memref<864x49xf32, #tpu.memory_space<vmem>>, vector<96x49xf32>
      tpu.vector_store %arg31[%c0_10, %c0_11], %27 {strides = array<i32>} : memref<864x49xf32, #tpu.memory_space<vmem>>, vector<96x49xf32>,
      %c96 = arith.constant 96 : index
      %c0_12 = arith.constant 0 : index
      %29 = vector.load %arg1[%c96, %c0_12] : memref<896x49xf32, #tpu.memory_space<vmem>>, vector<96x49xf32>
      %c96_13 = arith.constant 96 : index
      %c0_14 = arith.constant 0 : index
      %30 = vector.load %arg30[%c96_13, %c0_14] : memref<864x2xf32, #tpu.memory_space<vmem>>, vector<96x1xf32>
      %c96_15 = arith.constant 96 : index
      %c1_16 = arith.constant 1 : index
      %31 = vector.load %arg30[%c96_15, %c1_16] : memref<864x2xf32, #tpu.memory_space<vmem>>, vector<96x1xf32>
      %cst_17 = arith.constant dense<0.000000e+00> : vector<96xf32>
      %32 = vector.multi_reduction <add>, %29, %cst_17 [1] : vector<96x49xf32> to vector<96xf32>
      %33 = vector.shape_cast %32 : vector<96xf32> to vector<96x1xf32>
      %cst_18 = arith.constant 0.0204081628 : f32
      %34 = vector.broadcast %cst_18 : f32 to vector<96x1xf32>
      %35 = arith.mulf %33, %34 : vector<96x1xf32>
      %36 = vector.broadcast %35 : vector<96x1xf32> to vector<96x49xf32>
      %37 = arith.subf %29, %36 : vector<96x49xf32>
      %38 = arith.mulf %37, %37 : vector<96x49xf32>
      %cst_19 = arith.constant dense<0.000000e+00> : vector<96xf32>
      %39 = vector.multi_reduction <add>, %38, %cst_19 [1] : vector<96x49xf32> to vector<96xf32>
      %40 = vector.shape_cast %39 : vector<96xf32> to vector<96x1xf32>
      %cst_20 = arith.constant 0.0204081628 : f32
      %41 = vector.broadcast %cst_20 : f32 to vector<96x1xf32>
      %42 = arith.mulf %40, %41 : vector<96x1xf32>
      %cst_21 = arith.constant 9.99999974E-6 : f32
      %43 = vector.broadcast %cst_21 : f32 to vector<96x1xf32>
      %44 = arith.addf %42, %43 : vector<96x1xf32>
      %45 = math.rsqrt %44 : vector<96x1xf32>
      %46 = arith.mulf %45, %30 : vector<96x1xf32>
      %47 = vector.broadcast %46 : vector<96x1xf32> to vector<96x49xf32>
      %48 = arith.mulf %37, %47 : vector<96x49xf32>
      %49 = vector.broadcast %31 : vector<96x1xf32> to vector<96x49xf32>
      %50 = arith.addf %48, %49 : vector<96x49xf32>
      %c96_22 = arith.constant 96 : index
      %c0_23 = arith.constant 0 : index
      %51 = vector.load %arg31[%c96_22, %c0_23] : memref<864x49xf32, #tpu.memory_space<vmem>>, vector<96x49xf32>
      tpu.vector_store %arg31[%c96_22, %c0_23], %50 {strides = array<i32>} : memref<864x49xf32, #tpu.memory_space<vmem>>, vector<96x49xf32>,
      %c192 = arith.constant 192 : index
      %c0_24 = arith.constant 0 : index
      %52 = vector.load %arg1[%c192, %c0_24] : memref<896x49xf32, #tpu.memory_space<vmem>>, vector<96x49xf32>
      %c192_25 = arith.constant 192 : index
      %c0_26 = arith.constant 0 : index
      %53 = vector.load %arg30[%c192_25, %c0_26] : memref<864x2xf32, #tpu.memory_space<vmem>>, vector<96x1xf32>
      %c192_27 = arith.constant 192 : index
      %c1_28 = arith.constant 1 : index
      %54 = vector.load %arg30[%c192_27, %c1_28] : memref<864x2xf32, #tpu.memory_space<vmem>>, vector<96x1xf32>
      %cst_29 = arith.constant dense<0.000000e+00> : vector<96xf32>
      %55 = vector.multi_reduction <add>, %52, %cst_29 [1] : vector<96x49xf32> to vector<96xf32>
      %56 = vector.shape_cast %55 : vector<96xf32> to vector<96x1xf32>
      %cst_30 = arith.constant 0.0204081628 : f32
      %57 = vector.broadcast %cst_30 : f32 to vector<96x1xf32>
      %58 = arith.mulf %56, %57 : vector<96x1xf32>
      %59 = vector.broadcast %58 : vector<96x1xf32> to vector<96x49xf32>
      %60 = arith.subf %52, %59 : vector<96x49xf32>
      %61 = arith.mulf %60, %60 : vector<96x49xf32>
      %cst_31 = arith.constant dense<0.000000e+00> : vector<96xf32>
      %62 = vector.multi_reduction <add>, %61, %cst_31 [1] : vector<96x49xf32> to vector<96xf32>
      %63 = vector.shape_cast %62 : vector<96xf32> to vector<96x1xf32>
      %cst_32 = arith.constant 0.0204081628 : f32
      %64 = vector.broadcast %cst_32 : f32 to vector<96x1xf32>
      %65 = arith.mulf %63, %64 : vector<96x1xf32>
      %cst_33 = arith.constant 9.99999974E-6 : f32
      %66 = vector.broadcast %cst_33 : f32 to vector<96x1xf32>
      %67 = arith.addf %65, %66 : vector<96x1xf32>
      %68 = math.rsqrt %67 : vector<96x1xf32>
      %69 = arith.mulf %68, %53 : vector<96x1xf32>
      %70 = vector.broadcast %69 : vector<96x1xf32> to vector<96x49xf32>
      %71 = arith.mulf %60, %70 : vector<96x49xf32>
      %72 = vector.broadcast %54 : vector<96x1xf32> to vector<96x49xf32>
      %73 = arith.addf %71, %72 : vector<96x49xf32>
      %c192_34 = arith.constant 192 : index
      %c0_35 = arith.constant 0 : index
      %74 = vector.load %arg31[%c192_34, %c0_35] : memref<864x49xf32, #tpu.memory_space<vmem>>, vector<96x49xf32>
      tpu.vector_store %arg31[%c192_34, %c0_35], %73 {strides = array<i32>} : memref<864x49xf32, #tpu.memory_space<vmem>>, vector<96x49xf32>,
      %c288 = arith.constant 288 : index
      %c0_36 = arith.constant 0 : index
      %75 = vector.load %arg1[%c288, %c0_36] : memref<896x49xf32, #tpu.memory_space<vmem>>, vector<96x49xf32>
      %c288_37 = arith.constant 288 : index
      %c0_38 = arith.constant 0 : index
      %76 = vector.load %arg30[%c288_37, %c0_38] : memref<864x2xf32, #tpu.memory_space<vmem>>, vector<96x1xf32>
      %c288_39 = arith.constant 288 : index
      %c1_40 = arith.constant 1 : index
      %77 = vector.load %arg30[%c288_39, %c1_40] : memref<864x2xf32, #tpu.memory_space<vmem>>, vector<96x1xf32>
      %cst_41 = arith.constant dense<0.000000e+00> : vector<96xf32>
      %78 = vector.multi_reduction <add>, %75, %cst_41 [1] : vector<96x49xf32> to vector<96xf32>
      %79 = vector.shape_cast %78 : vector<96xf32> to vector<96x1xf32>
      %cst_42 = arith.constant 0.0204081628 : f32
      %80 = vector.broadcast %cst_42 : f32 to vector<96x1xf32>
      %81 = arith.mulf %79, %80 : vector<96x1xf32>
      %82 = vector.broadcast %81 : vector<96x1xf32> to vector<96x49xf32>
      %83 = arith.subf %75, %82 : vector<96x49xf32>
      %84 = arith.mulf %83, %83 : vector<96x49xf32>
      %cst_43 = arith.constant dense<0.000000e+00> : vector<96xf32>
      %85 = vector.multi_reduction <add>, %84, %cst_43 [1] : vector<96x49xf32> to vector<96xf32>
      %86 = vector.shape_cast %85 : vector<96xf32> to vector<96x1xf32>
      %cst_44 = arith.constant 0.0204081628 : f32
      %87 = vector.broadcast %cst_44 : f32 to vector<96x1xf32>
      %88 = arith.mulf %86, %87 : vector<96x1xf32>
      %cst_45 = arith.constant 9.99999974E-6 : f32
      %89 = vector.broadcast %cst_45 : f32 to vector<96x1xf32>
      %90 = arith.addf %88, %89 : vector<96x1xf32>
      %91 = math.rsqrt %90 : vector<96x1xf32>
      %92 = arith.mulf %91, %76 : vector<96x1xf32>
      %93 = vector.broadcast %92 : vector<96x1xf32> to vector<96x49xf32>
      %94 = arith.mulf %83, %93 : vector<96x49xf32>
      %95 = vector.broadcast %77 : vector<96x1xf32> to vector<96x49xf32>
      %96 = arith.addf %94, %95 : vector<96x49xf32>
      %c288_46 = arith.constant 288 : index
      %c0_47 = arith.constant 0 : index
      %97 = vector.load %arg31[%c288_46, %c0_47] : memref<864x49xf32, #tpu.memory_space<vmem>>, vector<96x49xf32>
      tpu.vector_store %arg31[%c288_46, %c0_47], %96 {strides = array<i32>} : memref<864x49xf32, #tpu.memory_space<vmem>>, vector<96x49xf32>,
      %c384 = arith.constant 384 : index
      %c0_48 = arith.constant 0 : index
      %98 = vector.load %arg1[%c384, %c0_48] : memref<896x49xf32, #tpu.memory_space<vmem>>, vector<96x49xf32>
      %c384_49 = arith.constant 384 : index
      %c0_50 = arith.constant 0 : index
      %99 = vector.load %arg30[%c384_49, %c0_50] : memref<864x2xf32, #tpu.memory_space<vmem>>, vector<96x1xf32>
      %c384_51 = arith.constant 384 : index
      %c1_52 = arith.constant 1 : index
      %100 = vector.load %arg30[%c384_51, %c1_52] : memref<864x2xf32, #tpu.memory_space<vmem>>, vector<96x1xf32>
      %cst_53 = arith.constant dense<0.000000e+00> : vector<96xf32>
      %101 = vector.multi_reduction <add>, %98, %cst_53 [1] : vector<96x49xf32> to vector<96xf32>
      %102 = vector.shape_cast %101 : vector<96xf32> to vector<96x1xf32>
      %cst_54 = arith.constant 0.0204081628 : f32
      %103 = vector.broadcast %cst_54 : f32 to vector<96x1xf32>
      %104 = arith.mulf %102, %103 : vector<96x1xf32>
      %105 = vector.broadcast %104 : vector<96x1xf32> to vector<96x49xf32>
      %106 = arith.subf %98, %105 : vector<96x49xf32>
      %107 = arith.mulf %106, %106 : vector<96x49xf32>
      %cst_55 = arith.constant dense<0.000000e+00> : vector<96xf32>
      %108 = vector.multi_reduction <add>, %107, %cst_55 [1] : vector<96x49xf32> to vector<96xf32>
      %109 = vector.shape_cast %108 : vector<96xf32> to vector<96x1xf32>
      %cst_56 = arith.constant 0.0204081628 : f32
      %110 = vector.broadcast %cst_56 : f32 to vector<96x1xf32>
      %111 = arith.mulf %109, %110 : vector<96x1xf32>
      %cst_57 = arith.constant 9.99999974E-6 : f32
      %112 = vector.broadcast %cst_57 : f32 to vector<96x1xf32>
      %113 = arith.addf %111, %112 : vector<96x1xf32>
      %114 = math.rsqrt %113 : vector<96x1xf32>
      %115 = arith.mulf %114, %99 : vector<96x1xf32>
      %116 = vector.broadcast %115 : vector<96x1xf32> to vector<96x49xf32>
      %117 = arith.mulf %106, %116 : vector<96x49xf32>
      %118 = vector.broadcast %100 : vector<96x1xf32> to vector<96x49xf32>
      %119 = arith.addf %117, %118 : vector<96x49xf32>
      %c384_58 = arith.constant 384 : index
      %c0_59 = arith.constant 0 : index
      %120 = vector.load %arg31[%c384_58, %c0_59] : memref<864x49xf32, #tpu.memory_space<vmem>>, vector<96x49xf32>
      tpu.vector_store %arg31[%c384_58, %c0_59], %119 {strides = array<i32>} : memref<864x49xf32, #tpu.memory_space<vmem>>, vector<96x49xf32>,
      %c480 = arith.constant 480 : index
      %c0_60 = arith.constant 0 : index
      %121 = vector.load %arg1[%c480, %c0_60] : memref<896x49xf32, #tpu.memory_space<vmem>>, vector<96x49xf32>
      %c480_61 = arith.constant 480 : index
      %c0_62 = arith.constant 0 : index
      %122 = vector.load %arg30[%c480_61, %c0_62] : memref<864x2xf32, #tpu.memory_space<vmem>>, vector<96x1xf32>
      %c480_63 = arith.constant 480 : index
      %c1_64 = arith.constant 1 : index
      %123 = vector.load %arg30[%c480_63, %c1_64] : memref<864x2xf32, #tpu.memory_space<vmem>>, vector<96x1xf32>
      %cst_65 = arith.constant dense<0.000000e+00> : vector<96xf32>
      %124 = vector.multi_reduction <add>, %121, %cst_65 [1] : vector<96x49xf32> to vector<96xf32>
      %125 = vector.shape_cast %124 : vector<96xf32> to vector<96x1xf32>
      %cst_66 = arith.constant 0.0204081628 : f32
      %126 = vector.broadcast %cst_66 : f32 to vector<96x1xf32>
      %127 = arith.mulf %125, %126 : vector<96x1xf32>
      %128 = vector.broadcast %127 : vector<96x1xf32> to vector<96x49xf32>
      %129 = arith.subf %121, %128 : vector<96x49xf32>
      %130 = arith.mulf %129, %129 : vector<96x49xf32>
      %cst_67 = arith.constant dense<0.000000e+00> : vector<96xf32>
      %131 = vector.multi_reduction <add>, %130, %cst_67 [1] : vector<96x49xf32> to vector<96xf32>
      %132 = vector.shape_cast %131 : vector<96xf32> to vector<96x1xf32>
      %cst_68 = arith.constant 0.0204081628 : f32
      %133 = vector.broadcast %cst_68 : f32 to vector<96x1xf32>
      %134 = arith.mulf %132, %133 : vector<96x1xf32>
      %cst_69 = arith.constant 9.99999974E-6 : f32
      %135 = vector.broadcast %cst_69 : f32 to vector<96x1xf32>
      %136 = arith.addf %134, %135 : vector<96x1xf32>
      %137 = math.rsqrt %136 : vector<96x1xf32>
      %138 = arith.mulf %137, %122 : vector<96x1xf32>
      %139 = vector.broadcast %138 : vector<96x1xf32> to vector<96x49xf32>
      %140 = arith.mulf %129, %139 : vector<96x49xf32>
      %141 = vector.broadcast %123 : vector<96x1xf32> to vector<96x49xf32>
      %142 = arith.addf %140, %141 : vector<96x49xf32>
      %c480_70 = arith.constant 480 : index
      %c0_71 = arith.constant 0 : index
      %143 = vector.load %arg31[%c480_70, %c0_71] : memref<864x49xf32, #tpu.memory_space<vmem>>, vector<96x49xf32>
      tpu.vector_store %arg31[%c480_70, %c0_71], %142 {strides = array<i32>} : memref<864x49xf32, #tpu.memory_space<vmem>>, vector<96x49xf32>,
      %c576 = arith.constant 576 : index
      %c0_72 = arith.constant 0 : index
      %144 = vector.load %arg1[%c576, %c0_72] : memref<896x49xf32, #tpu.memory_space<vmem>>, vector<96x49xf32>
      %c576_73 = arith.constant 576 : index
      %c0_74 = arith.constant 0 : index
      %145 = vector.load %arg30[%c576_73, %c0_74] : memref<864x2xf32, #tpu.memory_space<vmem>>, vector<96x1xf32>
      %c576_75 = arith.constant 576 : index
      %c1_76 = arith.constant 1 : index
      %146 = vector.load %arg30[%c576_75, %c1_76] : memref<864x2xf32, #tpu.memory_space<vmem>>, vector<96x1xf32>
      %cst_77 = arith.constant dense<0.000000e+00> : vector<96xf32>
      %147 = vector.multi_reduction <add>, %144, %cst_77 [1] : vector<96x49xf32> to vector<96xf32>
      %148 = vector.shape_cast %147 : vector<96xf32> to vector<96x1xf32>
      %cst_78 = arith.constant 0.0204081628 : f32
      %149 = vector.broadcast %cst_78 : f32 to vector<96x1xf32>
      %150 = arith.mulf %148, %149 : vector<96x1xf32>
      %151 = vector.broadcast %150 : vector<96x1xf32> to vector<96x49xf32>
      %152 = arith.subf %144, %151 : vector<96x49xf32>
      %153 = arith.mulf %152, %152 : vector<96x49xf32>
      %cst_79 = arith.constant dense<0.000000e+00> : vector<96xf32>
      %154 = vector.multi_reduction <add>, %153, %cst_79 [1] : vector<96x49xf32> to vector<96xf32>
      %155 = vector.shape_cast %154 : vector<96xf32> to vector<96x1xf32>
      %cst_80 = arith.constant 0.0204081628 : f32
      %156 = vector.broadcast %cst_80 : f32 to vector<96x1xf32>
      %157 = arith.mulf %155, %156 : vector<96x1xf32>
      %cst_81 = arith.constant 9.99999974E-6 : f32
      %158 = vector.broadcast %cst_81 : f32 to vector<96x1xf32>
      %159 = arith.addf %157, %158 : vector<96x1xf32>
      %160 = math.rsqrt %159 : vector<96x1xf32>
      %161 = arith.mulf %160, %145 : vector<96x1xf32>
      %162 = vector.broadcast %161 : vector<96x1xf32> to vector<96x49xf32>
      %163 = arith.mulf %152, %162 : vector<96x49xf32>
      %164 = vector.broadcast %146 : vector<96x1xf32> to vector<96x49xf32>
      %165 = arith.addf %163, %164 : vector<96x49xf32>
      %c576_82 = arith.constant 576 : index
      %c0_83 = arith.constant 0 : index
      %166 = vector.load %arg31[%c576_82, %c0_83] : memref<864x49xf32, #tpu.memory_space<vmem>>, vector<96x49xf32>
      tpu.vector_store %arg31[%c576_82, %c0_83], %165 {strides = array<i32>} : memref<864x49xf32, #tpu.memory_space<vmem>>, vector<96x49xf32>,
      %c672 = arith.constant 672 : index
      %c0_84 = arith.constant 0 : index
      %167 = vector.load %arg1[%c672, %c0_84] : memref<896x49xf32, #tpu.memory_space<vmem>>, vector<96x49xf32>
      %c672_85 = arith.constant 672 : index
      %c0_86 = arith.constant 0 : index
      %168 = vector.load %arg30[%c672_85, %c0_86] : memref<864x2xf32, #tpu.memory_space<vmem>>, vector<96x1xf32>
      %c672_87 = arith.constant 672 : index
      %c1_88 = arith.constant 1 : index
      %169 = vector.load %arg30[%c672_87, %c1_88] : memref<864x2xf32, #tpu.memory_space<vmem>>, vector<96x1xf32>
      %cst_89 = arith.constant dense<0.000000e+00> : vector<96xf32>
      %170 = vector.multi_reduction <add>, %167, %cst_89 [1] : vector<96x49xf32> to vector<96xf32>
      %171 = vector.shape_cast %170 : vector<96xf32> to vector<96x1xf32>
      %cst_90 = arith.constant 0.0204081628 : f32
      %172 = vector.broadcast %cst_90 : f32 to vector<96x1xf32>
      %173 = arith.mulf %171, %172 : vector<96x1xf32>
      %174 = vector.broadcast %173 : vector<96x1xf32> to vector<96x49xf32>
      %175 = arith.subf %167, %174 : vector<96x49xf32>
      %176 = arith.mulf %175, %175 : vector<96x49xf32>
      %cst_91 = arith.constant dense<0.000000e+00> : vector<96xf32>
      %177 = vector.multi_reduction <add>, %176, %cst_91 [1] : vector<96x49xf32> to vector<96xf32>
      %178 = vector.shape_cast %177 : vector<96xf32> to vector<96x1xf32>
      %cst_92 = arith.constant 0.0204081628 : f32
      %179 = vector.broadcast %cst_92 : f32 to vector<96x1xf32>
      %180 = arith.mulf %178, %179 : vector<96x1xf32>
      %cst_93 = arith.constant 9.99999974E-6 : f32
      %181 = vector.broadcast %cst_93 : f32 to vector<96x1xf32>
      %182 = arith.addf %180, %181 : vector<96x1xf32>
      %183 = math.rsqrt %182 : vector<96x1xf32>
      %184 = arith.mulf %183, %168 : vector<96x1xf32>
      %185 = vector.broadcast %184 : vector<96x1xf32> to vector<96x49xf32>
      %186 = arith.mulf %175, %185 : vector<96x49xf32>
      %187 = vector.broadcast %169 : vector<96x1xf32> to vector<96x49xf32>
      %188 = arith.addf %186, %187 : vector<96x49xf32>
      %c672_94 = arith.constant 672 : index
      %c0_95 = arith.constant 0 : index
      %189 = vector.load %arg31[%c672_94, %c0_95] : memref<864x49xf32, #tpu.memory_space<vmem>>, vector<96x49xf32>
      tpu.vector_store %arg31[%c672_94, %c0_95], %188 {strides = array<i32>} : memref<864x49xf32, #tpu.memory_space<vmem>>, vector<96x49xf32>,
      %c768 = arith.constant 768 : index
      %c0_96 = arith.constant 0 : index
      %190 = vector.load %arg1[%c768, %c0_96] : memref<896x49xf32, #tpu.memory_space<vmem>>, vector<96x49xf32>
      %c768_97 = arith.constant 768 : index
      %c0_98 = arith.constant 0 : index
      %191 = vector.load %arg30[%c768_97, %c0_98] : memref<864x2xf32, #tpu.memory_space<vmem>>, vector<96x1xf32>
      %c768_99 = arith.constant 768 : index
      %c1_100 = arith.constant 1 : index
      %192 = vector.load %arg30[%c768_99, %c1_100] : memref<864x2xf32, #tpu.memory_space<vmem>>, vector<96x1xf32>
      %cst_101 = arith.constant dense<0.000000e+00> : vector<96xf32>
      %193 = vector.multi_reduction <add>, %190, %cst_101 [1] : vector<96x49xf32> to vector<96xf32>
      %194 = vector.shape_cast %193 : vector<96xf32> to vector<96x1xf32>
      %cst_102 = arith.constant 0.0204081628 : f32
      %195 = vector.broadcast %cst_102 : f32 to vector<96x1xf32>
      %196 = arith.mulf %194, %195 : vector<96x1xf32>
      %197 = vector.broadcast %196 : vector<96x1xf32> to vector<96x49xf32>
      %198 = arith.subf %190, %197 : vector<96x49xf32>
      %199 = arith.mulf %198, %198 : vector<96x49xf32>
      %cst_103 = arith.constant dense<0.000000e+00> : vector<96xf32>
      %200 = vector.multi_reduction <add>, %199, %cst_103 [1] : vector<96x49xf32> to vector<96xf32>
      %201 = vector.shape_cast %200 : vector<96xf32> to vector<96x1xf32>
      %cst_104 = arith.constant 0.0204081628 : f32
      %202 = vector.broadcast %cst_104 : f32 to vector<96x1xf32>
      %203 = arith.mulf %201, %202 : vector<96x1xf32>
      %cst_105 = arith.constant 9.99999974E-6 : f32
      %204 = vector.broadcast %cst_105 : f32 to vector<96x1xf32>
      %205 = arith.addf %203, %204 : vector<96x1xf32>
      %206 = math.rsqrt %205 : vector<96x1xf32>
      %207 = arith.mulf %206, %191 : vector<96x1xf32>
      %208 = vector.broadcast %207 : vector<96x1xf32> to vector<96x49xf32>
      %209 = arith.mulf %198, %208 : vector<96x49xf32>
      %210 = vector.broadcast %192 : vector<96x1xf32> to vector<96x49xf32>
      %211 = arith.addf %209, %210 : vector<96x49xf32>
      %c768_106 = arith.constant 768 : index
      %c0_107 = arith.constant 0 : index
      %212 = vector.load %arg31[%c768_106, %c0_107] : memref<864x49xf32, #tpu.memory_space<vmem>>, vector<96x49xf32>
      tpu.vector_store %arg31[%c768_106, %c0_107], %211 {strides = array<i32>} : memref<864x49xf32, #tpu.memory_space<vmem>>, vector<96x49xf32>,
    } else {
    }
    %c1_i32 = arith.constant 1 : i32
    %3 = arith.cmpi eq, %arg0, %c1_i32 : i32
    %4 = arith.extui %3 : i1 to i32
    %c0_i32_1 = arith.constant 0 : i32
    %5 = arith.cmpi ne, %4, %c0_i32_1 : i32
    scf.if %5 {
      %c0 = arith.constant 0 : index
      %c0_2 = arith.constant 0 : index
      %6 = vector.load %arg28[%c0, %c0_2] : memref<288x128xf32, #tpu.memory_space<vmem>>, vector<288x128xf32>
      %c0_3 = arith.constant 0 : index
      %c0_4 = arith.constant 0 : index
      %7 = vector.load %arg27[%c0_3, %c0_4] : memref<128x49xf32, #tpu.memory_space<vmem>>, vector<128x49xf32>
      %cst = arith.constant dense<0.000000e+00> : vector<288x49xf32>
      %8 = tpu.matmul %6, %7, %cst {dimension_numbers = #tpu.dot_dimension_numbers<[1], [0], [0], [1], [0, 0, 1, 1], [], []>} : vector<288x128xf32>, vector<128x49xf32>, vector<288x49xf32> -> vector<288x49xf32>
      %c0_5 = arith.constant 0 : index
      %c0_6 = arith.constant 0 : index
      %9 = vector.load %arg32[%c0_5, %c0_6] : memref<288x49xf32, #tpu.memory_space<vmem>>, vector<288x49xf32>
      tpu.vector_store %arg32[%c0_5, %c0_6], %8 {strides = array<i32>} : memref<288x49xf32, #tpu.memory_space<vmem>>, vector<288x49xf32>,
      %c0_7 = arith.constant 0 : index
      %c0_8 = arith.constant 0 : index
      %10 = vector.load %arg32[%c0_7, %c0_8] : memref<288x49xf32, #tpu.memory_space<vmem>>, vector<32x49xf32>
      %c0_9 = arith.constant 0 : index
      %c0_10 = arith.constant 0 : index
      %c0_11 = arith.constant 0 : index
      %11 = vector.load %arg29[%c0_9, %c0_10, %c0_11] : memref<9x49x49xf32, #tpu.memory_space<vmem>>, vector<1x49x49xf32>
      %12 = vector.shape_cast %11 : vector<1x49x49xf32> to vector<49x49xf32>
      %cst_12 = arith.constant dense<0.000000e+00> : vector<32x49xf32>
      %13 = tpu.matmul %10, %12, %cst_12 {dimension_numbers = #tpu.dot_dimension_numbers<[1], [0], [0], [1], [0, 0, 1, 1], [], []>} : vector<32x49xf32>, vector<49x49xf32>, vector<32x49xf32> -> vector<32x49xf32>
      %c32 = arith.constant 32 : index
      %c0_13 = arith.constant 0 : index
      %14 = vector.load %arg32[%c32, %c0_13] : memref<288x49xf32, #tpu.memory_space<vmem>>, vector<32x49xf32>
      %c1 = arith.constant 1 : index
      %c0_14 = arith.constant 0 : index
      %c0_15 = arith.constant 0 : index
      %15 = vector.load %arg29[%c1, %c0_14, %c0_15] : memref<9x49x49xf32, #tpu.memory_space<vmem>>, vector<1x49x49xf32>
      %16 = vector.shape_cast %15 : vector<1x49x49xf32> to vector<49x49xf32>
      %cst_16 = arith.constant dense<0.000000e+00> : vector<32x49xf32>
      %17 = tpu.matmul %14, %16, %cst_16 {dimension_numbers = #tpu.dot_dimension_numbers<[1], [0], [0], [1], [0, 0, 1, 1], [], []>} : vector<32x49xf32>, vector<49x49xf32>, vector<32x49xf32> -> vector<32x49xf32>
      %18 = arith.addf %13, %17 : vector<32x49xf32>
      %c64 = arith.constant 64 : index
      %c0_17 = arith.constant 0 : index
      %19 = vector.load %arg32[%c64, %c0_17] : memref<288x49xf32, #tpu.memory_space<vmem>>, vector<32x49xf32>
      %c2 = arith.constant 2 : index
      %c0_18 = arith.constant 0 : index
      %c0_19 = arith.constant 0 : index
      %20 = vector.load %arg29[%c2, %c0_18, %c0_19] : memref<9x49x49xf32, #tpu.memory_space<vmem>>, vector<1x49x49xf32>
      %21 = vector.shape_cast %20 : vector<1x49x49xf32> to vector<49x49xf32>
      %cst_20 = arith.constant dense<0.000000e+00> : vector<32x49xf32>
      %22 = tpu.matmul %19, %21, %cst_20 {dimension_numbers = #tpu.dot_dimension_numbers<[1], [0], [0], [1], [0, 0, 1, 1], [], []>} : vector<32x49xf32>, vector<49x49xf32>, vector<32x49xf32> -> vector<32x49xf32>
      %23 = arith.addf %18, %22 : vector<32x49xf32>
      %c96 = arith.constant 96 : index
      %c0_21 = arith.constant 0 : index
      %24 = vector.load %arg32[%c96, %c0_21] : memref<288x49xf32, #tpu.memory_space<vmem>>, vector<32x49xf32>
      %c3 = arith.constant 3 : index
      %c0_22 = arith.constant 0 : index
      %c0_23 = arith.constant 0 : index
      %25 = vector.load %arg29[%c3, %c0_22, %c0_23] : memref<9x49x49xf32, #tpu.memory_space<vmem>>, vector<1x49x49xf32>
      %26 = vector.shape_cast %25 : vector<1x49x49xf32> to vector<49x49xf32>
      %cst_24 = arith.constant dense<0.000000e+00> : vector<32x49xf32>
      %27 = tpu.matmul %24, %26, %cst_24 {dimension_numbers = #tpu.dot_dimension_numbers<[1], [0], [0], [1], [0, 0, 1, 1], [], []>} : vector<32x49xf32>, vector<49x49xf32>, vector<32x49xf32> -> vector<32x49xf32>
      %28 = arith.addf %23, %27 : vector<32x49xf32>
      %c128 = arith.constant 128 : index
      %c0_25 = arith.constant 0 : index
      %29 = vector.load %arg32[%c128, %c0_25] : memref<288x49xf32, #tpu.memory_space<vmem>>, vector<32x49xf32>
      %c4 = arith.constant 4 : index
      %c0_26 = arith.constant 0 : index
      %c0_27 = arith.constant 0 : index
      %30 = vector.load %arg29[%c4, %c0_26, %c0_27] : memref<9x49x49xf32, #tpu.memory_space<vmem>>, vector<1x49x49xf32>
      %31 = vector.shape_cast %30 : vector<1x49x49xf32> to vector<49x49xf32>
      %cst_28 = arith.constant dense<0.000000e+00> : vector<32x49xf32>
      %32 = tpu.matmul %29, %31, %cst_28 {dimension_numbers = #tpu.dot_dimension_numbers<[1], [0], [0], [1], [0, 0, 1, 1], [], []>} : vector<32x49xf32>, vector<49x49xf32>, vector<32x49xf32> -> vector<32x49xf32>
      %33 = arith.addf %28, %32 : vector<32x49xf32>
      %c160 = arith.constant 160 : index
      %c0_29 = arith.constant 0 : index
      %34 = vector.load %arg32[%c160, %c0_29] : memref<288x49xf32, #tpu.memory_space<vmem>>, vector<32x49xf32>
      %c5 = arith.constant 5 : index
      %c0_30 = arith.constant 0 : index
      %c0_31 = arith.constant 0 : index
      %35 = vector.load %arg29[%c5, %c0_30, %c0_31] : memref<9x49x49xf32, #tpu.memory_space<vmem>>, vector<1x49x49xf32>
      %36 = vector.shape_cast %35 : vector<1x49x49xf32> to vector<49x49xf32>
      %cst_32 = arith.constant dense<0.000000e+00> : vector<32x49xf32>
      %37 = tpu.matmul %34, %36, %cst_32 {dimension_numbers = #tpu.dot_dimension_numbers<[1], [0], [0], [1], [0, 0, 1, 1], [], []>} : vector<32x49xf32>, vector<49x49xf32>, vector<32x49xf32> -> vector<32x49xf32>
      %38 = arith.addf %33, %37 : vector<32x49xf32>
      %c192 = arith.constant 192 : index
      %c0_33 = arith.constant 0 : index
      %39 = vector.load %arg32[%c192, %c0_33] : memref<288x49xf32, #tpu.memory_space<vmem>>, vector<32x49xf32>
      %c6 = arith.constant 6 : index
      %c0_34 = arith.constant 0 : index
      %c0_35 = arith.constant 0 : index
      %40 = vector.load %arg29[%c6, %c0_34, %c0_35] : memref<9x49x49xf32, #tpu.memory_space<vmem>>, vector<1x49x49xf32>
      %41 = vector.shape_cast %40 : vector<1x49x49xf32> to vector<49x49xf32>
      %cst_36 = arith.constant dense<0.000000e+00> : vector<32x49xf32>
      %42 = tpu.matmul %39, %41, %cst_36 {dimension_numbers = #tpu.dot_dimension_numbers<[1], [0], [0], [1], [0, 0, 1, 1], [], []>} : vector<32x49xf32>, vector<49x49xf32>, vector<32x49xf32> -> vector<32x49xf32>
      %43 = arith.addf %38, %42 : vector<32x49xf32>
      %c224 = arith.constant 224 : index
      %c0_37 = arith.constant 0 : index
      %44 = vector.load %arg32[%c224, %c0_37] : memref<288x49xf32, #tpu.memory_space<vmem>>, vector<32x49xf32>
      %c7 = arith.constant 7 : index
      %c0_38 = arith.constant 0 : index
      %c0_39 = arith.constant 0 : index
      %45 = vector.load %arg29[%c7, %c0_38, %c0_39] : memref<9x49x49xf32, #tpu.memory_space<vmem>>, vector<1x49x49xf32>
      %46 = vector.shape_cast %45 : vector<1x49x49xf32> to vector<49x49xf32>
      %cst_40 = arith.constant dense<0.000000e+00> : vector<32x49xf32>
      %47 = tpu.matmul %44, %46, %cst_40 {dimension_numbers = #tpu.dot_dimension_numbers<[1], [0], [0], [1], [0, 0, 1, 1], [], []>} : vector<32x49xf32>, vector<49x49xf32>, vector<32x49xf32> -> vector<32x49xf32>
      %48 = arith.addf %43, %47 : vector<32x49xf32>
      %c256 = arith.constant 256 : index
      %c0_41 = arith.constant 0 : index
      %49 = vector.load %arg32[%c256, %c0_41] : memref<288x49xf32, #tpu.memory_space<vmem>>, vector<32x49xf32>
      %c8 = arith.constant 8 : index
      %c0_42 = arith.constant 0 : index
      %c0_43 = arith.constant 0 : index
      %50 = vector.load %arg29[%c8, %c0_42, %c0_43] : memref<9x49x49xf32, #tpu.memory_space<vmem>>, vector<1x49x49xf32>
      %51 = vector.shape_cast %50 : vector<1x49x49xf32> to vector<49x49xf32>
      %cst_44 = arith.constant dense<0.000000e+00> : vector<32x49xf32>
      %52 = tpu.matmul %49, %51, %cst_44 {dimension_numbers = #tpu.dot_dimension_numbers<[1], [0], [0], [1], [0, 0, 1, 1], [], []>} : vector<32x49xf32>, vector<49x49xf32>, vector<32x49xf32> -> vector<32x49xf32>
      %53 = arith.addf %48, %52 : vector<32x49xf32>
      %c864 = arith.constant 864 : index
      %c0_45 = arith.constant 0 : index
      %54 = vector.load %arg1[%c864, %c0_45] : memref<896x49xf32, #tpu.memory_space<vmem>>, vector<32x49xf32>
      %c0_46 = arith.constant 0 : index
      %c0_47 = arith.constant 0 : index
      %55 = vector.load %arg30[%c0_46, %c0_47] : memref<864x2xf32, #tpu.memory_space<vmem>>, vector<32x1xf32>
      %c0_48 = arith.constant 0 : index
      %c1_49 = arith.constant 1 : index
      %56 = vector.load %arg30[%c0_48, %c1_49] : memref<864x2xf32, #tpu.memory_space<vmem>>, vector<32x1xf32>
      %cst_50 = arith.constant dense<0.000000e+00> : vector<32xf32>
      %57 = vector.multi_reduction <add>, %54, %cst_50 [1] : vector<32x49xf32> to vector<32xf32>
      %58 = vector.shape_cast %57 : vector<32xf32> to vector<32x1xf32>
      %cst_51 = arith.constant 0.0204081628 : f32
      %59 = vector.broadcast %cst_51 : f32 to vector<32x1xf32>
      %60 = arith.mulf %58, %59 : vector<32x1xf32>
      %61 = vector.broadcast %60 : vector<32x1xf32> to vector<32x49xf32>
      %62 = arith.subf %54, %61 : vector<32x49xf32>
      %63 = arith.mulf %62, %62 : vector<32x49xf32>
      %cst_52 = arith.constant dense<0.000000e+00> : vector<32xf32>
      %64 = vector.multi_reduction <add>, %63, %cst_52 [1] : vector<32x49xf32> to vector<32xf32>
      %65 = vector.shape_cast %64 : vector<32xf32> to vector<32x1xf32>
      %cst_53 = arith.constant 0.0204081628 : f32
      %66 = vector.broadcast %cst_53 : f32 to vector<32x1xf32>
      %67 = arith.mulf %65, %66 : vector<32x1xf32>
      %cst_54 = arith.constant 9.99999974E-6 : f32
      %68 = vector.broadcast %cst_54 : f32 to vector<32x1xf32>
      %69 = arith.addf %67, %68 : vector<32x1xf32>
      %70 = math.rsqrt %69 : vector<32x1xf32>
      %71 = arith.mulf %70, %55 : vector<32x1xf32>
      %72 = vector.broadcast %71 : vector<32x1xf32> to vector<32x49xf32>
      %73 = arith.mulf %62, %72 : vector<32x49xf32>
      %74 = vector.broadcast %56 : vector<32x1xf32> to vector<32x49xf32>
      %75 = arith.addf %73, %74 : vector<32x49xf32>
      %c0_55 = arith.constant 0 : index
      %c0_56 = arith.constant 0 : index
      %76 = vector.load %arg31[%c0_55, %c0_56] : memref<864x49xf32, #tpu.memory_space<vmem>>, vector<32x49xf32>
      tpu.vector_store %arg31[%c0_55, %c0_56], %75 {strides = array<i32>} : memref<864x49xf32, #tpu.memory_space<vmem>>, vector<32x49xf32>,
      %c0_57 = arith.constant 0 : index
      %c0_58 = arith.constant 0 : index
      %77 = vector.load %arg2[%c0_57, %c0_58] : memref<32x49xf32, #tpu.memory_space<vmem>>, vector<32x49xf32>
      %c32_59 = arith.constant 32 : index
      %c0_60 = arith.constant 0 : index
      %78 = vector.load %arg30[%c32_59, %c0_60] : memref<864x2xf32, #tpu.memory_space<vmem>>, vector<32x1xf32>
      %c32_61 = arith.constant 32 : index
      %c1_62 = arith.constant 1 : index
      %79 = vector.load %arg30[%c32_61, %c1_62] : memref<864x2xf32, #tpu.memory_space<vmem>>, vector<32x1xf32>
      %cst_63 = arith.constant dense<0.000000e+00> : vector<32xf32>
      %80 = vector.multi_reduction <add>, %77, %cst_63 [1] : vector<32x49xf32> to vector<32xf32>
      %81 = vector.shape_cast %80 : vector<32xf32> to vector<32x1xf32>
      %cst_64 = arith.constant 0.0204081628 : f32
      %82 = vector.broadcast %cst_64 : f32 to vector<32x1xf32>
      %83 = arith.mulf %81, %82 : vector<32x1xf32>
      %84 = vector.broadcast %83 : vector<32x1xf32> to vector<32x49xf32>
      %85 = arith.subf %77, %84 : vector<32x49xf32>
      %86 = arith.mulf %85, %85 : vector<32x49xf32>
      %cst_65 = arith.constant dense<0.000000e+00> : vector<32xf32>
      %87 = vector.multi_reduction <add>, %86, %cst_65 [1] : vector<32x49xf32> to vector<32xf32>
      %88 = vector.shape_cast %87 : vector<32xf32> to vector<32x1xf32>
      %cst_66 = arith.constant 0.0204081628 : f32
      %89 = vector.broadcast %cst_66 : f32 to vector<32x1xf32>
      %90 = arith.mulf %88, %89 : vector<32x1xf32>
      %cst_67 = arith.constant 9.99999974E-6 : f32
      %91 = vector.broadcast %cst_67 : f32 to vector<32x1xf32>
      %92 = arith.addf %90, %91 : vector<32x1xf32>
      %93 = math.rsqrt %92 : vector<32x1xf32>
      %94 = arith.mulf %93, %78 : vector<32x1xf32>
      %95 = vector.broadcast %94 : vector<32x1xf32> to vector<32x49xf32>
      %96 = arith.mulf %85, %95 : vector<32x49xf32>
      %97 = vector.broadcast %79 : vector<32x1xf32> to vector<32x49xf32>
      %98 = arith.addf %96, %97 : vector<32x49xf32>
      %c32_68 = arith.constant 32 : index
      %c0_69 = arith.constant 0 : index
      %99 = vector.load %arg31[%c32_68, %c0_69] : memref<864x49xf32, #tpu.memory_space<vmem>>, vector<32x49xf32>
      tpu.vector_store %arg31[%c32_68, %c0_69], %98 {strides = array<i32>} : memref<864x49xf32, #tpu.memory_space<vmem>>, vector<32x49xf32>,
      %c0_70 = arith.constant 0 : index
      %c0_71 = arith.constant 0 : index
      %100 = vector.load %arg3[%c0_70, %c0_71] : memref<32x49xf32, #tpu.memory_space<vmem>>, vector<32x49xf32>
      %c64_72 = arith.constant 64 : index
      %c0_73 = arith.constant 0 : index
      %101 = vector.load %arg30[%c64_72, %c0_73] : memref<864x2xf32, #tpu.memory_space<vmem>>, vector<32x1xf32>
      %c64_74 = arith.constant 64 : index
      %c1_75 = arith.constant 1 : index
      %102 = vector.load %arg30[%c64_74, %c1_75] : memref<864x2xf32, #tpu.memory_space<vmem>>, vector<32x1xf32>
      %cst_76 = arith.constant dense<0.000000e+00> : vector<32xf32>
      %103 = vector.multi_reduction <add>, %100, %cst_76 [1] : vector<32x49xf32> to vector<32xf32>
      %104 = vector.shape_cast %103 : vector<32xf32> to vector<32x1xf32>
      %cst_77 = arith.constant 0.0204081628 : f32
      %105 = vector.broadcast %cst_77 : f32 to vector<32x1xf32>
      %106 = arith.mulf %104, %105 : vector<32x1xf32>
      %107 = vector.broadcast %106 : vector<32x1xf32> to vector<32x49xf32>
      %108 = arith.subf %100, %107 : vector<32x49xf32>
      %109 = arith.mulf %108, %108 : vector<32x49xf32>
      %cst_78 = arith.constant dense<0.000000e+00> : vector<32xf32>
      %110 = vector.multi_reduction <add>, %109, %cst_78 [1] : vector<32x49xf32> to vector<32xf32>
      %111 = vector.shape_cast %110 : vector<32xf32> to vector<32x1xf32>
      %cst_79 = arith.constant 0.0204081628 : f32
      %112 = vector.broadcast %cst_79 : f32 to vector<32x1xf32>
      %113 = arith.mulf %111, %112 : vector<32x1xf32>
      %cst_80 = arith.constant 9.99999974E-6 : f32
      %114 = vector.broadcast %cst_80 : f32 to vector<32x1xf32>
      %115 = arith.addf %113, %114 : vector<32x1xf32>
      %116 = math.rsqrt %115 : vector<32x1xf32>
      %117 = arith.mulf %116, %101 : vector<32x1xf32>
      %118 = vector.broadcast %117 : vector<32x1xf32> to vector<32x49xf32>
      %119 = arith.mulf %108, %118 : vector<32x49xf32>
      %120 = vector.broadcast %102 : vector<32x1xf32> to vector<32x49xf32>
      %121 = arith.addf %119, %120 : vector<32x49xf32>
      %c64_81 = arith.constant 64 : index
      %c0_82 = arith.constant 0 : index
      %122 = vector.load %arg31[%c64_81, %c0_82] : memref<864x49xf32, #tpu.memory_space<vmem>>, vector<32x49xf32>
      tpu.vector_store %arg31[%c64_81, %c0_82], %121 {strides = array<i32>} : memref<864x49xf32, #tpu.memory_space<vmem>>, vector<32x49xf32>,
      %c0_83 = arith.constant 0 : index
      %c0_84 = arith.constant 0 : index
      %123 = vector.load %arg4[%c0_83, %c0_84] : memref<32x49xf32, #tpu.memory_space<vmem>>, vector<32x49xf32>
      %c96_85 = arith.constant 96 : index
      %c0_86 = arith.constant 0 : index
      %124 = vector.load %arg30[%c96_85, %c0_86] : memref<864x2xf32, #tpu.memory_space<vmem>>, vector<32x1xf32>
      %c96_87 = arith.constant 96 : index
      %c1_88 = arith.constant 1 : index
      %125 = vector.load %arg30[%c96_87, %c1_88] : memref<864x2xf32, #tpu.memory_space<vmem>>, vector<32x1xf32>
      %cst_89 = arith.constant dense<0.000000e+00> : vector<32xf32>
      %126 = vector.multi_reduction <add>, %123, %cst_89 [1] : vector<32x49xf32> to vector<32xf32>
      %127 = vector.shape_cast %126 : vector<32xf32> to vector<32x1xf32>
      %cst_90 = arith.constant 0.0204081628 : f32
      %128 = vector.broadcast %cst_90 : f32 to vector<32x1xf32>
      %129 = arith.mulf %127, %128 : vector<32x1xf32>
      %130 = vector.broadcast %129 : vector<32x1xf32> to vector<32x49xf32>
      %131 = arith.subf %123, %130 : vector<32x49xf32>
      %132 = arith.mulf %131, %131 : vector<32x49xf32>
      %cst_91 = arith.constant dense<0.000000e+00> : vector<32xf32>
      %133 = vector.multi_reduction <add>, %132, %cst_91 [1] : vector<32x49xf32> to vector<32xf32>
      %134 = vector.shape_cast %133 : vector<32xf32> to vector<32x1xf32>
      %cst_92 = arith.constant 0.0204081628 : f32
      %135 = vector.broadcast %cst_92 : f32 to vector<32x1xf32>
      %136 = arith.mulf %134, %135 : vector<32x1xf32>
      %cst_93 = arith.constant 9.99999974E-6 : f32
      %137 = vector.broadcast %cst_93 : f32 to vector<32x1xf32>
      %138 = arith.addf %136, %137 : vector<32x1xf32>
      %139 = math.rsqrt %138 : vector<32x1xf32>
      %140 = arith.mulf %139, %124 : vector<32x1xf32>
      %141 = vector.broadcast %140 : vector<32x1xf32> to vector<32x49xf32>
      %142 = arith.mulf %131, %141 : vector<32x49xf32>
      %143 = vector.broadcast %125 : vector<32x1xf32> to vector<32x49xf32>
      %144 = arith.addf %142, %143 : vector<32x49xf32>
      %c96_94 = arith.constant 96 : index
      %c0_95 = arith.constant 0 : index
      %145 = vector.load %arg31[%c96_94, %c0_95] : memref<864x49xf32, #tpu.memory_space<vmem>>, vector<32x49xf32>
      tpu.vector_store %arg31[%c96_94, %c0_95], %144 {strides = array<i32>} : memref<864x49xf32, #tpu.memory_space<vmem>>, vector<32x49xf32>,
      %c0_96 = arith.constant 0 : index
      %c0_97 = arith.constant 0 : index
      %146 = vector.load %arg5[%c0_96, %c0_97] : memref<32x49xf32, #tpu.memory_space<vmem>>, vector<32x49xf32>
      %c128_98 = arith.constant 128 : index
      %c0_99 = arith.constant 0 : index
      %147 = vector.load %arg30[%c128_98, %c0_99] : memref<864x2xf32, #tpu.memory_space<vmem>>, vector<32x1xf32>
      %c128_100 = arith.constant 128 : index
      %c1_101 = arith.constant 1 : index
      %148 = vector.load %arg30[%c128_100, %c1_101] : memref<864x2xf32, #tpu.memory_space<vmem>>, vector<32x1xf32>
      %cst_102 = arith.constant dense<0.000000e+00> : vector<32xf32>
      %149 = vector.multi_reduction <add>, %146, %cst_102 [1] : vector<32x49xf32> to vector<32xf32>
      %150 = vector.shape_cast %149 : vector<32xf32> to vector<32x1xf32>
      %cst_103 = arith.constant 0.0204081628 : f32
      %151 = vector.broadcast %cst_103 : f32 to vector<32x1xf32>
      %152 = arith.mulf %150, %151 : vector<32x1xf32>
      %153 = vector.broadcast %152 : vector<32x1xf32> to vector<32x49xf32>
      %154 = arith.subf %146, %153 : vector<32x49xf32>
      %155 = arith.mulf %154, %154 : vector<32x49xf32>
      %cst_104 = arith.constant dense<0.000000e+00> : vector<32xf32>
      %156 = vector.multi_reduction <add>, %155, %cst_104 [1] : vector<32x49xf32> to vector<32xf32>
      %157 = vector.shape_cast %156 : vector<32xf32> to vector<32x1xf32>
      %cst_105 = arith.constant 0.0204081628 : f32
      %158 = vector.broadcast %cst_105 : f32 to vector<32x1xf32>
      %159 = arith.mulf %157, %158 : vector<32x1xf32>
      %cst_106 = arith.constant 9.99999974E-6 : f32
      %160 = vector.broadcast %cst_106 : f32 to vector<32x1xf32>
      %161 = arith.addf %159, %160 : vector<32x1xf32>
      %162 = math.rsqrt %161 : vector<32x1xf32>
      %163 = arith.mulf %162, %147 : vector<32x1xf32>
      %164 = vector.broadcast %163 : vector<32x1xf32> to vector<32x49xf32>
      %165 = arith.mulf %154, %164 : vector<32x49xf32>
      %166 = vector.broadcast %148 : vector<32x1xf32> to vector<32x49xf32>
      %167 = arith.addf %165, %166 : vector<32x49xf32>
      %c128_107 = arith.constant 128 : index
      %c0_108 = arith.constant 0 : index
      %168 = vector.load %arg31[%c128_107, %c0_108] : memref<864x49xf32, #tpu.memory_space<vmem>>, vector<32x49xf32>
      tpu.vector_store %arg31[%c128_107, %c0_108], %167 {strides = array<i32>} : memref<864x49xf32, #tpu.memory_space<vmem>>, vector<32x49xf32>,
      %c0_109 = arith.constant 0 : index
      %c0_110 = arith.constant 0 : index
      %169 = vector.load %arg6[%c0_109, %c0_110] : memref<32x49xf32, #tpu.memory_space<vmem>>, vector<32x49xf32>
      %c160_111 = arith.constant 160 : index
      %c0_112 = arith.constant 0 : index
      %170 = vector.load %arg30[%c160_111, %c0_112] : memref<864x2xf32, #tpu.memory_space<vmem>>, vector<32x1xf32>
      %c160_113 = arith.constant 160 : index
      %c1_114 = arith.constant 1 : index
      %171 = vector.load %arg30[%c160_113, %c1_114] : memref<864x2xf32, #tpu.memory_space<vmem>>, vector<32x1xf32>
      %cst_115 = arith.constant dense<0.000000e+00> : vector<32xf32>
      %172 = vector.multi_reduction <add>, %169, %cst_115 [1] : vector<32x49xf32> to vector<32xf32>
      %173 = vector.shape_cast %172 : vector<32xf32> to vector<32x1xf32>
      %cst_116 = arith.constant 0.0204081628 : f32
      %174 = vector.broadcast %cst_116 : f32 to vector<32x1xf32>
      %175 = arith.mulf %173, %174 : vector<32x1xf32>
      %176 = vector.broadcast %175 : vector<32x1xf32> to vector<32x49xf32>
      %177 = arith.subf %169, %176 : vector<32x49xf32>
      %178 = arith.mulf %177, %177 : vector<32x49xf32>
      %cst_117 = arith.constant dense<0.000000e+00> : vector<32xf32>
      %179 = vector.multi_reduction <add>, %178, %cst_117 [1] : vector<32x49xf32> to vector<32xf32>
      %180 = vector.shape_cast %179 : vector<32xf32> to vector<32x1xf32>
      %cst_118 = arith.constant 0.0204081628 : f32
      %181 = vector.broadcast %cst_118 : f32 to vector<32x1xf32>
      %182 = arith.mulf %180, %181 : vector<32x1xf32>
      %cst_119 = arith.constant 9.99999974E-6 : f32
      %183 = vector.broadcast %cst_119 : f32 to vector<32x1xf32>
      %184 = arith.addf %182, %183 : vector<32x1xf32>
      %185 = math.rsqrt %184 : vector<32x1xf32>
      %186 = arith.mulf %185, %170 : vector<32x1xf32>
      %187 = vector.broadcast %186 : vector<32x1xf32> to vector<32x49xf32>
      %188 = arith.mulf %177, %187 : vector<32x49xf32>
      %189 = vector.broadcast %171 : vector<32x1xf32> to vector<32x49xf32>
      %190 = arith.addf %188, %189 : vector<32x49xf32>
      %c160_120 = arith.constant 160 : index
      %c0_121 = arith.constant 0 : index
      %191 = vector.load %arg31[%c160_120, %c0_121] : memref<864x49xf32, #tpu.memory_space<vmem>>, vector<32x49xf32>
      tpu.vector_store %arg31[%c160_120, %c0_121], %190 {strides = array<i32>} : memref<864x49xf32, #tpu.memory_space<vmem>>, vector<32x49xf32>,
      %c0_122 = arith.constant 0 : index
      %c0_123 = arith.constant 0 : index
      %192 = vector.load %arg7[%c0_122, %c0_123] : memref<32x49xf32, #tpu.memory_space<vmem>>, vector<32x49xf32>
      %c192_124 = arith.constant 192 : index
      %c0_125 = arith.constant 0 : index
      %193 = vector.load %arg30[%c192_124, %c0_125] : memref<864x2xf32, #tpu.memory_space<vmem>>, vector<32x1xf32>
      %c192_126 = arith.constant 192 : index
      %c1_127 = arith.constant 1 : index
      %194 = vector.load %arg30[%c192_126, %c1_127] : memref<864x2xf32, #tpu.memory_space<vmem>>, vector<32x1xf32>
      %cst_128 = arith.constant dense<0.000000e+00> : vector<32xf32>
      %195 = vector.multi_reduction <add>, %192, %cst_128 [1] : vector<32x49xf32> to vector<32xf32>
      %196 = vector.shape_cast %195 : vector<32xf32> to vector<32x1xf32>
      %cst_129 = arith.constant 0.0204081628 : f32
      %197 = vector.broadcast %cst_129 : f32 to vector<32x1xf32>
      %198 = arith.mulf %196, %197 : vector<32x1xf32>
      %199 = vector.broadcast %198 : vector<32x1xf32> to vector<32x49xf32>
      %200 = arith.subf %192, %199 : vector<32x49xf32>
      %201 = arith.mulf %200, %200 : vector<32x49xf32>
      %cst_130 = arith.constant dense<0.000000e+00> : vector<32xf32>
      %202 = vector.multi_reduction <add>, %201, %cst_130 [1] : vector<32x49xf32> to vector<32xf32>
      %203 = vector.shape_cast %202 : vector<32xf32> to vector<32x1xf32>
      %cst_131 = arith.constant 0.0204081628 : f32
      %204 = vector.broadcast %cst_131 : f32 to vector<32x1xf32>
      %205 = arith.mulf %203, %204 : vector<32x1xf32>
      %cst_132 = arith.constant 9.99999974E-6 : f32
      %206 = vector.broadcast %cst_132 : f32 to vector<32x1xf32>
      %207 = arith.addf %205, %206 : vector<32x1xf32>
      %208 = math.rsqrt %207 : vector<32x1xf32>
      %209 = arith.mulf %208, %193 : vector<32x1xf32>
      %210 = vector.broadcast %209 : vector<32x1xf32> to vector<32x49xf32>
      %211 = arith.mulf %200, %210 : vector<32x49xf32>
      %212 = vector.broadcast %194 : vector<32x1xf32> to vector<32x49xf32>
      %213 = arith.addf %211, %212 : vector<32x49xf32>
      %c192_133 = arith.constant 192 : index
      %c0_134 = arith.constant 0 : index
      %214 = vector.load %arg31[%c192_133, %c0_134] : memref<864x49xf32, #tpu.memory_space<vmem>>, vector<32x49xf32>
      tpu.vector_store %arg31[%c192_133, %c0_134], %213 {strides = array<i32>} : memref<864x49xf32, #tpu.memory_space<vmem>>, vector<32x49xf32>,
      %c0_135 = arith.constant 0 : index
      %c0_136 = arith.constant 0 : index
      %215 = vector.load %arg8[%c0_135, %c0_136] : memref<32x49xf32, #tpu.memory_space<vmem>>, vector<32x49xf32>
      %c224_137 = arith.constant 224 : index
      %c0_138 = arith.constant 0 : index
      %216 = vector.load %arg30[%c224_137, %c0_138] : memref<864x2xf32, #tpu.memory_space<vmem>>, vector<32x1xf32>
      %c224_139 = arith.constant 224 : index
      %c1_140 = arith.constant 1 : index
      %217 = vector.load %arg30[%c224_139, %c1_140] : memref<864x2xf32, #tpu.memory_space<vmem>>, vector<32x1xf32>
      %cst_141 = arith.constant dense<0.000000e+00> : vector<32xf32>
      %218 = vector.multi_reduction <add>, %215, %cst_141 [1] : vector<32x49xf32> to vector<32xf32>
      %219 = vector.shape_cast %218 : vector<32xf32> to vector<32x1xf32>
      %cst_142 = arith.constant 0.0204081628 : f32
      %220 = vector.broadcast %cst_142 : f32 to vector<32x1xf32>
      %221 = arith.mulf %219, %220 : vector<32x1xf32>
      %222 = vector.broadcast %221 : vector<32x1xf32> to vector<32x49xf32>
      %223 = arith.subf %215, %222 : vector<32x49xf32>
      %224 = arith.mulf %223, %223 : vector<32x49xf32>
      %cst_143 = arith.constant dense<0.000000e+00> : vector<32xf32>
      %225 = vector.multi_reduction <add>, %224, %cst_143 [1] : vector<32x49xf32> to vector<32xf32>
      %226 = vector.shape_cast %225 : vector<32xf32> to vector<32x1xf32>
      %cst_144 = arith.constant 0.0204081628 : f32
      %227 = vector.broadcast %cst_144 : f32 to vector<32x1xf32>
      %228 = arith.mulf %226, %227 : vector<32x1xf32>
      %cst_145 = arith.constant 9.99999974E-6 : f32
      %229 = vector.broadcast %cst_145 : f32 to vector<32x1xf32>
      %230 = arith.addf %228, %229 : vector<32x1xf32>
      %231 = math.rsqrt %230 : vector<32x1xf32>
      %232 = arith.mulf %231, %216 : vector<32x1xf32>
      %233 = vector.broadcast %232 : vector<32x1xf32> to vector<32x49xf32>
      %234 = arith.mulf %223, %233 : vector<32x49xf32>
      %235 = vector.broadcast %217 : vector<32x1xf32> to vector<32x49xf32>
      %236 = arith.addf %234, %235 : vector<32x49xf32>
      %c224_146 = arith.constant 224 : index
      %c0_147 = arith.constant 0 : index
      %237 = vector.load %arg31[%c224_146, %c0_147] : memref<864x49xf32, #tpu.memory_space<vmem>>, vector<32x49xf32>
      tpu.vector_store %arg31[%c224_146, %c0_147], %236 {strides = array<i32>} : memref<864x49xf32, #tpu.memory_space<vmem>>, vector<32x49xf32>,
      %c0_148 = arith.constant 0 : index
      %c0_149 = arith.constant 0 : index
      %238 = vector.load %arg9[%c0_148, %c0_149] : memref<32x49xf32, #tpu.memory_space<vmem>>, vector<32x49xf32>
      %c256_150 = arith.constant 256 : index
      %c0_151 = arith.constant 0 : index
      %239 = vector.load %arg30[%c256_150, %c0_151] : memref<864x2xf32, #tpu.memory_space<vmem>>, vector<32x1xf32>
      %c256_152 = arith.constant 256 : index
      %c1_153 = arith.constant 1 : index
      %240 = vector.load %arg30[%c256_152, %c1_153] : memref<864x2xf32, #tpu.memory_space<vmem>>, vector<32x1xf32>
      %cst_154 = arith.constant dense<0.000000e+00> : vector<32xf32>
      %241 = vector.multi_reduction <add>, %238, %cst_154 [1] : vector<32x49xf32> to vector<32xf32>
      %242 = vector.shape_cast %241 : vector<32xf32> to vector<32x1xf32>
      %cst_155 = arith.constant 0.0204081628 : f32
      %243 = vector.broadcast %cst_155 : f32 to vector<32x1xf32>
      %244 = arith.mulf %242, %243 : vector<32x1xf32>
      %245 = vector.broadcast %244 : vector<32x1xf32> to vector<32x49xf32>
      %246 = arith.subf %238, %245 : vector<32x49xf32>
      %247 = arith.mulf %246, %246 : vector<32x49xf32>
      %cst_156 = arith.constant dense<0.000000e+00> : vector<32xf32>
      %248 = vector.multi_reduction <add>, %247, %cst_156 [1] : vector<32x49xf32> to vector<32xf32>
      %249 = vector.shape_cast %248 : vector<32xf32> to vector<32x1xf32>
      %cst_157 = arith.constant 0.0204081628 : f32
      %250 = vector.broadcast %cst_157 : f32 to vector<32x1xf32>
      %251 = arith.mulf %249, %250 : vector<32x1xf32>
      %cst_158 = arith.constant 9.99999974E-6 : f32
      %252 = vector.broadcast %cst_158 : f32 to vector<32x1xf32>
      %253 = arith.addf %251, %252 : vector<32x1xf32>
      %254 = math.rsqrt %253 : vector<32x1xf32>
      %255 = arith.mulf %254, %239 : vector<32x1xf32>
      %256 = vector.broadcast %255 : vector<32x1xf32> to vector<32x49xf32>
      %257 = arith.mulf %246, %256 : vector<32x49xf32>
      %258 = vector.broadcast %240 : vector<32x1xf32> to vector<32x49xf32>
      %259 = arith.addf %257, %258 : vector<32x49xf32>
      %c256_159 = arith.constant 256 : index
      %c0_160 = arith.constant 0 : index
      %260 = vector.load %arg31[%c256_159, %c0_160] : memref<864x49xf32, #tpu.memory_space<vmem>>, vector<32x49xf32>
      tpu.vector_store %arg31[%c256_159, %c0_160], %259 {strides = array<i32>} : memref<864x49xf32, #tpu.memory_space<vmem>>, vector<32x49xf32>,
      %c0_161 = arith.constant 0 : index
      %c0_162 = arith.constant 0 : index
      %261 = vector.load %arg10[%c0_161, %c0_162] : memref<32x49xf32, #tpu.memory_space<vmem>>, vector<32x49xf32>
      %c288 = arith.constant 288 : index
      %c0_163 = arith.constant 0 : index
      %262 = vector.load %arg30[%c288, %c0_163] : memref<864x2xf32, #tpu.memory_space<vmem>>, vector<32x1xf32>
      %c288_164 = arith.constant 288 : index
      %c1_165 = arith.constant 1 : index
      %263 = vector.load %arg30[%c288_164, %c1_165] : memref<864x2xf32, #tpu.memory_space<vmem>>, vector<32x1xf32>
      %cst_166 = arith.constant dense<0.000000e+00> : vector<32xf32>
      %264 = vector.multi_reduction <add>, %261, %cst_166 [1] : vector<32x49xf32> to vector<32xf32>
      %265 = vector.shape_cast %264 : vector<32xf32> to vector<32x1xf32>
      %cst_167 = arith.constant 0.0204081628 : f32
      %266 = vector.broadcast %cst_167 : f32 to vector<32x1xf32>
      %267 = arith.mulf %265, %266 : vector<32x1xf32>
      %268 = vector.broadcast %267 : vector<32x1xf32> to vector<32x49xf32>
      %269 = arith.subf %261, %268 : vector<32x49xf32>
      %270 = arith.mulf %269, %269 : vector<32x49xf32>
      %cst_168 = arith.constant dense<0.000000e+00> : vector<32xf32>
      %271 = vector.multi_reduction <add>, %270, %cst_168 [1] : vector<32x49xf32> to vector<32xf32>
      %272 = vector.shape_cast %271 : vector<32xf32> to vector<32x1xf32>
      %cst_169 = arith.constant 0.0204081628 : f32
      %273 = vector.broadcast %cst_169 : f32 to vector<32x1xf32>
      %274 = arith.mulf %272, %273 : vector<32x1xf32>
      %cst_170 = arith.constant 9.99999974E-6 : f32
      %275 = vector.broadcast %cst_170 : f32 to vector<32x1xf32>
      %276 = arith.addf %274, %275 : vector<32x1xf32>
      %277 = math.rsqrt %276 : vector<32x1xf32>
      %278 = arith.mulf %277, %262 : vector<32x1xf32>
      %279 = vector.broadcast %278 : vector<32x1xf32> to vector<32x49xf32>
      %280 = arith.mulf %269, %279 : vector<32x49xf32>
      %281 = vector.broadcast %263 : vector<32x1xf32> to vector<32x49xf32>
      %282 = arith.addf %280, %281 : vector<32x49xf32>
      %c288_171 = arith.constant 288 : index
      %c0_172 = arith.constant 0 : index
      %283 = vector.load %arg31[%c288_171, %c0_172] : memref<864x49xf32, #tpu.memory_space<vmem>>, vector<32x49xf32>
      tpu.vector_store %arg31[%c288_171, %c0_172], %282 {strides = array<i32>} : memref<864x49xf32, #tpu.memory_space<vmem>>, vector<32x49xf32>,
      %c0_173 = arith.constant 0 : index
      %c0_174 = arith.constant 0 : index
      %284 = vector.load %arg11[%c0_173, %c0_174] : memref<32x49xf32, #tpu.memory_space<vmem>>, vector<32x49xf32>
      %c320 = arith.constant 320 : index
      %c0_175 = arith.constant 0 : index
      %285 = vector.load %arg30[%c320, %c0_175] : memref<864x2xf32, #tpu.memory_space<vmem>>, vector<32x1xf32>
      %c320_176 = arith.constant 320 : index
      %c1_177 = arith.constant 1 : index
      %286 = vector.load %arg30[%c320_176, %c1_177] : memref<864x2xf32, #tpu.memory_space<vmem>>, vector<32x1xf32>
      %cst_178 = arith.constant dense<0.000000e+00> : vector<32xf32>
      %287 = vector.multi_reduction <add>, %284, %cst_178 [1] : vector<32x49xf32> to vector<32xf32>
      %288 = vector.shape_cast %287 : vector<32xf32> to vector<32x1xf32>
      %cst_179 = arith.constant 0.0204081628 : f32
      %289 = vector.broadcast %cst_179 : f32 to vector<32x1xf32>
      %290 = arith.mulf %288, %289 : vector<32x1xf32>
      %291 = vector.broadcast %290 : vector<32x1xf32> to vector<32x49xf32>
      %292 = arith.subf %284, %291 : vector<32x49xf32>
      %293 = arith.mulf %292, %292 : vector<32x49xf32>
      %cst_180 = arith.constant dense<0.000000e+00> : vector<32xf32>
      %294 = vector.multi_reduction <add>, %293, %cst_180 [1] : vector<32x49xf32> to vector<32xf32>
      %295 = vector.shape_cast %294 : vector<32xf32> to vector<32x1xf32>
      %cst_181 = arith.constant 0.0204081628 : f32
      %296 = vector.broadcast %cst_181 : f32 to vector<32x1xf32>
      %297 = arith.mulf %295, %296 : vector<32x1xf32>
      %cst_182 = arith.constant 9.99999974E-6 : f32
      %298 = vector.broadcast %cst_182 : f32 to vector<32x1xf32>
      %299 = arith.addf %297, %298 : vector<32x1xf32>
      %300 = math.rsqrt %299 : vector<32x1xf32>
      %301 = arith.mulf %300, %285 : vector<32x1xf32>
      %302 = vector.broadcast %301 : vector<32x1xf32> to vector<32x49xf32>
      %303 = arith.mulf %292, %302 : vector<32x49xf32>
      %304 = vector.broadcast %286 : vector<32x1xf32> to vector<32x49xf32>
      %305 = arith.addf %303, %304 : vector<32x49xf32>
      %c320_183 = arith.constant 320 : index
      %c0_184 = arith.constant 0 : index
      %306 = vector.load %arg31[%c320_183, %c0_184] : memref<864x49xf32, #tpu.memory_space<vmem>>, vector<32x49xf32>
      tpu.vector_store %arg31[%c320_183, %c0_184], %305 {strides = array<i32>} : memref<864x49xf32, #tpu.memory_space<vmem>>, vector<32x49xf32>,
      %c0_185 = arith.constant 0 : index
      %c0_186 = arith.constant 0 : index
      %307 = vector.load %arg12[%c0_185, %c0_186] : memref<32x49xf32, #tpu.memory_space<vmem>>, vector<32x49xf32>
      %c352 = arith.constant 352 : index
      %c0_187 = arith.constant 0 : index
      %308 = vector.load %arg30[%c352, %c0_187] : memref<864x2xf32, #tpu.memory_space<vmem>>, vector<32x1xf32>
      %c352_188 = arith.constant 352 : index
      %c1_189 = arith.constant 1 : index
      %309 = vector.load %arg30[%c352_188, %c1_189] : memref<864x2xf32, #tpu.memory_space<vmem>>, vector<32x1xf32>
      %cst_190 = arith.constant dense<0.000000e+00> : vector<32xf32>
      %310 = vector.multi_reduction <add>, %307, %cst_190 [1] : vector<32x49xf32> to vector<32xf32>
      %311 = vector.shape_cast %310 : vector<32xf32> to vector<32x1xf32>
      %cst_191 = arith.constant 0.0204081628 : f32
      %312 = vector.broadcast %cst_191 : f32 to vector<32x1xf32>
      %313 = arith.mulf %311, %312 : vector<32x1xf32>
      %314 = vector.broadcast %313 : vector<32x1xf32> to vector<32x49xf32>
      %315 = arith.subf %307, %314 : vector<32x49xf32>
      %316 = arith.mulf %315, %315 : vector<32x49xf32>
      %cst_192 = arith.constant dense<0.000000e+00> : vector<32xf32>
      %317 = vector.multi_reduction <add>, %316, %cst_192 [1] : vector<32x49xf32> to vector<32xf32>
      %318 = vector.shape_cast %317 : vector<32xf32> to vector<32x1xf32>
      %cst_193 = arith.constant 0.0204081628 : f32
      %319 = vector.broadcast %cst_193 : f32 to vector<32x1xf32>
      %320 = arith.mulf %318, %319 : vector<32x1xf32>
      %cst_194 = arith.constant 9.99999974E-6 : f32
      %321 = vector.broadcast %cst_194 : f32 to vector<32x1xf32>
      %322 = arith.addf %320, %321 : vector<32x1xf32>
      %323 = math.rsqrt %322 : vector<32x1xf32>
      %324 = arith.mulf %323, %308 : vector<32x1xf32>
      %325 = vector.broadcast %324 : vector<32x1xf32> to vector<32x49xf32>
      %326 = arith.mulf %315, %325 : vector<32x49xf32>
      %327 = vector.broadcast %309 : vector<32x1xf32> to vector<32x49xf32>
      %328 = arith.addf %326, %327 : vector<32x49xf32>
      %c352_195 = arith.constant 352 : index
      %c0_196 = arith.constant 0 : index
      %329 = vector.load %arg31[%c352_195, %c0_196] : memref<864x49xf32, #tpu.memory_space<vmem>>, vector<32x49xf32>
      tpu.vector_store %arg31[%c352_195, %c0_196], %328 {strides = array<i32>} : memref<864x49xf32, #tpu.memory_space<vmem>>, vector<32x49xf32>,
      %c0_197 = arith.constant 0 : index
      %c0_198 = arith.constant 0 : index
      %330 = vector.load %arg13[%c0_197, %c0_198] : memref<32x49xf32, #tpu.memory_space<vmem>>, vector<32x49xf32>
      %c384 = arith.constant 384 : index
      %c0_199 = arith.constant 0 : index
      %331 = vector.load %arg30[%c384, %c0_199] : memref<864x2xf32, #tpu.memory_space<vmem>>, vector<32x1xf32>
      %c384_200 = arith.constant 384 : index
      %c1_201 = arith.constant 1 : index
      %332 = vector.load %arg30[%c384_200, %c1_201] : memref<864x2xf32, #tpu.memory_space<vmem>>, vector<32x1xf32>
      %cst_202 = arith.constant dense<0.000000e+00> : vector<32xf32>
      %333 = vector.multi_reduction <add>, %330, %cst_202 [1] : vector<32x49xf32> to vector<32xf32>
      %334 = vector.shape_cast %333 : vector<32xf32> to vector<32x1xf32>
      %cst_203 = arith.constant 0.0204081628 : f32
      %335 = vector.broadcast %cst_203 : f32 to vector<32x1xf32>
      %336 = arith.mulf %334, %335 : vector<32x1xf32>
      %337 = vector.broadcast %336 : vector<32x1xf32> to vector<32x49xf32>
      %338 = arith.subf %330, %337 : vector<32x49xf32>
      %339 = arith.mulf %338, %338 : vector<32x49xf32>
      %cst_204 = arith.constant dense<0.000000e+00> : vector<32xf32>
      %340 = vector.multi_reduction <add>, %339, %cst_204 [1] : vector<32x49xf32> to vector<32xf32>
      %341 = vector.shape_cast %340 : vector<32xf32> to vector<32x1xf32>
      %cst_205 = arith.constant 0.0204081628 : f32
      %342 = vector.broadcast %cst_205 : f32 to vector<32x1xf32>
      %343 = arith.mulf %341, %342 : vector<32x1xf32>
      %cst_206 = arith.constant 9.99999974E-6 : f32
      %344 = vector.broadcast %cst_206 : f32 to vector<32x1xf32>
      %345 = arith.addf %343, %344 : vector<32x1xf32>
      %346 = math.rsqrt %345 : vector<32x1xf32>
      %347 = arith.mulf %346, %331 : vector<32x1xf32>
      %348 = vector.broadcast %347 : vector<32x1xf32> to vector<32x49xf32>
      %349 = arith.mulf %338, %348 : vector<32x49xf32>
      %350 = vector.broadcast %332 : vector<32x1xf32> to vector<32x49xf32>
      %351 = arith.addf %349, %350 : vector<32x49xf32>
      %c384_207 = arith.constant 384 : index
      %c0_208 = arith.constant 0 : index
      %352 = vector.load %arg31[%c384_207, %c0_208] : memref<864x49xf32, #tpu.memory_space<vmem>>, vector<32x49xf32>
      tpu.vector_store %arg31[%c384_207, %c0_208], %351 {strides = array<i32>} : memref<864x49xf32, #tpu.memory_space<vmem>>, vector<32x49xf32>,
      %c0_209 = arith.constant 0 : index
      %c0_210 = arith.constant 0 : index
      %353 = vector.load %arg14[%c0_209, %c0_210] : memref<32x49xf32, #tpu.memory_space<vmem>>, vector<32x49xf32>
      %c416 = arith.constant 416 : index
      %c0_211 = arith.constant 0 : index
      %354 = vector.load %arg30[%c416, %c0_211] : memref<864x2xf32, #tpu.memory_space<vmem>>, vector<32x1xf32>
      %c416_212 = arith.constant 416 : index
      %c1_213 = arith.constant 1 : index
      %355 = vector.load %arg30[%c416_212, %c1_213] : memref<864x2xf32, #tpu.memory_space<vmem>>, vector<32x1xf32>
      %cst_214 = arith.constant dense<0.000000e+00> : vector<32xf32>
      %356 = vector.multi_reduction <add>, %353, %cst_214 [1] : vector<32x49xf32> to vector<32xf32>
      %357 = vector.shape_cast %356 : vector<32xf32> to vector<32x1xf32>
      %cst_215 = arith.constant 0.0204081628 : f32
      %358 = vector.broadcast %cst_215 : f32 to vector<32x1xf32>
      %359 = arith.mulf %357, %358 : vector<32x1xf32>
      %360 = vector.broadcast %359 : vector<32x1xf32> to vector<32x49xf32>
      %361 = arith.subf %353, %360 : vector<32x49xf32>
      %362 = arith.mulf %361, %361 : vector<32x49xf32>
      %cst_216 = arith.constant dense<0.000000e+00> : vector<32xf32>
      %363 = vector.multi_reduction <add>, %362, %cst_216 [1] : vector<32x49xf32> to vector<32xf32>
      %364 = vector.shape_cast %363 : vector<32xf32> to vector<32x1xf32>
      %cst_217 = arith.constant 0.0204081628 : f32
      %365 = vector.broadcast %cst_217 : f32 to vector<32x1xf32>
      %366 = arith.mulf %364, %365 : vector<32x1xf32>
      %cst_218 = arith.constant 9.99999974E-6 : f32
      %367 = vector.broadcast %cst_218 : f32 to vector<32x1xf32>
      %368 = arith.addf %366, %367 : vector<32x1xf32>
      %369 = math.rsqrt %368 : vector<32x1xf32>
      %370 = arith.mulf %369, %354 : vector<32x1xf32>
      %371 = vector.broadcast %370 : vector<32x1xf32> to vector<32x49xf32>
      %372 = arith.mulf %361, %371 : vector<32x49xf32>
      %373 = vector.broadcast %355 : vector<32x1xf32> to vector<32x49xf32>
      %374 = arith.addf %372, %373 : vector<32x49xf32>
      %c416_219 = arith.constant 416 : index
      %c0_220 = arith.constant 0 : index
      %375 = vector.load %arg31[%c416_219, %c0_220] : memref<864x49xf32, #tpu.memory_space<vmem>>, vector<32x49xf32>
      tpu.vector_store %arg31[%c416_219, %c0_220], %374 {strides = array<i32>} : memref<864x49xf32, #tpu.memory_space<vmem>>, vector<32x49xf32>,
      %c0_221 = arith.constant 0 : index
      %c0_222 = arith.constant 0 : index
      %376 = vector.load %arg15[%c0_221, %c0_222] : memref<32x49xf32, #tpu.memory_space<vmem>>, vector<32x49xf32>
      %c448 = arith.constant 448 : index
      %c0_223 = arith.constant 0 : index
      %377 = vector.load %arg30[%c448, %c0_223] : memref<864x2xf32, #tpu.memory_space<vmem>>, vector<32x1xf32>
      %c448_224 = arith.constant 448 : index
      %c1_225 = arith.constant 1 : index
      %378 = vector.load %arg30[%c448_224, %c1_225] : memref<864x2xf32, #tpu.memory_space<vmem>>, vector<32x1xf32>
      %cst_226 = arith.constant dense<0.000000e+00> : vector<32xf32>
      %379 = vector.multi_reduction <add>, %376, %cst_226 [1] : vector<32x49xf32> to vector<32xf32>
      %380 = vector.shape_cast %379 : vector<32xf32> to vector<32x1xf32>
      %cst_227 = arith.constant 0.0204081628 : f32
      %381 = vector.broadcast %cst_227 : f32 to vector<32x1xf32>
      %382 = arith.mulf %380, %381 : vector<32x1xf32>
      %383 = vector.broadcast %382 : vector<32x1xf32> to vector<32x49xf32>
      %384 = arith.subf %376, %383 : vector<32x49xf32>
      %385 = arith.mulf %384, %384 : vector<32x49xf32>
      %cst_228 = arith.constant dense<0.000000e+00> : vector<32xf32>
      %386 = vector.multi_reduction <add>, %385, %cst_228 [1] : vector<32x49xf32> to vector<32xf32>
      %387 = vector.shape_cast %386 : vector<32xf32> to vector<32x1xf32>
      %cst_229 = arith.constant 0.0204081628 : f32
      %388 = vector.broadcast %cst_229 : f32 to vector<32x1xf32>
      %389 = arith.mulf %387, %388 : vector<32x1xf32>
      %cst_230 = arith.constant 9.99999974E-6 : f32
      %390 = vector.broadcast %cst_230 : f32 to vector<32x1xf32>
      %391 = arith.addf %389, %390 : vector<32x1xf32>
      %392 = math.rsqrt %391 : vector<32x1xf32>
      %393 = arith.mulf %392, %377 : vector<32x1xf32>
      %394 = vector.broadcast %393 : vector<32x1xf32> to vector<32x49xf32>
      %395 = arith.mulf %384, %394 : vector<32x49xf32>
      %396 = vector.broadcast %378 : vector<32x1xf32> to vector<32x49xf32>
      %397 = arith.addf %395, %396 : vector<32x49xf32>
      %c448_231 = arith.constant 448 : index
      %c0_232 = arith.constant 0 : index
      %398 = vector.load %arg31[%c448_231, %c0_232] : memref<864x49xf32, #tpu.memory_space<vmem>>, vector<32x49xf32>
      tpu.vector_store %arg31[%c448_231, %c0_232], %397 {strides = array<i32>} : memref<864x49xf32, #tpu.memory_space<vmem>>, vector<32x49xf32>,
      %c0_233 = arith.constant 0 : index
      %c0_234 = arith.constant 0 : index
      %399 = vector.load %arg16[%c0_233, %c0_234] : memref<32x49xf32, #tpu.memory_space<vmem>>, vector<32x49xf32>
      %c480 = arith.constant 480 : index
      %c0_235 = arith.constant 0 : index
      %400 = vector.load %arg30[%c480, %c0_235] : memref<864x2xf32, #tpu.memory_space<vmem>>, vector<32x1xf32>
      %c480_236 = arith.constant 480 : index
      %c1_237 = arith.constant 1 : index
      %401 = vector.load %arg30[%c480_236, %c1_237] : memref<864x2xf32, #tpu.memory_space<vmem>>, vector<32x1xf32>
      %cst_238 = arith.constant dense<0.000000e+00> : vector<32xf32>
      %402 = vector.multi_reduction <add>, %399, %cst_238 [1] : vector<32x49xf32> to vector<32xf32>
      %403 = vector.shape_cast %402 : vector<32xf32> to vector<32x1xf32>
      %cst_239 = arith.constant 0.0204081628 : f32
      %404 = vector.broadcast %cst_239 : f32 to vector<32x1xf32>
      %405 = arith.mulf %403, %404 : vector<32x1xf32>
      %406 = vector.broadcast %405 : vector<32x1xf32> to vector<32x49xf32>
      %407 = arith.subf %399, %406 : vector<32x49xf32>
      %408 = arith.mulf %407, %407 : vector<32x49xf32>
      %cst_240 = arith.constant dense<0.000000e+00> : vector<32xf32>
      %409 = vector.multi_reduction <add>, %408, %cst_240 [1] : vector<32x49xf32> to vector<32xf32>
      %410 = vector.shape_cast %409 : vector<32xf32> to vector<32x1xf32>
      %cst_241 = arith.constant 0.0204081628 : f32
      %411 = vector.broadcast %cst_241 : f32 to vector<32x1xf32>
      %412 = arith.mulf %410, %411 : vector<32x1xf32>
      %cst_242 = arith.constant 9.99999974E-6 : f32
      %413 = vector.broadcast %cst_242 : f32 to vector<32x1xf32>
      %414 = arith.addf %412, %413 : vector<32x1xf32>
      %415 = math.rsqrt %414 : vector<32x1xf32>
      %416 = arith.mulf %415, %400 : vector<32x1xf32>
      %417 = vector.broadcast %416 : vector<32x1xf32> to vector<32x49xf32>
      %418 = arith.mulf %407, %417 : vector<32x49xf32>
      %419 = vector.broadcast %401 : vector<32x1xf32> to vector<32x49xf32>
      %420 = arith.addf %418, %419 : vector<32x49xf32>
      %c480_243 = arith.constant 480 : index
      %c0_244 = arith.constant 0 : index
      %421 = vector.load %arg31[%c480_243, %c0_244] : memref<864x49xf32, #tpu.memory_space<vmem>>, vector<32x49xf32>
      tpu.vector_store %arg31[%c480_243, %c0_244], %420 {strides = array<i32>} : memref<864x49xf32, #tpu.memory_space<vmem>>, vector<32x49xf32>,
      %c0_245 = arith.constant 0 : index
      %c0_246 = arith.constant 0 : index
      %422 = vector.load %arg17[%c0_245, %c0_246] : memref<32x49xf32, #tpu.memory_space<vmem>>, vector<32x49xf32>
      %c512 = arith.constant 512 : index
      %c0_247 = arith.constant 0 : index
      %423 = vector.load %arg30[%c512, %c0_247] : memref<864x2xf32, #tpu.memory_space<vmem>>, vector<32x1xf32>
      %c512_248 = arith.constant 512 : index
      %c1_249 = arith.constant 1 : index
      %424 = vector.load %arg30[%c512_248, %c1_249] : memref<864x2xf32, #tpu.memory_space<vmem>>, vector<32x1xf32>
      %cst_250 = arith.constant dense<0.000000e+00> : vector<32xf32>
      %425 = vector.multi_reduction <add>, %422, %cst_250 [1] : vector<32x49xf32> to vector<32xf32>
      %426 = vector.shape_cast %425 : vector<32xf32> to vector<32x1xf32>
      %cst_251 = arith.constant 0.0204081628 : f32
      %427 = vector.broadcast %cst_251 : f32 to vector<32x1xf32>
      %428 = arith.mulf %426, %427 : vector<32x1xf32>
      %429 = vector.broadcast %428 : vector<32x1xf32> to vector<32x49xf32>
      %430 = arith.subf %422, %429 : vector<32x49xf32>
      %431 = arith.mulf %430, %430 : vector<32x49xf32>
      %cst_252 = arith.constant dense<0.000000e+00> : vector<32xf32>
      %432 = vector.multi_reduction <add>, %431, %cst_252 [1] : vector<32x49xf32> to vector<32xf32>
      %433 = vector.shape_cast %432 : vector<32xf32> to vector<32x1xf32>
      %cst_253 = arith.constant 0.0204081628 : f32
      %434 = vector.broadcast %cst_253 : f32 to vector<32x1xf32>
      %435 = arith.mulf %433, %434 : vector<32x1xf32>
      %cst_254 = arith.constant 9.99999974E-6 : f32
      %436 = vector.broadcast %cst_254 : f32 to vector<32x1xf32>
      %437 = arith.addf %435, %436 : vector<32x1xf32>
      %438 = math.rsqrt %437 : vector<32x1xf32>
      %439 = arith.mulf %438, %423 : vector<32x1xf32>
      %440 = vector.broadcast %439 : vector<32x1xf32> to vector<32x49xf32>
      %441 = arith.mulf %430, %440 : vector<32x49xf32>
      %442 = vector.broadcast %424 : vector<32x1xf32> to vector<32x49xf32>
      %443 = arith.addf %441, %442 : vector<32x49xf32>
      %c512_255 = arith.constant 512 : index
      %c0_256 = arith.constant 0 : index
      %444 = vector.load %arg31[%c512_255, %c0_256] : memref<864x49xf32, #tpu.memory_space<vmem>>, vector<32x49xf32>
      tpu.vector_store %arg31[%c512_255, %c0_256], %443 {strides = array<i32>} : memref<864x49xf32, #tpu.memory_space<vmem>>, vector<32x49xf32>,
      %c0_257 = arith.constant 0 : index
      %c0_258 = arith.constant 0 : index
      %445 = vector.load %arg18[%c0_257, %c0_258] : memref<32x49xf32, #tpu.memory_space<vmem>>, vector<32x49xf32>
      %c544 = arith.constant 544 : index
      %c0_259 = arith.constant 0 : index
      %446 = vector.load %arg30[%c544, %c0_259] : memref<864x2xf32, #tpu.memory_space<vmem>>, vector<32x1xf32>
      %c544_260 = arith.constant 544 : index
      %c1_261 = arith.constant 1 : index
      %447 = vector.load %arg30[%c544_260, %c1_261] : memref<864x2xf32, #tpu.memory_space<vmem>>, vector<32x1xf32>
      %cst_262 = arith.constant dense<0.000000e+00> : vector<32xf32>
      %448 = vector.multi_reduction <add>, %445, %cst_262 [1] : vector<32x49xf32> to vector<32xf32>
      %449 = vector.shape_cast %448 : vector<32xf32> to vector<32x1xf32>
      %cst_263 = arith.constant 0.0204081628 : f32
      %450 = vector.broadcast %cst_263 : f32 to vector<32x1xf32>
      %451 = arith.mulf %449, %450 : vector<32x1xf32>
      %452 = vector.broadcast %451 : vector<32x1xf32> to vector<32x49xf32>
      %453 = arith.subf %445, %452 : vector<32x49xf32>
      %454 = arith.mulf %453, %453 : vector<32x49xf32>
      %cst_264 = arith.constant dense<0.000000e+00> : vector<32xf32>
      %455 = vector.multi_reduction <add>, %454, %cst_264 [1] : vector<32x49xf32> to vector<32xf32>
      %456 = vector.shape_cast %455 : vector<32xf32> to vector<32x1xf32>
      %cst_265 = arith.constant 0.0204081628 : f32
      %457 = vector.broadcast %cst_265 : f32 to vector<32x1xf32>
      %458 = arith.mulf %456, %457 : vector<32x1xf32>
      %cst_266 = arith.constant 9.99999974E-6 : f32
      %459 = vector.broadcast %cst_266 : f32 to vector<32x1xf32>
      %460 = arith.addf %458, %459 : vector<32x1xf32>
      %461 = math.rsqrt %460 : vector<32x1xf32>
      %462 = arith.mulf %461, %446 : vector<32x1xf32>
      %463 = vector.broadcast %462 : vector<32x1xf32> to vector<32x49xf32>
      %464 = arith.mulf %453, %463 : vector<32x49xf32>
      %465 = vector.broadcast %447 : vector<32x1xf32> to vector<32x49xf32>
      %466 = arith.addf %464, %465 : vector<32x49xf32>
      %c544_267 = arith.constant 544 : index
      %c0_268 = arith.constant 0 : index
      %467 = vector.load %arg31[%c544_267, %c0_268] : memref<864x49xf32, #tpu.memory_space<vmem>>, vector<32x49xf32>
      tpu.vector_store %arg31[%c544_267, %c0_268], %466 {strides = array<i32>} : memref<864x49xf32, #tpu.memory_space<vmem>>, vector<32x49xf32>,
      %c0_269 = arith.constant 0 : index
      %c0_270 = arith.constant 0 : index
      %468 = vector.load %arg19[%c0_269, %c0_270] : memref<32x49xf32, #tpu.memory_space<vmem>>, vector<32x49xf32>
      %c576 = arith.constant 576 : index
      %c0_271 = arith.constant 0 : index
      %469 = vector.load %arg30[%c576, %c0_271] : memref<864x2xf32, #tpu.memory_space<vmem>>, vector<32x1xf32>
      %c576_272 = arith.constant 576 : index
      %c1_273 = arith.constant 1 : index
      %470 = vector.load %arg30[%c576_272, %c1_273] : memref<864x2xf32, #tpu.memory_space<vmem>>, vector<32x1xf32>
      %cst_274 = arith.constant dense<0.000000e+00> : vector<32xf32>
      %471 = vector.multi_reduction <add>, %468, %cst_274 [1] : vector<32x49xf32> to vector<32xf32>
      %472 = vector.shape_cast %471 : vector<32xf32> to vector<32x1xf32>
      %cst_275 = arith.constant 0.0204081628 : f32
      %473 = vector.broadcast %cst_275 : f32 to vector<32x1xf32>
      %474 = arith.mulf %472, %473 : vector<32x1xf32>
      %475 = vector.broadcast %474 : vector<32x1xf32> to vector<32x49xf32>
      %476 = arith.subf %468, %475 : vector<32x49xf32>
      %477 = arith.mulf %476, %476 : vector<32x49xf32>
      %cst_276 = arith.constant dense<0.000000e+00> : vector<32xf32>
      %478 = vector.multi_reduction <add>, %477, %cst_276 [1] : vector<32x49xf32> to vector<32xf32>
      %479 = vector.shape_cast %478 : vector<32xf32> to vector<32x1xf32>
      %cst_277 = arith.constant 0.0204081628 : f32
      %480 = vector.broadcast %cst_277 : f32 to vector<32x1xf32>
      %481 = arith.mulf %479, %480 : vector<32x1xf32>
      %cst_278 = arith.constant 9.99999974E-6 : f32
      %482 = vector.broadcast %cst_278 : f32 to vector<32x1xf32>
      %483 = arith.addf %481, %482 : vector<32x1xf32>
      %484 = math.rsqrt %483 : vector<32x1xf32>
      %485 = arith.mulf %484, %469 : vector<32x1xf32>
      %486 = vector.broadcast %485 : vector<32x1xf32> to vector<32x49xf32>
      %487 = arith.mulf %476, %486 : vector<32x49xf32>
      %488 = vector.broadcast %470 : vector<32x1xf32> to vector<32x49xf32>
      %489 = arith.addf %487, %488 : vector<32x49xf32>
      %c576_279 = arith.constant 576 : index
      %c0_280 = arith.constant 0 : index
      %490 = vector.load %arg31[%c576_279, %c0_280] : memref<864x49xf32, #tpu.memory_space<vmem>>, vector<32x49xf32>
      tpu.vector_store %arg31[%c576_279, %c0_280], %489 {strides = array<i32>} : memref<864x49xf32, #tpu.memory_space<vmem>>, vector<32x49xf32>,
      %c0_281 = arith.constant 0 : index
      %c0_282 = arith.constant 0 : index
      %491 = vector.load %arg20[%c0_281, %c0_282] : memref<32x49xf32, #tpu.memory_space<vmem>>, vector<32x49xf32>
      %c608 = arith.constant 608 : index
      %c0_283 = arith.constant 0 : index
      %492 = vector.load %arg30[%c608, %c0_283] : memref<864x2xf32, #tpu.memory_space<vmem>>, vector<32x1xf32>
      %c608_284 = arith.constant 608 : index
      %c1_285 = arith.constant 1 : index
      %493 = vector.load %arg30[%c608_284, %c1_285] : memref<864x2xf32, #tpu.memory_space<vmem>>, vector<32x1xf32>
      %cst_286 = arith.constant dense<0.000000e+00> : vector<32xf32>
      %494 = vector.multi_reduction <add>, %491, %cst_286 [1] : vector<32x49xf32> to vector<32xf32>
      %495 = vector.shape_cast %494 : vector<32xf32> to vector<32x1xf32>
      %cst_287 = arith.constant 0.0204081628 : f32
      %496 = vector.broadcast %cst_287 : f32 to vector<32x1xf32>
      %497 = arith.mulf %495, %496 : vector<32x1xf32>
      %498 = vector.broadcast %497 : vector<32x1xf32> to vector<32x49xf32>
      %499 = arith.subf %491, %498 : vector<32x49xf32>
      %500 = arith.mulf %499, %499 : vector<32x49xf32>
      %cst_288 = arith.constant dense<0.000000e+00> : vector<32xf32>
      %501 = vector.multi_reduction <add>, %500, %cst_288 [1] : vector<32x49xf32> to vector<32xf32>
      %502 = vector.shape_cast %501 : vector<32xf32> to vector<32x1xf32>
      %cst_289 = arith.constant 0.0204081628 : f32
      %503 = vector.broadcast %cst_289 : f32 to vector<32x1xf32>
      %504 = arith.mulf %502, %503 : vector<32x1xf32>
      %cst_290 = arith.constant 9.99999974E-6 : f32
      %505 = vector.broadcast %cst_290 : f32 to vector<32x1xf32>
      %506 = arith.addf %504, %505 : vector<32x1xf32>
      %507 = math.rsqrt %506 : vector<32x1xf32>
      %508 = arith.mulf %507, %492 : vector<32x1xf32>
      %509 = vector.broadcast %508 : vector<32x1xf32> to vector<32x49xf32>
      %510 = arith.mulf %499, %509 : vector<32x49xf32>
      %511 = vector.broadcast %493 : vector<32x1xf32> to vector<32x49xf32>
      %512 = arith.addf %510, %511 : vector<32x49xf32>
      %c608_291 = arith.constant 608 : index
      %c0_292 = arith.constant 0 : index
      %513 = vector.load %arg31[%c608_291, %c0_292] : memref<864x49xf32, #tpu.memory_space<vmem>>, vector<32x49xf32>
      tpu.vector_store %arg31[%c608_291, %c0_292], %512 {strides = array<i32>} : memref<864x49xf32, #tpu.memory_space<vmem>>, vector<32x49xf32>,
      %c0_293 = arith.constant 0 : index
      %c0_294 = arith.constant 0 : index
      %514 = vector.load %arg21[%c0_293, %c0_294] : memref<32x49xf32, #tpu.memory_space<vmem>>, vector<32x49xf32>
      %c640 = arith.constant 640 : index
      %c0_295 = arith.constant 0 : index
      %515 = vector.load %arg30[%c640, %c0_295] : memref<864x2xf32, #tpu.memory_space<vmem>>, vector<32x1xf32>
      %c640_296 = arith.constant 640 : index
      %c1_297 = arith.constant 1 : index
      %516 = vector.load %arg30[%c640_296, %c1_297] : memref<864x2xf32, #tpu.memory_space<vmem>>, vector<32x1xf32>
      %cst_298 = arith.constant dense<0.000000e+00> : vector<32xf32>
      %517 = vector.multi_reduction <add>, %514, %cst_298 [1] : vector<32x49xf32> to vector<32xf32>
      %518 = vector.shape_cast %517 : vector<32xf32> to vector<32x1xf32>
      %cst_299 = arith.constant 0.0204081628 : f32
      %519 = vector.broadcast %cst_299 : f32 to vector<32x1xf32>
      %520 = arith.mulf %518, %519 : vector<32x1xf32>
      %521 = vector.broadcast %520 : vector<32x1xf32> to vector<32x49xf32>
      %522 = arith.subf %514, %521 : vector<32x49xf32>
      %523 = arith.mulf %522, %522 : vector<32x49xf32>
      %cst_300 = arith.constant dense<0.000000e+00> : vector<32xf32>
      %524 = vector.multi_reduction <add>, %523, %cst_300 [1] : vector<32x49xf32> to vector<32xf32>
      %525 = vector.shape_cast %524 : vector<32xf32> to vector<32x1xf32>
      %cst_301 = arith.constant 0.0204081628 : f32
      %526 = vector.broadcast %cst_301 : f32 to vector<32x1xf32>
      %527 = arith.mulf %525, %526 : vector<32x1xf32>
      %cst_302 = arith.constant 9.99999974E-6 : f32
      %528 = vector.broadcast %cst_302 : f32 to vector<32x1xf32>
      %529 = arith.addf %527, %528 : vector<32x1xf32>
      %530 = math.rsqrt %529 : vector<32x1xf32>
      %531 = arith.mulf %530, %515 : vector<32x1xf32>
      %532 = vector.broadcast %531 : vector<32x1xf32> to vector<32x49xf32>
      %533 = arith.mulf %522, %532 : vector<32x49xf32>
      %534 = vector.broadcast %516 : vector<32x1xf32> to vector<32x49xf32>
      %535 = arith.addf %533, %534 : vector<32x49xf32>
      %c640_303 = arith.constant 640 : index
      %c0_304 = arith.constant 0 : index
      %536 = vector.load %arg31[%c640_303, %c0_304] : memref<864x49xf32, #tpu.memory_space<vmem>>, vector<32x49xf32>
      tpu.vector_store %arg31[%c640_303, %c0_304], %535 {strides = array<i32>} : memref<864x49xf32, #tpu.memory_space<vmem>>, vector<32x49xf32>,
      %c0_305 = arith.constant 0 : index
      %c0_306 = arith.constant 0 : index
      %537 = vector.load %arg22[%c0_305, %c0_306] : memref<32x49xf32, #tpu.memory_space<vmem>>, vector<32x49xf32>
      %c672 = arith.constant 672 : index
      %c0_307 = arith.constant 0 : index
      %538 = vector.load %arg30[%c672, %c0_307] : memref<864x2xf32, #tpu.memory_space<vmem>>, vector<32x1xf32>
      %c672_308 = arith.constant 672 : index
      %c1_309 = arith.constant 1 : index
      %539 = vector.load %arg30[%c672_308, %c1_309] : memref<864x2xf32, #tpu.memory_space<vmem>>, vector<32x1xf32>
      %cst_310 = arith.constant dense<0.000000e+00> : vector<32xf32>
      %540 = vector.multi_reduction <add>, %537, %cst_310 [1] : vector<32x49xf32> to vector<32xf32>
      %541 = vector.shape_cast %540 : vector<32xf32> to vector<32x1xf32>
      %cst_311 = arith.constant 0.0204081628 : f32
      %542 = vector.broadcast %cst_311 : f32 to vector<32x1xf32>
      %543 = arith.mulf %541, %542 : vector<32x1xf32>
      %544 = vector.broadcast %543 : vector<32x1xf32> to vector<32x49xf32>
      %545 = arith.subf %537, %544 : vector<32x49xf32>
      %546 = arith.mulf %545, %545 : vector<32x49xf32>
      %cst_312 = arith.constant dense<0.000000e+00> : vector<32xf32>
      %547 = vector.multi_reduction <add>, %546, %cst_312 [1] : vector<32x49xf32> to vector<32xf32>
      %548 = vector.shape_cast %547 : vector<32xf32> to vector<32x1xf32>
      %cst_313 = arith.constant 0.0204081628 : f32
      %549 = vector.broadcast %cst_313 : f32 to vector<32x1xf32>
      %550 = arith.mulf %548, %549 : vector<32x1xf32>
      %cst_314 = arith.constant 9.99999974E-6 : f32
      %551 = vector.broadcast %cst_314 : f32 to vector<32x1xf32>
      %552 = arith.addf %550, %551 : vector<32x1xf32>
      %553 = math.rsqrt %552 : vector<32x1xf32>
      %554 = arith.mulf %553, %538 : vector<32x1xf32>
      %555 = vector.broadcast %554 : vector<32x1xf32> to vector<32x49xf32>
      %556 = arith.mulf %545, %555 : vector<32x49xf32>
      %557 = vector.broadcast %539 : vector<32x1xf32> to vector<32x49xf32>
      %558 = arith.addf %556, %557 : vector<32x49xf32>
      %c672_315 = arith.constant 672 : index
      %c0_316 = arith.constant 0 : index
      %559 = vector.load %arg31[%c672_315, %c0_316] : memref<864x49xf32, #tpu.memory_space<vmem>>, vector<32x49xf32>
      tpu.vector_store %arg31[%c672_315, %c0_316], %558 {strides = array<i32>} : memref<864x49xf32, #tpu.memory_space<vmem>>, vector<32x49xf32>,
      %c0_317 = arith.constant 0 : index
      %c0_318 = arith.constant 0 : index
      %560 = vector.load %arg23[%c0_317, %c0_318] : memref<32x49xf32, #tpu.memory_space<vmem>>, vector<32x49xf32>
      %c704 = arith.constant 704 : index
      %c0_319 = arith.constant 0 : index
      %561 = vector.load %arg30[%c704, %c0_319] : memref<864x2xf32, #tpu.memory_space<vmem>>, vector<32x1xf32>
      %c704_320 = arith.constant 704 : index
      %c1_321 = arith.constant 1 : index
      %562 = vector.load %arg30[%c704_320, %c1_321] : memref<864x2xf32, #tpu.memory_space<vmem>>, vector<32x1xf32>
      %cst_322 = arith.constant dense<0.000000e+00> : vector<32xf32>
      %563 = vector.multi_reduction <add>, %560, %cst_322 [1] : vector<32x49xf32> to vector<32xf32>
      %564 = vector.shape_cast %563 : vector<32xf32> to vector<32x1xf32>
      %cst_323 = arith.constant 0.0204081628 : f32
      %565 = vector.broadcast %cst_323 : f32 to vector<32x1xf32>
      %566 = arith.mulf %564, %565 : vector<32x1xf32>
      %567 = vector.broadcast %566 : vector<32x1xf32> to vector<32x49xf32>
      %568 = arith.subf %560, %567 : vector<32x49xf32>
      %569 = arith.mulf %568, %568 : vector<32x49xf32>
      %cst_324 = arith.constant dense<0.000000e+00> : vector<32xf32>
      %570 = vector.multi_reduction <add>, %569, %cst_324 [1] : vector<32x49xf32> to vector<32xf32>
      %571 = vector.shape_cast %570 : vector<32xf32> to vector<32x1xf32>
      %cst_325 = arith.constant 0.0204081628 : f32
      %572 = vector.broadcast %cst_325 : f32 to vector<32x1xf32>
      %573 = arith.mulf %571, %572 : vector<32x1xf32>
      %cst_326 = arith.constant 9.99999974E-6 : f32
      %574 = vector.broadcast %cst_326 : f32 to vector<32x1xf32>
      %575 = arith.addf %573, %574 : vector<32x1xf32>
      %576 = math.rsqrt %575 : vector<32x1xf32>
      %577 = arith.mulf %576, %561 : vector<32x1xf32>
      %578 = vector.broadcast %577 : vector<32x1xf32> to vector<32x49xf32>
      %579 = arith.mulf %568, %578 : vector<32x49xf32>
      %580 = vector.broadcast %562 : vector<32x1xf32> to vector<32x49xf32>
      %581 = arith.addf %579, %580 : vector<32x49xf32>
      %c704_327 = arith.constant 704 : index
      %c0_328 = arith.constant 0 : index
      %582 = vector.load %arg31[%c704_327, %c0_328] : memref<864x49xf32, #tpu.memory_space<vmem>>, vector<32x49xf32>
      tpu.vector_store %arg31[%c704_327, %c0_328], %581 {strides = array<i32>} : memref<864x49xf32, #tpu.memory_space<vmem>>, vector<32x49xf32>,
      %c0_329 = arith.constant 0 : index
      %c0_330 = arith.constant 0 : index
      %583 = vector.load %arg24[%c0_329, %c0_330] : memref<32x49xf32, #tpu.memory_space<vmem>>, vector<32x49xf32>
      %c736 = arith.constant 736 : index
      %c0_331 = arith.constant 0 : index
      %584 = vector.load %arg30[%c736, %c0_331] : memref<864x2xf32, #tpu.memory_space<vmem>>, vector<32x1xf32>
      %c736_332 = arith.constant 736 : index
      %c1_333 = arith.constant 1 : index
      %585 = vector.load %arg30[%c736_332, %c1_333] : memref<864x2xf32, #tpu.memory_space<vmem>>, vector<32x1xf32>
      %cst_334 = arith.constant dense<0.000000e+00> : vector<32xf32>
      %586 = vector.multi_reduction <add>, %583, %cst_334 [1] : vector<32x49xf32> to vector<32xf32>
      %587 = vector.shape_cast %586 : vector<32xf32> to vector<32x1xf32>
      %cst_335 = arith.constant 0.0204081628 : f32
      %588 = vector.broadcast %cst_335 : f32 to vector<32x1xf32>
      %589 = arith.mulf %587, %588 : vector<32x1xf32>
      %590 = vector.broadcast %589 : vector<32x1xf32> to vector<32x49xf32>
      %591 = arith.subf %583, %590 : vector<32x49xf32>
      %592 = arith.mulf %591, %591 : vector<32x49xf32>
      %cst_336 = arith.constant dense<0.000000e+00> : vector<32xf32>
      %593 = vector.multi_reduction <add>, %592, %cst_336 [1] : vector<32x49xf32> to vector<32xf32>
      %594 = vector.shape_cast %593 : vector<32xf32> to vector<32x1xf32>
      %cst_337 = arith.constant 0.0204081628 : f32
      %595 = vector.broadcast %cst_337 : f32 to vector<32x1xf32>
      %596 = arith.mulf %594, %595 : vector<32x1xf32>
      %cst_338 = arith.constant 9.99999974E-6 : f32
      %597 = vector.broadcast %cst_338 : f32 to vector<32x1xf32>
      %598 = arith.addf %596, %597 : vector<32x1xf32>
      %599 = math.rsqrt %598 : vector<32x1xf32>
      %600 = arith.mulf %599, %584 : vector<32x1xf32>
      %601 = vector.broadcast %600 : vector<32x1xf32> to vector<32x49xf32>
      %602 = arith.mulf %591, %601 : vector<32x49xf32>
      %603 = vector.broadcast %585 : vector<32x1xf32> to vector<32x49xf32>
      %604 = arith.addf %602, %603 : vector<32x49xf32>
      %c736_339 = arith.constant 736 : index
      %c0_340 = arith.constant 0 : index
      %605 = vector.load %arg31[%c736_339, %c0_340] : memref<864x49xf32, #tpu.memory_space<vmem>>, vector<32x49xf32>
      tpu.vector_store %arg31[%c736_339, %c0_340], %604 {strides = array<i32>} : memref<864x49xf32, #tpu.memory_space<vmem>>, vector<32x49xf32>,
      %c0_341 = arith.constant 0 : index
      %c0_342 = arith.constant 0 : index
      %606 = vector.load %arg25[%c0_341, %c0_342] : memref<32x49xf32, #tpu.memory_space<vmem>>, vector<32x49xf32>
      %c768 = arith.constant 768 : index
      %c0_343 = arith.constant 0 : index
      %607 = vector.load %arg30[%c768, %c0_343] : memref<864x2xf32, #tpu.memory_space<vmem>>, vector<32x1xf32>
      %c768_344 = arith.constant 768 : index
      %c1_345 = arith.constant 1 : index
      %608 = vector.load %arg30[%c768_344, %c1_345] : memref<864x2xf32, #tpu.memory_space<vmem>>, vector<32x1xf32>
      %cst_346 = arith.constant dense<0.000000e+00> : vector<32xf32>
      %609 = vector.multi_reduction <add>, %606, %cst_346 [1] : vector<32x49xf32> to vector<32xf32>
      %610 = vector.shape_cast %609 : vector<32xf32> to vector<32x1xf32>
      %cst_347 = arith.constant 0.0204081628 : f32
      %611 = vector.broadcast %cst_347 : f32 to vector<32x1xf32>
      %612 = arith.mulf %610, %611 : vector<32x1xf32>
      %613 = vector.broadcast %612 : vector<32x1xf32> to vector<32x49xf32>
      %614 = arith.subf %606, %613 : vector<32x49xf32>
      %615 = arith.mulf %614, %614 : vector<32x49xf32>
      %cst_348 = arith.constant dense<0.000000e+00> : vector<32xf32>
      %616 = vector.multi_reduction <add>, %615, %cst_348 [1] : vector<32x49xf32> to vector<32xf32>
      %617 = vector.shape_cast %616 : vector<32xf32> to vector<32x1xf32>
      %cst_349 = arith.constant 0.0204081628 : f32
      %618 = vector.broadcast %cst_349 : f32 to vector<32x1xf32>
      %619 = arith.mulf %617, %618 : vector<32x1xf32>
      %cst_350 = arith.constant 9.99999974E-6 : f32
      %620 = vector.broadcast %cst_350 : f32 to vector<32x1xf32>
      %621 = arith.addf %619, %620 : vector<32x1xf32>
      %622 = math.rsqrt %621 : vector<32x1xf32>
      %623 = arith.mulf %622, %607 : vector<32x1xf32>
      %624 = vector.broadcast %623 : vector<32x1xf32> to vector<32x49xf32>
      %625 = arith.mulf %614, %624 : vector<32x49xf32>
      %626 = vector.broadcast %608 : vector<32x1xf32> to vector<32x49xf32>
      %627 = arith.addf %625, %626 : vector<32x49xf32>
      %c768_351 = arith.constant 768 : index
      %c0_352 = arith.constant 0 : index
      %628 = vector.load %arg31[%c768_351, %c0_352] : memref<864x49xf32, #tpu.memory_space<vmem>>, vector<32x49xf32>
      tpu.vector_store %arg31[%c768_351, %c0_352], %627 {strides = array<i32>} : memref<864x49xf32, #tpu.memory_space<vmem>>, vector<32x49xf32>,
      %c800 = arith.constant 800 : index
      %c0_353 = arith.constant 0 : index
      %629 = vector.load %arg30[%c800, %c0_353] : memref<864x2xf32, #tpu.memory_space<vmem>>, vector<32x1xf32>
      %c800_354 = arith.constant 800 : index
      %c1_355 = arith.constant 1 : index
      %630 = vector.load %arg30[%c800_354, %c1_355] : memref<864x2xf32, #tpu.memory_space<vmem>>, vector<32x1xf32>
      %cst_356 = arith.constant dense<0.000000e+00> : vector<32xf32>
      %631 = vector.multi_reduction <add>, %53, %cst_356 [1] : vector<32x49xf32> to vector<32xf32>
      %632 = vector.shape_cast %631 : vector<32xf32> to vector<32x1xf32>
      %cst_357 = arith.constant 0.0204081628 : f32
      %633 = vector.broadcast %cst_357 : f32 to vector<32x1xf32>
      %634 = arith.mulf %632, %633 : vector<32x1xf32>
      %635 = vector.broadcast %634 : vector<32x1xf32> to vector<32x49xf32>
      %636 = arith.subf %53, %635 : vector<32x49xf32>
      %637 = arith.mulf %636, %636 : vector<32x49xf32>
      %cst_358 = arith.constant dense<0.000000e+00> : vector<32xf32>
      %638 = vector.multi_reduction <add>, %637, %cst_358 [1] : vector<32x49xf32> to vector<32xf32>
      %639 = vector.shape_cast %638 : vector<32xf32> to vector<32x1xf32>
      %cst_359 = arith.constant 0.0204081628 : f32
      %640 = vector.broadcast %cst_359 : f32 to vector<32x1xf32>
      %641 = arith.mulf %639, %640 : vector<32x1xf32>
      %cst_360 = arith.constant 9.99999974E-6 : f32
      %642 = vector.broadcast %cst_360 : f32 to vector<32x1xf32>
      %643 = arith.addf %641, %642 : vector<32x1xf32>
      %644 = math.rsqrt %643 : vector<32x1xf32>
      %645 = arith.mulf %644, %629 : vector<32x1xf32>
      %646 = vector.broadcast %645 : vector<32x1xf32> to vector<32x49xf32>
      %647 = arith.mulf %636, %646 : vector<32x49xf32>
      %648 = vector.broadcast %630 : vector<32x1xf32> to vector<32x49xf32>
      %649 = arith.addf %647, %648 : vector<32x49xf32>
      %c800_361 = arith.constant 800 : index
      %c0_362 = arith.constant 0 : index
      %650 = vector.load %arg31[%c800_361, %c0_362] : memref<864x49xf32, #tpu.memory_space<vmem>>, vector<32x49xf32>
      tpu.vector_store %arg31[%c800_361, %c0_362], %649 {strides = array<i32>} : memref<864x49xf32, #tpu.memory_space<vmem>>, vector<32x49xf32>,
      %c0_363 = arith.constant 0 : index
      %c0_364 = arith.constant 0 : index
      %651 = vector.load %arg26[%c0_363, %c0_364] : memref<32x49xf32, #tpu.memory_space<vmem>>, vector<32x49xf32>
      %c832 = arith.constant 832 : index
      %c0_365 = arith.constant 0 : index
      %652 = vector.load %arg30[%c832, %c0_365] : memref<864x2xf32, #tpu.memory_space<vmem>>, vector<32x1xf32>
      %c832_366 = arith.constant 832 : index
      %c1_367 = arith.constant 1 : index
      %653 = vector.load %arg30[%c832_366, %c1_367] : memref<864x2xf32, #tpu.memory_space<vmem>>, vector<32x1xf32>
      %cst_368 = arith.constant dense<0.000000e+00> : vector<32xf32>
      %654 = vector.multi_reduction <add>, %651, %cst_368 [1] : vector<32x49xf32> to vector<32xf32>
      %655 = vector.shape_cast %654 : vector<32xf32> to vector<32x1xf32>
      %cst_369 = arith.constant 0.0204081628 : f32
      %656 = vector.broadcast %cst_369 : f32 to vector<32x1xf32>
      %657 = arith.mulf %655, %656 : vector<32x1xf32>
      %658 = vector.broadcast %657 : vector<32x1xf32> to vector<32x49xf32>
      %659 = arith.subf %651, %658 : vector<32x49xf32>
      %660 = arith.mulf %659, %659 : vector<32x49xf32>
      %cst_370 = arith.constant dense<0.000000e+00> : vector<32xf32>
      %661 = vector.multi_reduction <add>, %660, %cst_370 [1] : vector<32x49xf32> to vector<32xf32>
      %662 = vector.shape_cast %661 : vector<32xf32> to vector<32x1xf32>
      %cst_371 = arith.constant 0.0204081628 : f32
      %663 = vector.broadcast %cst_371 : f32 to vector<32x1xf32>
      %664 = arith.mulf %662, %663 : vector<32x1xf32>
      %cst_372 = arith.constant 9.99999974E-6 : f32
      %665 = vector.broadcast %cst_372 : f32 to vector<32x1xf32>
      %666 = arith.addf %664, %665 : vector<32x1xf32>
      %667 = math.rsqrt %666 : vector<32x1xf32>
      %668 = arith.mulf %667, %652 : vector<32x1xf32>
      %669 = vector.broadcast %668 : vector<32x1xf32> to vector<32x49xf32>
      %670 = arith.mulf %659, %669 : vector<32x49xf32>
      %671 = vector.broadcast %653 : vector<32x1xf32> to vector<32x49xf32>
      %672 = arith.addf %670, %671 : vector<32x49xf32>
      %c832_373 = arith.constant 832 : index
      %c0_374 = arith.constant 0 : index
      %673 = vector.load %arg31[%c832_373, %c0_374] : memref<864x49xf32, #tpu.memory_space<vmem>>, vector<32x49xf32>
      tpu.vector_store %arg31[%c832_373, %c0_374], %672 {strides = array<i32>} : memref<864x49xf32, #tpu.memory_space<vmem>>, vector<32x49xf32>,
    } else {
    }
    return
  }
  func.func @transform_0(%arg0: i32) -> (i32, i32) {
    %c0_i32 = arith.constant 0 : i32
    %c0_i32_0 = arith.constant 0 : i32
    %c0_i32_1 = arith.constant 0 : i32
    return %c0_i32, %c0_i32_0 : i32, i32
  }
  func.func @transform_1(%arg0: i32) -> (i32, i32) {
    %c0_i32 = arith.constant 0 : i32
    %c0_i32_0 = arith.constant 0 : i32
    %c0_i32_1 = arith.constant 0 : i32
    return %c0_i32, %c0_i32_0 : i32, i32
  }
  func.func @transform_2(%arg0: i32) -> (i32, i32) {
    %c0_i32 = arith.constant 0 : i32
    %c0_i32_0 = arith.constant 0 : i32
    %c0_i32_1 = arith.constant 0 : i32
    return %c0_i32, %c0_i32_0 : i32, i32
  }
  func.func @transform_3(%arg0: i32) -> (i32, i32) {
    %c0_i32 = arith.constant 0 : i32
    %c0_i32_0 = arith.constant 0 : i32
    %c0_i32_1 = arith.constant 0 : i32
    return %c0_i32, %c0_i32_0 : i32, i32
  }
  func.func @transform_4(%arg0: i32) -> (i32, i32) {
    %c0_i32 = arith.constant 0 : i32
    %c0_i32_0 = arith.constant 0 : i32
    %c0_i32_1 = arith.constant 0 : i32
    return %c0_i32, %c0_i32_0 : i32, i32
  }
  func.func @transform_5(%arg0: i32) -> (i32, i32) {
    %c0_i32 = arith.constant 0 : i32
    %c0_i32_0 = arith.constant 0 : i32
    %c0_i32_1 = arith.constant 0 : i32
    return %c0_i32, %c0_i32_0 : i32, i32
  }
  func.func @transform_6(%arg0: i32) -> (i32, i32) {
    %c0_i32 = arith.constant 0 : i32
    %c0_i32_0 = arith.constant 0 : i32
    %c0_i32_1 = arith.constant 0 : i32
    return %c0_i32, %c0_i32_0 : i32, i32
  }
  func.func @transform_7(%arg0: i32) -> (i32, i32) {
    %c0_i32 = arith.constant 0 : i32
    %c0_i32_0 = arith.constant 0 : i32
    %c0_i32_1 = arith.constant 0 : i32
    return %c0_i32, %c0_i32_0 : i32, i32
  }
  func.func @transform_8(%arg0: i32) -> (i32, i32) {
    %c0_i32 = arith.constant 0 : i32
    %c0_i32_0 = arith.constant 0 : i32
    %c0_i32_1 = arith.constant 0 : i32
    return %c0_i32, %c0_i32_0 : i32, i32
  }
  func.func @transform_9(%arg0: i32) -> (i32, i32) {
    %c0_i32 = arith.constant 0 : i32
    %c0_i32_0 = arith.constant 0 : i32
    %c0_i32_1 = arith.constant 0 : i32
    return %c0_i32, %c0_i32_0 : i32, i32
  }
  func.func @transform_10(%arg0: i32) -> (i32, i32) {
    %c0_i32 = arith.constant 0 : i32
    %c0_i32_0 = arith.constant 0 : i32
    %c0_i32_1 = arith.constant 0 : i32
    return %c0_i32, %c0_i32_0 : i32, i32
  }
  func.func @transform_11(%arg0: i32) -> (i32, i32) {
    %c0_i32 = arith.constant 0 : i32
    %c0_i32_0 = arith.constant 0 : i32
    %c0_i32_1 = arith.constant 0 : i32
    return %c0_i32, %c0_i32_0 : i32, i32
  }
  func.func @transform_12(%arg0: i32) -> (i32, i32) {
    %c0_i32 = arith.constant 0 : i32
    %c0_i32_0 = arith.constant 0 : i32
    %c0_i32_1 = arith.constant 0 : i32
    return %c0_i32, %c0_i32_0 : i32, i32
  }
  func.func @transform_13(%arg0: i32) -> (i32, i32) {
    %c0_i32 = arith.constant 0 : i32
    %c0_i32_0 = arith.constant 0 : i32
    %c0_i32_1 = arith.constant 0 : i32
    return %c0_i32, %c0_i32_0 : i32, i32
  }
  func.func @transform_14(%arg0: i32) -> (i32, i32) {
    %c0_i32 = arith.constant 0 : i32
    %c0_i32_0 = arith.constant 0 : i32
    %c0_i32_1 = arith.constant 0 : i32
    return %c0_i32, %c0_i32_0 : i32, i32
  }
  func.func @transform_15(%arg0: i32) -> (i32, i32) {
    %c0_i32 = arith.constant 0 : i32
    %c0_i32_0 = arith.constant 0 : i32
    %c0_i32_1 = arith.constant 0 : i32
    return %c0_i32, %c0_i32_0 : i32, i32
  }
  func.func @transform_16(%arg0: i32) -> (i32, i32) {
    %c0_i32 = arith.constant 0 : i32
    %c0_i32_0 = arith.constant 0 : i32
    %c0_i32_1 = arith.constant 0 : i32
    return %c0_i32, %c0_i32_0 : i32, i32
  }
  func.func @transform_17(%arg0: i32) -> (i32, i32) {
    %c0_i32 = arith.constant 0 : i32
    %c0_i32_0 = arith.constant 0 : i32
    %c0_i32_1 = arith.constant 0 : i32
    return %c0_i32, %c0_i32_0 : i32, i32
  }
  func.func @transform_18(%arg0: i32) -> (i32, i32) {
    %c0_i32 = arith.constant 0 : i32
    %c0_i32_0 = arith.constant 0 : i32
    %c0_i32_1 = arith.constant 0 : i32
    return %c0_i32, %c0_i32_0 : i32, i32
  }
  func.func @transform_19(%arg0: i32) -> (i32, i32) {
    %c0_i32 = arith.constant 0 : i32
    %c0_i32_0 = arith.constant 0 : i32
    %c0_i32_1 = arith.constant 0 : i32
    return %c0_i32, %c0_i32_0 : i32, i32
  }
  func.func @transform_20(%arg0: i32) -> (i32, i32) {
    %c0_i32 = arith.constant 0 : i32
    %c0_i32_0 = arith.constant 0 : i32
    %c0_i32_1 = arith.constant 0 : i32
    return %c0_i32, %c0_i32_0 : i32, i32
  }
  func.func @transform_21(%arg0: i32) -> (i32, i32) {
    %c0_i32 = arith.constant 0 : i32
    %c0_i32_0 = arith.constant 0 : i32
    %c0_i32_1 = arith.constant 0 : i32
    return %c0_i32, %c0_i32_0 : i32, i32
  }
  func.func @transform_22(%arg0: i32) -> (i32, i32) {
    %c0_i32 = arith.constant 0 : i32
    %c0_i32_0 = arith.constant 0 : i32
    %c0_i32_1 = arith.constant 0 : i32
    return %c0_i32, %c0_i32_0 : i32, i32
  }
  func.func @transform_23(%arg0: i32) -> (i32, i32) {
    %c0_i32 = arith.constant 0 : i32
    %c0_i32_0 = arith.constant 0 : i32
    %c0_i32_1 = arith.constant 0 : i32
    return %c0_i32, %c0_i32_0 : i32, i32
  }
  func.func @transform_24(%arg0: i32) -> (i32, i32) {
    %c0_i32 = arith.constant 0 : i32
    %c0_i32_0 = arith.constant 0 : i32
    %c0_i32_1 = arith.constant 0 : i32
    return %c0_i32, %c0_i32_0 : i32, i32
  }
  func.func @transform_25(%arg0: i32) -> (i32, i32) {
    %c0_i32 = arith.constant 0 : i32
    %c0_i32_0 = arith.constant 0 : i32
    %c0_i32_1 = arith.constant 0 : i32
    return %c0_i32, %c0_i32_0 : i32, i32
  }
  func.func @transform_26(%arg0: i32) -> (i32, i32) {
    %c0_i32 = arith.constant 0 : i32
    %c0_i32_0 = arith.constant 0 : i32
    %c0_i32_1 = arith.constant 0 : i32
    return %c0_i32, %c0_i32_0 : i32, i32
  }
  func.func @transform_27(%arg0: i32) -> (i32, i32) {
    %c0_i32 = arith.constant 0 : i32
    %c0_i32_0 = arith.constant 0 : i32
    %c0_i32_1 = arith.constant 0 : i32
    return %c0_i32, %c0_i32_0 : i32, i32
  }
  func.func @transform_28(%arg0: i32) -> (i32, i32, i32) {
    %c0_i32 = arith.constant 0 : i32
    %c0_i32_0 = arith.constant 0 : i32
    %c0_i32_1 = arith.constant 0 : i32
    %c0_i32_2 = arith.constant 0 : i32
    return %c0_i32, %c0_i32_0, %c0_i32_1 : i32, i32, i32
  }
  func.func @transform_29(%arg0: i32) -> (i32, i32) {
    %c0_i32 = arith.constant 0 : i32
    %c0_i32_0 = arith.constant 0 : i32
    return %arg0, %c0_i32 : i32, i32
  }
  func.func @transform_30(%arg0: i32) -> (i32, i32) {
    %c0_i32 = arith.constant 0 : i32
    %c0_i32_0 = arith.constant 0 : i32
    return %arg0, %c0_i32 : i32, i32
  }
}

</mosaic_0001>

<llo_original>
// kernel: forward.1
$region0: #{forward.1}
  #allocation0 [shape = 'u32[]', space=smem, size = 0x4, offset = 0x4, fixed_abs, tag = 'smem constant byte address 0x4 - core index']
  #allocation1 [shape = 'u32[144,128]{1,0:T(1,128)}', space=vmem, size = 0x12000, scoped, tag = 'internal scratch']
  #allocation2 [shape = 'f32[288,49]{1,0:T(8,128)}', space=vmem, size = 0x24000, scoped, tag = 'scratch operand']
  %s0 = inlined_call_operand.smem [shape: u32[31], index: -1, kind: input, shape index: {}]
  %s1 = sld [smem:[%s0]]
  %s2 = scalar_lea.smem %s0, 1
  %s3 = sld [smem:[%s2]]
  %s4 = scalar_lea.smem %s0, 2
  %s5 = sld [smem:[%s4]]
  %s6 = scalar_lea.smem %s0, 3
  %s7 = sld [smem:[%s6]]
  %s8 = scalar_lea.smem %s0, 4
  %s9 = sld [smem:[%s8]]
  %s10 = scalar_lea.smem %s0, 5
  %s11 = sld [smem:[%s10]]
  %s12 = scalar_lea.smem %s0, 6
  %s13 = sld [smem:[%s12]]
  %s14 = scalar_lea.smem %s0, 7
  %s15 = sld [smem:[%s14]]
  %s16 = scalar_lea.smem %s0, 8
  %s17 = sld [smem:[%s16]]
  %s18 = scalar_lea.smem %s0, 9
  %s19 = sld [smem:[%s18]]
  %s20 = scalar_lea.smem %s0, 10
  %s21 = sld [smem:[%s20]]
  %s22 = scalar_lea.smem %s0, 11
  %s23 = sld [smem:[%s22]]
  %s24 = scalar_lea.smem %s0, 12
  %s25 = sld [smem:[%s24]]
  %s26 = scalar_lea.smem %s0, 13
  %s27 = sld [smem:[%s26]]
  %s28 = scalar_lea.smem %s0, 14
  %s29 = sld [smem:[%s28]]
  %s30 = scalar_lea.smem %s0, 15
  %s31 = sld [smem:[%s30]]
  %s32 = scalar_lea.smem %s0, 16
  %s33 = sld [smem:[%s32]]
  %s34 = scalar_lea.smem %s0, 17
  %s35 = sld [smem:[%s34]]
  %s36 = scalar_lea.smem %s0, 18
  %s37 = sld [smem:[%s36]]
  %s38 = scalar_lea.smem %s0, 19
  %s39 = sld [smem:[%s38]]
  %s40 = scalar_lea.smem %s0, 20
  %s41 = sld [smem:[%s40]]
  %s42 = scalar_lea.smem %s0, 21
  %s43 = sld [smem:[%s42]]
  %s44 = scalar_lea.smem %s0, 22
  %s45 = sld [smem:[%s44]]
  %s46 = scalar_lea.smem %s0, 23
  %s47 = sld [smem:[%s46]]
  %s48 = scalar_lea.smem %s0, 24
  %s49 = sld [smem:[%s48]]
  %s50 = scalar_lea.smem %s0, 25
  %s51 = sld [smem:[%s50]]
  %s52 = scalar_lea.smem %s0, 26
  %s53 = sld [smem:[%s52]]
  %s54 = scalar_lea.smem %s0, 27
  %s55 = sld [smem:[%s54]]
  %s56 = scalar_lea.smem %s0, 28
  %s57 = sld [smem:[%s56]]
  %s58 = scalar_lea.smem %s0, 29
  %s59 = sld [smem:[%s58]]
  %s60 = scalar_lea.smem %s0, 30
  %s61 = sld [smem:[%s60]]
  %s62 = sld [smem:[#allocation0]]
  $region161: #{forward.1} parent=0
    _
  %s64 = ssub.s32 1, %s62
  %s65 = scalar_select 0, %s64, %s62
  loop: start=0, step=1, limit=4
  $region2: #{forward.1} parent=0 // loop_pre_header
    _
  $region3: #{forward.1} parent=0 // loop_header
    %s67 = sphi 0, %s71
    %p68 = scmp.ge.s32.totalorder %s67, 4
    %s75 = sphi 0, %s75
    %s77 = sphi 0, %s75
    %s78 = sphi 0, %s77
    %s92 = sphi 0, %s78
    %s96 = sphi 0, %s96
    %s98 = sphi 0, %s96
    %s99 = sphi 0, %s98
    %s113 = sphi 0, %s99
    %s117 = sphi 0, %s117
    %s119 = sphi 0, %s117
    %s120 = sphi 0, %s119
    %s134 = sphi 0, %s120
    %s138 = sphi 0, %s138
    %s140 = sphi 0, %s138
    %s141 = sphi 0, %s140
    %s155 = sphi 0, %s141
    %s159 = sphi 0, %s159
    %s161 = sphi 0, %s159
    %s162 = sphi 0, %s161
    %s176 = sphi 0, %s162
    %s180 = sphi 0, %s180
    %s182 = sphi 0, %s180
    %s183 = sphi 0, %s182
    %s197 = sphi 0, %s183
    %s201 = sphi 0, %s201
    %s203 = sphi 0, %s201
    %s204 = sphi 0, %s203
    %s218 = sphi 0, %s204
    %s222 = sphi 0, %s222
    %s224 = sphi 0, %s222
    %s225 = sphi 0, %s224
    %s239 = sphi 0, %s225
    %s243 = sphi 0, %s243
    %s245 = sphi 0, %s243
    %s246 = sphi 0, %s245
    %s260 = sphi 0, %s246
    %s264 = sphi 0, %s264
    %s266 = sphi 0, %s264
    %s267 = sphi 0, %s266
    %s281 = sphi 0, %s267
    %s285 = sphi 0, %s285
    %s287 = sphi 0, %s285
    %s288 = sphi 0, %s287
    %s302 = sphi 0, %s288
    %s306 = sphi 0, %s306
    %s308 = sphi 0, %s306
    %s309 = sphi 0, %s308
    %s323 = sphi 0, %s309
    %s327 = sphi 0, %s327
    %s329 = sphi 0, %s327
    %s330 = sphi 0, %s329
    %s344 = sphi 0, %s330
    %s348 = sphi 0, %s348
    %s350 = sphi 0, %s348
    %s351 = sphi 0, %s350
    %s365 = sphi 0, %s351
    %s369 = sphi 0, %s369
    %s371 = sphi 0, %s369
    %s372 = sphi 0, %s371
    %s386 = sphi 0, %s372
    %s390 = sphi 0, %s390
    %s392 = sphi 0, %s390
    %s393 = sphi 0, %s392
    %s407 = sphi 0, %s393
    %s411 = sphi 0, %s411
    %s413 = sphi 0, %s411
    %s414 = sphi 0, %s413
    %s428 = sphi 0, %s414
    %s432 = sphi 0, %s432
    %s434 = sphi 0, %s432
    %s435 = sphi 0, %s434
    %s449 = sphi 0, %s435
    %s453 = sphi 0, %s453
    %s455 = sphi 0, %s453
    %s456 = sphi 0, %s455
    %s470 = sphi 0, %s456
    %s474 = sphi 0, %s474
    %s476 = sphi 0, %s474
    %s477 = sphi 0, %s476
    %s491 = sphi 0, %s477
    %s495 = sphi 0, %s495
    %s497 = sphi 0, %s495
    %s498 = sphi 0, %s497
    %s512 = sphi 0, %s498
    %s516 = sphi 0, %s516
    %s518 = sphi 0, %s516
    %s519 = sphi 0, %s518
    %s533 = sphi 0, %s519
    %s537 = sphi 0, %s537
    %s539 = sphi 0, %s537
    %s540 = sphi 0, %s539
    %s554 = sphi 0, %s540
    %s558 = sphi 0, %s558
    %s560 = sphi 0, %s558
    %s561 = sphi 0, %s560
    %s575 = sphi 0, %s561
    %s579 = sphi 0, %s579
    %s581 = sphi 0, %s579
    %s582 = sphi 0, %s581
    %s596 = sphi 0, %s582
    %s600 = sphi 0, %s600
    %s602 = sphi 0, %s600
    %s603 = sphi 0, %s602
    %s617 = sphi 0, %s603
    %s621 = sphi 0, %s621
    %s623 = sphi 0, %s621
    %s624 = sphi 0, %s623
    %s638 = sphi 0, %s624
    %s642 = sphi 0, %s642
    %s644 = sphi 0, %s642
    %s645 = sphi 0, %s644
    %s659 = sphi 0, %s645
    %s663 = sphi 0, %s663
    %s665 = sphi 0, %s663
    %s666 = sphi 0, %s665
    %s680 = sphi 0, %s666
    %s686 = sphi 0, %s688
    %s689 = sphi 0, %s686
    %s690 = sphi 0, %s689
    %s706 = sphi 0, %s690
    %s712 = sphi 0, %s714
    %s715 = sphi 0, %s712
    %s716 = sphi 0, %s715
    %s732 = sphi 0, %s716
  $region4: #{forward.1} parent=0 // loop_header_branch
    %70 = sbr.rel (%p68) target = $region8
  $region5: #{forward.1} parent=0 // loop_body
    %s72 = ssub.s32 %s67, 1
    %s73 = ssub.s32 %s67, 2
    %s74 = sadd.s32 %s67, 1
    %s76 = sadd.s32 %s75, 1
    %p79 = scmp.eq.s32.totalorder %s67, 1
    %p80 = scmp.ne.s32.totalorder %s75, %s77
    %p81 = scmp.eq.s32.totalorder %s67, 0
    %p82 = por %p80, %p81
    %p83 = scmp.ne.s32.totalorder %s75, %s77
    %p84 = scmp.eq.s32.totalorder %s72, 1
    %p85 = por %p83, %p84
    %p86 = scmp.ne.s32.totalorder %s77, %s78
    %p87 = scmp.eq.s32.totalorder %s72, 0
    %p88 = por %p86, %p87
    %p89 = scmp.ne.s32.totalorder %s77, %s78
    %p90 = scmp.eq.s32.totalorder %s73, 1
    %p91 = por %p89, %p90
    %p93 = scmp.ne.s32.totalorder %s78, %s92
    %p94 = scmp.eq.s32.totalorder %s73, 0
    %p95 = por %p93, %p94
    %s97 = sadd.s32 %s96, 1
    %p100 = scmp.eq.s32.totalorder %s67, 1
    %p101 = scmp.ne.s32.totalorder %s96, %s98
    %p102 = scmp.eq.s32.totalorder %s67, 0
    %p103 = por %p101, %p102
    %p104 = scmp.ne.s32.totalorder %s96, %s98
    %p105 = scmp.eq.s32.totalorder %s72, 1
    %p106 = por %p104, %p105
    %p107 = scmp.ne.s32.totalorder %s98, %s99
    %p108 = scmp.eq.s32.totalorder %s72, 0
    %p109 = por %p107, %p108
    %p110 = scmp.ne.s32.totalorder %s98, %s99
    %p111 = scmp.eq.s32.totalorder %s73, 1
    %p112 = por %p110, %p111
    %p114 = scmp.ne.s32.totalorder %s99, %s113
    %p115 = scmp.eq.s32.totalorder %s73, 0
    %p116 = por %p114, %p115
    %s118 = sadd.s32 %s117, 1
    %p121 = scmp.eq.s32.totalorder %s67, 1
    %p122 = scmp.ne.s32.totalorder %s117, %s119
    %p123 = scmp.eq.s32.totalorder %s67, 0
    %p124 = por %p122, %p123
    %p125 = scmp.ne.s32.totalorder %s117, %s119
    %p126 = scmp.eq.s32.totalorder %s72, 1
    %p127 = por %p125, %p126
    %p128 = scmp.ne.s32.totalorder %s119, %s120
    %p129 = scmp.eq.s32.totalorder %s72, 0
    %p130 = por %p128, %p129
    %p131 = scmp.ne.s32.totalorder %s119, %s120
    %p132 = scmp.eq.s32.totalorder %s73, 1
    %p133 = por %p131, %p132
    %p135 = scmp.ne.s32.totalorder %s120, %s134
    %p136 = scmp.eq.s32.totalorder %s73, 0
    %p137 = por %p135, %p136
    %s139 = sadd.s32 %s138, 1
    %p142 = scmp.eq.s32.totalorder %s67, 1
    %p143 = scmp.ne.s32.totalorder %s138, %s140
    %p144 = scmp.eq.s32.totalorder %s67, 0
    %p145 = por %p143, %p144
    %p146 = scmp.ne.s32.totalorder %s138, %s140
    %p147 = scmp.eq.s32.totalorder %s72, 1
    %p148 = por %p146, %p147
    %p149 = scmp.ne.s32.totalorder %s140, %s141
    %p150 = scmp.eq.s32.totalorder %s72, 0
    %p151 = por %p149, %p150
    %p152 = scmp.ne.s32.totalorder %s140, %s141
    %p153 = scmp.eq.s32.totalorder %s73, 1
    %p154 = por %p152, %p153
    %p156 = scmp.ne.s32.totalorder %s141, %s155
    %p157 = scmp.eq.s32.totalorder %s73, 0
    %p158 = por %p156, %p157
    %s160 = sadd.s32 %s159, 1
    %p163 = scmp.eq.s32.totalorder %s67, 1
    %p164 = scmp.ne.s32.totalorder %s159, %s161
    %p165 = scmp.eq.s32.totalorder %s67, 0
    %p166 = por %p164, %p165
    %p167 = scmp.ne.s32.totalorder %s159, %s161
    %p168 = scmp.eq.s32.totalorder %s72, 1
    %p169 = por %p167, %p168
    %p170 = scmp.ne.s32.totalorder %s161, %s162
    %p171 = scmp.eq.s32.totalorder %s72, 0
    %p172 = por %p170, %p171
    %p173 = scmp.ne.s32.totalorder %s161, %s162
    %p174 = scmp.eq.s32.totalorder %s73, 1
    %p175 = por %p173, %p174
    %p177 = scmp.ne.s32.totalorder %s162, %s176
    %p178 = scmp.eq.s32.totalorder %s73, 0
    %p179 = por %p177, %p178
    %s181 = sadd.s32 %s180, 1
    %p184 = scmp.eq.s32.totalorder %s67, 1
    %p185 = scmp.ne.s32.totalorder %s180, %s182
    %p186 = scmp.eq.s32.totalorder %s67, 0
    %p187 = por %p185, %p186
    %p188 = scmp.ne.s32.totalorder %s180, %s182
    %p189 = scmp.eq.s32.totalorder %s72, 1
    %p190 = por %p188, %p189
    %p191 = scmp.ne.s32.totalorder %s182, %s183
    %p192 = scmp.eq.s32.totalorder %s72, 0
    %p193 = por %p191, %p192
    %p194 = scmp.ne.s32.totalorder %s182, %s183
    %p195 = scmp.eq.s32.totalorder %s73, 1
    %p196 = por %p194, %p195
    %p198 = scmp.ne.s32.totalorder %s183, %s197
    %p199 = scmp.eq.s32.totalorder %s73, 0
    %p200 = por %p198, %p199
    %s202 = sadd.s32 %s201, 1
    %p205 = scmp.eq.s32.totalorder %s67, 1
    %p206 = scmp.ne.s32.totalorder %s201, %s203
    %p207 = scmp.eq.s32.totalorder %s67, 0
    %p208 = por %p206, %p207
    %p209 = scmp.ne.s32.totalorder %s201, %s203
    %p210 = scmp.eq.s32.totalorder %s72, 1
    %p211 = por %p209, %p210
    %p212 = scmp.ne.s32.totalorder %s203, %s204
    %p213 = scmp.eq.s32.totalorder %s72, 0
    %p214 = por %p212, %p213
    %p215 = scmp.ne.s32.totalorder %s203, %s204
    %p216 = scmp.eq.s32.totalorder %s73, 1
    %p217 = por %p215, %p216
    %p219 = scmp.ne.s32.totalorder %s204, %s218
    %p220 = scmp.eq.s32.totalorder %s73, 0
    %p221 = por %p219, %p220
    %s223 = sadd.s32 %s222, 1
    %p226 = scmp.eq.s32.totalorder %s67, 1
    %p227 = scmp.ne.s32.totalorder %s222, %s224
    %p228 = scmp.eq.s32.totalorder %s67, 0
    %p229 = por %p227, %p228
    %p230 = scmp.ne.s32.totalorder %s222, %s224
    %p231 = scmp.eq.s32.totalorder %s72, 1
    %p232 = por %p230, %p231
    %p233 = scmp.ne.s32.totalorder %s224, %s225
    %p234 = scmp.eq.s32.totalorder %s72, 0
    %p235 = por %p233, %p234
    %p236 = scmp.ne.s32.totalorder %s224, %s225
    %p237 = scmp.eq.s32.totalorder %s73, 1
    %p238 = por %p236, %p237
    %p240 = scmp.ne.s32.totalorder %s225, %s239
    %p241 = scmp.eq.s32.totalorder %s73, 0
    %p242 = por %p240, %p241
    %s244 = sadd.s32 %s243, 1
    %p247 = scmp.eq.s32.totalorder %s67, 1
    %p248 = scmp.ne.s32.totalorder %s243, %s245
    %p249 = scmp.eq.s32.totalorder %s67, 0
    %p250 = por %p248, %p249
    %p251 = scmp.ne.s32.totalorder %s243, %s245
    %p252 = scmp.eq.s32.totalorder %s72, 1
    %p253 = por %p251, %p252
    %p254 = scmp.ne.s32.totalorder %s245, %s246
    %p255 = scmp.eq.s32.totalorder %s72, 0
    %p256 = por %p254, %p255
    %p257 = scmp.ne.s32.totalorder %s245, %s246
    %p258 = scmp.eq.s32.totalorder %s73, 1
    %p259 = por %p257, %p258
    %p261 = scmp.ne.s32.totalorder %s246, %s260
    %p262 = scmp.eq.s32.totalorder %s73, 0
    %p263 = por %p261, %p262
    %s265 = sadd.s32 %s264, 1
    %p268 = scmp.eq.s32.totalorder %s67, 1
    %p269 = scmp.ne.s32.totalorder %s264, %s266
    %p270 = scmp.eq.s32.totalorder %s67, 0
    %p271 = por %p269, %p270
    %p272 = scmp.ne.s32.totalorder %s264, %s266
    %p273 = scmp.eq.s32.totalorder %s72, 1
    %p274 = por %p272, %p273
    %p275 = scmp.ne.s32.totalorder %s266, %s267
    %p276 = scmp.eq.s32.totalorder %s72, 0
    %p277 = por %p275, %p276
    %p278 = scmp.ne.s32.totalorder %s266, %s267
    %p279 = scmp.eq.s32.totalorder %s73, 1
    %p280 = por %p278, %p279
    %p282 = scmp.ne.s32.totalorder %s267, %s281
    %p283 = scmp.eq.s32.totalorder %s73, 0
    %p284 = por %p282, %p283
    %s286 = sadd.s32 %s285, 1
    %p289 = scmp.eq.s32.totalorder %s67, 1
    %p290 = scmp.ne.s32.totalorder %s285, %s287
    %p291 = scmp.eq.s32.totalorder %s67, 0
    %p292 = por %p290, %p291
    %p293 = scmp.ne.s32.totalorder %s285, %s287
    %p294 = scmp.eq.s32.totalorder %s72, 1
    %p295 = por %p293, %p294
    %p296 = scmp.ne.s32.totalorder %s287, %s288
    %p297 = scmp.eq.s32.totalorder %s72, 0
    %p298 = por %p296, %p297
    %p299 = scmp.ne.s32.totalorder %s287, %s288
    %p300 = scmp.eq.s32.totalorder %s73, 1
    %p301 = por %p299, %p300
    %p303 = scmp.ne.s32.totalorder %s288, %s302
    %p304 = scmp.eq.s32.totalorder %s73, 0
    %p305 = por %p303, %p304
    %s307 = sadd.s32 %s306, 1
    %p310 = scmp.eq.s32.totalorder %s67, 1
    %p311 = scmp.ne.s32.totalorder %s306, %s308
    %p312 = scmp.eq.s32.totalorder %s67, 0
    %p313 = por %p311, %p312
    %p314 = scmp.ne.s32.totalorder %s306, %s308
    %p315 = scmp.eq.s32.totalorder %s72, 1
    %p316 = por %p314, %p315
    %p317 = scmp.ne.s32.totalorder %s308, %s309
    %p318 = scmp.eq.s32.totalorder %s72, 0
    %p319 = por %p317, %p318
    %p320 = scmp.ne.s32.totalorder %s308, %s309
    %p321 = scmp.eq.s32.totalorder %s73, 1
    %p322 = por %p320, %p321
    %p324 = scmp.ne.s32.totalorder %s309, %s323
    %p325 = scmp.eq.s32.totalorder %s73, 0
    %p326 = por %p324, %p325
    %s328 = sadd.s32 %s327, 1
    %p331 = scmp.eq.s32.totalorder %s67, 1
    %p332 = scmp.ne.s32.totalorder %s327, %s329
    %p333 = scmp.eq.s32.totalorder %s67, 0
    %p334 = por %p332, %p333
    %p335 = scmp.ne.s32.totalorder %s327, %s329
    %p336 = scmp.eq.s32.totalorder %s72, 1
    %p337 = por %p335, %p336
    %p338 = scmp.ne.s32.totalorder %s329, %s330
    %p339 = scmp.eq.s32.totalorder %s72, 0
    %p340 = por %p338, %p339
    %p341 = scmp.ne.s32.totalorder %s329, %s330
    %p342 = scmp.eq.s32.totalorder %s73, 1
    %p343 = por %p341, %p342
    %p345 = scmp.ne.s32.totalorder %s330, %s344
    %p346 = scmp.eq.s32.totalorder %s73, 0
    %p347 = por %p345, %p346
    %s349 = sadd.s32 %s348, 1
    %p352 = scmp.eq.s32.totalorder %s67, 1
    %p353 = scmp.ne.s32.totalorder %s348, %s350
    %p354 = scmp.eq.s32.totalorder %s67, 0
    %p355 = por %p353, %p354
    %p356 = scmp.ne.s32.totalorder %s348, %s350
    %p357 = scmp.eq.s32.totalorder %s72, 1
    %p358 = por %p356, %p357
    %p359 = scmp.ne.s32.totalorder %s350, %s351
    %p360 = scmp.eq.s32.totalorder %s72, 0
    %p361 = por %p359, %p360
    %p362 = scmp.ne.s32.totalorder %s350, %s351
    %p363 = scmp.eq.s32.totalorder %s73, 1
    %p364 = por %p362, %p363
    %p366 = scmp.ne.s32.totalorder %s351, %s365
    %p367 = scmp.eq.s32.totalorder %s73, 0
    %p368 = por %p366, %p367
    %s370 = sadd.s32 %s369, 1
    %p373 = scmp.eq.s32.totalorder %s67, 1
    %p374 = scmp.ne.s32.totalorder %s369, %s371
    %p375 = scmp.eq.s32.totalorder %s67, 0
    %p376 = por %p374, %p375
    %p377 = scmp.ne.s32.totalorder %s369, %s371
    %p378 = scmp.eq.s32.totalorder %s72, 1
    %p379 = por %p377, %p378
    %p380 = scmp.ne.s32.totalorder %s371, %s372
    %p381 = scmp.eq.s32.totalorder %s72, 0
    %p382 = por %p380, %p381
    %p383 = scmp.ne.s32.totalorder %s371, %s372
    %p384 = scmp.eq.s32.totalorder %s73, 1
    %p385 = por %p383, %p384
    %p387 = scmp.ne.s32.totalorder %s372, %s386
    %p388 = scmp.eq.s32.totalorder %s73, 0
    %p389 = por %p387, %p388
    %s391 = sadd.s32 %s390, 1
    %p394 = scmp.eq.s32.totalorder %s67, 1
    %p395 = scmp.ne.s32.totalorder %s390, %s392
    %p396 = scmp.eq.s32.totalorder %s67, 0
    %p397 = por %p395, %p396
    %p398 = scmp.ne.s32.totalorder %s390, %s392
    %p399 = scmp.eq.s32.totalorder %s72, 1
    %p400 = por %p398, %p399
    %p401 = scmp.ne.s32.totalorder %s392, %s393
    %p402 = scmp.eq.s32.totalorder %s72, 0
    %p403 = por %p401, %p402
    %p404 = scmp.ne.s32.totalorder %s392, %s393
    %p405 = scmp.eq.s32.totalorder %s73, 1
    %p406 = por %p404, %p405
    %p408 = scmp.ne.s32.totalorder %s393, %s407
    %p409 = scmp.eq.s32.totalorder %s73, 0
    %p410 = por %p408, %p409
    %s412 = sadd.s32 %s411, 1
    %p415 = scmp.eq.s32.totalorder %s67, 1
    %p416 = scmp.ne.s32.totalorder %s411, %s413
    %p417 = scmp.eq.s32.totalorder %s67, 0
    %p418 = por %p416, %p417
    %p419 = scmp.ne.s32.totalorder %s411, %s413
    %p420 = scmp.eq.s32.totalorder %s72, 1
    %p421 = por %p419, %p420
    %p422 = scmp.ne.s32.totalorder %s413, %s414
    %p423 = scmp.eq.s32.totalorder %s72, 0
    %p424 = por %p422, %p423
    %p425 = scmp.ne.s32.totalorder %s413, %s414
    %p426 = scmp.eq.s32.totalorder %s73, 1
    %p427 = por %p425, %p426
    %p429 = scmp.ne.s32.totalorder %s414, %s428
    %p430 = scmp.eq.s32.totalorder %s73, 0
    %p431 = por %p429, %p430
    %s433 = sadd.s32 %s432, 1
    %p436 = scmp.eq.s32.totalorder %s67, 1
    %p437 = scmp.ne.s32.totalorder %s432, %s434
    %p438 = scmp.eq.s32.totalorder %s67, 0
    %p439 = por %p437, %p438
    %p440 = scmp.ne.s32.totalorder %s432, %s434
    %p441 = scmp.eq.s32.totalorder %s72, 1
    %p442 = por %p440, %p441
    %p443 = scmp.ne.s32.totalorder %s434, %s435
    %p444 = scmp.eq.s32.totalorder %s72, 0
    %p445 = por %p443, %p444
    %p446 = scmp.ne.s32.totalorder %s434, %s435
    %p447 = scmp.eq.s32.totalorder %s73, 1
    %p448 = por %p446, %p447
    %p450 = scmp.ne.s32.totalorder %s435, %s449
    %p451 = scmp.eq.s32.totalorder %s73, 0
    %p452 = por %p450, %p451
    %s454 = sadd.s32 %s453, 1
    %p457 = scmp.eq.s32.totalorder %s67, 1
    %p458 = scmp.ne.s32.totalorder %s453, %s455
    %p459 = scmp.eq.s32.totalorder %s67, 0
    %p460 = por %p458, %p459
    %p461 = scmp.ne.s32.totalorder %s453, %s455
    %p462 = scmp.eq.s32.totalorder %s72, 1
    %p463 = por %p461, %p462
    %p464 = scmp.ne.s32.totalorder %s455, %s456
    %p465 = scmp.eq.s32.totalorder %s72, 0
    %p466 = por %p464, %p465
    %p467 = scmp.ne.s32.totalorder %s455, %s456
    %p468 = scmp.eq.s32.totalorder %s73, 1
    %p469 = por %p467, %p468
    %p471 = scmp.ne.s32.totalorder %s456, %s470
    %p472 = scmp.eq.s32.totalorder %s73, 0
    %p473 = por %p471, %p472
    %s475 = sadd.s32 %s474, 1
    %p478 = scmp.eq.s32.totalorder %s67, 1
    %p479 = scmp.ne.s32.totalorder %s474, %s476
    %p480 = scmp.eq.s32.totalorder %s67, 0
    %p481 = por %p479, %p480
    %p482 = scmp.ne.s32.totalorder %s474, %s476
    %p483 = scmp.eq.s32.totalorder %s72, 1
    %p484 = por %p482, %p483
    %p485 = scmp.ne.s32.totalorder %s476, %s477
    %p486 = scmp.eq.s32.totalorder %s72, 0
    %p487 = por %p485, %p486
    %p488 = scmp.ne.s32.totalorder %s476, %s477
    %p489 = scmp.eq.s32.totalorder %s73, 1
    %p490 = por %p488, %p489
    %p492 = scmp.ne.s32.totalorder %s477, %s491
    %p493 = scmp.eq.s32.totalorder %s73, 0
    %p494 = por %p492, %p493
    %s496 = sadd.s32 %s495, 1
    %p499 = scmp.eq.s32.totalorder %s67, 1
    %p500 = scmp.ne.s32.totalorder %s495, %s497
    %p501 = scmp.eq.s32.totalorder %s67, 0
    %p502 = por %p500, %p501
    %p503 = scmp.ne.s32.totalorder %s495, %s497
    %p504 = scmp.eq.s32.totalorder %s72, 1
    %p505 = por %p503, %p504
    %p506 = scmp.ne.s32.totalorder %s497, %s498
    %p507 = scmp.eq.s32.totalorder %s72, 0
    %p508 = por %p506, %p507
    %p509 = scmp.ne.s32.totalorder %s497, %s498
    %p510 = scmp.eq.s32.totalorder %s73, 1
    %p511 = por %p509, %p510
    %p513 = scmp.ne.s32.totalorder %s498, %s512
    %p514 = scmp.eq.s32.totalorder %s73, 0
    %p515 = por %p513, %p514
    %s517 = sadd.s32 %s516, 1
    %p520 = scmp.eq.s32.totalorder %s67, 1
    %p521 = scmp.ne.s32.totalorder %s516, %s518
    %p522 = scmp.eq.s32.totalorder %s67, 0
    %p523 = por %p521, %p522
    %p524 = scmp.ne.s32.totalorder %s516, %s518
    %p525 = scmp.eq.s32.totalorder %s72, 1
    %p526 = por %p524, %p525
    %p527 = scmp.ne.s32.totalorder %s518, %s519
    %p528 = scmp.eq.s32.totalorder %s72, 0
    %p529 = por %p527, %p528
    %p530 = scmp.ne.s32.totalorder %s518, %s519
    %p531 = scmp.eq.s32.totalorder %s73, 1
    %p532 = por %p530, %p531
    %p534 = scmp.ne.s32.totalorder %s519, %s533
    %p535 = scmp.eq.s32.totalorder %s73, 0
    %p536 = por %p534, %p535
    %s538 = sadd.s32 %s537, 1
    %p541 = scmp.eq.s32.totalorder %s67, 1
    %p542 = scmp.ne.s32.totalorder %s537, %s539
    %p543 = scmp.eq.s32.totalorder %s67, 0
    %p544 = por %p542, %p543
    %p545 = scmp.ne.s32.totalorder %s537, %s539
    %p546 = scmp.eq.s32.totalorder %s72, 1
    %p547 = por %p545, %p546
    %p548 = scmp.ne.s32.totalorder %s539, %s540
    %p549 = scmp.eq.s32.totalorder %s72, 0
    %p550 = por %p548, %p549
    %p551 = scmp.ne.s32.totalorder %s539, %s540
    %p552 = scmp.eq.s32.totalorder %s73, 1
    %p553 = por %p551, %p552
    %p555 = scmp.ne.s32.totalorder %s540, %s554
    %p556 = scmp.eq.s32.totalorder %s73, 0
    %p557 = por %p555, %p556
    %s559 = sadd.s32 %s558, 1
    %p562 = scmp.eq.s32.totalorder %s67, 1
    %p563 = scmp.ne.s32.totalorder %s558, %s560
    %p564 = scmp.eq.s32.totalorder %s67, 0
    %p565 = por %p563, %p564
    %p566 = scmp.ne.s32.totalorder %s558, %s560
    %p567 = scmp.eq.s32.totalorder %s72, 1
    %p568 = por %p566, %p567
    %p569 = scmp.ne.s32.totalorder %s560, %s561
    %p570 = scmp.eq.s32.totalorder %s72, 0
    %p571 = por %p569, %p570
    %p572 = scmp.ne.s32.totalorder %s560, %s561
    %p573 = scmp.eq.s32.totalorder %s73, 1
    %p574 = por %p572, %p573
    %p576 = scmp.ne.s32.totalorder %s561, %s575
    %p577 = scmp.eq.s32.totalorder %s73, 0
    %p578 = por %p576, %p577
    %s580 = sadd.s32 %s579, 1
    %p583 = scmp.eq.s32.totalorder %s67, 1
    %p584 = scmp.ne.s32.totalorder %s579, %s581
    %p585 = scmp.eq.s32.totalorder %s67, 0
    %p586 = por %p584, %p585
    %p587 = scmp.ne.s32.totalorder %s579, %s581
    %p588 = scmp.eq.s32.totalorder %s72, 1
    %p589 = por %p587, %p588
    %p590 = scmp.ne.s32.totalorder %s581, %s582
    %p591 = scmp.eq.s32.totalorder %s72, 0
    %p592 = por %p590, %p591
    %p593 = scmp.ne.s32.totalorder %s581, %s582
    %p594 = scmp.eq.s32.totalorder %s73, 1
    %p595 = por %p593, %p594
    %p597 = scmp.ne.s32.totalorder %s582, %s596
    %p598 = scmp.eq.s32.totalorder %s73, 0
    %p599 = por %p597, %p598
    %s601 = sadd.s32 %s600, 1
    %p604 = scmp.eq.s32.totalorder %s67, 1
    %p605 = scmp.ne.s32.totalorder %s600, %s602
    %p606 = scmp.eq.s32.totalorder %s67, 0
    %p607 = por %p605, %p606
    %p608 = scmp.ne.s32.totalorder %s600, %s602
    %p609 = scmp.eq.s32.totalorder %s72, 1
    %p610 = por %p608, %p609
    %p611 = scmp.ne.s32.totalorder %s602, %s603
    %p612 = scmp.eq.s32.totalorder %s72, 0
    %p613 = por %p611, %p612
    %p614 = scmp.ne.s32.totalorder %s602, %s603
    %p615 = scmp.eq.s32.totalorder %s73, 1
    %p616 = por %p614, %p615
    %p618 = scmp.ne.s32.totalorder %s603, %s617
    %p619 = scmp.eq.s32.totalorder %s73, 0
    %p620 = por %p618, %p619
    %s622 = sadd.s32 %s621, 1
    %p625 = scmp.eq.s32.totalorder %s67, 1
    %p626 = scmp.ne.s32.totalorder %s621, %s623
    %p627 = scmp.eq.s32.totalorder %s67, 0
    %p628 = por %p626, %p627
    %p629 = scmp.ne.s32.totalorder %s621, %s623
    %p630 = scmp.eq.s32.totalorder %s72, 1
    %p631 = por %p629, %p630
    %p632 = scmp.ne.s32.totalorder %s623, %s624
    %p633 = scmp.eq.s32.totalorder %s72, 0
    %p634 = por %p632, %p633
    %p635 = scmp.ne.s32.totalorder %s623, %s624
    %p636 = scmp.eq.s32.totalorder %s73, 1
    %p637 = por %p635, %p636
    %p639 = scmp.ne.s32.totalorder %s624, %s638
    %p640 = scmp.eq.s32.totalorder %s73, 0
    %p641 = por %p639, %p640
    %s643 = sadd.s32 %s642, 1
    %p646 = scmp.eq.s32.totalorder %s67, 1
    %p647 = scmp.ne.s32.totalorder %s642, %s644
    %p648 = scmp.eq.s32.totalorder %s67, 0
    %p649 = por %p647, %p648
    %p650 = scmp.ne.s32.totalorder %s642, %s644
    %p651 = scmp.eq.s32.totalorder %s72, 1
    %p652 = por %p650, %p651
    %p653 = scmp.ne.s32.totalorder %s644, %s645
    %p654 = scmp.eq.s32.totalorder %s72, 0
    %p655 = por %p653, %p654
    %p656 = scmp.ne.s32.totalorder %s644, %s645
    %p657 = scmp.eq.s32.totalorder %s73, 1
    %p658 = por %p656, %p657
    %p660 = scmp.ne.s32.totalorder %s645, %s659
    %p661 = scmp.eq.s32.totalorder %s73, 0
    %p662 = por %p660, %p661
    %s664 = sadd.s32 %s663, 1
    %p667 = scmp.eq.s32.totalorder %s67, 1
    %p668 = scmp.ne.s32.totalorder %s663, %s665
    %p669 = scmp.eq.s32.totalorder %s67, 0
    %p670 = por %p668, %p669
    %p671 = scmp.ne.s32.totalorder %s663, %s665
    %p672 = scmp.eq.s32.totalorder %s72, 1
    %p673 = por %p671, %p672
    %p674 = scmp.ne.s32.totalorder %s665, %s666
    %p675 = scmp.eq.s32.totalorder %s72, 0
    %p676 = por %p674, %p675
    %p677 = scmp.ne.s32.totalorder %s665, %s666
    %p678 = scmp.eq.s32.totalorder %s73, 1
    %p679 = por %p677, %p678
    %p681 = scmp.ne.s32.totalorder %s666, %s680
    %p682 = scmp.eq.s32.totalorder %s73, 0
    %p683 = por %p681, %p682
    %s684 = ssub.s32 %s67, %s74
    %p685 = scmp.eq.s32.totalorder %s684, 0
    %s687 = sadd.s32 %s686, 1
    %s688 = scalar_select %p685, %s686, %s687
    %p691 = pneg %p685
    %p692 = scmp.eq.s32.totalorder %s67, 1
    %p693 = por %p691, %p692
    %p694 = scmp.ne.s32.totalorder %s686, %s689
    %p695 = scmp.eq.s32.totalorder %s67, 0
    %p696 = por %p694, %p695
    %p697 = scmp.ne.s32.totalorder %s686, %s689
    %p698 = scmp.eq.s32.totalorder %s72, 1
    %p699 = por %p697, %p698
    %p700 = scmp.ne.s32.totalorder %s689, %s690
    %p701 = scmp.eq.s32.totalorder %s72, 0
    %p702 = por %p700, %p701
    %p703 = scmp.ne.s32.totalorder %s689, %s690
    %p704 = scmp.eq.s32.totalorder %s73, 1
    %p705 = por %p703, %p704
    %p707 = scmp.ne.s32.totalorder %s690, %s706
    %p708 = scmp.eq.s32.totalorder %s73, 0
    %p709 = por %p707, %p708
    %s710 = ssub.s32 %s67, %s74
    %p711 = scmp.eq.s32.totalorder %s710, 0
    %s713 = sadd.s32 %s712, 1
    %s714 = scalar_select %p711, %s712, %s713
    %p717 = pneg %p711
    %p718 = scmp.eq.s32.totalorder %s67, 1
    %p719 = por %p717, %p718
    %p720 = scmp.ne.s32.totalorder %s712, %s715
    %p721 = scmp.eq.s32.totalorder %s67, 0
    %p722 = por %p720, %p721
    %p723 = scmp.ne.s32.totalorder %s712, %s715
    %p724 = scmp.eq.s32.totalorder %s72, 1
    %p725 = por %p723, %p724
    %p726 = scmp.ne.s32.totalorder %s715, %s716
    %p727 = scmp.eq.s32.totalorder %s72, 0
    %p728 = por %p726, %p727
    %p729 = scmp.ne.s32.totalorder %s715, %s716
    %p730 = scmp.eq.s32.totalorder %s73, 1
    %p731 = por %p729, %p730
    %p733 = scmp.ne.s32.totalorder %s716, %s732
    %p734 = scmp.eq.s32.totalorder %s73, 0
    %p735 = por %p733, %p734
    %p736 = scmp.le.s32.totalorder 1, %s67
    %p737 = scmp.lt.s32.totalorder %s67, 3
    %p738 = pnand %p736, %p737
    %p739 = pneg %p738
    // Predicated region
    $region9: #{forward.1} parent=5 // pred_check
      _
    $region10: #{forward.1} parent=5 // pred_check_branch
      %741 = sbr.rel (%p738) target = $region12
    $region11: #{forward.1} parent=5 // pred_region
      %s742 = ssub.s32 %s67, 1
      // Predicated region
      $region13: #{forward.1} parent=11 // pred_check
        %p743 = pneg %p88
      $region14: #{forward.1} parent=11 // pred_check_branch
        %745 = sbr.rel (%p743) target = $region16
      $region15: #{forward.1} parent=11 // pred_region
        _
      $region16: #{forward.1} parent=11 // pred_fallthru
        _
      // Predicated region
      $region17: #{forward.1} parent=11 // pred_check
        %p746 = pneg %p109
      $region18: #{forward.1} parent=11 // pred_check_branch
        %748 = sbr.rel (%p746) target = $region20
      $region19: #{forward.1} parent=11 // pred_region
        _
      $region20: #{forward.1} parent=11 // pred_fallthru
        _
      // Predicated region
      $region21: #{forward.1} parent=11 // pred_check
        %p749 = pneg %p130
      $region22: #{forward.1} parent=11 // pred_check_branch
        %751 = sbr.rel (%p749) target = $region24
      $region23: #{forward.1} parent=11 // pred_region
        _
      $region24: #{forward.1} parent=11 // pred_fallthru
        _
      // Predicated region
      $region25: #{forward.1} parent=11 // pred_check
        %p752 = pneg %p151
      $region26: #{forward.1} parent=11 // pred_check_branch
        %754 = sbr.rel (%p752) target = $region28
      $region27: #{forward.1} parent=11 // pred_region
        _
      $region28: #{forward.1} parent=11 // pred_fallthru
        _
      // Predicated region
      $region29: #{forward.1} parent=11 // pred_check
        %p755 = pneg %p172
      $region30: #{forward.1} parent=11 // pred_check_branch
        %757 = sbr.rel (%p755) target = $region32
      $region31: #{forward.1} parent=11 // pred_region
        _
      $region32: #{forward.1} parent=11 // pred_fallthru
        _
      // Predicated region
      $region33: #{forward.1} parent=11 // pred_check
        %p758 = pneg %p193
      $region34: #{forward.1} parent=11 // pred_check_branch
        %760 = sbr.rel (%p758) target = $region36
      $region35: #{forward.1} parent=11 // pred_region
        _
      $region36: #{forward.1} parent=11 // pred_fallthru
        _
      // Predicated region
      $region37: #{forward.1} parent=11 // pred_check
        %p761 = pneg %p214
      $region38: #{forward.1} parent=11 // pred_check_branch
        %763 = sbr.rel (%p761) target = $region40
      $region39: #{forward.1} parent=11 // pred_region
        _
      $region40: #{forward.1} parent=11 // pred_fallthru
        _
      // Predicated region
      $region41: #{forward.1} parent=11 // pred_check
        %p764 = pneg %p235
      $region42: #{forward.1} parent=11 // pred_check_branch
        %766 = sbr.rel (%p764) target = $region44
      $region43: #{forward.1} parent=11 // pred_region
        _
      $region44: #{forward.1} parent=11 // pred_fallthru
        _
      // Predicated region
      $region45: #{forward.1} parent=11 // pred_check
        %p767 = pneg %p256
      $region46: #{forward.1} parent=11 // pred_check_branch
        %769 = sbr.rel (%p767) target = $region48
      $region47: #{forward.1} parent=11 // pred_region
        _
      $region48: #{forward.1} parent=11 // pred_fallthru
        _
      // Predicated region
      $region49: #{forward.1} parent=11 // pred_check
        %p770 = pneg %p277
      $region50: #{forward.1} parent=11 // pred_check_branch
        %772 = sbr.rel (%p770) target = $region52
      $region51: #{forward.1} parent=11 // pred_region
        _
      $region52: #{forward.1} parent=11 // pred_fallthru
        _
      // Predicated region
      $region53: #{forward.1} parent=11 // pred_check
        %p773 = pneg %p298
      $region54: #{forward.1} parent=11 // pred_check_branch
        %775 = sbr.rel (%p773) target = $region56
      $region55: #{forward.1} parent=11 // pred_region
        _
      $region56: #{forward.1} parent=11 // pred_fallthru
        _
      // Predicated region
      $region57: #{forward.1} parent=11 // pred_check
        %p776 = pneg %p319
      $region58: #{forward.1} parent=11 // pred_check_branch
        %778 = sbr.rel (%p776) target = $region60
      $region59: #{forward.1} parent=11 // pred_region
        _
      $region60: #{forward.1} parent=11 // pred_fallthru
        _
      // Predicated region
      $region61: #{forward.1} parent=11 // pred_check
        %p779 = pneg %p340
      $region62: #{forward.1} parent=11 // pred_check_branch
        %781 = sbr.rel (%p779) target = $region64
      $region63: #{forward.1} parent=11 // pred_region
        _
      $region64: #{forward.1} parent=11 // pred_fallthru
        _
      // Predicated region
      $region65: #{forward.1} parent=11 // pred_check
        %p782 = pneg %p361
      $region66: #{forward.1} parent=11 // pred_check_branch
        %784 = sbr.rel (%p782) target = $region68
      $region67: #{forward.1} parent=11 // pred_region
        _
      $region68: #{forward.1} parent=11 // pred_fallthru
        _
      // Predicated region
      $region69: #{forward.1} parent=11 // pred_check
        %p785 = pneg %p382
      $region70: #{forward.1} parent=11 // pred_check_branch
        %787 = sbr.rel (%p785) target = $region72
      $region71: #{forward.1} parent=11 // pred_region
        _
      $region72: #{forward.1} parent=11 // pred_fallthru
        _
      // Predicated region
      $region73: #{forward.1} parent=11 // pred_check
        %p788 = pneg %p403
      $region74: #{forward.1} parent=11 // pred_check_branch
        %790 = sbr.rel (%p788) target = $region76
      $region75: #{forward.1} parent=11 // pred_region
        _
      $region76: #{forward.1} parent=11 // pred_fallthru
        _
      // Predicated region
      $region77: #{forward.1} parent=11 // pred_check
        %p791 = pneg %p424
      $region78: #{forward.1} parent=11 // pred_check_branch
        %793 = sbr.rel (%p791) target = $region80
      $region79: #{forward.1} parent=11 // pred_region
        _
      $region80: #{forward.1} parent=11 // pred_fallthru
        _
      // Predicated region
      $region81: #{forward.1} parent=11 // pred_check
        %p794 = pneg %p445
      $region82: #{forward.1} parent=11 // pred_check_branch
        %796 = sbr.rel (%p794) target = $region84
      $region83: #{forward.1} parent=11 // pred_region
        _
      $region84: #{forward.1} parent=11 // pred_fallthru
        _
      // Predicated region
      $region85: #{forward.1} parent=11 // pred_check
        %p797 = pneg %p466
      $region86: #{forward.1} parent=11 // pred_check_branch
        %799 = sbr.rel (%p797) target = $region88
      $region87: #{forward.1} parent=11 // pred_region
        _
      $region88: #{forward.1} parent=11 // pred_fallthru
        _
      // Predicated region
      $region89: #{forward.1} parent=11 // pred_check
        %p800 = pneg %p487
      $region90: #{forward.1} parent=11 // pred_check_branch
        %802 = sbr.rel (%p800) target = $region92
      $region91: #{forward.1} parent=11 // pred_region
        _
      $region92: #{forward.1} parent=11 // pred_fallthru
        _
      // Predicated region
      $region93: #{forward.1} parent=11 // pred_check
        %p803 = pneg %p508
      $region94: #{forward.1} parent=11 // pred_check_branch
        %805 = sbr.rel (%p803) target = $region96
      $region95: #{forward.1} parent=11 // pred_region
        _
      $region96: #{forward.1} parent=11 // pred_fallthru
        _
      // Predicated region
      $region97: #{forward.1} parent=11 // pred_check
        %p806 = pneg %p529
      $region98: #{forward.1} parent=11 // pred_check_branch
        %808 = sbr.rel (%p806) target = $region100
      $region99: #{forward.1} parent=11 // pred_region
        _
      $region100: #{forward.1} parent=11 // pred_fallthru
        _
      // Predicated region
      $region101: #{forward.1} parent=11 // pred_check
        %p809 = pneg %p550
      $region102: #{forward.1} parent=11 // pred_check_branch
        %811 = sbr.rel (%p809) target = $region104
      $region103: #{forward.1} parent=11 // pred_region
        _
      $region104: #{forward.1} parent=11 // pred_fallthru
        _
      // Predicated region
      $region105: #{forward.1} parent=11 // pred_check
        %p812 = pneg %p571
      $region106: #{forward.1} parent=11 // pred_check_branch
        %814 = sbr.rel (%p812) target = $region108
      $region107: #{forward.1} parent=11 // pred_region
        _
      $region108: #{forward.1} parent=11 // pred_fallthru
        _
      // Predicated region
      $region109: #{forward.1} parent=11 // pred_check
        %p815 = pneg %p592
      $region110: #{forward.1} parent=11 // pred_check_branch
        %817 = sbr.rel (%p815) target = $region112
      $region111: #{forward.1} parent=11 // pred_region
        _
      $region112: #{forward.1} parent=11 // pred_fallthru
        _
      // Predicated region
      $region113: #{forward.1} parent=11 // pred_check
        %p818 = pneg %p613
      $region114: #{forward.1} parent=11 // pred_check_branch
        %820 = sbr.rel (%p818) target = $region116
      $region115: #{forward.1} parent=11 // pred_region
        _
      $region116: #{forward.1} parent=11 // pred_fallthru
        _
      // Predicated region
      $region117: #{forward.1} parent=11 // pred_check
        %p821 = pneg %p634
      $region118: #{forward.1} parent=11 // pred_check_branch
        %823 = sbr.rel (%p821) target = $region120
      $region119: #{forward.1} parent=11 // pred_region
        _
      $region120: #{forward.1} parent=11 // pred_fallthru
        _
      // Predicated region
      $region121: #{forward.1} parent=11 // pred_check
        %p824 = pneg %p655
      $region122: #{forward.1} parent=11 // pred_check_branch
        %826 = sbr.rel (%p824) target = $region124
      $region123: #{forward.1} parent=11 // pred_region
        _
      $region124: #{forward.1} parent=11 // pred_fallthru
        _
      // Predicated region
      $region125: #{forward.1} parent=11 // pred_check
        %p827 = pneg %p676
      $region126: #{forward.1} parent=11 // pred_check_branch
        %829 = sbr.rel (%p827) target = $region128
      $region127: #{forward.1} parent=11 // pred_region
        _
      $region128: #{forward.1} parent=11 // pred_fallthru
        _
    $region12: #{forward.1} parent=5 // pred_fallthru
      _
    %p830 = scmp.lt.s32.totalorder %s67, 2
    // Predicated region
    $region129: #{forward.1} parent=5 // pred_check
      %p831 = pneg %p830
    $region130: #{forward.1} parent=5 // pred_check_branch
      %833 = sbr.rel (%p831) target = $region132
    $region131: #{forward.1} parent=5 // pred_region
      // Predicated region
      $region133: #{forward.1} parent=131 // pred_check
        %p834 = pneg %p696
      $region134: #{forward.1} parent=131 // pred_check_branch
        %836 = sbr.rel (%p834) target = $region136
      $region135: #{forward.1} parent=131 // pred_region
        %s837 = smul.u32 108, %s67
        %p838 = scmp.lt.s32.totalorder %s837, 215
        %s839 = scalar_select %p838, %s837, 215
        %s840 = smul.addr %s839, 8
        %s841 = scalar_lea.vmem %s59, %s840
        %s842 = smul.u32 108, %s67
      $region136: #{forward.1} parent=131 // pred_fallthru
        _
    $region132: #{forward.1} parent=5 // pred_fallthru
      _
    %p843 = scmp.le.s32.totalorder 1, %s67
    %p844 = scmp.lt.s32.totalorder %s67, 3
    %p845 = pnand %p843, %p844
    %p846 = pneg %p845
    // Predicated region
    $region137: #{forward.1} parent=5 // pred_check
      _
    $region138: #{forward.1} parent=5 // pred_check_branch
      %848 = sbr.rel (%p845) target = $region140
    $region139: #{forward.1} parent=5 // pred_region
      %s849 = ssub.s32 %s67, 1
      %p850 = pneg %p88
      %p851 = pneg %p85
      %p852 = pneg %p109
      %p853 = pneg %p106
      %p854 = pneg %p130
      %p855 = pneg %p127
      %p856 = pneg %p151
      %p857 = pneg %p148
      %p858 = pneg %p172
      %p859 = pneg %p169
      %p860 = pneg %p193
      %p861 = pneg %p190
      %p862 = pneg %p214
      %p863 = pneg %p211
      %p864 = pneg %p235
      %p865 = pneg %p232
      %p866 = pneg %p256
      %p867 = pneg %p253
      %p868 = pneg %p277
      %p869 = pneg %p274
      %p870 = pneg %p298
      %p871 = pneg %p295
      %p872 = pneg %p319
      %p873 = pneg %p316
      %p874 = pneg %p340
      %p875 = pneg %p337
      %p876 = pneg %p361
      %p877 = pneg %p358
      %p878 = pneg %p382
      %p879 = pneg %p379
      %p880 = pneg %p403
      %p881 = pneg %p400
      %p882 = pneg %p424
      %p883 = pneg %p421
      %p884 = pneg %p445
      %p885 = pneg %p442
      %p886 = pneg %p466
      %p887 = pneg %p463
      %p888 = pneg %p487
      %p889 = pneg %p484
      %p890 = pneg %p508
      %p891 = pneg %p505
      %p892 = pneg %p529
      %p893 = pneg %p526
      %p894 = pneg %p550
      %p895 = pneg %p547
      %p896 = pneg %p571
      %p897 = pneg %p568
      %p898 = pneg %p592
      %p899 = pneg %p589
      %p900 = pneg %p613
      %p901 = pneg %p610
      %p902 = pneg %p634
      %p903 = pneg %p631
      %p904 = pneg %p655
      %p905 = pneg %p652
      %p906 = pneg %p676
      %p907 = pneg %p673
      %s908 = smul.u32 108, %s72
      %p909 = scmp.lt.s32.totalorder %s908, 215
      %s910 = scalar_select %p909, %s908, 215
      %s911 = smul.addr %s910, 8
      %s912 = scalar_lea.vmem %s59, %s911
      %p913 = pneg %p702
      %p914 = pneg %p699
      %p915 = pneg %p728
      %p916 = pneg %p725
      %s917 = smul.u32 108, %s72
      %p918 = scmp.lt.s32.totalorder %s917, 215
      %s919 = scalar_select %p918, %s917, 215
      %s920 = smul.addr %s919, 8
      %s921 = scalar_lea.vmem %s61, %s920
      %s922 = smul.u32 108, %s72
      %p923 = scmp.lt.s32.totalorder %s922, 215
      %s924 = scalar_select %p923, %s922, 215
      %s925 = smul.addr %s924, 8
      %s926 = scalar_lea.vmem %s59, %s925
      %s927 = smul.u32 108, %s72
      %s928 = smul.u32 108, %s72
      %p929 = scmp.lt.s32.totalorder %s928, 215
      %s930 = scalar_select %p929, %s928, 215
      %s931 = smul.addr %s930, 8
      %s932 = scalar_lea.vmem %s61, %s931
      %s933 = smul.u32 108, %s72
      %p934 = scmp.eq.s32.totalorder %s72, 0
      // Predicated region
      $region141: #{forward.1} parent=139 // pred_check
        %p935 = pneg %p934
      $region142: #{forward.1} parent=139 // pred_check_branch
        %937 = sbr.rel (%p935) target = $region144
      $region143: #{forward.1} parent=139 // pred_region
        %v938 = vld [vmem:[%s1] sm:$0xff]
        %v939 = vld [vmem:[%s1 + $0x8] sm:$0xff]
        %v940 = vld [vmem:[%s1 + $0x10] sm:$0xff]
        %v941 = vld [vmem:[%s1 + $0x18] sm:$0xff]
        %v942 = vld [vmem:[%s1 + $0x20] sm:$0xff]
        %v943 = vld [vmem:[%s1 + $0x28] sm:$0xff]
        %v944 = vld [vmem:[%s1 + $0x30] sm:$0xff]
        %v945 = vld [vmem:[%s1 + $0x38] sm:$0xff]
        %v946 = vld [vmem:[%s1 + $0x40] sm:$0xff]
        %v947 = vld [vmem:[%s1 + $0x48] sm:$0xff]
        %v948 = vld [vmem:[%s1 + $0x50] sm:$0xff]
        %v949 = vld [vmem:[%s1 + $0x58] sm:$0xff]
        %v950 = vld [vmem:[%s926] sm:$0xff]
        %v951 = vld [vmem:[%s926 + $0x8] sm:$0xff]
        %v952 = vld [vmem:[%s926 + $0x10] sm:$0xff]
        %v953 = vld [vmem:[%s926 + $0x18] sm:$0xff]
        %v954 = vld [vmem:[%s926 + $0x20] sm:$0xff]
        %v955 = vld [vmem:[%s926 + $0x28] sm:$0xff]
        %v956 = vld [vmem:[%s926 + $0x30] sm:$0xff]
        %v957 = vld [vmem:[%s926 + $0x38] sm:$0xff]
        %v958 = vld [vmem:[%s926 + $0x40] sm:$0xff]
        %v959 = vld [vmem:[%s926 + $0x48] sm:$0xff]
        %v960 = vld [vmem:[%s926 + $0x50] sm:$0xff]
        %v961 = vld [vmem:[%s926 + $0x58] sm:$0xff]
        %vm962 = vcmask 400384
        %v963 = vsel %vm962, %v938, 0.0
        %964 = vadd.xlane.f32.xlu0 %v963
        %v965 = vpop.xlane.xlu0 %964
        %v966 = vsel %vm962, %v939, 0.0
        %967 = vadd.xlane.f32.xlu0 %v966
        %v968 = vpop.xlane.xlu0 %967
        %v969 = vsel %vm962, %v940, 0.0
        %970 = vadd.xlane.f32.xlu0 %v969
        %v971 = vpop.xlane.xlu0 %970
        %v972 = vsel %vm962, %v941, 0.0
        %973 = vadd.xlane.f32.xlu0 %v972
        %v974 = vpop.xlane.xlu0 %973
        %v975 = vsel %vm962, %v942, 0.0
        %976 = vadd.xlane.f32.xlu0 %v975
        %v977 = vpop.xlane.xlu0 %976
        %v978 = vsel %vm962, %v943, 0.0
        %979 = vadd.xlane.f32.xlu0 %v978
        %v980 = vpop.xlane.xlu0 %979
        %v981 = vsel %vm962, %v944, 0.0
        %982 = vadd.xlane.f32.xlu0 %v981
        %v983 = vpop.xlane.xlu0 %982
        %v984 = vsel %vm962, %v945, 0.0
        %985 = vadd.xlane.f32.xlu0 %v984
        %v986 = vpop.xlane.xlu0 %985
        %v987 = vsel %vm962, %v946, 0.0
        %988 = vadd.xlane.f32.xlu0 %v987
        %v989 = vpop.xlane.xlu0 %988
        %v990 = vsel %vm962, %v947, 0.0
        %991 = vadd.xlane.f32.xlu0 %v990
        %v992 = vpop.xlane.xlu0 %991
        %v993 = vsel %vm962, %v948, 0.0
        %994 = vadd.xlane.f32.xlu0 %v993
        %v995 = vpop.xlane.xlu0 %994
        %v996 = vsel %vm962, %v949, 0.0
        %997 = vadd.xlane.f32.xlu0 %v996
        %v998 = vpop.xlane.xlu0 %997
        %v999 = vmul.f32 %v965, 0.020408163
        %v1000 = vmul.f32 %v968, 0.020408163
        %v1001 = vmul.f32 %v971, 0.020408163
        %v1002 = vmul.f32 %v974, 0.020408163
        %v1003 = vmul.f32 %v977, 0.020408163
        %v1004 = vmul.f32 %v980, 0.020408163
        %v1005 = vmul.f32 %v983, 0.020408163
        %v1006 = vmul.f32 %v986, 0.020408163
        %v1007 = vmul.f32 %v989, 0.020408163
        %v1008 = vmul.f32 %v992, 0.020408163
        %v1009 = vmul.f32 %v995, 0.020408163
        %v1010 = vmul.f32 %v998, 0.020408163
        %v1011 = vsub.f32 %v938, %v999
        %v1012 = vsub.f32 %v939, %v1000
        %v1013 = vsub.f32 %v940, %v1001
        %v1014 = vsub.f32 %v941, %v1002
        %v1015 = vsub.f32 %v942, %v1003
        %v1016 = vsub.f32 %v943, %v1004
        %v1017 = vsub.f32 %v944, %v1005
        %v1018 = vsub.f32 %v945, %v1006
        %v1019 = vsub.f32 %v946, %v1007
        %v1020 = vsub.f32 %v947, %v1008
        %v1021 = vsub.f32 %v948, %v1009
        %v1022 = vsub.f32 %v949, %v1010
        %v1023 = vmul.f32 %v1011, %v1011
        %v1024 = vmul.f32 %v1012, %v1012
        %v1025 = vmul.f32 %v1013, %v1013
        %v1026 = vmul.f32 %v1014, %v1014
        %v1027 = vmul.f32 %v1015, %v1015
        %v1028 = vmul.f32 %v1016, %v1016
        %v1029 = vmul.f32 %v1017, %v1017
        %v1030 = vmul.f32 %v1018, %v1018
        %v1031 = vmul.f32 %v1019, %v1019
        %v1032 = vmul.f32 %v1020, %v1020
        %v1033 = vmul.f32 %v1021, %v1021
        %v1034 = vmul.f32 %v1022, %v1022
        %v1035 = vsel %vm962, %v1023, 0.0
        %1036 = vadd.xlane.f32.xlu0 %v1035
        %v1037 = vpop.xlane.xlu0 %1036
        %v1038 = vsel %vm962, %v1024, 0.0
        %1039 = vadd.xlane.f32.xlu0 %v1038
        %v1040 = vpop.xlane.xlu0 %1039
        %v1041 = vsel %vm962, %v1025, 0.0
        %1042 = vadd.xlane.f32.xlu0 %v1041
        %v1043 = vpop.xlane.xlu0 %1042
        %v1044 = vsel %vm962, %v1026, 0.0
        %1045 = vadd.xlane.f32.xlu0 %v1044
        %v1046 = vpop.xlane.xlu0 %1045
        %v1047 = vsel %vm962, %v1027, 0.0
        %1048 = vadd.xlane.f32.xlu0 %v1047
        %v1049 = vpop.xlane.xlu0 %1048
        %v1050 = vsel %vm962, %v1028, 0.0
        %1051 = vadd.xlane.f32.xlu0 %v1050
        %v1052 = vpop.xlane.xlu0 %1051
        %v1053 = vsel %vm962, %v1029, 0.0
        %1054 = vadd.xlane.f32.xlu0 %v1053
        %v1055 = vpop.xlane.xlu0 %1054
        %v1056 = vsel %vm962, %v1030, 0.0
        %1057 = vadd.xlane.f32.xlu0 %v1056
        %v1058 = vpop.xlane.xlu0 %1057
        %v1059 = vsel %vm962, %v1031, 0.0
        %1060 = vadd.xlane.f32.xlu0 %v1059
        %v1061 = vpop.xlane.xlu0 %1060
        %v1062 = vsel %vm962, %v1032, 0.0
        %1063 = vadd.xlane.f32.xlu0 %v1062
        %v1064 = vpop.xlane.xlu0 %1063
        %v1065 = vsel %vm962, %v1033, 0.0
        %1066 = vadd.xlane.f32.xlu0 %v1065
        %v1067 = vpop.xlane.xlu0 %1066
        %v1068 = vsel %vm962, %v1034, 0.0
        %1069 = vadd.xlane.f32.xlu0 %v1068
        %v1070 = vpop.xlane.xlu0 %1069
        %v1071 = vmul.f32 %v1037, 0.020408163
        %v1072 = vmul.f32 %v1040, 0.020408163
        %v1073 = vmul.f32 %v1043, 0.020408163
        %v1074 = vmul.f32 %v1046, 0.020408163
        %v1075 = vmul.f32 %v1049, 0.020408163
        %v1076 = vmul.f32 %v1052, 0.020408163
        %v1077 = vmul.f32 %v1055, 0.020408163
        %v1078 = vmul.f32 %v1058, 0.020408163
        %v1079 = vmul.f32 %v1061, 0.020408163
        %v1080 = vmul.f32 %v1064, 0.020408163
        %v1081 = vmul.f32 %v1067, 0.020408163
        %v1082 = vmul.f32 %v1070, 0.020408163
        %v1083 = vadd.f32 %v1071, 1e-05
        %v1084 = vadd.f32 %v1072, 1e-05
        %v1085 = vadd.f32 %v1073, 1e-05
        %v1086 = vadd.f32 %v1074, 1e-05
        %v1087 = vadd.f32 %v1075, 1e-05
        %v1088 = vadd.f32 %v1076, 1e-05
        %v1089 = vadd.f32 %v1077, 1e-05
        %v1090 = vadd.f32 %v1078, 1e-05
        %v1091 = vadd.f32 %v1079, 1e-05
        %v1092 = vadd.f32 %v1080, 1e-05
        %v1093 = vadd.f32 %v1081, 1e-05
        %v1094 = vadd.f32 %v1082, 1e-05
        %v1095 = vrsqrt.pop %v1083
        %v1096 = vrsqrt.pop %v1084
        %v1097 = vrsqrt.pop %v1085
        %v1098 = vrsqrt.pop %v1086
        %v1099 = vrsqrt.pop %v1087
        %v1100 = vrsqrt.pop %v1088
        %v1101 = vrsqrt.pop %v1089
        %v1102 = vrsqrt.pop %v1090
        %v1103 = vrsqrt.pop %v1091
        %v1104 = vrsqrt.pop %v1092
        %v1105 = vrsqrt.pop %v1093
        %v1106 = vrsqrt.pop %v1094
        %v1107 = vmul.f32 %v1095, %v950
        %v1108 = vmul.f32 %v1096, %v951
        %v1109 = vmul.f32 %v1097, %v952
        %v1110 = vmul.f32 %v1098, %v953
        %v1111 = vmul.f32 %v1099, %v954
        %v1112 = vmul.f32 %v1100, %v955
        %v1113 = vmul.f32 %v1101, %v956
        %v1114 = vmul.f32 %v1102, %v957
        %v1115 = vmul.f32 %v1103, %v958
        %v1116 = vmul.f32 %v1104, %v959
        %v1117 = vmul.f32 %v1105, %v960
        %v1118 = vmul.f32 %v1106, %v961
        %1120 = vset.pattern.permute.xlu0 0
        %1121 = vperm.xlu0 %1120, %v1107
        %v1122 = vpop.permute.xlu0 %1121
        %1125 = vset.pattern.permute.xlu0 0
        %1126 = vperm.xlu0 %1125, %v1108
        %v1127 = vpop.permute.xlu0 %1126
        %1130 = vset.pattern.permute.xlu0 0
        %1131 = vperm.xlu0 %1130, %v1109
        %v1132 = vpop.permute.xlu0 %1131
        %1135 = vset.pattern.permute.xlu0 0
        %1136 = vperm.xlu0 %1135, %v1110
        %v1137 = vpop.permute.xlu0 %1136
        %1140 = vset.pattern.permute.xlu0 0
        %1141 = vperm.xlu0 %1140, %v1111
        %v1142 = vpop.permute.xlu0 %1141
        %1145 = vset.pattern.permute.xlu0 0
        %1146 = vperm.xlu0 %1145, %v1112
        %v1147 = vpop.permute.xlu0 %1146
        %1150 = vset.pattern.permute.xlu0 0
        %1151 = vperm.xlu0 %1150, %v1113
        %v1152 = vpop.permute.xlu0 %1151
        %1155 = vset.pattern.permute.xlu0 0
        %1156 = vperm.xlu0 %1155, %v1114
        %v1157 = vpop.permute.xlu0 %1156
        %1160 = vset.pattern.permute.xlu0 0
        %1161 = vperm.xlu0 %1160, %v1115
        %v1162 = vpop.permute.xlu0 %1161
        %1165 = vset.pattern.permute.xlu0 0
        %1166 = vperm.xlu0 %1165, %v1116
        %v1167 = vpop.permute.xlu0 %1166
        %1170 = vset.pattern.permute.xlu0 0
        %1171 = vperm.xlu0 %1170, %v1117
        %v1172 = vpop.permute.xlu0 %1171
        %1175 = vset.pattern.permute.xlu0 0
        %1176 = vperm.xlu0 %1175, %v1118
        %v1177 = vpop.permute.xlu0 %1176
        %v1179 = vmul.f32 %v1011, %v1122
        %v1180 = vmul.f32 %v1012, %v1127
        %v1181 = vmul.f32 %v1013, %v1132
        %v1182 = vmul.f32 %v1014, %v1137
        %v1183 = vmul.f32 %v1015, %v1142
        %v1184 = vmul.f32 %v1016, %v1147
        %v1185 = vmul.f32 %v1017, %v1152
        %v1186 = vmul.f32 %v1018, %v1157
        %v1187 = vmul.f32 %v1019, %v1162
        %v1188 = vmul.f32 %v1020, %v1167
        %v1189 = vmul.f32 %v1021, %v1172
        %v1190 = vmul.f32 %v1022, %v1177
        %1192 = vset.pattern.permute.xlu0 1
        %1193 = vperm.xlu0 %1192, %v950
        %v1194 = vpop.permute.xlu0 %1193
        %1197 = vset.pattern.permute.xlu0 1
        %1198 = vperm.xlu0 %1197, %v951
        %v1199 = vpop.permute.xlu0 %1198
        %1202 = vset.pattern.permute.xlu0 1
        %1203 = vperm.xlu0 %1202, %v952
        %v1204 = vpop.permute.xlu0 %1203
        %1207 = vset.pattern.permute.xlu0 1
        %1208 = vperm.xlu0 %1207, %v953
        %v1209 = vpop.permute.xlu0 %1208
        %1212 = vset.pattern.permute.xlu0 1
        %1213 = vperm.xlu0 %1212, %v954
        %v1214 = vpop.permute.xlu0 %1213
        %1217 = vset.pattern.permute.xlu0 1
        %1218 = vperm.xlu0 %1217, %v955
        %v1219 = vpop.permute.xlu0 %1218
        %1222 = vset.pattern.permute.xlu0 1
        %1223 = vperm.xlu0 %1222, %v956
        %v1224 = vpop.permute.xlu0 %1223
        %1227 = vset.pattern.permute.xlu0 1
        %1228 = vperm.xlu0 %1227, %v957
        %v1229 = vpop.permute.xlu0 %1228
        %1232 = vset.pattern.permute.xlu0 1
        %1233 = vperm.xlu0 %1232, %v958
        %v1234 = vpop.permute.xlu0 %1233
        %1237 = vset.pattern.permute.xlu0 1
        %1238 = vperm.xlu0 %1237, %v959
        %v1239 = vpop.permute.xlu0 %1238
        %1242 = vset.pattern.permute.xlu0 1
        %1243 = vperm.xlu0 %1242, %v960
        %v1244 = vpop.permute.xlu0 %1243
        %1247 = vset.pattern.permute.xlu0 1
        %1248 = vperm.xlu0 %1247, %v961
        %v1249 = vpop.permute.xlu0 %1248
        %v1251 = vadd.f32 %v1179, %v1194
        %v1252 = vadd.f32 %v1180, %v1199
        %v1253 = vadd.f32 %v1181, %v1204
        %v1254 = vadd.f32 %v1182, %v1209
        %v1255 = vadd.f32 %v1183, %v1214
        %v1256 = vadd.f32 %v1184, %v1219
        %v1257 = vadd.f32 %v1185, %v1224
        %v1258 = vadd.f32 %v1186, %v1229
        %v1259 = vadd.f32 %v1187, %v1234
        %v1260 = vadd.f32 %v1188, %v1239
        %v1261 = vadd.f32 %v1189, %v1244
        %v1262 = vadd.f32 %v1190, %v1249
        %1263 = vst.msk [vmem:[%s932] sm:$0xff] %vm962, %v1251
        %1264 = vst.msk [vmem:[%s932 + $0x8] sm:$0xff] %vm962, %v1252
        %1265 = vst.msk [vmem:[%s932 + $0x10] sm:$0xff] %vm962, %v1253
        %1266 = vst.msk [vmem:[%s932 + $0x18] sm:$0xff] %vm962, %v1254
        %1267 = vst.msk [vmem:[%s932 + $0x20] sm:$0xff] %vm962, %v1255
        %1268 = vst.msk [vmem:[%s932 + $0x28] sm:$0xff] %vm962, %v1256
        %1269 = vst.msk [vmem:[%s932 + $0x30] sm:$0xff] %vm962, %v1257
        %1270 = vst.msk [vmem:[%s932 + $0x38] sm:$0xff] %vm962, %v1258
        %1271 = vst.msk [vmem:[%s932 + $0x40] sm:$0xff] %vm962, %v1259
        %1272 = vst.msk [vmem:[%s932 + $0x48] sm:$0xff] %vm962, %v1260
        %1273 = vst.msk [vmem:[%s932 + $0x50] sm:$0xff] %vm962, %v1261
        %1274 = vst.msk [vmem:[%s932 + $0x58] sm:$0xff] %vm962, %v1262
        %v1275 = vld [vmem:[%s1 + $0x60] sm:$0xff]
        %v1276 = vld [vmem:[%s1 + $0x68] sm:$0xff]
        %v1277 = vld [vmem:[%s1 + $0x70] sm:$0xff]
        %v1278 = vld [vmem:[%s1 + $0x78] sm:$0xff]
        %v1279 = vld [vmem:[%s1 + $0x80] sm:$0xff]
        %v1280 = vld [vmem:[%s1 + $0x88] sm:$0xff]
        %v1281 = vld [vmem:[%s1 + $0x90] sm:$0xff]
        %v1282 = vld [vmem:[%s1 + $0x98] sm:$0xff]
        %v1283 = vld [vmem:[%s1 + $0xa0] sm:$0xff]
        %v1284 = vld [vmem:[%s1 + $0xa8] sm:$0xff]
        %v1285 = vld [vmem:[%s1 + $0xb0] sm:$0xff]
        %v1286 = vld [vmem:[%s1 + $0xb8] sm:$0xff]
        %v1287 = vld [vmem:[%s926 + $0x60] sm:$0xff]
        %v1288 = vld [vmem:[%s926 + $0x68] sm:$0xff]
        %v1289 = vld [vmem:[%s926 + $0x70] sm:$0xff]
        %v1290 = vld [vmem:[%s926 + $0x78] sm:$0xff]
        %v1291 = vld [vmem:[%s926 + $0x80] sm:$0xff]
        %v1292 = vld [vmem:[%s926 + $0x88] sm:$0xff]
        %v1293 = vld [vmem:[%s926 + $0x90] sm:$0xff]
        %v1294 = vld [vmem:[%s926 + $0x98] sm:$0xff]
        %v1295 = vld [vmem:[%s926 + $0xa0] sm:$0xff]
        %v1296 = vld [vmem:[%s926 + $0xa8] sm:$0xff]
        %v1297 = vld [vmem:[%s926 + $0xb0] sm:$0xff]
        %v1298 = vld [vmem:[%s926 + $0xb8] sm:$0xff]
        %v1299 = vsel %vm962, %v1275, 0.0
        %1300 = vadd.xlane.f32.xlu0 %v1299
        %v1301 = vpop.xlane.xlu0 %1300
        %v1302 = vsel %vm962, %v1276, 0.0
        %1303 = vadd.xlane.f32.xlu0 %v1302
        %v1304 = vpop.xlane.xlu0 %1303
        %v1305 = vsel %vm962, %v1277, 0.0
        %1306 = vadd.xlane.f32.xlu0 %v1305
        %v1307 = vpop.xlane.xlu0 %1306
        %v1308 = vsel %vm962, %v1278, 0.0
        %1309 = vadd.xlane.f32.xlu0 %v1308
        %v1310 = vpop.xlane.xlu0 %1309
        %v1311 = vsel %vm962, %v1279, 0.0
        %1312 = vadd.xlane.f32.xlu0 %v1311
        %v1313 = vpop.xlane.xlu0 %1312
        %v1314 = vsel %vm962, %v1280, 0.0
        %1315 = vadd.xlane.f32.xlu0 %v1314
        %v1316 = vpop.xlane.xlu0 %1315
        %v1317 = vsel %vm962, %v1281, 0.0
        %1318 = vadd.xlane.f32.xlu0 %v1317
        %v1319 = vpop.xlane.xlu0 %1318
        %v1320 = vsel %vm962, %v1282, 0.0
        %1321 = vadd.xlane.f32.xlu0 %v1320
        %v1322 = vpop.xlane.xlu0 %1321
        %v1323 = vsel %vm962, %v1283, 0.0
        %1324 = vadd.xlane.f32.xlu0 %v1323
        %v1325 = vpop.xlane.xlu0 %1324
        %v1326 = vsel %vm962, %v1284, 0.0
        %1327 = vadd.xlane.f32.xlu0 %v1326
        %v1328 = vpop.xlane.xlu0 %1327
        %v1329 = vsel %vm962, %v1285, 0.0
        %1330 = vadd.xlane.f32.xlu0 %v1329
        %v1331 = vpop.xlane.xlu0 %1330
        %v1332 = vsel %vm962, %v1286, 0.0
        %1333 = vadd.xlane.f32.xlu0 %v1332
        %v1334 = vpop.xlane.xlu0 %1333
        %v1335 = vmul.f32 %v1301, 0.020408163
        %v1336 = vmul.f32 %v1304, 0.020408163
        %v1337 = vmul.f32 %v1307, 0.020408163
        %v1338 = vmul.f32 %v1310, 0.020408163
        %v1339 = vmul.f32 %v1313, 0.020408163
        %v1340 = vmul.f32 %v1316, 0.020408163
        %v1341 = vmul.f32 %v1319, 0.020408163
        %v1342 = vmul.f32 %v1322, 0.020408163
        %v1343 = vmul.f32 %v1325, 0.020408163
        %v1344 = vmul.f32 %v1328, 0.020408163
        %v1345 = vmul.f32 %v1331, 0.020408163
        %v1346 = vmul.f32 %v1334, 0.020408163
        %v1347 = vsub.f32 %v1275, %v1335
        %v1348 = vsub.f32 %v1276, %v1336
        %v1349 = vsub.f32 %v1277, %v1337
        %v1350 = vsub.f32 %v1278, %v1338
        %v1351 = vsub.f32 %v1279, %v1339
        %v1352 = vsub.f32 %v1280, %v1340
        %v1353 = vsub.f32 %v1281, %v1341
        %v1354 = vsub.f32 %v1282, %v1342
        %v1355 = vsub.f32 %v1283, %v1343
        %v1356 = vsub.f32 %v1284, %v1344
        %v1357 = vsub.f32 %v1285, %v1345
        %v1358 = vsub.f32 %v1286, %v1346
        %v1359 = vmul.f32 %v1347, %v1347
        %v1360 = vmul.f32 %v1348, %v1348
        %v1361 = vmul.f32 %v1349, %v1349
        %v1362 = vmul.f32 %v1350, %v1350
        %v1363 = vmul.f32 %v1351, %v1351
        %v1364 = vmul.f32 %v1352, %v1352
        %v1365 = vmul.f32 %v1353, %v1353
        %v1366 = vmul.f32 %v1354, %v1354
        %v1367 = vmul.f32 %v1355, %v1355
        %v1368 = vmul.f32 %v1356, %v1356
        %v1369 = vmul.f32 %v1357, %v1357
        %v1370 = vmul.f32 %v1358, %v1358
        %v1371 = vsel %vm962, %v1359, 0.0
        %1372 = vadd.xlane.f32.xlu0 %v1371
        %v1373 = vpop.xlane.xlu0 %1372
        %v1374 = vsel %vm962, %v1360, 0.0
        %1375 = vadd.xlane.f32.xlu0 %v1374
        %v1376 = vpop.xlane.xlu0 %1375
        %v1377 = vsel %vm962, %v1361, 0.0
        %1378 = vadd.xlane.f32.xlu0 %v1377
        %v1379 = vpop.xlane.xlu0 %1378
        %v1380 = vsel %vm962, %v1362, 0.0
        %1381 = vadd.xlane.f32.xlu0 %v1380
        %v1382 = vpop.xlane.xlu0 %1381
        %v1383 = vsel %vm962, %v1363, 0.0
        %1384 = vadd.xlane.f32.xlu0 %v1383
        %v1385 = vpop.xlane.xlu0 %1384
        %v1386 = vsel %vm962, %v1364, 0.0
        %1387 = vadd.xlane.f32.xlu0 %v1386
        %v1388 = vpop.xlane.xlu0 %1387
        %v1389 = vsel %vm962, %v1365, 0.0
        %1390 = vadd.xlane.f32.xlu0 %v1389
        %v1391 = vpop.xlane.xlu0 %1390
        %v1392 = vsel %vm962, %v1366, 0.0
        %1393 = vadd.xlane.f32.xlu0 %v1392
        %v1394 = vpop.xlane.xlu0 %1393
        %v1395 = vsel %vm962, %v1367, 0.0
        %1396 = vadd.xlane.f32.xlu0 %v1395
        %v1397 = vpop.xlane.xlu0 %1396
        %v1398 = vsel %vm962, %v1368, 0.0
        %1399 = vadd.xlane.f32.xlu0 %v1398
        %v1400 = vpop.xlane.xlu0 %1399
        %v1401 = vsel %vm962, %v1369, 0.0
        %1402 = vadd.xlane.f32.xlu0 %v1401
        %v1403 = vpop.xlane.xlu0 %1402
        %v1404 = vsel %vm962, %v1370, 0.0
        %1405 = vadd.xlane.f32.xlu0 %v1404
        %v1406 = vpop.xlane.xlu0 %1405
        %v1407 = vmul.f32 %v1373, 0.020408163
        %v1408 = vmul.f32 %v1376, 0.020408163
        %v1409 = vmul.f32 %v1379, 0.020408163
        %v1410 = vmul.f32 %v1382, 0.020408163
        %v1411 = vmul.f32 %v1385, 0.020408163
        %v1412 = vmul.f32 %v1388, 0.020408163
        %v1413 = vmul.f32 %v1391, 0.020408163
        %v1414 = vmul.f32 %v1394, 0.020408163
        %v1415 = vmul.f32 %v1397, 0.020408163
        %v1416 = vmul.f32 %v1400, 0.020408163
        %v1417 = vmul.f32 %v1403, 0.020408163
        %v1418 = vmul.f32 %v1406, 0.020408163
        %v1419 = vadd.f32 %v1407, 1e-05
        %v1420 = vadd.f32 %v1408, 1e-05
        %v1421 = vadd.f32 %v1409, 1e-05
        %v1422 = vadd.f32 %v1410, 1e-05
        %v1423 = vadd.f32 %v1411, 1e-05
        %v1424 = vadd.f32 %v1412, 1e-05
        %v1425 = vadd.f32 %v1413, 1e-05
        %v1426 = vadd.f32 %v1414, 1e-05
        %v1427 = vadd.f32 %v1415, 1e-05
        %v1428 = vadd.f32 %v1416, 1e-05
        %v1429 = vadd.f32 %v1417, 1e-05
        %v1430 = vadd.f32 %v1418, 1e-05
        %v1431 = vrsqrt.pop %v1419
        %v1432 = vrsqrt.pop %v1420
        %v1433 = vrsqrt.pop %v1421
        %v1434 = vrsqrt.pop %v1422
        %v1435 = vrsqrt.pop %v1423
        %v1436 = vrsqrt.pop %v1424
        %v1437 = vrsqrt.pop %v1425
        %v1438 = vrsqrt.pop %v1426
        %v1439 = vrsqrt.pop %v1427
        %v1440 = vrsqrt.pop %v1428
        %v1441 = vrsqrt.pop %v1429
        %v1442 = vrsqrt.pop %v1430
        %v1443 = vmul.f32 %v1431, %v1287
        %v1444 = vmul.f32 %v1432, %v1288
        %v1445 = vmul.f32 %v1433, %v1289
        %v1446 = vmul.f32 %v1434, %v1290
        %v1447 = vmul.f32 %v1435, %v1291
        %v1448 = vmul.f32 %v1436, %v1292
        %v1449 = vmul.f32 %v1437, %v1293
        %v1450 = vmul.f32 %v1438, %v1294
        %v1451 = vmul.f32 %v1439, %v1295
        %v1452 = vmul.f32 %v1440, %v1296
        %v1453 = vmul.f32 %v1441, %v1297
        %v1454 = vmul.f32 %v1442, %v1298
        %1456 = vset.pattern.permute.xlu0 0
        %1457 = vperm.xlu0 %1456, %v1443
        %v1458 = vpop.permute.xlu0 %1457
        %1461 = vset.pattern.permute.xlu0 0
        %1462 = vperm.xlu0 %1461, %v1444
        %v1463 = vpop.permute.xlu0 %1462
        %1466 = vset.pattern.permute.xlu0 0
        %1467 = vperm.xlu0 %1466, %v1445
        %v1468 = vpop.permute.xlu0 %1467
        %1471 = vset.pattern.permute.xlu0 0
        %1472 = vperm.xlu0 %1471, %v1446
        %v1473 = vpop.permute.xlu0 %1472
        %1476 = vset.pattern.permute.xlu0 0
        %1477 = vperm.xlu0 %1476, %v1447
        %v1478 = vpop.permute.xlu0 %1477
        %1481 = vset.pattern.permute.xlu0 0
        %1482 = vperm.xlu0 %1481, %v1448
        %v1483 = vpop.permute.xlu0 %1482
        %1486 = vset.pattern.permute.xlu0 0
        %1487 = vperm.xlu0 %1486, %v1449
        %v1488 = vpop.permute.xlu0 %1487
        %1491 = vset.pattern.permute.xlu0 0
        %1492 = vperm.xlu0 %1491, %v1450
        %v1493 = vpop.permute.xlu0 %1492
        %1496 = vset.pattern.permute.xlu0 0
        %1497 = vperm.xlu0 %1496, %v1451
        %v1498 = vpop.permute.xlu0 %1497
        %1501 = vset.pattern.permute.xlu0 0
        %1502 = vperm.xlu0 %1501, %v1452
        %v1503 = vpop.permute.xlu0 %1502
        %1506 = vset.pattern.permute.xlu0 0
        %1507 = vperm.xlu0 %1506, %v1453
        %v1508 = vpop.permute.xlu0 %1507
        %1511 = vset.pattern.permute.xlu0 0
        %1512 = vperm.xlu0 %1511, %v1454
        %v1513 = vpop.permute.xlu0 %1512
        %v1515 = vmul.f32 %v1347, %v1458
        %v1516 = vmul.f32 %v1348, %v1463
        %v1517 = vmul.f32 %v1349, %v1468
        %v1518 = vmul.f32 %v1350, %v1473
        %v1519 = vmul.f32 %v1351, %v1478
        %v1520 = vmul.f32 %v1352, %v1483
        %v1521 = vmul.f32 %v1353, %v1488
        %v1522 = vmul.f32 %v1354, %v1493
        %v1523 = vmul.f32 %v1355, %v1498
        %v1524 = vmul.f32 %v1356, %v1503
        %v1525 = vmul.f32 %v1357, %v1508
        %v1526 = vmul.f32 %v1358, %v1513
        %1528 = vset.pattern.permute.xlu0 1
        %1529 = vperm.xlu0 %1528, %v1287
        %v1530 = vpop.permute.xlu0 %1529
        %1533 = vset.pattern.permute.xlu0 1
        %1534 = vperm.xlu0 %1533, %v1288
        %v1535 = vpop.permute.xlu0 %1534
        %1538 = vset.pattern.permute.xlu0 1
        %1539 = vperm.xlu0 %1538, %v1289
        %v1540 = vpop.permute.xlu0 %1539
        %1543 = vset.pattern.permute.xlu0 1
        %1544 = vperm.xlu0 %1543, %v1290
        %v1545 = vpop.permute.xlu0 %1544
        %1548 = vset.pattern.permute.xlu0 1
        %1549 = vperm.xlu0 %1548, %v1291
        %v1550 = vpop.permute.xlu0 %1549
        %1553 = vset.pattern.permute.xlu0 1
        %1554 = vperm.xlu0 %1553, %v1292
        %v1555 = vpop.permute.xlu0 %1554
        %1558 = vset.pattern.permute.xlu0 1
        %1559 = vperm.xlu0 %1558, %v1293
        %v1560 = vpop.permute.xlu0 %1559
        %1563 = vset.pattern.permute.xlu0 1
        %1564 = vperm.xlu0 %1563, %v1294
        %v1565 = vpop.permute.xlu0 %1564
        %1568 = vset.pattern.permute.xlu0 1
        %1569 = vperm.xlu0 %1568, %v1295
        %v1570 = vpop.permute.xlu0 %1569
        %1573 = vset.pattern.permute.xlu0 1
        %1574 = vperm.xlu0 %1573, %v1296
        %v1575 = vpop.permute.xlu0 %1574
        %1578 = vset.pattern.permute.xlu0 1
        %1579 = vperm.xlu0 %1578, %v1297
        %v1580 = vpop.permute.xlu0 %1579
        %1583 = vset.pattern.permute.xlu0 1
        %1584 = vperm.xlu0 %1583, %v1298
        %v1585 = vpop.permute.xlu0 %1584
        %v1587 = vadd.f32 %v1515, %v1530
        %v1588 = vadd.f32 %v1516, %v1535
        %v1589 = vadd.f32 %v1517, %v1540
        %v1590 = vadd.f32 %v1518, %v1545
        %v1591 = vadd.f32 %v1519, %v1550
        %v1592 = vadd.f32 %v1520, %v1555
        %v1593 = vadd.f32 %v1521, %v1560
        %v1594 = vadd.f32 %v1522, %v1565
        %v1595 = vadd.f32 %v1523, %v1570
        %v1596 = vadd.f32 %v1524, %v1575
        %v1597 = vadd.f32 %v1525, %v1580
        %v1598 = vadd.f32 %v1526, %v1585
        %1599 = vst.msk [vmem:[%s932 + $0x60] sm:$0xff] %vm962, %v1587
        %1600 = vst.msk [vmem:[%s932 + $0x68] sm:$0xff] %vm962, %v1588
        %1601 = vst.msk [vmem:[%s932 + $0x70] sm:$0xff] %vm962, %v1589
        %1602 = vst.msk [vmem:[%s932 + $0x78] sm:$0xff] %vm962, %v1590
        %1603 = vst.msk [vmem:[%s932 + $0x80] sm:$0xff] %vm962, %v1591
        %1604 = vst.msk [vmem:[%s932 + $0x88] sm:$0xff] %vm962, %v1592
        %1605 = vst.msk [vmem:[%s932 + $0x90] sm:$0xff] %vm962, %v1593
        %1606 = vst.msk [vmem:[%s932 + $0x98] sm:$0xff] %vm962, %v1594
        %1607 = vst.msk [vmem:[%s932 + $0xa0] sm:$0xff] %vm962, %v1595
        %1608 = vst.msk [vmem:[%s932 + $0xa8] sm:$0xff] %vm962, %v1596
        %1609 = vst.msk [vmem:[%s932 + $0xb0] sm:$0xff] %vm962, %v1597
        %1610 = vst.msk [vmem:[%s932 + $0xb8] sm:$0xff] %vm962, %v1598
        %v1611 = vld [vmem:[%s1 + $0xc0] sm:$0xff]
        %v1612 = vld [vmem:[%s1 + $0xc8] sm:$0xff]
        %v1613 = vld [vmem:[%s1 + $0xd0] sm:$0xff]
        %v1614 = vld [vmem:[%s1 + $0xd8] sm:$0xff]
        %v1615 = vld [vmem:[%s1 + $0xe0] sm:$0xff]
        %v1616 = vld [vmem:[%s1 + $0xe8] sm:$0xff]
        %v1617 = vld [vmem:[%s1 + $0xf0] sm:$0xff]
        %v1618 = vld [vmem:[%s1 + $0xf8] sm:$0xff]
        %v1619 = vld [vmem:[%s1 + $0x100] sm:$0xff]
        %v1620 = vld [vmem:[%s1 + $0x108] sm:$0xff]
        %v1621 = vld [vmem:[%s1 + $0x110] sm:$0xff]
        %v1622 = vld [vmem:[%s1 + $0x118] sm:$0xff]
        %v1623 = vld [vmem:[%s926 + $0xc0] sm:$0xff]
        %v1624 = vld [vmem:[%s926 + $0xc8] sm:$0xff]
        %v1625 = vld [vmem:[%s926 + $0xd0] sm:$0xff]
        %v1626 = vld [vmem:[%s926 + $0xd8] sm:$0xff]
        %v1627 = vld [vmem:[%s926 + $0xe0] sm:$0xff]
        %v1628 = vld [vmem:[%s926 + $0xe8] sm:$0xff]
        %v1629 = vld [vmem:[%s926 + $0xf0] sm:$0xff]
        %v1630 = vld [vmem:[%s926 + $0xf8] sm:$0xff]
        %v1631 = vld [vmem:[%s926 + $0x100] sm:$0xff]
        %v1632 = vld [vmem:[%s926 + $0x108] sm:$0xff]
        %v1633 = vld [vmem:[%s926 + $0x110] sm:$0xff]
        %v1634 = vld [vmem:[%s926 + $0x118] sm:$0xff]
        %v1635 = vsel %vm962, %v1611, 0.0
        %1636 = vadd.xlane.f32.xlu0 %v1635
        %v1637 = vpop.xlane.xlu0 %1636
        %v1638 = vsel %vm962, %v1612, 0.0
        %1639 = vadd.xlane.f32.xlu0 %v1638
        %v1640 = vpop.xlane.xlu0 %1639
        %v1641 = vsel %vm962, %v1613, 0.0
        %1642 = vadd.xlane.f32.xlu0 %v1641
        %v1643 = vpop.xlane.xlu0 %1642
        %v1644 = vsel %vm962, %v1614, 0.0
        %1645 = vadd.xlane.f32.xlu0 %v1644
        %v1646 = vpop.xlane.xlu0 %1645
        %v1647 = vsel %vm962, %v1615, 0.0
        %1648 = vadd.xlane.f32.xlu0 %v1647
        %v1649 = vpop.xlane.xlu0 %1648
        %v1650 = vsel %vm962, %v1616, 0.0
        %1651 = vadd.xlane.f32.xlu0 %v1650
        %v1652 = vpop.xlane.xlu0 %1651
        %v1653 = vsel %vm962, %v1617, 0.0
        %1654 = vadd.xlane.f32.xlu0 %v1653
        %v1655 = vpop.xlane.xlu0 %1654
        %v1656 = vsel %vm962, %v1618, 0.0
        %1657 = vadd.xlane.f32.xlu0 %v1656
        %v1658 = vpop.xlane.xlu0 %1657
        %v1659 = vsel %vm962, %v1619, 0.0
        %1660 = vadd.xlane.f32.xlu0 %v1659
        %v1661 = vpop.xlane.xlu0 %1660
        %v1662 = vsel %vm962, %v1620, 0.0
        %1663 = vadd.xlane.f32.xlu0 %v1662
        %v1664 = vpop.xlane.xlu0 %1663
        %v1665 = vsel %vm962, %v1621, 0.0
        %1666 = vadd.xlane.f32.xlu0 %v1665
        %v1667 = vpop.xlane.xlu0 %1666
        %v1668 = vsel %vm962, %v1622, 0.0
        %1669 = vadd.xlane.f32.xlu0 %v1668
        %v1670 = vpop.xlane.xlu0 %1669
        %v1671 = vmul.f32 %v1637, 0.020408163
        %v1672 = vmul.f32 %v1640, 0.020408163
        %v1673 = vmul.f32 %v1643, 0.020408163
        %v1674 = vmul.f32 %v1646, 0.020408163
        %v1675 = vmul.f32 %v1649, 0.020408163
        %v1676 = vmul.f32 %v1652, 0.020408163
        %v1677 = vmul.f32 %v1655, 0.020408163
        %v1678 = vmul.f32 %v1658, 0.020408163
        %v1679 = vmul.f32 %v1661, 0.020408163
        %v1680 = vmul.f32 %v1664, 0.020408163
        %v1681 = vmul.f32 %v1667, 0.020408163
        %v1682 = vmul.f32 %v1670, 0.020408163
        %v1683 = vsub.f32 %v1611, %v1671
        %v1684 = vsub.f32 %v1612, %v1672
        %v1685 = vsub.f32 %v1613, %v1673
        %v1686 = vsub.f32 %v1614, %v1674
        %v1687 = vsub.f32 %v1615, %v1675
        %v1688 = vsub.f32 %v1616, %v1676
        %v1689 = vsub.f32 %v1617, %v1677
        %v1690 = vsub.f32 %v1618, %v1678
        %v1691 = vsub.f32 %v1619, %v1679
        %v1692 = vsub.f32 %v1620, %v1680
        %v1693 = vsub.f32 %v1621, %v1681
        %v1694 = vsub.f32 %v1622, %v1682
        %v1695 = vmul.f32 %v1683, %v1683
        %v1696 = vmul.f32 %v1684, %v1684
        %v1697 = vmul.f32 %v1685, %v1685
        %v1698 = vmul.f32 %v1686, %v1686
        %v1699 = vmul.f32 %v1687, %v1687
        %v1700 = vmul.f32 %v1688, %v1688
        %v1701 = vmul.f32 %v1689, %v1689
        %v1702 = vmul.f32 %v1690, %v1690
        %v1703 = vmul.f32 %v1691, %v1691
        %v1704 = vmul.f32 %v1692, %v1692
        %v1705 = vmul.f32 %v1693, %v1693
        %v1706 = vmul.f32 %v1694, %v1694
        %v1707 = vsel %vm962, %v1695, 0.0
        %1708 = vadd.xlane.f32.xlu0 %v1707
        %v1709 = vpop.xlane.xlu0 %1708
        %v1710 = vsel %vm962, %v1696, 0.0
        %1711 = vadd.xlane.f32.xlu0 %v1710
        %v1712 = vpop.xlane.xlu0 %1711
        %v1713 = vsel %vm962, %v1697, 0.0
        %1714 = vadd.xlane.f32.xlu0 %v1713
        %v1715 = vpop.xlane.xlu0 %1714
        %v1716 = vsel %vm962, %v1698, 0.0
        %1717 = vadd.xlane.f32.xlu0 %v1716
        %v1718 = vpop.xlane.xlu0 %1717
        %v1719 = vsel %vm962, %v1699, 0.0
        %1720 = vadd.xlane.f32.xlu0 %v1719
        %v1721 = vpop.xlane.xlu0 %1720
        %v1722 = vsel %vm962, %v1700, 0.0
        %1723 = vadd.xlane.f32.xlu0 %v1722
        %v1724 = vpop.xlane.xlu0 %1723
        %v1725 = vsel %vm962, %v1701, 0.0
        %1726 = vadd.xlane.f32.xlu0 %v1725
        %v1727 = vpop.xlane.xlu0 %1726
        %v1728 = vsel %vm962, %v1702, 0.0
        %1729 = vadd.xlane.f32.xlu0 %v1728
        %v1730 = vpop.xlane.xlu0 %1729
        %v1731 = vsel %vm962, %v1703, 0.0
        %1732 = vadd.xlane.f32.xlu0 %v1731
        %v1733 = vpop.xlane.xlu0 %1732
        %v1734 = vsel %vm962, %v1704, 0.0
        %1735 = vadd.xlane.f32.xlu0 %v1734
        %v1736 = vpop.xlane.xlu0 %1735
        %v1737 = vsel %vm962, %v1705, 0.0
        %1738 = vadd.xlane.f32.xlu0 %v1737
        %v1739 = vpop.xlane.xlu0 %1738
        %v1740 = vsel %vm962, %v1706, 0.0
        %1741 = vadd.xlane.f32.xlu0 %v1740
        %v1742 = vpop.xlane.xlu0 %1741
        %v1743 = vmul.f32 %v1709, 0.020408163
        %v1744 = vmul.f32 %v1712, 0.020408163
        %v1745 = vmul.f32 %v1715, 0.020408163
        %v1746 = vmul.f32 %v1718, 0.020408163
        %v1747 = vmul.f32 %v1721, 0.020408163
        %v1748 = vmul.f32 %v1724, 0.020408163
        %v1749 = vmul.f32 %v1727, 0.020408163
        %v1750 = vmul.f32 %v1730, 0.020408163
        %v1751 = vmul.f32 %v1733, 0.020408163
        %v1752 = vmul.f32 %v1736, 0.020408163
        %v1753 = vmul.f32 %v1739, 0.020408163
        %v1754 = vmul.f32 %v1742, 0.020408163
        %v1755 = vadd.f32 %v1743, 1e-05
        %v1756 = vadd.f32 %v1744, 1e-05
        %v1757 = vadd.f32 %v1745, 1e-05
        %v1758 = vadd.f32 %v1746, 1e-05
        %v1759 = vadd.f32 %v1747, 1e-05
        %v1760 = vadd.f32 %v1748, 1e-05
        %v1761 = vadd.f32 %v1749, 1e-05
        %v1762 = vadd.f32 %v1750, 1e-05
        %v1763 = vadd.f32 %v1751, 1e-05
        %v1764 = vadd.f32 %v1752, 1e-05
        %v1765 = vadd.f32 %v1753, 1e-05
        %v1766 = vadd.f32 %v1754, 1e-05
        %v1767 = vrsqrt.pop %v1755
        %v1768 = vrsqrt.pop %v1756
        %v1769 = vrsqrt.pop %v1757
        %v1770 = vrsqrt.pop %v1758
        %v1771 = vrsqrt.pop %v1759
        %v1772 = vrsqrt.pop %v1760
        %v1773 = vrsqrt.pop %v1761
        %v1774 = vrsqrt.pop %v1762
        %v1775 = vrsqrt.pop %v1763
        %v1776 = vrsqrt.pop %v1764
        %v1777 = vrsqrt.pop %v1765
        %v1778 = vrsqrt.pop %v1766
        %v1779 = vmul.f32 %v1767, %v1623
        %v1780 = vmul.f32 %v1768, %v1624
        %v1781 = vmul.f32 %v1769, %v1625
        %v1782 = vmul.f32 %v1770, %v1626
        %v1783 = vmul.f32 %v1771, %v1627
        %v1784 = vmul.f32 %v1772, %v1628
        %v1785 = vmul.f32 %v1773, %v1629
        %v1786 = vmul.f32 %v1774, %v1630
        %v1787 = vmul.f32 %v1775, %v1631
        %v1788 = vmul.f32 %v1776, %v1632
        %v1789 = vmul.f32 %v1777, %v1633
        %v1790 = vmul.f32 %v1778, %v1634
        %1792 = vset.pattern.permute.xlu0 0
        %1793 = vperm.xlu0 %1792, %v1779
        %v1794 = vpop.permute.xlu0 %1793
        %1797 = vset.pattern.permute.xlu0 0
        %1798 = vperm.xlu0 %1797, %v1780
        %v1799 = vpop.permute.xlu0 %1798
        %1802 = vset.pattern.permute.xlu0 0
        %1803 = vperm.xlu0 %1802, %v1781
        %v1804 = vpop.permute.xlu0 %1803
        %1807 = vset.pattern.permute.xlu0 0
        %1808 = vperm.xlu0 %1807, %v1782
        %v1809 = vpop.permute.xlu0 %1808
        %1812 = vset.pattern.permute.xlu0 0
        %1813 = vperm.xlu0 %1812, %v1783
        %v1814 = vpop.permute.xlu0 %1813
        %1817 = vset.pattern.permute.xlu0 0
        %1818 = vperm.xlu0 %1817, %v1784
        %v1819 = vpop.permute.xlu0 %1818
        %1822 = vset.pattern.permute.xlu0 0
        %1823 = vperm.xlu0 %1822, %v1785
        %v1824 = vpop.permute.xlu0 %1823
        %1827 = vset.pattern.permute.xlu0 0
        %1828 = vperm.xlu0 %1827, %v1786
        %v1829 = vpop.permute.xlu0 %1828
        %1832 = vset.pattern.permute.xlu0 0
        %1833 = vperm.xlu0 %1832, %v1787
        %v1834 = vpop.permute.xlu0 %1833
        %1837 = vset.pattern.permute.xlu0 0
        %1838 = vperm.xlu0 %1837, %v1788
        %v1839 = vpop.permute.xlu0 %1838
        %1842 = vset.pattern.permute.xlu0 0
        %1843 = vperm.xlu0 %1842, %v1789
        %v1844 = vpop.permute.xlu0 %1843
        %1847 = vset.pattern.permute.xlu0 0
        %1848 = vperm.xlu0 %1847, %v1790
        %v1849 = vpop.permute.xlu0 %1848
        %v1851 = vmul.f32 %v1683, %v1794
        %v1852 = vmul.f32 %v1684, %v1799
        %v1853 = vmul.f32 %v1685, %v1804
        %v1854 = vmul.f32 %v1686, %v1809
        %v1855 = vmul.f32 %v1687, %v1814
        %v1856 = vmul.f32 %v1688, %v1819
        %v1857 = vmul.f32 %v1689, %v1824
        %v1858 = vmul.f32 %v1690, %v1829
        %v1859 = vmul.f32 %v1691, %v1834
        %v1860 = vmul.f32 %v1692, %v1839
        %v1861 = vmul.f32 %v1693, %v1844
        %v1862 = vmul.f32 %v1694, %v1849
        %1864 = vset.pattern.permute.xlu0 1
        %1865 = vperm.xlu0 %1864, %v1623
        %v1866 = vpop.permute.xlu0 %1865
        %1869 = vset.pattern.permute.xlu0 1
        %1870 = vperm.xlu0 %1869, %v1624
        %v1871 = vpop.permute.xlu0 %1870
        %1874 = vset.pattern.permute.xlu0 1
        %1875 = vperm.xlu0 %1874, %v1625
        %v1876 = vpop.permute.xlu0 %1875
        %1879 = vset.pattern.permute.xlu0 1
        %1880 = vperm.xlu0 %1879, %v1626
        %v1881 = vpop.permute.xlu0 %1880
        %1884 = vset.pattern.permute.xlu0 1
        %1885 = vperm.xlu0 %1884, %v1627
        %v1886 = vpop.permute.xlu0 %1885
        %1889 = vset.pattern.permute.xlu0 1
        %1890 = vperm.xlu0 %1889, %v1628
        %v1891 = vpop.permute.xlu0 %1890
        %1894 = vset.pattern.permute.xlu0 1
        %1895 = vperm.xlu0 %1894, %v1629
        %v1896 = vpop.permute.xlu0 %1895
        %1899 = vset.pattern.permute.xlu0 1
        %1900 = vperm.xlu0 %1899, %v1630
        %v1901 = vpop.permute.xlu0 %1900
        %1904 = vset.pattern.permute.xlu0 1
        %1905 = vperm.xlu0 %1904, %v1631
        %v1906 = vpop.permute.xlu0 %1905
        %1909 = vset.pattern.permute.xlu0 1
        %1910 = vperm.xlu0 %1909, %v1632
        %v1911 = vpop.permute.xlu0 %1910
        %1914 = vset.pattern.permute.xlu0 1
        %1915 = vperm.xlu0 %1914, %v1633
        %v1916 = vpop.permute.xlu0 %1915
        %1919 = vset.pattern.permute.xlu0 1
        %1920 = vperm.xlu0 %1919, %v1634
        %v1921 = vpop.permute.xlu0 %1920
        %v1923 = vadd.f32 %v1851, %v1866
        %v1924 = vadd.f32 %v1852, %v1871
        %v1925 = vadd.f32 %v1853, %v1876
        %v1926 = vadd.f32 %v1854, %v1881
        %v1927 = vadd.f32 %v1855, %v1886
        %v1928 = vadd.f32 %v1856, %v1891
        %v1929 = vadd.f32 %v1857, %v1896
        %v1930 = vadd.f32 %v1858, %v1901
        %v1931 = vadd.f32 %v1859, %v1906
        %v1932 = vadd.f32 %v1860, %v1911
        %v1933 = vadd.f32 %v1861, %v1916
        %v1934 = vadd.f32 %v1862, %v1921
        %1935 = vst.msk [vmem:[%s932 + $0xc0] sm:$0xff] %vm962, %v1923
        %1936 = vst.msk [vmem:[%s932 + $0xc8] sm:$0xff] %vm962, %v1924
        %1937 = vst.msk [vmem:[%s932 + $0xd0] sm:$0xff] %vm962, %v1925
        %1938 = vst.msk [vmem:[%s932 + $0xd8] sm:$0xff] %vm962, %v1926
        %1939 = vst.msk [vmem:[%s932 + $0xe0] sm:$0xff] %vm962, %v1927
        %1940 = vst.msk [vmem:[%s932 + $0xe8] sm:$0xff] %vm962, %v1928
        %1941 = vst.msk [vmem:[%s932 + $0xf0] sm:$0xff] %vm962, %v1929
        %1942 = vst.msk [vmem:[%s932 + $0xf8] sm:$0xff] %vm962, %v1930
        %1943 = vst.msk [vmem:[%s932 + $0x100] sm:$0xff] %vm962, %v1931
        %1944 = vst.msk [vmem:[%s932 + $0x108] sm:$0xff] %vm962, %v1932
        %1945 = vst.msk [vmem:[%s932 + $0x110] sm:$0xff] %vm962, %v1933
        %1946 = vst.msk [vmem:[%s932 + $0x118] sm:$0xff] %vm962, %v1934
        %v1947 = vld [vmem:[%s1 + $0x120] sm:$0xff]
        %v1948 = vld [vmem:[%s1 + $0x128] sm:$0xff]
        %v1949 = vld [vmem:[%s1 + $0x130] sm:$0xff]
        %v1950 = vld [vmem:[%s1 + $0x138] sm:$0xff]
        %v1951 = vld [vmem:[%s1 + $0x140] sm:$0xff]
        %v1952 = vld [vmem:[%s1 + $0x148] sm:$0xff]
        %v1953 = vld [vmem:[%s1 + $0x150] sm:$0xff]
        %v1954 = vld [vmem:[%s1 + $0x158] sm:$0xff]
        %v1955 = vld [vmem:[%s1 + $0x160] sm:$0xff]
        %v1956 = vld [vmem:[%s1 + $0x168] sm:$0xff]
        %v1957 = vld [vmem:[%s1 + $0x170] sm:$0xff]
        %v1958 = vld [vmem:[%s1 + $0x178] sm:$0xff]
        %v1959 = vld [vmem:[%s926 + $0x120] sm:$0xff]
        %v1960 = vld [vmem:[%s926 + $0x128] sm:$0xff]
        %v1961 = vld [vmem:[%s926 + $0x130] sm:$0xff]
        %v1962 = vld [vmem:[%s926 + $0x138] sm:$0xff]
        %v1963 = vld [vmem:[%s926 + $0x140] sm:$0xff]
        %v1964 = vld [vmem:[%s926 + $0x148] sm:$0xff]
        %v1965 = vld [vmem:[%s926 + $0x150] sm:$0xff]
        %v1966 = vld [vmem:[%s926 + $0x158] sm:$0xff]
        %v1967 = vld [vmem:[%s926 + $0x160] sm:$0xff]
        %v1968 = vld [vmem:[%s926 + $0x168] sm:$0xff]
        %v1969 = vld [vmem:[%s926 + $0x170] sm:$0xff]
        %v1970 = vld [vmem:[%s926 + $0x178] sm:$0xff]
        %v1971 = vsel %vm962, %v1947, 0.0
        %1972 = vadd.xlane.f32.xlu0 %v1971
        %v1973 = vpop.xlane.xlu0 %1972
        %v1974 = vsel %vm962, %v1948, 0.0
        %1975 = vadd.xlane.f32.xlu0 %v1974
        %v1976 = vpop.xlane.xlu0 %1975
        %v1977 = vsel %vm962, %v1949, 0.0
        %1978 = vadd.xlane.f32.xlu0 %v1977
        %v1979 = vpop.xlane.xlu0 %1978
        %v1980 = vsel %vm962, %v1950, 0.0
        %1981 = vadd.xlane.f32.xlu0 %v1980
        %v1982 = vpop.xlane.xlu0 %1981
        %v1983 = vsel %vm962, %v1951, 0.0
        %1984 = vadd.xlane.f32.xlu0 %v1983
        %v1985 = vpop.xlane.xlu0 %1984
        %v1986 = vsel %vm962, %v1952, 0.0
        %1987 = vadd.xlane.f32.xlu0 %v1986
        %v1988 = vpop.xlane.xlu0 %1987
        %v1989 = vsel %vm962, %v1953, 0.0
        %1990 = vadd.xlane.f32.xlu0 %v1989
        %v1991 = vpop.xlane.xlu0 %1990
        %v1992 = vsel %vm962, %v1954, 0.0
        %1993 = vadd.xlane.f32.xlu0 %v1992
        %v1994 = vpop.xlane.xlu0 %1993
        %v1995 = vsel %vm962, %v1955, 0.0
        %1996 = vadd.xlane.f32.xlu0 %v1995
        %v1997 = vpop.xlane.xlu0 %1996
        %v1998 = vsel %vm962, %v1956, 0.0
        %1999 = vadd.xlane.f32.xlu0 %v1998
        %v2000 = vpop.xlane.xlu0 %1999
        %v2001 = vsel %vm962, %v1957, 0.0
        %2002 = vadd.xlane.f32.xlu0 %v2001
        %v2003 = vpop.xlane.xlu0 %2002
        %v2004 = vsel %vm962, %v1958, 0.0
        %2005 = vadd.xlane.f32.xlu0 %v2004
        %v2006 = vpop.xlane.xlu0 %2005
        %v2007 = vmul.f32 %v1973, 0.020408163
        %v2008 = vmul.f32 %v1976, 0.020408163
        %v2009 = vmul.f32 %v1979, 0.020408163
        %v2010 = vmul.f32 %v1982, 0.020408163
        %v2011 = vmul.f32 %v1985, 0.020408163
        %v2012 = vmul.f32 %v1988, 0.020408163
        %v2013 = vmul.f32 %v1991, 0.020408163
        %v2014 = vmul.f32 %v1994, 0.020408163
        %v2015 = vmul.f32 %v1997, 0.020408163
        %v2016 = vmul.f32 %v2000, 0.020408163
        %v2017 = vmul.f32 %v2003, 0.020408163
        %v2018 = vmul.f32 %v2006, 0.020408163
        %v2019 = vsub.f32 %v1947, %v2007
        %v2020 = vsub.f32 %v1948, %v2008
        %v2021 = vsub.f32 %v1949, %v2009
        %v2022 = vsub.f32 %v1950, %v2010
        %v2023 = vsub.f32 %v1951, %v2011
        %v2024 = vsub.f32 %v1952, %v2012
        %v2025 = vsub.f32 %v1953, %v2013
        %v2026 = vsub.f32 %v1954, %v2014
        %v2027 = vsub.f32 %v1955, %v2015
        %v2028 = vsub.f32 %v1956, %v2016
        %v2029 = vsub.f32 %v1957, %v2017
        %v2030 = vsub.f32 %v1958, %v2018
        %v2031 = vmul.f32 %v2019, %v2019
        %v2032 = vmul.f32 %v2020, %v2020
        %v2033 = vmul.f32 %v2021, %v2021
        %v2034 = vmul.f32 %v2022, %v2022
        %v2035 = vmul.f32 %v2023, %v2023
        %v2036 = vmul.f32 %v2024, %v2024
        %v2037 = vmul.f32 %v2025, %v2025
        %v2038 = vmul.f32 %v2026, %v2026
        %v2039 = vmul.f32 %v2027, %v2027
        %v2040 = vmul.f32 %v2028, %v2028
        %v2041 = vmul.f32 %v2029, %v2029
        %v2042 = vmul.f32 %v2030, %v2030
        %v2043 = vsel %vm962, %v2031, 0.0
        %2044 = vadd.xlane.f32.xlu0 %v2043
        %v2045 = vpop.xlane.xlu0 %2044
        %v2046 = vsel %vm962, %v2032, 0.0
        %2047 = vadd.xlane.f32.xlu0 %v2046
        %v2048 = vpop.xlane.xlu0 %2047
        %v2049 = vsel %vm962, %v2033, 0.0
        %2050 = vadd.xlane.f32.xlu0 %v2049
        %v2051 = vpop.xlane.xlu0 %2050
        %v2052 = vsel %vm962, %v2034, 0.0
        %2053 = vadd.xlane.f32.xlu0 %v2052
        %v2054 = vpop.xlane.xlu0 %2053
        %v2055 = vsel %vm962, %v2035, 0.0
        %2056 = vadd.xlane.f32.xlu0 %v2055
        %v2057 = vpop.xlane.xlu0 %2056
        %v2058 = vsel %vm962, %v2036, 0.0
        %2059 = vadd.xlane.f32.xlu0 %v2058
        %v2060 = vpop.xlane.xlu0 %2059
        %v2061 = vsel %vm962, %v2037, 0.0
        %2062 = vadd.xlane.f32.xlu0 %v2061
        %v2063 = vpop.xlane.xlu0 %2062
        %v2064 = vsel %vm962, %v2038, 0.0
        %2065 = vadd.xlane.f32.xlu0 %v2064
        %v2066 = vpop.xlane.xlu0 %2065
        %v2067 = vsel %vm962, %v2039, 0.0
        %2068 = vadd.xlane.f32.xlu0 %v2067
        %v2069 = vpop.xlane.xlu0 %2068
        %v2070 = vsel %vm962, %v2040, 0.0
        %2071 = vadd.xlane.f32.xlu0 %v2070
        %v2072 = vpop.xlane.xlu0 %2071
        %v2073 = vsel %vm962, %v2041, 0.0
        %2074 = vadd.xlane.f32.xlu0 %v2073
        %v2075 = vpop.xlane.xlu0 %2074
        %v2076 = vsel %vm962, %v2042, 0.0
        %2077 = vadd.xlane.f32.xlu0 %v2076
        %v2078 = vpop.xlane.xlu0 %2077
        %v2079 = vmul.f32 %v2045, 0.020408163
        %v2080 = vmul.f32 %v2048, 0.020408163
        %v2081 = vmul.f32 %v2051, 0.020408163
        %v2082 = vmul.f32 %v2054, 0.020408163
        %v2083 = vmul.f32 %v2057, 0.020408163
        %v2084 = vmul.f32 %v2060, 0.020408163
        %v2085 = vmul.f32 %v2063, 0.020408163
        %v2086 = vmul.f32 %v2066, 0.020408163
        %v2087 = vmul.f32 %v2069, 0.020408163
        %v2088 = vmul.f32 %v2072, 0.020408163
        %v2089 = vmul.f32 %v2075, 0.020408163
        %v2090 = vmul.f32 %v2078, 0.020408163
        %v2091 = vadd.f32 %v2079, 1e-05
        %v2092 = vadd.f32 %v2080, 1e-05
        %v2093 = vadd.f32 %v2081, 1e-05
        %v2094 = vadd.f32 %v2082, 1e-05
        %v2095 = vadd.f32 %v2083, 1e-05
        %v2096 = vadd.f32 %v2084, 1e-05
        %v2097 = vadd.f32 %v2085, 1e-05
        %v2098 = vadd.f32 %v2086, 1e-05
        %v2099 = vadd.f32 %v2087, 1e-05
        %v2100 = vadd.f32 %v2088, 1e-05
        %v2101 = vadd.f32 %v2089, 1e-05
        %v2102 = vadd.f32 %v2090, 1e-05
        %v2103 = vrsqrt.pop %v2091
        %v2104 = vrsqrt.pop %v2092
        %v2105 = vrsqrt.pop %v2093
        %v2106 = vrsqrt.pop %v2094
        %v2107 = vrsqrt.pop %v2095
        %v2108 = vrsqrt.pop %v2096
        %v2109 = vrsqrt.pop %v2097
        %v2110 = vrsqrt.pop %v2098
        %v2111 = vrsqrt.pop %v2099
        %v2112 = vrsqrt.pop %v2100
        %v2113 = vrsqrt.pop %v2101
        %v2114 = vrsqrt.pop %v2102
        %v2115 = vmul.f32 %v2103, %v1959
        %v2116 = vmul.f32 %v2104, %v1960
        %v2117 = vmul.f32 %v2105, %v1961
        %v2118 = vmul.f32 %v2106, %v1962
        %v2119 = vmul.f32 %v2107, %v1963
        %v2120 = vmul.f32 %v2108, %v1964
        %v2121 = vmul.f32 %v2109, %v1965
        %v2122 = vmul.f32 %v2110, %v1966
        %v2123 = vmul.f32 %v2111, %v1967
        %v2124 = vmul.f32 %v2112, %v1968
        %v2125 = vmul.f32 %v2113, %v1969
        %v2126 = vmul.f32 %v2114, %v1970
        %2128 = vset.pattern.permute.xlu0 0
        %2129 = vperm.xlu0 %2128, %v2115
        %v2130 = vpop.permute.xlu0 %2129
        %2133 = vset.pattern.permute.xlu0 0
        %2134 = vperm.xlu0 %2133, %v2116
        %v2135 = vpop.permute.xlu0 %2134
        %2138 = vset.pattern.permute.xlu0 0
        %2139 = vperm.xlu0 %2138, %v2117
        %v2140 = vpop.permute.xlu0 %2139
        %2143 = vset.pattern.permute.xlu0 0
        %2144 = vperm.xlu0 %2143, %v2118
        %v2145 = vpop.permute.xlu0 %2144
        %2148 = vset.pattern.permute.xlu0 0
        %2149 = vperm.xlu0 %2148, %v2119
        %v2150 = vpop.permute.xlu0 %2149
        %2153 = vset.pattern.permute.xlu0 0
        %2154 = vperm.xlu0 %2153, %v2120
        %v2155 = vpop.permute.xlu0 %2154
        %2158 = vset.pattern.permute.xlu0 0
        %2159 = vperm.xlu0 %2158, %v2121
        %v2160 = vpop.permute.xlu0 %2159
        %2163 = vset.pattern.permute.xlu0 0
        %2164 = vperm.xlu0 %2163, %v2122
        %v2165 = vpop.permute.xlu0 %2164
        %2168 = vset.pattern.permute.xlu0 0
        %2169 = vperm.xlu0 %2168, %v2123
        %v2170 = vpop.permute.xlu0 %2169
        %2173 = vset.pattern.permute.xlu0 0
        %2174 = vperm.xlu0 %2173, %v2124
        %v2175 = vpop.permute.xlu0 %2174
        %2178 = vset.pattern.permute.xlu0 0
        %2179 = vperm.xlu0 %2178, %v2125
        %v2180 = vpop.permute.xlu0 %2179
        %2183 = vset.pattern.permute.xlu0 0
        %2184 = vperm.xlu0 %2183, %v2126
        %v2185 = vpop.permute.xlu0 %2184
        %v2187 = vmul.f32 %v2019, %v2130
        %v2188 = vmul.f32 %v2020, %v2135
        %v2189 = vmul.f32 %v2021, %v2140
        %v2190 = vmul.f32 %v2022, %v2145
        %v2191 = vmul.f32 %v2023, %v2150
        %v2192 = vmul.f32 %v2024, %v2155
        %v2193 = vmul.f32 %v2025, %v2160
        %v2194 = vmul.f32 %v2026, %v2165
        %v2195 = vmul.f32 %v2027, %v2170
        %v2196 = vmul.f32 %v2028, %v2175
        %v2197 = vmul.f32 %v2029, %v2180
        %v2198 = vmul.f32 %v2030, %v2185
        %2200 = vset.pattern.permute.xlu0 1
        %2201 = vperm.xlu0 %2200, %v1959
        %v2202 = vpop.permute.xlu0 %2201
        %2205 = vset.pattern.permute.xlu0 1
        %2206 = vperm.xlu0 %2205, %v1960
        %v2207 = vpop.permute.xlu0 %2206
        %2210 = vset.pattern.permute.xlu0 1
        %2211 = vperm.xlu0 %2210, %v1961
        %v2212 = vpop.permute.xlu0 %2211
        %2215 = vset.pattern.permute.xlu0 1
        %2216 = vperm.xlu0 %2215, %v1962
        %v2217 = vpop.permute.xlu0 %2216
        %2220 = vset.pattern.permute.xlu0 1
        %2221 = vperm.xlu0 %2220, %v1963
        %v2222 = vpop.permute.xlu0 %2221
        %2225 = vset.pattern.permute.xlu0 1
        %2226 = vperm.xlu0 %2225, %v1964
        %v2227 = vpop.permute.xlu0 %2226
        %2230 = vset.pattern.permute.xlu0 1
        %2231 = vperm.xlu0 %2230, %v1965
        %v2232 = vpop.permute.xlu0 %2231
        %2235 = vset.pattern.permute.xlu0 1
        %2236 = vperm.xlu0 %2235, %v1966
        %v2237 = vpop.permute.xlu0 %2236
        %2240 = vset.pattern.permute.xlu0 1
        %2241 = vperm.xlu0 %2240, %v1967
        %v2242 = vpop.permute.xlu0 %2241
        %2245 = vset.pattern.permute.xlu0 1
        %2246 = vperm.xlu0 %2245, %v1968
        %v2247 = vpop.permute.xlu0 %2246
        %2250 = vset.pattern.permute.xlu0 1
        %2251 = vperm.xlu0 %2250, %v1969
        %v2252 = vpop.permute.xlu0 %2251
        %2255 = vset.pattern.permute.xlu0 1
        %2256 = vperm.xlu0 %2255, %v1970
        %v2257 = vpop.permute.xlu0 %2256
        %v2259 = vadd.f32 %v2187, %v2202
        %v2260 = vadd.f32 %v2188, %v2207
        %v2261 = vadd.f32 %v2189, %v2212
        %v2262 = vadd.f32 %v2190, %v2217
        %v2263 = vadd.f32 %v2191, %v2222
        %v2264 = vadd.f32 %v2192, %v2227
        %v2265 = vadd.f32 %v2193, %v2232
        %v2266 = vadd.f32 %v2194, %v2237
        %v2267 = vadd.f32 %v2195, %v2242
        %v2268 = vadd.f32 %v2196, %v2247
        %v2269 = vadd.f32 %v2197, %v2252
        %v2270 = vadd.f32 %v2198, %v2257
        %2271 = vst.msk [vmem:[%s932 + $0x120] sm:$0xff] %vm962, %v2259
        %2272 = vst.msk [vmem:[%s932 + $0x128] sm:$0xff] %vm962, %v2260
        %2273 = vst.msk [vmem:[%s932 + $0x130] sm:$0xff] %vm962, %v2261
        %2274 = vst.msk [vmem:[%s932 + $0x138] sm:$0xff] %vm962, %v2262
        %2275 = vst.msk [vmem:[%s932 + $0x140] sm:$0xff] %vm962, %v2263
        %2276 = vst.msk [vmem:[%s932 + $0x148] sm:$0xff] %vm962, %v2264
        %2277 = vst.msk [vmem:[%s932 + $0x150] sm:$0xff] %vm962, %v2265
        %2278 = vst.msk [vmem:[%s932 + $0x158] sm:$0xff] %vm962, %v2266
        %2279 = vst.msk [vmem:[%s932 + $0x160] sm:$0xff] %vm962, %v2267
        %2280 = vst.msk [vmem:[%s932 + $0x168] sm:$0xff] %vm962, %v2268
        %2281 = vst.msk [vmem:[%s932 + $0x170] sm:$0xff] %vm962, %v2269
        %2282 = vst.msk [vmem:[%s932 + $0x178] sm:$0xff] %vm962, %v2270
        %v2283 = vld [vmem:[%s1 + $0x180] sm:$0xff]
        %v2284 = vld [vmem:[%s1 + $0x188] sm:$0xff]
        %v2285 = vld [vmem:[%s1 + $0x190] sm:$0xff]
        %v2286 = vld [vmem:[%s1 + $0x198] sm:$0xff]
        %v2287 = vld [vmem:[%s1 + $0x1a0] sm:$0xff]
        %v2288 = vld [vmem:[%s1 + $0x1a8] sm:$0xff]
        %v2289 = vld [vmem:[%s1 + $0x1b0] sm:$0xff]
        %v2290 = vld [vmem:[%s1 + $0x1b8] sm:$0xff]
        %v2291 = vld [vmem:[%s1 + $0x1c0] sm:$0xff]
        %v2292 = vld [vmem:[%s1 + $0x1c8] sm:$0xff]
        %v2293 = vld [vmem:[%s1 + $0x1d0] sm:$0xff]
        %v2294 = vld [vmem:[%s1 + $0x1d8] sm:$0xff]
        %v2295 = vld [vmem:[%s926 + $0x180] sm:$0xff]
        %v2296 = vld [vmem:[%s926 + $0x188] sm:$0xff]
        %v2297 = vld [vmem:[%s926 + $0x190] sm:$0xff]
        %v2298 = vld [vmem:[%s926 + $0x198] sm:$0xff]
        %v2299 = vld [vmem:[%s926 + $0x1a0] sm:$0xff]
        %v2300 = vld [vmem:[%s926 + $0x1a8] sm:$0xff]
        %v2301 = vld [vmem:[%s926 + $0x1b0] sm:$0xff]
        %v2302 = vld [vmem:[%s926 + $0x1b8] sm:$0xff]
        %v2303 = vld [vmem:[%s926 + $0x1c0] sm:$0xff]
        %v2304 = vld [vmem:[%s926 + $0x1c8] sm:$0xff]
        %v2305 = vld [vmem:[%s926 + $0x1d0] sm:$0xff]
        %v2306 = vld [vmem:[%s926 + $0x1d8] sm:$0xff]
        %v2307 = vsel %vm962, %v2283, 0.0
        %2308 = vadd.xlane.f32.xlu0 %v2307
        %v2309 = vpop.xlane.xlu0 %2308
        %v2310 = vsel %vm962, %v2284, 0.0
        %2311 = vadd.xlane.f32.xlu0 %v2310
        %v2312 = vpop.xlane.xlu0 %2311
        %v2313 = vsel %vm962, %v2285, 0.0
        %2314 = vadd.xlane.f32.xlu0 %v2313
        %v2315 = vpop.xlane.xlu0 %2314
        %v2316 = vsel %vm962, %v2286, 0.0
        %2317 = vadd.xlane.f32.xlu0 %v2316
        %v2318 = vpop.xlane.xlu0 %2317
        %v2319 = vsel %vm962, %v2287, 0.0
        %2320 = vadd.xlane.f32.xlu0 %v2319
        %v2321 = vpop.xlane.xlu0 %2320
        %v2322 = vsel %vm962, %v2288, 0.0
        %2323 = vadd.xlane.f32.xlu0 %v2322
        %v2324 = vpop.xlane.xlu0 %2323
        %v2325 = vsel %vm962, %v2289, 0.0
        %2326 = vadd.xlane.f32.xlu0 %v2325
        %v2327 = vpop.xlane.xlu0 %2326
        %v2328 = vsel %vm962, %v2290, 0.0
        %2329 = vadd.xlane.f32.xlu0 %v2328
        %v2330 = vpop.xlane.xlu0 %2329
        %v2331 = vsel %vm962, %v2291, 0.0
        %2332 = vadd.xlane.f32.xlu0 %v2331
        %v2333 = vpop.xlane.xlu0 %2332
        %v2334 = vsel %vm962, %v2292, 0.0
        %2335 = vadd.xlane.f32.xlu0 %v2334
        %v2336 = vpop.xlane.xlu0 %2335
        %v2337 = vsel %vm962, %v2293, 0.0
        %2338 = vadd.xlane.f32.xlu0 %v2337
        %v2339 = vpop.xlane.xlu0 %2338
        %v2340 = vsel %vm962, %v2294, 0.0
        %2341 = vadd.xlane.f32.xlu0 %v2340
        %v2342 = vpop.xlane.xlu0 %2341
        %v2343 = vmul.f32 %v2309, 0.020408163
        %v2344 = vmul.f32 %v2312, 0.020408163
        %v2345 = vmul.f32 %v2315, 0.020408163
        %v2346 = vmul.f32 %v2318, 0.020408163
        %v2347 = vmul.f32 %v2321, 0.020408163
        %v2348 = vmul.f32 %v2324, 0.020408163
        %v2349 = vmul.f32 %v2327, 0.020408163
        %v2350 = vmul.f32 %v2330, 0.020408163
        %v2351 = vmul.f32 %v2333, 0.020408163
        %v2352 = vmul.f32 %v2336, 0.020408163
        %v2353 = vmul.f32 %v2339, 0.020408163
        %v2354 = vmul.f32 %v2342, 0.020408163
        %v2355 = vsub.f32 %v2283, %v2343
        %v2356 = vsub.f32 %v2284, %v2344
        %v2357 = vsub.f32 %v2285, %v2345
        %v2358 = vsub.f32 %v2286, %v2346
        %v2359 = vsub.f32 %v2287, %v2347
        %v2360 = vsub.f32 %v2288, %v2348
        %v2361 = vsub.f32 %v2289, %v2349
        %v2362 = vsub.f32 %v2290, %v2350
        %v2363 = vsub.f32 %v2291, %v2351
        %v2364 = vsub.f32 %v2292, %v2352
        %v2365 = vsub.f32 %v2293, %v2353
        %v2366 = vsub.f32 %v2294, %v2354
        %v2367 = vmul.f32 %v2355, %v2355
        %v2368 = vmul.f32 %v2356, %v2356
        %v2369 = vmul.f32 %v2357, %v2357
        %v2370 = vmul.f32 %v2358, %v2358
        %v2371 = vmul.f32 %v2359, %v2359
        %v2372 = vmul.f32 %v2360, %v2360
        %v2373 = vmul.f32 %v2361, %v2361
        %v2374 = vmul.f32 %v2362, %v2362
        %v2375 = vmul.f32 %v2363, %v2363
        %v2376 = vmul.f32 %v2364, %v2364
        %v2377 = vmul.f32 %v2365, %v2365
        %v2378 = vmul.f32 %v2366, %v2366
        %v2379 = vsel %vm962, %v2367, 0.0
        %2380 = vadd.xlane.f32.xlu0 %v2379
        %v2381 = vpop.xlane.xlu0 %2380
        %v2382 = vsel %vm962, %v2368, 0.0
        %2383 = vadd.xlane.f32.xlu0 %v2382
        %v2384 = vpop.xlane.xlu0 %2383
        %v2385 = vsel %vm962, %v2369, 0.0
        %2386 = vadd.xlane.f32.xlu0 %v2385
        %v2387 = vpop.xlane.xlu0 %2386
        %v2388 = vsel %vm962, %v2370, 0.0
        %2389 = vadd.xlane.f32.xlu0 %v2388
        %v2390 = vpop.xlane.xlu0 %2389
        %v2391 = vsel %vm962, %v2371, 0.0
        %2392 = vadd.xlane.f32.xlu0 %v2391
        %v2393 = vpop.xlane.xlu0 %2392
        %v2394 = vsel %vm962, %v2372, 0.0
        %2395 = vadd.xlane.f32.xlu0 %v2394
        %v2396 = vpop.xlane.xlu0 %2395
        %v2397 = vsel %vm962, %v2373, 0.0
        %2398 = vadd.xlane.f32.xlu0 %v2397
        %v2399 = vpop.xlane.xlu0 %2398
        %v2400 = vsel %vm962, %v2374, 0.0
        %2401 = vadd.xlane.f32.xlu0 %v2400
        %v2402 = vpop.xlane.xlu0 %2401
        %v2403 = vsel %vm962, %v2375, 0.0
        %2404 = vadd.xlane.f32.xlu0 %v2403
        %v2405 = vpop.xlane.xlu0 %2404
        %v2406 = vsel %vm962, %v2376, 0.0
        %2407 = vadd.xlane.f32.xlu0 %v2406
        %v2408 = vpop.xlane.xlu0 %2407
        %v2409 = vsel %vm962, %v2377, 0.0
        %2410 = vadd.xlane.f32.xlu0 %v2409
        %v2411 = vpop.xlane.xlu0 %2410
        %v2412 = vsel %vm962, %v2378, 0.0
        %2413 = vadd.xlane.f32.xlu0 %v2412
        %v2414 = vpop.xlane.xlu0 %2413
        %v2415 = vmul.f32 %v2381, 0.020408163
        %v2416 = vmul.f32 %v2384, 0.020408163
        %v2417 = vmul.f32 %v2387, 0.020408163
        %v2418 = vmul.f32 %v2390, 0.020408163
        %v2419 = vmul.f32 %v2393, 0.020408163
        %v2420 = vmul.f32 %v2396, 0.020408163
        %v2421 = vmul.f32 %v2399, 0.020408163
        %v2422 = vmul.f32 %v2402, 0.020408163
        %v2423 = vmul.f32 %v2405, 0.020408163
        %v2424 = vmul.f32 %v2408, 0.020408163
        %v2425 = vmul.f32 %v2411, 0.020408163
        %v2426 = vmul.f32 %v2414, 0.020408163
        %v2427 = vadd.f32 %v2415, 1e-05
        %v2428 = vadd.f32 %v2416, 1e-05
        %v2429 = vadd.f32 %v2417, 1e-05
        %v2430 = vadd.f32 %v2418, 1e-05
        %v2431 = vadd.f32 %v2419, 1e-05
        %v2432 = vadd.f32 %v2420, 1e-05
        %v2433 = vadd.f32 %v2421, 1e-05
        %v2434 = vadd.f32 %v2422, 1e-05
        %v2435 = vadd.f32 %v2423, 1e-05
        %v2436 = vadd.f32 %v2424, 1e-05
        %v2437 = vadd.f32 %v2425, 1e-05
        %v2438 = vadd.f32 %v2426, 1e-05
        %v2439 = vrsqrt.pop %v2427
        %v2440 = vrsqrt.pop %v2428
        %v2441 = vrsqrt.pop %v2429
        %v2442 = vrsqrt.pop %v2430
        %v2443 = vrsqrt.pop %v2431
        %v2444 = vrsqrt.pop %v2432
        %v2445 = vrsqrt.pop %v2433
        %v2446 = vrsqrt.pop %v2434
        %v2447 = vrsqrt.pop %v2435
        %v2448 = vrsqrt.pop %v2436
        %v2449 = vrsqrt.pop %v2437
        %v2450 = vrsqrt.pop %v2438
        %v2451 = vmul.f32 %v2439, %v2295
        %v2452 = vmul.f32 %v2440, %v2296
        %v2453 = vmul.f32 %v2441, %v2297
        %v2454 = vmul.f32 %v2442, %v2298
        %v2455 = vmul.f32 %v2443, %v2299
        %v2456 = vmul.f32 %v2444, %v2300
        %v2457 = vmul.f32 %v2445, %v2301
        %v2458 = vmul.f32 %v2446, %v2302
        %v2459 = vmul.f32 %v2447, %v2303
        %v2460 = vmul.f32 %v2448, %v2304
        %v2461 = vmul.f32 %v2449, %v2305
        %v2462 = vmul.f32 %v2450, %v2306
        %2464 = vset.pattern.permute.xlu0 0
        %2465 = vperm.xlu0 %2464, %v2451
        %v2466 = vpop.permute.xlu0 %2465
        %2469 = vset.pattern.permute.xlu0 0
        %2470 = vperm.xlu0 %2469, %v2452
        %v2471 = vpop.permute.xlu0 %2470
        %2474 = vset.pattern.permute.xlu0 0
        %2475 = vperm.xlu0 %2474, %v2453
        %v2476 = vpop.permute.xlu0 %2475
        %2479 = vset.pattern.permute.xlu0 0
        %2480 = vperm.xlu0 %2479, %v2454
        %v2481 = vpop.permute.xlu0 %2480
        %2484 = vset.pattern.permute.xlu0 0
        %2485 = vperm.xlu0 %2484, %v2455
        %v2486 = vpop.permute.xlu0 %2485
        %2489 = vset.pattern.permute.xlu0 0
        %2490 = vperm.xlu0 %2489, %v2456
        %v2491 = vpop.permute.xlu0 %2490
        %2494 = vset.pattern.permute.xlu0 0
        %2495 = vperm.xlu0 %2494, %v2457
        %v2496 = vpop.permute.xlu0 %2495
        %2499 = vset.pattern.permute.xlu0 0
        %2500 = vperm.xlu0 %2499, %v2458
        %v2501 = vpop.permute.xlu0 %2500
        %2504 = vset.pattern.permute.xlu0 0
        %2505 = vperm.xlu0 %2504, %v2459
        %v2506 = vpop.permute.xlu0 %2505
        %2509 = vset.pattern.permute.xlu0 0
        %2510 = vperm.xlu0 %2509, %v2460
        %v2511 = vpop.permute.xlu0 %2510
        %2514 = vset.pattern.permute.xlu0 0
        %2515 = vperm.xlu0 %2514, %v2461
        %v2516 = vpop.permute.xlu0 %2515
        %2519 = vset.pattern.permute.xlu0 0
        %2520 = vperm.xlu0 %2519, %v2462
        %v2521 = vpop.permute.xlu0 %2520
        %v2523 = vmul.f32 %v2355, %v2466
        %v2524 = vmul.f32 %v2356, %v2471
        %v2525 = vmul.f32 %v2357, %v2476
        %v2526 = vmul.f32 %v2358, %v2481
        %v2527 = vmul.f32 %v2359, %v2486
        %v2528 = vmul.f32 %v2360, %v2491
        %v2529 = vmul.f32 %v2361, %v2496
        %v2530 = vmul.f32 %v2362, %v2501
        %v2531 = vmul.f32 %v2363, %v2506
        %v2532 = vmul.f32 %v2364, %v2511
        %v2533 = vmul.f32 %v2365, %v2516
        %v2534 = vmul.f32 %v2366, %v2521
        %2536 = vset.pattern.permute.xlu0 1
        %2537 = vperm.xlu0 %2536, %v2295
        %v2538 = vpop.permute.xlu0 %2537
        %2541 = vset.pattern.permute.xlu0 1
        %2542 = vperm.xlu0 %2541, %v2296
        %v2543 = vpop.permute.xlu0 %2542
        %2546 = vset.pattern.permute.xlu0 1
        %2547 = vperm.xlu0 %2546, %v2297
        %v2548 = vpop.permute.xlu0 %2547
        %2551 = vset.pattern.permute.xlu0 1
        %2552 = vperm.xlu0 %2551, %v2298
        %v2553 = vpop.permute.xlu0 %2552
        %2556 = vset.pattern.permute.xlu0 1
        %2557 = vperm.xlu0 %2556, %v2299
        %v2558 = vpop.permute.xlu0 %2557
        %2561 = vset.pattern.permute.xlu0 1
        %2562 = vperm.xlu0 %2561, %v2300
        %v2563 = vpop.permute.xlu0 %2562
        %2566 = vset.pattern.permute.xlu0 1
        %2567 = vperm.xlu0 %2566, %v2301
        %v2568 = vpop.permute.xlu0 %2567
        %2571 = vset.pattern.permute.xlu0 1
        %2572 = vperm.xlu0 %2571, %v2302
        %v2573 = vpop.permute.xlu0 %2572
        %2576 = vset.pattern.permute.xlu0 1
        %2577 = vperm.xlu0 %2576, %v2303
        %v2578 = vpop.permute.xlu0 %2577
        %2581 = vset.pattern.permute.xlu0 1
        %2582 = vperm.xlu0 %2581, %v2304
        %v2583 = vpop.permute.xlu0 %2582
        %2586 = vset.pattern.permute.xlu0 1
        %2587 = vperm.xlu0 %2586, %v2305
        %v2588 = vpop.permute.xlu0 %2587
        %2591 = vset.pattern.permute.xlu0 1
        %2592 = vperm.xlu0 %2591, %v2306
        %v2593 = vpop.permute.xlu0 %2592
        %v2595 = vadd.f32 %v2523, %v2538
        %v2596 = vadd.f32 %v2524, %v2543
        %v2597 = vadd.f32 %v2525, %v2548
        %v2598 = vadd.f32 %v2526, %v2553
        %v2599 = vadd.f32 %v2527, %v2558
        %v2600 = vadd.f32 %v2528, %v2563
        %v2601 = vadd.f32 %v2529, %v2568
        %v2602 = vadd.f32 %v2530, %v2573
        %v2603 = vadd.f32 %v2531, %v2578
        %v2604 = vadd.f32 %v2532, %v2583
        %v2605 = vadd.f32 %v2533, %v2588
        %v2606 = vadd.f32 %v2534, %v2593
        %2607 = vst.msk [vmem:[%s932 + $0x180] sm:$0xff] %vm962, %v2595
        %2608 = vst.msk [vmem:[%s932 + $0x188] sm:$0xff] %vm962, %v2596
        %2609 = vst.msk [vmem:[%s932 + $0x190] sm:$0xff] %vm962, %v2597
        %2610 = vst.msk [vmem:[%s932 + $0x198] sm:$0xff] %vm962, %v2598
        %2611 = vst.msk [vmem:[%s932 + $0x1a0] sm:$0xff] %vm962, %v2599
        %2612 = vst.msk [vmem:[%s932 + $0x1a8] sm:$0xff] %vm962, %v2600
        %2613 = vst.msk [vmem:[%s932 + $0x1b0] sm:$0xff] %vm962, %v2601
        %2614 = vst.msk [vmem:[%s932 + $0x1b8] sm:$0xff] %vm962, %v2602
        %2615 = vst.msk [vmem:[%s932 + $0x1c0] sm:$0xff] %vm962, %v2603
        %2616 = vst.msk [vmem:[%s932 + $0x1c8] sm:$0xff] %vm962, %v2604
        %2617 = vst.msk [vmem:[%s932 + $0x1d0] sm:$0xff] %vm962, %v2605
        %2618 = vst.msk [vmem:[%s932 + $0x1d8] sm:$0xff] %vm962, %v2606
        %v2619 = vld [vmem:[%s1 + $0x1e0] sm:$0xff]
        %v2620 = vld [vmem:[%s1 + $0x1e8] sm:$0xff]
        %v2621 = vld [vmem:[%s1 + $0x1f0] sm:$0xff]
        %v2622 = vld [vmem:[%s1 + $0x1f8] sm:$0xff]
        %v2623 = vld [vmem:[%s1 + $0x200] sm:$0xff]
        %v2624 = vld [vmem:[%s1 + $0x208] sm:$0xff]
        %v2625 = vld [vmem:[%s1 + $0x210] sm:$0xff]
        %v2626 = vld [vmem:[%s1 + $0x218] sm:$0xff]
        %v2627 = vld [vmem:[%s1 + $0x220] sm:$0xff]
        %v2628 = vld [vmem:[%s1 + $0x228] sm:$0xff]
        %v2629 = vld [vmem:[%s1 + $0x230] sm:$0xff]
        %v2630 = vld [vmem:[%s1 + $0x238] sm:$0xff]
        %v2631 = vld [vmem:[%s926 + $0x1e0] sm:$0xff]
        %v2632 = vld [vmem:[%s926 + $0x1e8] sm:$0xff]
        %v2633 = vld [vmem:[%s926 + $0x1f0] sm:$0xff]
        %v2634 = vld [vmem:[%s926 + $0x1f8] sm:$0xff]
        %v2635 = vld [vmem:[%s926 + $0x200] sm:$0xff]
        %v2636 = vld [vmem:[%s926 + $0x208] sm:$0xff]
        %v2637 = vld [vmem:[%s926 + $0x210] sm:$0xff]
        %v2638 = vld [vmem:[%s926 + $0x218] sm:$0xff]
        %v2639 = vld [vmem:[%s926 + $0x220] sm:$0xff]
        %v2640 = vld [vmem:[%s926 + $0x228] sm:$0xff]
        %v2641 = vld [vmem:[%s926 + $0x230] sm:$0xff]
        %v2642 = vld [vmem:[%s926 + $0x238] sm:$0xff]
        %v2643 = vsel %vm962, %v2619, 0.0
        %2644 = vadd.xlane.f32.xlu0 %v2643
        %v2645 = vpop.xlane.xlu0 %2644
        %v2646 = vsel %vm962, %v2620, 0.0
        %2647 = vadd.xlane.f32.xlu0 %v2646
        %v2648 = vpop.xlane.xlu0 %2647
        %v2649 = vsel %vm962, %v2621, 0.0
        %2650 = vadd.xlane.f32.xlu0 %v2649
        %v2651 = vpop.xlane.xlu0 %2650
        %v2652 = vsel %vm962, %v2622, 0.0
        %2653 = vadd.xlane.f32.xlu0 %v2652
        %v2654 = vpop.xlane.xlu0 %2653
        %v2655 = vsel %vm962, %v2623, 0.0
        %2656 = vadd.xlane.f32.xlu0 %v2655
        %v2657 = vpop.xlane.xlu0 %2656
        %v2658 = vsel %vm962, %v2624, 0.0
        %2659 = vadd.xlane.f32.xlu0 %v2658
        %v2660 = vpop.xlane.xlu0 %2659
        %v2661 = vsel %vm962, %v2625, 0.0
        %2662 = vadd.xlane.f32.xlu0 %v2661
        %v2663 = vpop.xlane.xlu0 %2662
        %v2664 = vsel %vm962, %v2626, 0.0
        %2665 = vadd.xlane.f32.xlu0 %v2664
        %v2666 = vpop.xlane.xlu0 %2665
        %v2667 = vsel %vm962, %v2627, 0.0
        %2668 = vadd.xlane.f32.xlu0 %v2667
        %v2669 = vpop.xlane.xlu0 %2668
        %v2670 = vsel %vm962, %v2628, 0.0
        %2671 = vadd.xlane.f32.xlu0 %v2670
        %v2672 = vpop.xlane.xlu0 %2671
        %v2673 = vsel %vm962, %v2629, 0.0
        %2674 = vadd.xlane.f32.xlu0 %v2673
        %v2675 = vpop.xlane.xlu0 %2674
        %v2676 = vsel %vm962, %v2630, 0.0
        %2677 = vadd.xlane.f32.xlu0 %v2676
        %v2678 = vpop.xlane.xlu0 %2677
        %v2679 = vmul.f32 %v2645, 0.020408163
        %v2680 = vmul.f32 %v2648, 0.020408163
        %v2681 = vmul.f32 %v2651, 0.020408163
        %v2682 = vmul.f32 %v2654, 0.020408163
        %v2683 = vmul.f32 %v2657, 0.020408163
        %v2684 = vmul.f32 %v2660, 0.020408163
        %v2685 = vmul.f32 %v2663, 0.020408163
        %v2686 = vmul.f32 %v2666, 0.020408163
        %v2687 = vmul.f32 %v2669, 0.020408163
        %v2688 = vmul.f32 %v2672, 0.020408163
        %v2689 = vmul.f32 %v2675, 0.020408163
        %v2690 = vmul.f32 %v2678, 0.020408163
        %v2691 = vsub.f32 %v2619, %v2679
        %v2692 = vsub.f32 %v2620, %v2680
        %v2693 = vsub.f32 %v2621, %v2681
        %v2694 = vsub.f32 %v2622, %v2682
        %v2695 = vsub.f32 %v2623, %v2683
        %v2696 = vsub.f32 %v2624, %v2684
        %v2697 = vsub.f32 %v2625, %v2685
        %v2698 = vsub.f32 %v2626, %v2686
        %v2699 = vsub.f32 %v2627, %v2687
        %v2700 = vsub.f32 %v2628, %v2688
        %v2701 = vsub.f32 %v2629, %v2689
        %v2702 = vsub.f32 %v2630, %v2690
        %v2703 = vmul.f32 %v2691, %v2691
        %v2704 = vmul.f32 %v2692, %v2692
        %v2705 = vmul.f32 %v2693, %v2693
        %v2706 = vmul.f32 %v2694, %v2694
        %v2707 = vmul.f32 %v2695, %v2695
        %v2708 = vmul.f32 %v2696, %v2696
        %v2709 = vmul.f32 %v2697, %v2697
        %v2710 = vmul.f32 %v2698, %v2698
        %v2711 = vmul.f32 %v2699, %v2699
        %v2712 = vmul.f32 %v2700, %v2700
        %v2713 = vmul.f32 %v2701, %v2701
        %v2714 = vmul.f32 %v2702, %v2702
        %v2715 = vsel %vm962, %v2703, 0.0
        %2716 = vadd.xlane.f32.xlu0 %v2715
        %v2717 = vpop.xlane.xlu0 %2716
        %v2718 = vsel %vm962, %v2704, 0.0
        %2719 = vadd.xlane.f32.xlu0 %v2718
        %v2720 = vpop.xlane.xlu0 %2719
        %v2721 = vsel %vm962, %v2705, 0.0
        %2722 = vadd.xlane.f32.xlu0 %v2721
        %v2723 = vpop.xlane.xlu0 %2722
        %v2724 = vsel %vm962, %v2706, 0.0
        %2725 = vadd.xlane.f32.xlu0 %v2724
        %v2726 = vpop.xlane.xlu0 %2725
        %v2727 = vsel %vm962, %v2707, 0.0
        %2728 = vadd.xlane.f32.xlu0 %v2727
        %v2729 = vpop.xlane.xlu0 %2728
        %v2730 = vsel %vm962, %v2708, 0.0
        %2731 = vadd.xlane.f32.xlu0 %v2730
        %v2732 = vpop.xlane.xlu0 %2731
        %v2733 = vsel %vm962, %v2709, 0.0
        %2734 = vadd.xlane.f32.xlu0 %v2733
        %v2735 = vpop.xlane.xlu0 %2734
        %v2736 = vsel %vm962, %v2710, 0.0
        %2737 = vadd.xlane.f32.xlu0 %v2736
        %v2738 = vpop.xlane.xlu0 %2737
        %v2739 = vsel %vm962, %v2711, 0.0
        %2740 = vadd.xlane.f32.xlu0 %v2739
        %v2741 = vpop.xlane.xlu0 %2740
        %v2742 = vsel %vm962, %v2712, 0.0
        %2743 = vadd.xlane.f32.xlu0 %v2742
        %v2744 = vpop.xlane.xlu0 %2743
        %v2745 = vsel %vm962, %v2713, 0.0
        %2746 = vadd.xlane.f32.xlu0 %v2745
        %v2747 = vpop.xlane.xlu0 %2746
        %v2748 = vsel %vm962, %v2714, 0.0
        %2749 = vadd.xlane.f32.xlu0 %v2748
        %v2750 = vpop.xlane.xlu0 %2749
        %v2751 = vmul.f32 %v2717, 0.020408163
        %v2752 = vmul.f32 %v2720, 0.020408163
        %v2753 = vmul.f32 %v2723, 0.020408163
        %v2754 = vmul.f32 %v2726, 0.020408163
        %v2755 = vmul.f32 %v2729, 0.020408163
        %v2756 = vmul.f32 %v2732, 0.020408163
        %v2757 = vmul.f32 %v2735, 0.020408163
        %v2758 = vmul.f32 %v2738, 0.020408163
        %v2759 = vmul.f32 %v2741, 0.020408163
        %v2760 = vmul.f32 %v2744, 0.020408163
        %v2761 = vmul.f32 %v2747, 0.020408163
        %v2762 = vmul.f32 %v2750, 0.020408163
        %v2763 = vadd.f32 %v2751, 1e-05
        %v2764 = vadd.f32 %v2752, 1e-05
        %v2765 = vadd.f32 %v2753, 1e-05
        %v2766 = vadd.f32 %v2754, 1e-05
        %v2767 = vadd.f32 %v2755, 1e-05
        %v2768 = vadd.f32 %v2756, 1e-05
        %v2769 = vadd.f32 %v2757, 1e-05
        %v2770 = vadd.f32 %v2758, 1e-05
        %v2771 = vadd.f32 %v2759, 1e-05
        %v2772 = vadd.f32 %v2760, 1e-05
        %v2773 = vadd.f32 %v2761, 1e-05
        %v2774 = vadd.f32 %v2762, 1e-05
        %v2775 = vrsqrt.pop %v2763
        %v2776 = vrsqrt.pop %v2764
        %v2777 = vrsqrt.pop %v2765
        %v2778 = vrsqrt.pop %v2766
        %v2779 = vrsqrt.pop %v2767
        %v2780 = vrsqrt.pop %v2768
        %v2781 = vrsqrt.pop %v2769
        %v2782 = vrsqrt.pop %v2770
        %v2783 = vrsqrt.pop %v2771
        %v2784 = vrsqrt.pop %v2772
        %v2785 = vrsqrt.pop %v2773
        %v2786 = vrsqrt.pop %v2774
        %v2787 = vmul.f32 %v2775, %v2631
        %v2788 = vmul.f32 %v2776, %v2632
        %v2789 = vmul.f32 %v2777, %v2633
        %v2790 = vmul.f32 %v2778, %v2634
        %v2791 = vmul.f32 %v2779, %v2635
        %v2792 = vmul.f32 %v2780, %v2636
        %v2793 = vmul.f32 %v2781, %v2637
        %v2794 = vmul.f32 %v2782, %v2638
        %v2795 = vmul.f32 %v2783, %v2639
        %v2796 = vmul.f32 %v2784, %v2640
        %v2797 = vmul.f32 %v2785, %v2641
        %v2798 = vmul.f32 %v2786, %v2642
        %2800 = vset.pattern.permute.xlu0 0
        %2801 = vperm.xlu0 %2800, %v2787
        %v2802 = vpop.permute.xlu0 %2801
        %2805 = vset.pattern.permute.xlu0 0
        %2806 = vperm.xlu0 %2805, %v2788
        %v2807 = vpop.permute.xlu0 %2806
        %2810 = vset.pattern.permute.xlu0 0
        %2811 = vperm.xlu0 %2810, %v2789
        %v2812 = vpop.permute.xlu0 %2811
        %2815 = vset.pattern.permute.xlu0 0
        %2816 = vperm.xlu0 %2815, %v2790
        %v2817 = vpop.permute.xlu0 %2816
        %2820 = vset.pattern.permute.xlu0 0
        %2821 = vperm.xlu0 %2820, %v2791
        %v2822 = vpop.permute.xlu0 %2821
        %2825 = vset.pattern.permute.xlu0 0
        %2826 = vperm.xlu0 %2825, %v2792
        %v2827 = vpop.permute.xlu0 %2826
        %2830 = vset.pattern.permute.xlu0 0
        %2831 = vperm.xlu0 %2830, %v2793
        %v2832 = vpop.permute.xlu0 %2831
        %2835 = vset.pattern.permute.xlu0 0
        %2836 = vperm.xlu0 %2835, %v2794
        %v2837 = vpop.permute.xlu0 %2836
        %2840 = vset.pattern.permute.xlu0 0
        %2841 = vperm.xlu0 %2840, %v2795
        %v2842 = vpop.permute.xlu0 %2841
        %2845 = vset.pattern.permute.xlu0 0
        %2846 = vperm.xlu0 %2845, %v2796
        %v2847 = vpop.permute.xlu0 %2846
        %2850 = vset.pattern.permute.xlu0 0
        %2851 = vperm.xlu0 %2850, %v2797
        %v2852 = vpop.permute.xlu0 %2851
        %2855 = vset.pattern.permute.xlu0 0
        %2856 = vperm.xlu0 %2855, %v2798
        %v2857 = vpop.permute.xlu0 %2856
        %v2859 = vmul.f32 %v2691, %v2802
        %v2860 = vmul.f32 %v2692, %v2807
        %v2861 = vmul.f32 %v2693, %v2812
        %v2862 = vmul.f32 %v2694, %v2817
        %v2863 = vmul.f32 %v2695, %v2822
        %v2864 = vmul.f32 %v2696, %v2827
        %v2865 = vmul.f32 %v2697, %v2832
        %v2866 = vmul.f32 %v2698, %v2837
        %v2867 = vmul.f32 %v2699, %v2842
        %v2868 = vmul.f32 %v2700, %v2847
        %v2869 = vmul.f32 %v2701, %v2852
        %v2870 = vmul.f32 %v2702, %v2857
        %2872 = vset.pattern.permute.xlu0 1
        %2873 = vperm.xlu0 %2872, %v2631
        %v2874 = vpop.permute.xlu0 %2873
        %2877 = vset.pattern.permute.xlu0 1
        %2878 = vperm.xlu0 %2877, %v2632
        %v2879 = vpop.permute.xlu0 %2878
        %2882 = vset.pattern.permute.xlu0 1
        %2883 = vperm.xlu0 %2882, %v2633
        %v2884 = vpop.permute.xlu0 %2883
        %2887 = vset.pattern.permute.xlu0 1
        %2888 = vperm.xlu0 %2887, %v2634
        %v2889 = vpop.permute.xlu0 %2888
        %2892 = vset.pattern.permute.xlu0 1
        %2893 = vperm.xlu0 %2892, %v2635
        %v2894 = vpop.permute.xlu0 %2893
        %2897 = vset.pattern.permute.xlu0 1
        %2898 = vperm.xlu0 %2897, %v2636
        %v2899 = vpop.permute.xlu0 %2898
        %2902 = vset.pattern.permute.xlu0 1
        %2903 = vperm.xlu0 %2902, %v2637
        %v2904 = vpop.permute.xlu0 %2903
        %2907 = vset.pattern.permute.xlu0 1
        %2908 = vperm.xlu0 %2907, %v2638
        %v2909 = vpop.permute.xlu0 %2908
        %2912 = vset.pattern.permute.xlu0 1
        %2913 = vperm.xlu0 %2912, %v2639
        %v2914 = vpop.permute.xlu0 %2913
        %2917 = vset.pattern.permute.xlu0 1
        %2918 = vperm.xlu0 %2917, %v2640
        %v2919 = vpop.permute.xlu0 %2918
        %2922 = vset.pattern.permute.xlu0 1
        %2923 = vperm.xlu0 %2922, %v2641
        %v2924 = vpop.permute.xlu0 %2923
        %2927 = vset.pattern.permute.xlu0 1
        %2928 = vperm.xlu0 %2927, %v2642
        %v2929 = vpop.permute.xlu0 %2928
        %v2931 = vadd.f32 %v2859, %v2874
        %v2932 = vadd.f32 %v2860, %v2879
        %v2933 = vadd.f32 %v2861, %v2884
        %v2934 = vadd.f32 %v2862, %v2889
        %v2935 = vadd.f32 %v2863, %v2894
        %v2936 = vadd.f32 %v2864, %v2899
        %v2937 = vadd.f32 %v2865, %v2904
        %v2938 = vadd.f32 %v2866, %v2909
        %v2939 = vadd.f32 %v2867, %v2914
        %v2940 = vadd.f32 %v2868, %v2919
        %v2941 = vadd.f32 %v2869, %v2924
        %v2942 = vadd.f32 %v2870, %v2929
        %2943 = vst.msk [vmem:[%s932 + $0x1e0] sm:$0xff] %vm962, %v2931
        %2944 = vst.msk [vmem:[%s932 + $0x1e8] sm:$0xff] %vm962, %v2932
        %2945 = vst.msk [vmem:[%s932 + $0x1f0] sm:$0xff] %vm962, %v2933
        %2946 = vst.msk [vmem:[%s932 + $0x1f8] sm:$0xff] %vm962, %v2934
        %2947 = vst.msk [vmem:[%s932 + $0x200] sm:$0xff] %vm962, %v2935
        %2948 = vst.msk [vmem:[%s932 + $0x208] sm:$0xff] %vm962, %v2936
        %2949 = vst.msk [vmem:[%s932 + $0x210] sm:$0xff] %vm962, %v2937
        %2950 = vst.msk [vmem:[%s932 + $0x218] sm:$0xff] %vm962, %v2938
        %2951 = vst.msk [vmem:[%s932 + $0x220] sm:$0xff] %vm962, %v2939
        %2952 = vst.msk [vmem:[%s932 + $0x228] sm:$0xff] %vm962, %v2940
        %2953 = vst.msk [vmem:[%s932 + $0x230] sm:$0xff] %vm962, %v2941
        %2954 = vst.msk [vmem:[%s932 + $0x238] sm:$0xff] %vm962, %v2942
        %v2955 = vld [vmem:[%s1 + $0x240] sm:$0xff]
        %v2956 = vld [vmem:[%s1 + $0x248] sm:$0xff]
        %v2957 = vld [vmem:[%s1 + $0x250] sm:$0xff]
        %v2958 = vld [vmem:[%s1 + $0x258] sm:$0xff]
        %v2959 = vld [vmem:[%s1 + $0x260] sm:$0xff]
        %v2960 = vld [vmem:[%s1 + $0x268] sm:$0xff]
        %v2961 = vld [vmem:[%s1 + $0x270] sm:$0xff]
        %v2962 = vld [vmem:[%s1 + $0x278] sm:$0xff]
        %v2963 = vld [vmem:[%s1 + $0x280] sm:$0xff]
        %v2964 = vld [vmem:[%s1 + $0x288] sm:$0xff]
        %v2965 = vld [vmem:[%s1 + $0x290] sm:$0xff]
        %v2966 = vld [vmem:[%s1 + $0x298] sm:$0xff]
        %v2967 = vld [vmem:[%s926 + $0x240] sm:$0xff]
        %v2968 = vld [vmem:[%s926 + $0x248] sm:$0xff]
        %v2969 = vld [vmem:[%s926 + $0x250] sm:$0xff]
        %v2970 = vld [vmem:[%s926 + $0x258] sm:$0xff]
        %v2971 = vld [vmem:[%s926 + $0x260] sm:$0xff]
        %v2972 = vld [vmem:[%s926 + $0x268] sm:$0xff]
        %v2973 = vld [vmem:[%s926 + $0x270] sm:$0xff]
        %v2974 = vld [vmem:[%s926 + $0x278] sm:$0xff]
        %v2975 = vld [vmem:[%s926 + $0x280] sm:$0xff]
        %v2976 = vld [vmem:[%s926 + $0x288] sm:$0xff]
        %v2977 = vld [vmem:[%s926 + $0x290] sm:$0xff]
        %v2978 = vld [vmem:[%s926 + $0x298] sm:$0xff]
        %v2979 = vsel %vm962, %v2955, 0.0
        %2980 = vadd.xlane.f32.xlu0 %v2979
        %v2981 = vpop.xlane.xlu0 %2980
        %v2982 = vsel %vm962, %v2956, 0.0
        %2983 = vadd.xlane.f32.xlu0 %v2982
        %v2984 = vpop.xlane.xlu0 %2983
        %v2985 = vsel %vm962, %v2957, 0.0
        %2986 = vadd.xlane.f32.xlu0 %v2985
        %v2987 = vpop.xlane.xlu0 %2986
        %v2988 = vsel %vm962, %v2958, 0.0
        %2989 = vadd.xlane.f32.xlu0 %v2988
        %v2990 = vpop.xlane.xlu0 %2989
        %v2991 = vsel %vm962, %v2959, 0.0
        %2992 = vadd.xlane.f32.xlu0 %v2991
        %v2993 = vpop.xlane.xlu0 %2992
        %v2994 = vsel %vm962, %v2960, 0.0
        %2995 = vadd.xlane.f32.xlu0 %v2994
        %v2996 = vpop.xlane.xlu0 %2995
        %v2997 = vsel %vm962, %v2961, 0.0
        %2998 = vadd.xlane.f32.xlu0 %v2997
        %v2999 = vpop.xlane.xlu0 %2998
        %v3000 = vsel %vm962, %v2962, 0.0
        %3001 = vadd.xlane.f32.xlu0 %v3000
        %v3002 = vpop.xlane.xlu0 %3001
        %v3003 = vsel %vm962, %v2963, 0.0
        %3004 = vadd.xlane.f32.xlu0 %v3003
        %v3005 = vpop.xlane.xlu0 %3004
        %v3006 = vsel %vm962, %v2964, 0.0
        %3007 = vadd.xlane.f32.xlu0 %v3006
        %v3008 = vpop.xlane.xlu0 %3007
        %v3009 = vsel %vm962, %v2965, 0.0
        %3010 = vadd.xlane.f32.xlu0 %v3009
        %v3011 = vpop.xlane.xlu0 %3010
        %v3012 = vsel %vm962, %v2966, 0.0
        %3013 = vadd.xlane.f32.xlu0 %v3012
        %v3014 = vpop.xlane.xlu0 %3013
        %v3015 = vmul.f32 %v2981, 0.020408163
        %v3016 = vmul.f32 %v2984, 0.020408163
        %v3017 = vmul.f32 %v2987, 0.020408163
        %v3018 = vmul.f32 %v2990, 0.020408163
        %v3019 = vmul.f32 %v2993, 0.020408163
        %v3020 = vmul.f32 %v2996, 0.020408163
        %v3021 = vmul.f32 %v2999, 0.020408163
        %v3022 = vmul.f32 %v3002, 0.020408163
        %v3023 = vmul.f32 %v3005, 0.020408163
        %v3024 = vmul.f32 %v3008, 0.020408163
        %v3025 = vmul.f32 %v3011, 0.020408163
        %v3026 = vmul.f32 %v3014, 0.020408163
        %v3027 = vsub.f32 %v2955, %v3015
        %v3028 = vsub.f32 %v2956, %v3016
        %v3029 = vsub.f32 %v2957, %v3017
        %v3030 = vsub.f32 %v2958, %v3018
        %v3031 = vsub.f32 %v2959, %v3019
        %v3032 = vsub.f32 %v2960, %v3020
        %v3033 = vsub.f32 %v2961, %v3021
        %v3034 = vsub.f32 %v2962, %v3022
        %v3035 = vsub.f32 %v2963, %v3023
        %v3036 = vsub.f32 %v2964, %v3024
        %v3037 = vsub.f32 %v2965, %v3025
        %v3038 = vsub.f32 %v2966, %v3026
        %v3039 = vmul.f32 %v3027, %v3027
        %v3040 = vmul.f32 %v3028, %v3028
        %v3041 = vmul.f32 %v3029, %v3029
        %v3042 = vmul.f32 %v3030, %v3030
        %v3043 = vmul.f32 %v3031, %v3031
        %v3044 = vmul.f32 %v3032, %v3032
        %v3045 = vmul.f32 %v3033, %v3033
        %v3046 = vmul.f32 %v3034, %v3034
        %v3047 = vmul.f32 %v3035, %v3035
        %v3048 = vmul.f32 %v3036, %v3036
        %v3049 = vmul.f32 %v3037, %v3037
        %v3050 = vmul.f32 %v3038, %v3038
        %v3051 = vsel %vm962, %v3039, 0.0
        %3052 = vadd.xlane.f32.xlu0 %v3051
        %v3053 = vpop.xlane.xlu0 %3052
        %v3054 = vsel %vm962, %v3040, 0.0
        %3055 = vadd.xlane.f32.xlu0 %v3054
        %v3056 = vpop.xlane.xlu0 %3055
        %v3057 = vsel %vm962, %v3041, 0.0
        %3058 = vadd.xlane.f32.xlu0 %v3057
        %v3059 = vpop.xlane.xlu0 %3058
        %v3060 = vsel %vm962, %v3042, 0.0
        %3061 = vadd.xlane.f32.xlu0 %v3060
        %v3062 = vpop.xlane.xlu0 %3061
        %v3063 = vsel %vm962, %v3043, 0.0
        %3064 = vadd.xlane.f32.xlu0 %v3063
        %v3065 = vpop.xlane.xlu0 %3064
        %v3066 = vsel %vm962, %v3044, 0.0
        %3067 = vadd.xlane.f32.xlu0 %v3066
        %v3068 = vpop.xlane.xlu0 %3067
        %v3069 = vsel %vm962, %v3045, 0.0
        %3070 = vadd.xlane.f32.xlu0 %v3069
        %v3071 = vpop.xlane.xlu0 %3070
        %v3072 = vsel %vm962, %v3046, 0.0
        %3073 = vadd.xlane.f32.xlu0 %v3072
        %v3074 = vpop.xlane.xlu0 %3073
        %v3075 = vsel %vm962, %v3047, 0.0
        %3076 = vadd.xlane.f32.xlu0 %v3075
        %v3077 = vpop.xlane.xlu0 %3076
        %v3078 = vsel %vm962, %v3048, 0.0
        %3079 = vadd.xlane.f32.xlu0 %v3078
        %v3080 = vpop.xlane.xlu0 %3079
        %v3081 = vsel %vm962, %v3049, 0.0
        %3082 = vadd.xlane.f32.xlu0 %v3081
        %v3083 = vpop.xlane.xlu0 %3082
        %v3084 = vsel %vm962, %v3050, 0.0
        %3085 = vadd.xlane.f32.xlu0 %v3084
        %v3086 = vpop.xlane.xlu0 %3085
        %v3087 = vmul.f32 %v3053, 0.020408163
        %v3088 = vmul.f32 %v3056, 0.020408163
        %v3089 = vmul.f32 %v3059, 0.020408163
        %v3090 = vmul.f32 %v3062, 0.020408163
        %v3091 = vmul.f32 %v3065, 0.020408163
        %v3092 = vmul.f32 %v3068, 0.020408163
        %v3093 = vmul.f32 %v3071, 0.020408163
        %v3094 = vmul.f32 %v3074, 0.020408163
        %v3095 = vmul.f32 %v3077, 0.020408163
        %v3096 = vmul.f32 %v3080, 0.020408163
        %v3097 = vmul.f32 %v3083, 0.020408163
        %v3098 = vmul.f32 %v3086, 0.020408163
        %v3099 = vadd.f32 %v3087, 1e-05
        %v3100 = vadd.f32 %v3088, 1e-05
        %v3101 = vadd.f32 %v3089, 1e-05
        %v3102 = vadd.f32 %v3090, 1e-05
        %v3103 = vadd.f32 %v3091, 1e-05
        %v3104 = vadd.f32 %v3092, 1e-05
        %v3105 = vadd.f32 %v3093, 1e-05
        %v3106 = vadd.f32 %v3094, 1e-05
        %v3107 = vadd.f32 %v3095, 1e-05
        %v3108 = vadd.f32 %v3096, 1e-05
        %v3109 = vadd.f32 %v3097, 1e-05
        %v3110 = vadd.f32 %v3098, 1e-05
        %v3111 = vrsqrt.pop %v3099
        %v3112 = vrsqrt.pop %v3100
        %v3113 = vrsqrt.pop %v3101
        %v3114 = vrsqrt.pop %v3102
        %v3115 = vrsqrt.pop %v3103
        %v3116 = vrsqrt.pop %v3104
        %v3117 = vrsqrt.pop %v3105
        %v3118 = vrsqrt.pop %v3106
        %v3119 = vrsqrt.pop %v3107
        %v3120 = vrsqrt.pop %v3108
        %v3121 = vrsqrt.pop %v3109
        %v3122 = vrsqrt.pop %v3110
        %v3123 = vmul.f32 %v3111, %v2967
        %v3124 = vmul.f32 %v3112, %v2968
        %v3125 = vmul.f32 %v3113, %v2969
        %v3126 = vmul.f32 %v3114, %v2970
        %v3127 = vmul.f32 %v3115, %v2971
        %v3128 = vmul.f32 %v3116, %v2972
        %v3129 = vmul.f32 %v3117, %v2973
        %v3130 = vmul.f32 %v3118, %v2974
        %v3131 = vmul.f32 %v3119, %v2975
        %v3132 = vmul.f32 %v3120, %v2976
        %v3133 = vmul.f32 %v3121, %v2977
        %v3134 = vmul.f32 %v3122, %v2978
        %3136 = vset.pattern.permute.xlu0 0
        %3137 = vperm.xlu0 %3136, %v3123
        %v3138 = vpop.permute.xlu0 %3137
        %3141 = vset.pattern.permute.xlu0 0
        %3142 = vperm.xlu0 %3141, %v3124
        %v3143 = vpop.permute.xlu0 %3142
        %3146 = vset.pattern.permute.xlu0 0
        %3147 = vperm.xlu0 %3146, %v3125
        %v3148 = vpop.permute.xlu0 %3147
        %3151 = vset.pattern.permute.xlu0 0
        %3152 = vperm.xlu0 %3151, %v3126
        %v3153 = vpop.permute.xlu0 %3152
        %3156 = vset.pattern.permute.xlu0 0
        %3157 = vperm.xlu0 %3156, %v3127
        %v3158 = vpop.permute.xlu0 %3157
        %3161 = vset.pattern.permute.xlu0 0
        %3162 = vperm.xlu0 %3161, %v3128
        %v3163 = vpop.permute.xlu0 %3162
        %3166 = vset.pattern.permute.xlu0 0
        %3167 = vperm.xlu0 %3166, %v3129
        %v3168 = vpop.permute.xlu0 %3167
        %3171 = vset.pattern.permute.xlu0 0
        %3172 = vperm.xlu0 %3171, %v3130
        %v3173 = vpop.permute.xlu0 %3172
        %3176 = vset.pattern.permute.xlu0 0
        %3177 = vperm.xlu0 %3176, %v3131
        %v3178 = vpop.permute.xlu0 %3177
        %3181 = vset.pattern.permute.xlu0 0
        %3182 = vperm.xlu0 %3181, %v3132
        %v3183 = vpop.permute.xlu0 %3182
        %3186 = vset.pattern.permute.xlu0 0
        %3187 = vperm.xlu0 %3186, %v3133
        %v3188 = vpop.permute.xlu0 %3187
        %3191 = vset.pattern.permute.xlu0 0
        %3192 = vperm.xlu0 %3191, %v3134
        %v3193 = vpop.permute.xlu0 %3192
        %v3195 = vmul.f32 %v3027, %v3138
        %v3196 = vmul.f32 %v3028, %v3143
        %v3197 = vmul.f32 %v3029, %v3148
        %v3198 = vmul.f32 %v3030, %v3153
        %v3199 = vmul.f32 %v3031, %v3158
        %v3200 = vmul.f32 %v3032, %v3163
        %v3201 = vmul.f32 %v3033, %v3168
        %v3202 = vmul.f32 %v3034, %v3173
        %v3203 = vmul.f32 %v3035, %v3178
        %v3204 = vmul.f32 %v3036, %v3183
        %v3205 = vmul.f32 %v3037, %v3188
        %v3206 = vmul.f32 %v3038, %v3193
        %3208 = vset.pattern.permute.xlu0 1
        %3209 = vperm.xlu0 %3208, %v2967
        %v3210 = vpop.permute.xlu0 %3209
        %3213 = vset.pattern.permute.xlu0 1
        %3214 = vperm.xlu0 %3213, %v2968
        %v3215 = vpop.permute.xlu0 %3214
        %3218 = vset.pattern.permute.xlu0 1
        %3219 = vperm.xlu0 %3218, %v2969
        %v3220 = vpop.permute.xlu0 %3219
        %3223 = vset.pattern.permute.xlu0 1
        %3224 = vperm.xlu0 %3223, %v2970
        %v3225 = vpop.permute.xlu0 %3224
        %3228 = vset.pattern.permute.xlu0 1
        %3229 = vperm.xlu0 %3228, %v2971
        %v3230 = vpop.permute.xlu0 %3229
        %3233 = vset.pattern.permute.xlu0 1
        %3234 = vperm.xlu0 %3233, %v2972
        %v3235 = vpop.permute.xlu0 %3234
        %3238 = vset.pattern.permute.xlu0 1
        %3239 = vperm.xlu0 %3238, %v2973
        %v3240 = vpop.permute.xlu0 %3239
        %3243 = vset.pattern.permute.xlu0 1
        %3244 = vperm.xlu0 %3243, %v2974
        %v3245 = vpop.permute.xlu0 %3244
        %3248 = vset.pattern.permute.xlu0 1
        %3249 = vperm.xlu0 %3248, %v2975
        %v3250 = vpop.permute.xlu0 %3249
        %3253 = vset.pattern.permute.xlu0 1
        %3254 = vperm.xlu0 %3253, %v2976
        %v3255 = vpop.permute.xlu0 %3254
        %3258 = vset.pattern.permute.xlu0 1
        %3259 = vperm.xlu0 %3258, %v2977
        %v3260 = vpop.permute.xlu0 %3259
        %3263 = vset.pattern.permute.xlu0 1
        %3264 = vperm.xlu0 %3263, %v2978
        %v3265 = vpop.permute.xlu0 %3264
        %v3267 = vadd.f32 %v3195, %v3210
        %v3268 = vadd.f32 %v3196, %v3215
        %v3269 = vadd.f32 %v3197, %v3220
        %v3270 = vadd.f32 %v3198, %v3225
        %v3271 = vadd.f32 %v3199, %v3230
        %v3272 = vadd.f32 %v3200, %v3235
        %v3273 = vadd.f32 %v3201, %v3240
        %v3274 = vadd.f32 %v3202, %v3245
        %v3275 = vadd.f32 %v3203, %v3250
        %v3276 = vadd.f32 %v3204, %v3255
        %v3277 = vadd.f32 %v3205, %v3260
        %v3278 = vadd.f32 %v3206, %v3265
        %3279 = vst.msk [vmem:[%s932 + $0x240] sm:$0xff] %vm962, %v3267
        %3280 = vst.msk [vmem:[%s932 + $0x248] sm:$0xff] %vm962, %v3268
        %3281 = vst.msk [vmem:[%s932 + $0x250] sm:$0xff] %vm962, %v3269
        %3282 = vst.msk [vmem:[%s932 + $0x258] sm:$0xff] %vm962, %v3270
        %3283 = vst.msk [vmem:[%s932 + $0x260] sm:$0xff] %vm962, %v3271
        %3284 = vst.msk [vmem:[%s932 + $0x268] sm:$0xff] %vm962, %v3272
        %3285 = vst.msk [vmem:[%s932 + $0x270] sm:$0xff] %vm962, %v3273
        %3286 = vst.msk [vmem:[%s932 + $0x278] sm:$0xff] %vm962, %v3274
        %3287 = vst.msk [vmem:[%s932 + $0x280] sm:$0xff] %vm962, %v3275
        %3288 = vst.msk [vmem:[%s932 + $0x288] sm:$0xff] %vm962, %v3276
        %3289 = vst.msk [vmem:[%s932 + $0x290] sm:$0xff] %vm962, %v3277
        %3290 = vst.msk [vmem:[%s932 + $0x298] sm:$0xff] %vm962, %v3278
        %v3291 = vld [vmem:[%s1 + $0x2a0] sm:$0xff]
        %v3292 = vld [vmem:[%s1 + $0x2a8] sm:$0xff]
        %v3293 = vld [vmem:[%s1 + $0x2b0] sm:$0xff]
        %v3294 = vld [vmem:[%s1 + $0x2b8] sm:$0xff]
        %v3295 = vld [vmem:[%s1 + $0x2c0] sm:$0xff]
        %v3296 = vld [vmem:[%s1 + $0x2c8] sm:$0xff]
        %v3297 = vld [vmem:[%s1 + $0x2d0] sm:$0xff]
        %v3298 = vld [vmem:[%s1 + $0x2d8] sm:$0xff]
        %v3299 = vld [vmem:[%s1 + $0x2e0] sm:$0xff]
        %v3300 = vld [vmem:[%s1 + $0x2e8] sm:$0xff]
        %v3301 = vld [vmem:[%s1 + $0x2f0] sm:$0xff]
        %v3302 = vld [vmem:[%s1 + $0x2f8] sm:$0xff]
        %v3303 = vld [vmem:[%s926 + $0x2a0] sm:$0xff]
        %v3304 = vld [vmem:[%s926 + $0x2a8] sm:$0xff]
        %v3305 = vld [vmem:[%s926 + $0x2b0] sm:$0xff]
        %v3306 = vld [vmem:[%s926 + $0x2b8] sm:$0xff]
        %v3307 = vld [vmem:[%s926 + $0x2c0] sm:$0xff]
        %v3308 = vld [vmem:[%s926 + $0x2c8] sm:$0xff]
        %v3309 = vld [vmem:[%s926 + $0x2d0] sm:$0xff]
        %v3310 = vld [vmem:[%s926 + $0x2d8] sm:$0xff]
        %v3311 = vld [vmem:[%s926 + $0x2e0] sm:$0xff]
        %v3312 = vld [vmem:[%s926 + $0x2e8] sm:$0xff]
        %v3313 = vld [vmem:[%s926 + $0x2f0] sm:$0xff]
        %v3314 = vld [vmem:[%s926 + $0x2f8] sm:$0xff]
        %v3315 = vsel %vm962, %v3291, 0.0
        %3316 = vadd.xlane.f32.xlu0 %v3315
        %v3317 = vpop.xlane.xlu0 %3316
        %v3318 = vsel %vm962, %v3292, 0.0
        %3319 = vadd.xlane.f32.xlu0 %v3318
        %v3320 = vpop.xlane.xlu0 %3319
        %v3321 = vsel %vm962, %v3293, 0.0
        %3322 = vadd.xlane.f32.xlu0 %v3321
        %v3323 = vpop.xlane.xlu0 %3322
        %v3324 = vsel %vm962, %v3294, 0.0
        %3325 = vadd.xlane.f32.xlu0 %v3324
        %v3326 = vpop.xlane.xlu0 %3325
        %v3327 = vsel %vm962, %v3295, 0.0
        %3328 = vadd.xlane.f32.xlu0 %v3327
        %v3329 = vpop.xlane.xlu0 %3328
        %v3330 = vsel %vm962, %v3296, 0.0
        %3331 = vadd.xlane.f32.xlu0 %v3330
        %v3332 = vpop.xlane.xlu0 %3331
        %v3333 = vsel %vm962, %v3297, 0.0
        %3334 = vadd.xlane.f32.xlu0 %v3333
        %v3335 = vpop.xlane.xlu0 %3334
        %v3336 = vsel %vm962, %v3298, 0.0
        %3337 = vadd.xlane.f32.xlu0 %v3336
        %v3338 = vpop.xlane.xlu0 %3337
        %v3339 = vsel %vm962, %v3299, 0.0
        %3340 = vadd.xlane.f32.xlu0 %v3339
        %v3341 = vpop.xlane.xlu0 %3340
        %v3342 = vsel %vm962, %v3300, 0.0
        %3343 = vadd.xlane.f32.xlu0 %v3342
        %v3344 = vpop.xlane.xlu0 %3343
        %v3345 = vsel %vm962, %v3301, 0.0
        %3346 = vadd.xlane.f32.xlu0 %v3345
        %v3347 = vpop.xlane.xlu0 %3346
        %v3348 = vsel %vm962, %v3302, 0.0
        %3349 = vadd.xlane.f32.xlu0 %v3348
        %v3350 = vpop.xlane.xlu0 %3349
        %v3351 = vmul.f32 %v3317, 0.020408163
        %v3352 = vmul.f32 %v3320, 0.020408163
        %v3353 = vmul.f32 %v3323, 0.020408163
        %v3354 = vmul.f32 %v3326, 0.020408163
        %v3355 = vmul.f32 %v3329, 0.020408163
        %v3356 = vmul.f32 %v3332, 0.020408163
        %v3357 = vmul.f32 %v3335, 0.020408163
        %v3358 = vmul.f32 %v3338, 0.020408163
        %v3359 = vmul.f32 %v3341, 0.020408163
        %v3360 = vmul.f32 %v3344, 0.020408163
        %v3361 = vmul.f32 %v3347, 0.020408163
        %v3362 = vmul.f32 %v3350, 0.020408163
        %v3363 = vsub.f32 %v3291, %v3351
        %v3364 = vsub.f32 %v3292, %v3352
        %v3365 = vsub.f32 %v3293, %v3353
        %v3366 = vsub.f32 %v3294, %v3354
        %v3367 = vsub.f32 %v3295, %v3355
        %v3368 = vsub.f32 %v3296, %v3356
        %v3369 = vsub.f32 %v3297, %v3357
        %v3370 = vsub.f32 %v3298, %v3358
        %v3371 = vsub.f32 %v3299, %v3359
        %v3372 = vsub.f32 %v3300, %v3360
        %v3373 = vsub.f32 %v3301, %v3361
        %v3374 = vsub.f32 %v3302, %v3362
        %v3375 = vmul.f32 %v3363, %v3363
        %v3376 = vmul.f32 %v3364, %v3364
        %v3377 = vmul.f32 %v3365, %v3365
        %v3378 = vmul.f32 %v3366, %v3366
        %v3379 = vmul.f32 %v3367, %v3367
        %v3380 = vmul.f32 %v3368, %v3368
        %v3381 = vmul.f32 %v3369, %v3369
        %v3382 = vmul.f32 %v3370, %v3370
        %v3383 = vmul.f32 %v3371, %v3371
        %v3384 = vmul.f32 %v3372, %v3372
        %v3385 = vmul.f32 %v3373, %v3373
        %v3386 = vmul.f32 %v3374, %v3374
        %v3387 = vsel %vm962, %v3375, 0.0
        %3388 = vadd.xlane.f32.xlu0 %v3387
        %v3389 = vpop.xlane.xlu0 %3388
        %v3390 = vsel %vm962, %v3376, 0.0
        %3391 = vadd.xlane.f32.xlu0 %v3390
        %v3392 = vpop.xlane.xlu0 %3391
        %v3393 = vsel %vm962, %v3377, 0.0
        %3394 = vadd.xlane.f32.xlu0 %v3393
        %v3395 = vpop.xlane.xlu0 %3394
        %v3396 = vsel %vm962, %v3378, 0.0
        %3397 = vadd.xlane.f32.xlu0 %v3396
        %v3398 = vpop.xlane.xlu0 %3397
        %v3399 = vsel %vm962, %v3379, 0.0
        %3400 = vadd.xlane.f32.xlu0 %v3399
        %v3401 = vpop.xlane.xlu0 %3400
        %v3402 = vsel %vm962, %v3380, 0.0
        %3403 = vadd.xlane.f32.xlu0 %v3402
        %v3404 = vpop.xlane.xlu0 %3403
        %v3405 = vsel %vm962, %v3381, 0.0
        %3406 = vadd.xlane.f32.xlu0 %v3405
        %v3407 = vpop.xlane.xlu0 %3406
        %v3408 = vsel %vm962, %v3382, 0.0
        %3409 = vadd.xlane.f32.xlu0 %v3408
        %v3410 = vpop.xlane.xlu0 %3409
        %v3411 = vsel %vm962, %v3383, 0.0
        %3412 = vadd.xlane.f32.xlu0 %v3411
        %v3413 = vpop.xlane.xlu0 %3412
        %v3414 = vsel %vm962, %v3384, 0.0
        %3415 = vadd.xlane.f32.xlu0 %v3414
        %v3416 = vpop.xlane.xlu0 %3415
        %v3417 = vsel %vm962, %v3385, 0.0
        %3418 = vadd.xlane.f32.xlu0 %v3417
        %v3419 = vpop.xlane.xlu0 %3418
        %v3420 = vsel %vm962, %v3386, 0.0
        %3421 = vadd.xlane.f32.xlu0 %v3420
        %v3422 = vpop.xlane.xlu0 %3421
        %v3423 = vmul.f32 %v3389, 0.020408163
        %v3424 = vmul.f32 %v3392, 0.020408163
        %v3425 = vmul.f32 %v3395, 0.020408163
        %v3426 = vmul.f32 %v3398, 0.020408163
        %v3427 = vmul.f32 %v3401, 0.020408163
        %v3428 = vmul.f32 %v3404, 0.020408163
        %v3429 = vmul.f32 %v3407, 0.020408163
        %v3430 = vmul.f32 %v3410, 0.020408163
        %v3431 = vmul.f32 %v3413, 0.020408163
        %v3432 = vmul.f32 %v3416, 0.020408163
        %v3433 = vmul.f32 %v3419, 0.020408163
        %v3434 = vmul.f32 %v3422, 0.020408163
        %v3435 = vadd.f32 %v3423, 1e-05
        %v3436 = vadd.f32 %v3424, 1e-05
        %v3437 = vadd.f32 %v3425, 1e-05
        %v3438 = vadd.f32 %v3426, 1e-05
        %v3439 = vadd.f32 %v3427, 1e-05
        %v3440 = vadd.f32 %v3428, 1e-05
        %v3441 = vadd.f32 %v3429, 1e-05
        %v3442 = vadd.f32 %v3430, 1e-05
        %v3443 = vadd.f32 %v3431, 1e-05
        %v3444 = vadd.f32 %v3432, 1e-05
        %v3445 = vadd.f32 %v3433, 1e-05
        %v3446 = vadd.f32 %v3434, 1e-05
        %v3447 = vrsqrt.pop %v3435
        %v3448 = vrsqrt.pop %v3436
        %v3449 = vrsqrt.pop %v3437
        %v3450 = vrsqrt.pop %v3438
        %v3451 = vrsqrt.pop %v3439
        %v3452 = vrsqrt.pop %v3440
        %v3453 = vrsqrt.pop %v3441
        %v3454 = vrsqrt.pop %v3442
        %v3455 = vrsqrt.pop %v3443
        %v3456 = vrsqrt.pop %v3444
        %v3457 = vrsqrt.pop %v3445
        %v3458 = vrsqrt.pop %v3446
        %v3459 = vmul.f32 %v3447, %v3303
        %v3460 = vmul.f32 %v3448, %v3304
        %v3461 = vmul.f32 %v3449, %v3305
        %v3462 = vmul.f32 %v3450, %v3306
        %v3463 = vmul.f32 %v3451, %v3307
        %v3464 = vmul.f32 %v3452, %v3308
        %v3465 = vmul.f32 %v3453, %v3309
        %v3466 = vmul.f32 %v3454, %v3310
        %v3467 = vmul.f32 %v3455, %v3311
        %v3468 = vmul.f32 %v3456, %v3312
        %v3469 = vmul.f32 %v3457, %v3313
        %v3470 = vmul.f32 %v3458, %v3314
        %3472 = vset.pattern.permute.xlu0 0
        %3473 = vperm.xlu0 %3472, %v3459
        %v3474 = vpop.permute.xlu0 %3473
        %3477 = vset.pattern.permute.xlu0 0
        %3478 = vperm.xlu0 %3477, %v3460
        %v3479 = vpop.permute.xlu0 %3478
        %3482 = vset.pattern.permute.xlu0 0
        %3483 = vperm.xlu0 %3482, %v3461
        %v3484 = vpop.permute.xlu0 %3483
        %3487 = vset.pattern.permute.xlu0 0
        %3488 = vperm.xlu0 %3487, %v3462
        %v3489 = vpop.permute.xlu0 %3488
        %3492 = vset.pattern.permute.xlu0 0
        %3493 = vperm.xlu0 %3492, %v3463
        %v3494 = vpop.permute.xlu0 %3493
        %3497 = vset.pattern.permute.xlu0 0
        %3498 = vperm.xlu0 %3497, %v3464
        %v3499 = vpop.permute.xlu0 %3498
        %3502 = vset.pattern.permute.xlu0 0
        %3503 = vperm.xlu0 %3502, %v3465
        %v3504 = vpop.permute.xlu0 %3503
        %3507 = vset.pattern.permute.xlu0 0
        %3508 = vperm.xlu0 %3507, %v3466
        %v3509 = vpop.permute.xlu0 %3508
        %3512 = vset.pattern.permute.xlu0 0
        %3513 = vperm.xlu0 %3512, %v3467
        %v3514 = vpop.permute.xlu0 %3513
        %3517 = vset.pattern.permute.xlu0 0
        %3518 = vperm.xlu0 %3517, %v3468
        %v3519 = vpop.permute.xlu0 %3518
        %3522 = vset.pattern.permute.xlu0 0
        %3523 = vperm.xlu0 %3522, %v3469
        %v3524 = vpop.permute.xlu0 %3523
        %3527 = vset.pattern.permute.xlu0 0
        %3528 = vperm.xlu0 %3527, %v3470
        %v3529 = vpop.permute.xlu0 %3528
        %v3531 = vmul.f32 %v3363, %v3474
        %v3532 = vmul.f32 %v3364, %v3479
        %v3533 = vmul.f32 %v3365, %v3484
        %v3534 = vmul.f32 %v3366, %v3489
        %v3535 = vmul.f32 %v3367, %v3494
        %v3536 = vmul.f32 %v3368, %v3499
        %v3537 = vmul.f32 %v3369, %v3504
        %v3538 = vmul.f32 %v3370, %v3509
        %v3539 = vmul.f32 %v3371, %v3514
        %v3540 = vmul.f32 %v3372, %v3519
        %v3541 = vmul.f32 %v3373, %v3524
        %v3542 = vmul.f32 %v3374, %v3529
        %3544 = vset.pattern.permute.xlu0 1
        %3545 = vperm.xlu0 %3544, %v3303
        %v3546 = vpop.permute.xlu0 %3545
        %3549 = vset.pattern.permute.xlu0 1
        %3550 = vperm.xlu0 %3549, %v3304
        %v3551 = vpop.permute.xlu0 %3550
        %3554 = vset.pattern.permute.xlu0 1
        %3555 = vperm.xlu0 %3554, %v3305
        %v3556 = vpop.permute.xlu0 %3555
        %3559 = vset.pattern.permute.xlu0 1
        %3560 = vperm.xlu0 %3559, %v3306
        %v3561 = vpop.permute.xlu0 %3560
        %3564 = vset.pattern.permute.xlu0 1
        %3565 = vperm.xlu0 %3564, %v3307
        %v3566 = vpop.permute.xlu0 %3565
        %3569 = vset.pattern.permute.xlu0 1
        %3570 = vperm.xlu0 %3569, %v3308
        %v3571 = vpop.permute.xlu0 %3570
        %3574 = vset.pattern.permute.xlu0 1
        %3575 = vperm.xlu0 %3574, %v3309
        %v3576 = vpop.permute.xlu0 %3575
        %3579 = vset.pattern.permute.xlu0 1
        %3580 = vperm.xlu0 %3579, %v3310
        %v3581 = vpop.permute.xlu0 %3580
        %3584 = vset.pattern.permute.xlu0 1
        %3585 = vperm.xlu0 %3584, %v3311
        %v3586 = vpop.permute.xlu0 %3585
        %3589 = vset.pattern.permute.xlu0 1
        %3590 = vperm.xlu0 %3589, %v3312
        %v3591 = vpop.permute.xlu0 %3590
        %3594 = vset.pattern.permute.xlu0 1
        %3595 = vperm.xlu0 %3594, %v3313
        %v3596 = vpop.permute.xlu0 %3595
        %3599 = vset.pattern.permute.xlu0 1
        %3600 = vperm.xlu0 %3599, %v3314
        %v3601 = vpop.permute.xlu0 %3600
        %v3603 = vadd.f32 %v3531, %v3546
        %v3604 = vadd.f32 %v3532, %v3551
        %v3605 = vadd.f32 %v3533, %v3556
        %v3606 = vadd.f32 %v3534, %v3561
        %v3607 = vadd.f32 %v3535, %v3566
        %v3608 = vadd.f32 %v3536, %v3571
        %v3609 = vadd.f32 %v3537, %v3576
        %v3610 = vadd.f32 %v3538, %v3581
        %v3611 = vadd.f32 %v3539, %v3586
        %v3612 = vadd.f32 %v3540, %v3591
        %v3613 = vadd.f32 %v3541, %v3596
        %v3614 = vadd.f32 %v3542, %v3601
        %3615 = vst.msk [vmem:[%s932 + $0x2a0] sm:$0xff] %vm962, %v3603
        %3616 = vst.msk [vmem:[%s932 + $0x2a8] sm:$0xff] %vm962, %v3604
        %3617 = vst.msk [vmem:[%s932 + $0x2b0] sm:$0xff] %vm962, %v3605
        %3618 = vst.msk [vmem:[%s932 + $0x2b8] sm:$0xff] %vm962, %v3606
        %3619 = vst.msk [vmem:[%s932 + $0x2c0] sm:$0xff] %vm962, %v3607
        %3620 = vst.msk [vmem:[%s932 + $0x2c8] sm:$0xff] %vm962, %v3608
        %3621 = vst.msk [vmem:[%s932 + $0x2d0] sm:$0xff] %vm962, %v3609
        %3622 = vst.msk [vmem:[%s932 + $0x2d8] sm:$0xff] %vm962, %v3610
        %3623 = vst.msk [vmem:[%s932 + $0x2e0] sm:$0xff] %vm962, %v3611
        %3624 = vst.msk [vmem:[%s932 + $0x2e8] sm:$0xff] %vm962, %v3612
        %3625 = vst.msk [vmem:[%s932 + $0x2f0] sm:$0xff] %vm962, %v3613
        %3626 = vst.msk [vmem:[%s932 + $0x2f8] sm:$0xff] %vm962, %v3614
        %v3627 = vld [vmem:[%s1 + $0x300] sm:$0xff]
        %v3628 = vld [vmem:[%s1 + $0x308] sm:$0xff]
        %v3629 = vld [vmem:[%s1 + $0x310] sm:$0xff]
        %v3630 = vld [vmem:[%s1 + $0x318] sm:$0xff]
        %v3631 = vld [vmem:[%s1 + $0x320] sm:$0xff]
        %v3632 = vld [vmem:[%s1 + $0x328] sm:$0xff]
        %v3633 = vld [vmem:[%s1 + $0x330] sm:$0xff]
        %v3634 = vld [vmem:[%s1 + $0x338] sm:$0xff]
        %v3635 = vld [vmem:[%s1 + $0x340] sm:$0xff]
        %v3636 = vld [vmem:[%s1 + $0x348] sm:$0xff]
        %v3637 = vld [vmem:[%s1 + $0x350] sm:$0xff]
        %v3638 = vld [vmem:[%s1 + $0x358] sm:$0xff]
        %v3639 = vld [vmem:[%s926 + $0x300] sm:$0xff]
        %v3640 = vld [vmem:[%s926 + $0x308] sm:$0xff]
        %v3641 = vld [vmem:[%s926 + $0x310] sm:$0xff]
        %v3642 = vld [vmem:[%s926 + $0x318] sm:$0xff]
        %v3643 = vld [vmem:[%s926 + $0x320] sm:$0xff]
        %v3644 = vld [vmem:[%s926 + $0x328] sm:$0xff]
        %v3645 = vld [vmem:[%s926 + $0x330] sm:$0xff]
        %v3646 = vld [vmem:[%s926 + $0x338] sm:$0xff]
        %v3647 = vld [vmem:[%s926 + $0x340] sm:$0xff]
        %v3648 = vld [vmem:[%s926 + $0x348] sm:$0xff]
        %v3649 = vld [vmem:[%s926 + $0x350] sm:$0xff]
        %v3650 = vld [vmem:[%s926 + $0x358] sm:$0xff]
        %v3651 = vsel %vm962, %v3627, 0.0
        %3652 = vadd.xlane.f32.xlu0 %v3651
        %v3653 = vpop.xlane.xlu0 %3652
        %v3654 = vsel %vm962, %v3628, 0.0
        %3655 = vadd.xlane.f32.xlu0 %v3654
        %v3656 = vpop.xlane.xlu0 %3655
        %v3657 = vsel %vm962, %v3629, 0.0
        %3658 = vadd.xlane.f32.xlu0 %v3657
        %v3659 = vpop.xlane.xlu0 %3658
        %v3660 = vsel %vm962, %v3630, 0.0
        %3661 = vadd.xlane.f32.xlu0 %v3660
        %v3662 = vpop.xlane.xlu0 %3661
        %v3663 = vsel %vm962, %v3631, 0.0
        %3664 = vadd.xlane.f32.xlu0 %v3663
        %v3665 = vpop.xlane.xlu0 %3664
        %v3666 = vsel %vm962, %v3632, 0.0
        %3667 = vadd.xlane.f32.xlu0 %v3666
        %v3668 = vpop.xlane.xlu0 %3667
        %v3669 = vsel %vm962, %v3633, 0.0
        %3670 = vadd.xlane.f32.xlu0 %v3669
        %v3671 = vpop.xlane.xlu0 %3670
        %v3672 = vsel %vm962, %v3634, 0.0
        %3673 = vadd.xlane.f32.xlu0 %v3672
        %v3674 = vpop.xlane.xlu0 %3673
        %v3675 = vsel %vm962, %v3635, 0.0
        %3676 = vadd.xlane.f32.xlu0 %v3675
        %v3677 = vpop.xlane.xlu0 %3676
        %v3678 = vsel %vm962, %v3636, 0.0
        %3679 = vadd.xlane.f32.xlu0 %v3678
        %v3680 = vpop.xlane.xlu0 %3679
        %v3681 = vsel %vm962, %v3637, 0.0
        %3682 = vadd.xlane.f32.xlu0 %v3681
        %v3683 = vpop.xlane.xlu0 %3682
        %v3684 = vsel %vm962, %v3638, 0.0
        %3685 = vadd.xlane.f32.xlu0 %v3684
        %v3686 = vpop.xlane.xlu0 %3685
        %v3687 = vmul.f32 %v3653, 0.020408163
        %v3688 = vmul.f32 %v3656, 0.020408163
        %v3689 = vmul.f32 %v3659, 0.020408163
        %v3690 = vmul.f32 %v3662, 0.020408163
        %v3691 = vmul.f32 %v3665, 0.020408163
        %v3692 = vmul.f32 %v3668, 0.020408163
        %v3693 = vmul.f32 %v3671, 0.020408163
        %v3694 = vmul.f32 %v3674, 0.020408163
        %v3695 = vmul.f32 %v3677, 0.020408163
        %v3696 = vmul.f32 %v3680, 0.020408163
        %v3697 = vmul.f32 %v3683, 0.020408163
        %v3698 = vmul.f32 %v3686, 0.020408163
        %v3699 = vsub.f32 %v3627, %v3687
        %v3700 = vsub.f32 %v3628, %v3688
        %v3701 = vsub.f32 %v3629, %v3689
        %v3702 = vsub.f32 %v3630, %v3690
        %v3703 = vsub.f32 %v3631, %v3691
        %v3704 = vsub.f32 %v3632, %v3692
        %v3705 = vsub.f32 %v3633, %v3693
        %v3706 = vsub.f32 %v3634, %v3694
        %v3707 = vsub.f32 %v3635, %v3695
        %v3708 = vsub.f32 %v3636, %v3696
        %v3709 = vsub.f32 %v3637, %v3697
        %v3710 = vsub.f32 %v3638, %v3698
        %v3711 = vmul.f32 %v3699, %v3699
        %v3712 = vmul.f32 %v3700, %v3700
        %v3713 = vmul.f32 %v3701, %v3701
        %v3714 = vmul.f32 %v3702, %v3702
        %v3715 = vmul.f32 %v3703, %v3703
        %v3716 = vmul.f32 %v3704, %v3704
        %v3717 = vmul.f32 %v3705, %v3705
        %v3718 = vmul.f32 %v3706, %v3706
        %v3719 = vmul.f32 %v3707, %v3707
        %v3720 = vmul.f32 %v3708, %v3708
        %v3721 = vmul.f32 %v3709, %v3709
        %v3722 = vmul.f32 %v3710, %v3710
        %v3723 = vsel %vm962, %v3711, 0.0
        %3724 = vadd.xlane.f32.xlu0 %v3723
        %v3725 = vpop.xlane.xlu0 %3724
        %v3726 = vsel %vm962, %v3712, 0.0
        %3727 = vadd.xlane.f32.xlu0 %v3726
        %v3728 = vpop.xlane.xlu0 %3727
        %v3729 = vsel %vm962, %v3713, 0.0
        %3730 = vadd.xlane.f32.xlu0 %v3729
        %v3731 = vpop.xlane.xlu0 %3730
        %v3732 = vsel %vm962, %v3714, 0.0
        %3733 = vadd.xlane.f32.xlu0 %v3732
        %v3734 = vpop.xlane.xlu0 %3733
        %v3735 = vsel %vm962, %v3715, 0.0
        %3736 = vadd.xlane.f32.xlu0 %v3735
        %v3737 = vpop.xlane.xlu0 %3736
        %v3738 = vsel %vm962, %v3716, 0.0
        %3739 = vadd.xlane.f32.xlu0 %v3738
        %v3740 = vpop.xlane.xlu0 %3739
        %v3741 = vsel %vm962, %v3717, 0.0
        %3742 = vadd.xlane.f32.xlu0 %v3741
        %v3743 = vpop.xlane.xlu0 %3742
        %v3744 = vsel %vm962, %v3718, 0.0
        %3745 = vadd.xlane.f32.xlu0 %v3744
        %v3746 = vpop.xlane.xlu0 %3745
        %v3747 = vsel %vm962, %v3719, 0.0
        %3748 = vadd.xlane.f32.xlu0 %v3747
        %v3749 = vpop.xlane.xlu0 %3748
        %v3750 = vsel %vm962, %v3720, 0.0
        %3751 = vadd.xlane.f32.xlu0 %v3750
        %v3752 = vpop.xlane.xlu0 %3751
        %v3753 = vsel %vm962, %v3721, 0.0
        %3754 = vadd.xlane.f32.xlu0 %v3753
        %v3755 = vpop.xlane.xlu0 %3754
        %v3756 = vsel %vm962, %v3722, 0.0
        %3757 = vadd.xlane.f32.xlu0 %v3756
        %v3758 = vpop.xlane.xlu0 %3757
        %v3759 = vmul.f32 %v3725, 0.020408163
        %v3760 = vmul.f32 %v3728, 0.020408163
        %v3761 = vmul.f32 %v3731, 0.020408163
        %v3762 = vmul.f32 %v3734, 0.020408163
        %v3763 = vmul.f32 %v3737, 0.020408163
        %v3764 = vmul.f32 %v3740, 0.020408163
        %v3765 = vmul.f32 %v3743, 0.020408163
        %v3766 = vmul.f32 %v3746, 0.020408163
        %v3767 = vmul.f32 %v3749, 0.020408163
        %v3768 = vmul.f32 %v3752, 0.020408163
        %v3769 = vmul.f32 %v3755, 0.020408163
        %v3770 = vmul.f32 %v3758, 0.020408163
        %v3771 = vadd.f32 %v3759, 1e-05
        %v3772 = vadd.f32 %v3760, 1e-05
        %v3773 = vadd.f32 %v3761, 1e-05
        %v3774 = vadd.f32 %v3762, 1e-05
        %v3775 = vadd.f32 %v3763, 1e-05
        %v3776 = vadd.f32 %v3764, 1e-05
        %v3777 = vadd.f32 %v3765, 1e-05
        %v3778 = vadd.f32 %v3766, 1e-05
        %v3779 = vadd.f32 %v3767, 1e-05
        %v3780 = vadd.f32 %v3768, 1e-05
        %v3781 = vadd.f32 %v3769, 1e-05
        %v3782 = vadd.f32 %v3770, 1e-05
        %v3783 = vrsqrt.pop %v3771
        %v3784 = vrsqrt.pop %v3772
        %v3785 = vrsqrt.pop %v3773
        %v3786 = vrsqrt.pop %v3774
        %v3787 = vrsqrt.pop %v3775
        %v3788 = vrsqrt.pop %v3776
        %v3789 = vrsqrt.pop %v3777
        %v3790 = vrsqrt.pop %v3778
        %v3791 = vrsqrt.pop %v3779
        %v3792 = vrsqrt.pop %v3780
        %v3793 = vrsqrt.pop %v3781
        %v3794 = vrsqrt.pop %v3782
        %v3795 = vmul.f32 %v3783, %v3639
        %v3796 = vmul.f32 %v3784, %v3640
        %v3797 = vmul.f32 %v3785, %v3641
        %v3798 = vmul.f32 %v3786, %v3642
        %v3799 = vmul.f32 %v3787, %v3643
        %v3800 = vmul.f32 %v3788, %v3644
        %v3801 = vmul.f32 %v3789, %v3645
        %v3802 = vmul.f32 %v3790, %v3646
        %v3803 = vmul.f32 %v3791, %v3647
        %v3804 = vmul.f32 %v3792, %v3648
        %v3805 = vmul.f32 %v3793, %v3649
        %v3806 = vmul.f32 %v3794, %v3650
        %3808 = vset.pattern.permute.xlu0 0
        %3809 = vperm.xlu0 %3808, %v3795
        %v3810 = vpop.permute.xlu0 %3809
        %3813 = vset.pattern.permute.xlu0 0
        %3814 = vperm.xlu0 %3813, %v3796
        %v3815 = vpop.permute.xlu0 %3814
        %3818 = vset.pattern.permute.xlu0 0
        %3819 = vperm.xlu0 %3818, %v3797
        %v3820 = vpop.permute.xlu0 %3819
        %3823 = vset.pattern.permute.xlu0 0
        %3824 = vperm.xlu0 %3823, %v3798
        %v3825 = vpop.permute.xlu0 %3824
        %3828 = vset.pattern.permute.xlu0 0
        %3829 = vperm.xlu0 %3828, %v3799
        %v3830 = vpop.permute.xlu0 %3829
        %3833 = vset.pattern.permute.xlu0 0
        %3834 = vperm.xlu0 %3833, %v3800
        %v3835 = vpop.permute.xlu0 %3834
        %3838 = vset.pattern.permute.xlu0 0
        %3839 = vperm.xlu0 %3838, %v3801
        %v3840 = vpop.permute.xlu0 %3839
        %3843 = vset.pattern.permute.xlu0 0
        %3844 = vperm.xlu0 %3843, %v3802
        %v3845 = vpop.permute.xlu0 %3844
        %3848 = vset.pattern.permute.xlu0 0
        %3849 = vperm.xlu0 %3848, %v3803
        %v3850 = vpop.permute.xlu0 %3849
        %3853 = vset.pattern.permute.xlu0 0
        %3854 = vperm.xlu0 %3853, %v3804
        %v3855 = vpop.permute.xlu0 %3854
        %3858 = vset.pattern.permute.xlu0 0
        %3859 = vperm.xlu0 %3858, %v3805
        %v3860 = vpop.permute.xlu0 %3859
        %3863 = vset.pattern.permute.xlu0 0
        %3864 = vperm.xlu0 %3863, %v3806
        %v3865 = vpop.permute.xlu0 %3864
        %v3867 = vmul.f32 %v3699, %v3810
        %v3868 = vmul.f32 %v3700, %v3815
        %v3869 = vmul.f32 %v3701, %v3820
        %v3870 = vmul.f32 %v3702, %v3825
        %v3871 = vmul.f32 %v3703, %v3830
        %v3872 = vmul.f32 %v3704, %v3835
        %v3873 = vmul.f32 %v3705, %v3840
        %v3874 = vmul.f32 %v3706, %v3845
        %v3875 = vmul.f32 %v3707, %v3850
        %v3876 = vmul.f32 %v3708, %v3855
        %v3877 = vmul.f32 %v3709, %v3860
        %v3878 = vmul.f32 %v3710, %v3865
        %3880 = vset.pattern.permute.xlu0 1
        %3881 = vperm.xlu0 %3880, %v3639
        %v3882 = vpop.permute.xlu0 %3881
        %3885 = vset.pattern.permute.xlu0 1
        %3886 = vperm.xlu0 %3885, %v3640
        %v3887 = vpop.permute.xlu0 %3886
        %3890 = vset.pattern.permute.xlu0 1
        %3891 = vperm.xlu0 %3890, %v3641
        %v3892 = vpop.permute.xlu0 %3891
        %3895 = vset.pattern.permute.xlu0 1
        %3896 = vperm.xlu0 %3895, %v3642
        %v3897 = vpop.permute.xlu0 %3896
        %3900 = vset.pattern.permute.xlu0 1
        %3901 = vperm.xlu0 %3900, %v3643
        %v3902 = vpop.permute.xlu0 %3901
        %3905 = vset.pattern.permute.xlu0 1
        %3906 = vperm.xlu0 %3905, %v3644
        %v3907 = vpop.permute.xlu0 %3906
        %3910 = vset.pattern.permute.xlu0 1
        %3911 = vperm.xlu0 %3910, %v3645
        %v3912 = vpop.permute.xlu0 %3911
        %3915 = vset.pattern.permute.xlu0 1
        %3916 = vperm.xlu0 %3915, %v3646
        %v3917 = vpop.permute.xlu0 %3916
        %3920 = vset.pattern.permute.xlu0 1
        %3921 = vperm.xlu0 %3920, %v3647
        %v3922 = vpop.permute.xlu0 %3921
        %3925 = vset.pattern.permute.xlu0 1
        %3926 = vperm.xlu0 %3925, %v3648
        %v3927 = vpop.permute.xlu0 %3926
        %3930 = vset.pattern.permute.xlu0 1
        %3931 = vperm.xlu0 %3930, %v3649
        %v3932 = vpop.permute.xlu0 %3931
        %3935 = vset.pattern.permute.xlu0 1
        %3936 = vperm.xlu0 %3935, %v3650
        %v3937 = vpop.permute.xlu0 %3936
        %v3939 = vadd.f32 %v3867, %v3882
        %v3940 = vadd.f32 %v3868, %v3887
        %v3941 = vadd.f32 %v3869, %v3892
        %v3942 = vadd.f32 %v3870, %v3897
        %v3943 = vadd.f32 %v3871, %v3902
        %v3944 = vadd.f32 %v3872, %v3907
        %v3945 = vadd.f32 %v3873, %v3912
        %v3946 = vadd.f32 %v3874, %v3917
        %v3947 = vadd.f32 %v3875, %v3922
        %v3948 = vadd.f32 %v3876, %v3927
        %v3949 = vadd.f32 %v3877, %v3932
        %v3950 = vadd.f32 %v3878, %v3937
        %3951 = vst.msk [vmem:[%s932 + $0x300] sm:$0xff] %vm962, %v3939
        %3952 = vst.msk [vmem:[%s932 + $0x308] sm:$0xff] %vm962, %v3940
        %3953 = vst.msk [vmem:[%s932 + $0x310] sm:$0xff] %vm962, %v3941
        %3954 = vst.msk [vmem:[%s932 + $0x318] sm:$0xff] %vm962, %v3942
        %3955 = vst.msk [vmem:[%s932 + $0x320] sm:$0xff] %vm962, %v3943
        %3956 = vst.msk [vmem:[%s932 + $0x328] sm:$0xff] %vm962, %v3944
        %3957 = vst.msk [vmem:[%s932 + $0x330] sm:$0xff] %vm962, %v3945
        %3958 = vst.msk [vmem:[%s932 + $0x338] sm:$0xff] %vm962, %v3946
        %3959 = vst.msk [vmem:[%s932 + $0x340] sm:$0xff] %vm962, %v3947
        %3960 = vst.msk [vmem:[%s932 + $0x348] sm:$0xff] %vm962, %v3948
        %3961 = vst.msk [vmem:[%s932 + $0x350] sm:$0xff] %vm962, %v3949
        %3962 = vst.msk [vmem:[%s932 + $0x358] sm:$0xff] %vm962, %v3950
      $region144: #{forward.1} parent=139 // pred_fallthru
        _
      %p3963 = scmp.eq.s32.totalorder %s72, 1
      // Predicated region
      $region145: #{forward.1} parent=139 // pred_check
        %p3964 = pneg %p3963
      $region146: #{forward.1} parent=139 // pred_check_branch
        %3966 = sbr.rel (%p3964) target = $region148
      $region147: #{forward.1} parent=139 // pred_region
        %v3967 = vld [vmem:[%s55] sm:$0xff]
        %v3968 = vld [vmem:[%s55 + $0x8] sm:$0xff]
        %v3969 = vld [vmem:[%s55 + $0x10] sm:$0xff]
        %v3970 = vld [vmem:[%s55 + $0x18] sm:$0xff]
        %v3971 = vld [vmem:[%s55 + $0x20] sm:$0xff]
        %v3972 = vld [vmem:[%s55 + $0x28] sm:$0xff]
        %v3973 = vld [vmem:[%s55 + $0x30] sm:$0xff]
        %v3974 = vld [vmem:[%s55 + $0x38] sm:$0xff]
        %v3975 = vld [vmem:[%s55 + $0x40] sm:$0xff]
        %v3976 = vld [vmem:[%s55 + $0x48] sm:$0xff]
        %v3977 = vld [vmem:[%s55 + $0x50] sm:$0xff]
        %v3978 = vld [vmem:[%s55 + $0x58] sm:$0xff]
        %v3979 = vld [vmem:[%s55 + $0x60] sm:$0xff]
        %v3980 = vld [vmem:[%s55 + $0x68] sm:$0xff]
        %v3981 = vld [vmem:[%s55 + $0x70] sm:$0xff]
        %v3982 = vld [vmem:[%s55 + $0x78] sm:$0xff]
        %v3983 = vld [vmem:[%s55 + $0x80] sm:$0xff]
        %v3984 = vld [vmem:[%s55 + $0x88] sm:$0xff]
        %v3985 = vld [vmem:[%s55 + $0x90] sm:$0xff]
        %v3986 = vld [vmem:[%s55 + $0x98] sm:$0xff]
        %v3987 = vld [vmem:[%s55 + $0xa0] sm:$0xff]
        %v3988 = vld [vmem:[%s55 + $0xa8] sm:$0xff]
        %v3989 = vld [vmem:[%s55 + $0xb0] sm:$0xff]
        %v3990 = vld [vmem:[%s55 + $0xb8] sm:$0xff]
        %v3991 = vld [vmem:[%s55 + $0xc0] sm:$0xff]
        %v3992 = vld [vmem:[%s55 + $0xc8] sm:$0xff]
        %v3993 = vld [vmem:[%s55 + $0xd0] sm:$0xff]
        %v3994 = vld [vmem:[%s55 + $0xd8] sm:$0xff]
        %v3995 = vld [vmem:[%s55 + $0xe0] sm:$0xff]
        %v3996 = vld [vmem:[%s55 + $0xe8] sm:$0xff]
        %v3997 = vld [vmem:[%s55 + $0xf0] sm:$0xff]
        %v3998 = vld [vmem:[%s55 + $0xf8] sm:$0xff]
        %v3999 = vld [vmem:[%s55 + $0x100] sm:$0xff]
        %v4000 = vld [vmem:[%s55 + $0x108] sm:$0xff]
        %v4001 = vld [vmem:[%s55 + $0x110] sm:$0xff]
        %v4002 = vld [vmem:[%s55 + $0x118] sm:$0xff]
        %v4003 = vld [vmem:[%s53] sm:$0xff]
        %v4004 = vld [vmem:[%s53 + $0x8] sm:$0xff]
        %v4005 = vld [vmem:[%s53 + $0x10] sm:$0xff]
        %v4006 = vld [vmem:[%s53 + $0x18] sm:$0xff]
        %v4007 = vld [vmem:[%s53 + $0x20] sm:$0xff]
        %v4008 = vld [vmem:[%s53 + $0x28] sm:$0xff]
        %v4009 = vld [vmem:[%s53 + $0x30] sm:$0xff]
        %v4010 = vld [vmem:[%s53 + $0x38] sm:$0xff]
        %v4011 = vld [vmem:[%s53 + $0x40] sm:$0xff]
        %v4012 = vld [vmem:[%s53 + $0x48] sm:$0xff]
        %v4013 = vld [vmem:[%s53 + $0x50] sm:$0xff]
        %v4014 = vld [vmem:[%s53 + $0x58] sm:$0xff]
        %v4015 = vld [vmem:[%s53 + $0x60] sm:$0xff]
        %v4016 = vld [vmem:[%s53 + $0x68] sm:$0xff]
        %v4017 = vld [vmem:[%s53 + $0x70] sm:$0xff]
        %v4018 = vld [vmem:[%s53 + $0x78] sm:$0xff]
        %4019 = vmatprep.subr.mxu0 0.0
        %4020 = vmatpush1.msra.mxu0 %v4003
        %4021 = vmatprep.subr.mxu0 0.0
        %4022 = vmatpush1.msra.mxu0 %v4004
        %4023 = vmatprep.subr.mxu0 0.0
        %4024 = vmatpush1.msra.mxu0 %v4005
        %4025 = vmatprep.subr.mxu0 0.0
        %4026 = vmatpush1.msra.mxu0 %v4006
        %4027 = vmatprep.subr.mxu0 0.0
        %4028 = vmatpush1.msra.mxu0 %v4007
        %4029 = vmatprep.subr.mxu0 0.0
        %4030 = vmatpush1.msra.mxu0 %v4008
        %4031 = vmatprep.subr.mxu0 0.0
        %4032 = vmatpush1.msra.mxu0 %v4009
        %4033 = vmatprep.subr.mxu0 0.0
        %4034 = vmatpush1.msra.mxu0 %v4010
        %4035 = vmatprep.subr.mxu0 0.0
        %4036 = vmatpush1.msra.mxu0 %v4011
        %4037 = vmatprep.subr.mxu0 0.0
        %4038 = vmatpush1.msra.mxu0 %v4012
        %4039 = vmatprep.subr.mxu0 0.0
        %4040 = vmatpush1.msra.mxu0 %v4013
        %4041 = vmatprep.subr.mxu0 0.0
        %4042 = vmatpush1.msra.mxu0 %v4014
        %4043 = vmatprep.subr.mxu0 0.0
        %4044 = vmatpush1.msra.mxu0 %v4015
        %4045 = vmatprep.subr.mxu0 0.0
        %4046 = vmatpush1.msra.mxu0 %v4016
        %4047 = vmatprep.subr.mxu0 0.0
        %4048 = vmatpush1.msra.mxu0 %v4017
        %4049 = vmatprep.subr.mxu0 0.0
        %4050 = vmatpush1.msra.mxu0 %v4018
        %4051 = vmatprep.subr.mxu0 0.0
        %4052 = vmatpush1.msra.mxu0 0.0
        %4053 = vmatprep.subr.mxu0 0.0
        %4054 = vmatpush1.msra.mxu0 0.0
        %4055 = vmatprep.subr.mxu0 0.0
        %4056 = vmatpush1.msra.mxu0 0.0
        %4057 = vmatprep.subr.mxu0 0.0
        %4058 = vmatpush1.msra.mxu0 0.0
        %4059 = vmatprep.subr.mxu0 0.0
        %4060 = vmatpush1.msra.mxu0 0.0
        %4061 = vmatprep.subr.mxu0 0.0
        %4062 = vmatpush1.msra.mxu0 0.0
        %4063 = vmatprep.subr.mxu0 0.0
        %4064 = vmatpush1.msra.mxu0 0.0
        %4065 = vmatprep.subr.mxu0 0.0
        %4066 = vmatpush1.msra.mxu0 0.0
        %4067 = vmatprep.subr.mxu0 0.0
        %4068 = vmatpush1.msra.mxu0 0.0
        %4069 = vmatprep.subr.mxu0 0.0
        %4070 = vmatpush1.msra.mxu0 0.0
        %4071 = vmatprep.subr.mxu0 0.0
        %4072 = vmatpush1.msra.mxu0 0.0
        %4073 = vmatprep.subr.mxu0 0.0
        %4074 = vmatpush1.msra.mxu0 0.0
        %4075 = vmatprep.subr.mxu0 0.0
        %4076 = vmatpush1.msra.mxu0 0.0
        %4077 = vmatprep.subr.mxu0 0.0
        %4078 = vmatpush1.msra.mxu0 0.0
        %4079 = vmatprep.subr.mxu0 0.0
        %4080 = vmatpush1.msra.mxu0 0.0
        %4081 = vmatprep.subr.mxu0 0.0
        %4082 = vmatpush1.msra.mxu0 0.0
        %4083 = vmatprep.mubr.f32.mxu0 0.0
        %4084 = vmatmul.mubr.f32.gmra.mrb[0].mxu0 %v3967
        %v4085 = vpop.f32.mrb[0].mxu0
        %v4086 = vadd.f32 0.0, %v4085
        %v4087 = vpop.f32.mrb[0].mxu0
        %4088 = vmatprep.mubr.f32.mxu0 0.0
        %4089 = vmatmul.mubr.f32.gmra.mrb[0].mxu0 %v3968
        %v4090 = vpop.f32.mrb[0].mxu0
        %v4091 = vadd.f32 0.0, %v4090
        %v4092 = vpop.f32.mrb[0].mxu0
        %4093 = vmatprep.mubr.f32.mxu0 0.0
        %4094 = vmatmul.mubr.f32.gmra.mrb[0].mxu0 %v3969
        %v4095 = vpop.f32.mrb[0].mxu0
        %v4096 = vadd.f32 0.0, %v4095
        %v4097 = vpop.f32.mrb[0].mxu0
        %4098 = vmatprep.mubr.f32.mxu0 0.0
        %4099 = vmatmul.mubr.f32.gmra.mrb[0].mxu0 %v3970
        %v4100 = vpop.f32.mrb[0].mxu0
        %v4101 = vadd.f32 0.0, %v4100
        %v4102 = vpop.f32.mrb[0].mxu0
        %4103 = vmatprep.mubr.f32.mxu0 0.0
        %4104 = vmatmul.mubr.f32.gmra.mrb[0].mxu0 %v3971
        %v4105 = vpop.f32.mrb[0].mxu0
        %v4106 = vadd.f32 0.0, %v4105
        %v4107 = vpop.f32.mrb[0].mxu0
        %4108 = vmatprep.mubr.f32.mxu0 0.0
        %4109 = vmatmul.mubr.f32.gmra.mrb[0].mxu0 %v3972
        %v4110 = vpop.f32.mrb[0].mxu0
        %v4111 = vadd.f32 0.0, %v4110
        %v4112 = vpop.f32.mrb[0].mxu0
        %4113 = vmatprep.mubr.f32.mxu0 0.0
        %4114 = vmatmul.mubr.f32.gmra.mrb[0].mxu0 %v3973
        %v4115 = vpop.f32.mrb[0].mxu0
        %v4116 = vadd.f32 0.0, %v4115
        %v4117 = vpop.f32.mrb[0].mxu0
        %4118 = vmatprep.mubr.f32.mxu0 0.0
        %4119 = vmatmul.mubr.f32.gmra.mrb[0].mxu0 %v3974
        %v4120 = vpop.f32.mrb[0].mxu0
        %v4121 = vadd.f32 0.0, %v4120
        %v4122 = vpop.f32.mrb[0].mxu0
        %4123 = vmatprep.mubr.f32.mxu0 0.0
        %4124 = vmatmul.mubr.f32.gmra.mrb[0].mxu0 %v3975
        %v4125 = vpop.f32.mrb[0].mxu0
        %v4126 = vadd.f32 0.0, %v4125
        %v4127 = vpop.f32.mrb[0].mxu0
        %4128 = vmatprep.mubr.f32.mxu0 0.0
        %4129 = vmatmul.mubr.f32.gmra.mrb[0].mxu0 %v3976
        %v4130 = vpop.f32.mrb[0].mxu0
        %v4131 = vadd.f32 0.0, %v4130
        %v4132 = vpop.f32.mrb[0].mxu0
        %4133 = vmatprep.mubr.f32.mxu0 0.0
        %4134 = vmatmul.mubr.f32.gmra.mrb[0].mxu0 %v3977
        %v4135 = vpop.f32.mrb[0].mxu0
        %v4136 = vadd.f32 0.0, %v4135
        %v4137 = vpop.f32.mrb[0].mxu0
        %4138 = vmatprep.mubr.f32.mxu0 0.0
        %4139 = vmatmul.mubr.f32.gmra.mrb[0].mxu0 %v3978
        %v4140 = vpop.f32.mrb[0].mxu0
        %v4141 = vadd.f32 0.0, %v4140
        %v4142 = vpop.f32.mrb[0].mxu0
        %4143 = vmatprep.mubr.f32.mxu0 0.0
        %4144 = vmatmul.mubr.f32.gmra.mrb[0].mxu0 %v3979
        %v4145 = vpop.f32.mrb[0].mxu0
        %v4146 = vadd.f32 0.0, %v4145
        %v4147 = vpop.f32.mrb[0].mxu0
        %4148 = vmatprep.mubr.f32.mxu0 0.0
        %4149 = vmatmul.mubr.f32.gmra.mrb[0].mxu0 %v3980
        %v4150 = vpop.f32.mrb[0].mxu0
        %v4151 = vadd.f32 0.0, %v4150
        %v4152 = vpop.f32.mrb[0].mxu0
        %4153 = vmatprep.mubr.f32.mxu0 0.0
        %4154 = vmatmul.mubr.f32.gmra.mrb[0].mxu0 %v3981
        %v4155 = vpop.f32.mrb[0].mxu0
        %v4156 = vadd.f32 0.0, %v4155
        %v4157 = vpop.f32.mrb[0].mxu0
        %4158 = vmatprep.mubr.f32.mxu0 0.0
        %4159 = vmatmul.mubr.f32.gmra.mrb[0].mxu0 %v3982
        %v4160 = vpop.f32.mrb[0].mxu0
        %v4161 = vadd.f32 0.0, %v4160
        %v4162 = vpop.f32.mrb[0].mxu0
        %4163 = vmatprep.mubr.f32.mxu0 0.0
        %4164 = vmatmul.mubr.f32.gmra.mrb[0].mxu0 %v3983
        %v4165 = vpop.f32.mrb[0].mxu0
        %v4166 = vadd.f32 0.0, %v4165
        %v4167 = vpop.f32.mrb[0].mxu0
        %4168 = vmatprep.mubr.f32.mxu0 0.0
        %4169 = vmatmul.mubr.f32.gmra.mrb[0].mxu0 %v3984
        %v4170 = vpop.f32.mrb[0].mxu0
        %v4171 = vadd.f32 0.0, %v4170
        %v4172 = vpop.f32.mrb[0].mxu0
        %4173 = vmatprep.mubr.f32.mxu0 0.0
        %4174 = vmatmul.mubr.f32.gmra.mrb[0].mxu0 %v3985
        %v4175 = vpop.f32.mrb[0].mxu0
        %v4176 = vadd.f32 0.0, %v4175
        %v4177 = vpop.f32.mrb[0].mxu0
        %4178 = vmatprep.mubr.f32.mxu0 0.0
        %4179 = vmatmul.mubr.f32.gmra.mrb[0].mxu0 %v3986
        %v4180 = vpop.f32.mrb[0].mxu0
        %v4181 = vadd.f32 0.0, %v4180
        %v4182 = vpop.f32.mrb[0].mxu0
        %4183 = vmatprep.mubr.f32.mxu0 0.0
        %4184 = vmatmul.mubr.f32.gmra.mrb[0].mxu0 %v3987
        %v4185 = vpop.f32.mrb[0].mxu0
        %v4186 = vadd.f32 0.0, %v4185
        %v4187 = vpop.f32.mrb[0].mxu0
        %4188 = vmatprep.mubr.f32.mxu0 0.0
        %4189 = vmatmul.mubr.f32.gmra.mrb[0].mxu0 %v3988
        %v4190 = vpop.f32.mrb[0].mxu0
        %v4191 = vadd.f32 0.0, %v4190
        %v4192 = vpop.f32.mrb[0].mxu0
        %4193 = vmatprep.mubr.f32.mxu0 0.0
        %4194 = vmatmul.mubr.f32.gmra.mrb[0].mxu0 %v3989
        %v4195 = vpop.f32.mrb[0].mxu0
        %v4196 = vadd.f32 0.0, %v4195
        %v4197 = vpop.f32.mrb[0].mxu0
        %4198 = vmatprep.mubr.f32.mxu0 0.0
        %4199 = vmatmul.mubr.f32.gmra.mrb[0].mxu0 %v3990
        %v4200 = vpop.f32.mrb[0].mxu0
        %v4201 = vadd.f32 0.0, %v4200
        %v4202 = vpop.f32.mrb[0].mxu0
        %4203 = vmatprep.mubr.f32.mxu0 0.0
        %4204 = vmatmul.mubr.f32.gmra.mrb[0].mxu0 %v3991
        %v4205 = vpop.f32.mrb[0].mxu0
        %v4206 = vadd.f32 0.0, %v4205
        %v4207 = vpop.f32.mrb[0].mxu0
        %4208 = vmatprep.mubr.f32.mxu0 0.0
        %4209 = vmatmul.mubr.f32.gmra.mrb[0].mxu0 %v3992
        %v4210 = vpop.f32.mrb[0].mxu0
        %v4211 = vadd.f32 0.0, %v4210
        %v4212 = vpop.f32.mrb[0].mxu0
        %4213 = vmatprep.mubr.f32.mxu0 0.0
        %4214 = vmatmul.mubr.f32.gmra.mrb[0].mxu0 %v3993
        %v4215 = vpop.f32.mrb[0].mxu0
        %v4216 = vadd.f32 0.0, %v4215
        %v4217 = vpop.f32.mrb[0].mxu0
        %4218 = vmatprep.mubr.f32.mxu0 0.0
        %4219 = vmatmul.mubr.f32.gmra.mrb[0].mxu0 %v3994
        %v4220 = vpop.f32.mrb[0].mxu0
        %v4221 = vadd.f32 0.0, %v4220
        %v4222 = vpop.f32.mrb[0].mxu0
        %4223 = vmatprep.mubr.f32.mxu0 0.0
        %4224 = vmatmul.mubr.f32.gmra.mrb[0].mxu0 %v3995
        %v4225 = vpop.f32.mrb[0].mxu0
        %v4226 = vadd.f32 0.0, %v4225
        %v4227 = vpop.f32.mrb[0].mxu0
        %4228 = vmatprep.mubr.f32.mxu0 0.0
        %4229 = vmatmul.mubr.f32.gmra.mrb[0].mxu0 %v3996
        %v4230 = vpop.f32.mrb[0].mxu0
        %v4231 = vadd.f32 0.0, %v4230
        %v4232 = vpop.f32.mrb[0].mxu0
        %4233 = vmatprep.mubr.f32.mxu0 0.0
        %4234 = vmatmul.mubr.f32.gmra.mrb[0].mxu0 %v3997
        %v4235 = vpop.f32.mrb[0].mxu0
        %v4236 = vadd.f32 0.0, %v4235
        %v4237 = vpop.f32.mrb[0].mxu0
        %4238 = vmatprep.mubr.f32.mxu0 0.0
        %4239 = vmatmul.mubr.f32.gmra.mrb[0].mxu0 %v3998
        %v4240 = vpop.f32.mrb[0].mxu0
        %v4241 = vadd.f32 0.0, %v4240
        %v4242 = vpop.f32.mrb[0].mxu0
        %4243 = vmatprep.mubr.f32.mxu0 0.0
        %4244 = vmatmul.mubr.f32.gmra.mrb[0].mxu0 %v3999
        %v4245 = vpop.f32.mrb[0].mxu0
        %v4246 = vadd.f32 0.0, %v4245
        %v4247 = vpop.f32.mrb[0].mxu0
        %4248 = vmatprep.mubr.f32.mxu0 0.0
        %4249 = vmatmul.mubr.f32.gmra.mrb[0].mxu0 %v4000
        %v4250 = vpop.f32.mrb[0].mxu0
        %v4251 = vadd.f32 0.0, %v4250
        %v4252 = vpop.f32.mrb[0].mxu0
        %4253 = vmatprep.mubr.f32.mxu0 0.0
        %4254 = vmatmul.mubr.f32.gmra.mrb[0].mxu0 %v4001
        %v4255 = vpop.f32.mrb[0].mxu0
        %v4256 = vadd.f32 0.0, %v4255
        %v4257 = vpop.f32.mrb[0].mxu0
        %4258 = vmatprep.mubr.f32.mxu0 0.0
        %4259 = vmatmul.mubr.f32.gmra.mrb[0].mxu0 %v4002
        %v4260 = vpop.f32.mrb[0].mxu0
        %v4261 = vadd.f32 0.0, %v4260
        %v4262 = vpop.f32.mrb[0].mxu0
        %4263 = vdwg.mxu0
        %vm4264 = vcmask 400384
        %4265 = vst.msk [vmem:[#allocation2] sm:$0xff] %vm4264, %v4086
        %4266 = vst.msk [vmem:[#allocation2 + $0x8] sm:$0xff] %vm4264, %v4091
        %4267 = vst.msk [vmem:[#allocation2 + $0x10] sm:$0xff] %vm4264, %v4096
        %4268 = vst.msk [vmem:[#allocation2 + $0x18] sm:$0xff] %vm4264, %v4101
        %4269 = vst.msk [vmem:[#allocation2 + $0x20] sm:$0xff] %vm4264, %v4106
        %4270 = vst.msk [vmem:[#allocation2 + $0x28] sm:$0xff] %vm4264, %v4111
        %4271 = vst.msk [vmem:[#allocation2 + $0x30] sm:$0xff] %vm4264, %v4116
        %4272 = vst.msk [vmem:[#allocation2 + $0x38] sm:$0xff] %vm4264, %v4121
        %4273 = vst.msk [vmem:[#allocation2 + $0x40] sm:$0xff] %vm4264, %v4126
        %4274 = vst.msk [vmem:[#allocation2 + $0x48] sm:$0xff] %vm4264, %v4131
        %4275 = vst.msk [vmem:[#allocation2 + $0x50] sm:$0xff] %vm4264, %v4136
        %4276 = vst.msk [vmem:[#allocation2 + $0x58] sm:$0xff] %vm4264, %v4141
        %4277 = vst.msk [vmem:[#allocation2 + $0x60] sm:$0xff] %vm4264, %v4146
        %4278 = vst.msk [vmem:[#allocation2 + $0x68] sm:$0xff] %vm4264, %v4151
        %4279 = vst.msk [vmem:[#allocation2 + $0x70] sm:$0xff] %vm4264, %v4156
        %4280 = vst.msk [vmem:[#allocation2 + $0x78] sm:$0xff] %vm4264, %v4161
        %4281 = vst.msk [vmem:[#allocation2 + $0x80] sm:$0xff] %vm4264, %v4166
        %4282 = vst.msk [vmem:[#allocation2 + $0x88] sm:$0xff] %vm4264, %v4171
        %4283 = vst.msk [vmem:[#allocation2 + $0x90] sm:$0xff] %vm4264, %v4176
        %4284 = vst.msk [vmem:[#allocation2 + $0x98] sm:$0xff] %vm4264, %v4181
        %4285 = vst.msk [vmem:[#allocation2 + $0xa0] sm:$0xff] %vm4264, %v4186
        %4286 = vst.msk [vmem:[#allocation2 + $0xa8] sm:$0xff] %vm4264, %v4191
        %4287 = vst.msk [vmem:[#allocation2 + $0xb0] sm:$0xff] %vm4264, %v4196
        %4288 = vst.msk [vmem:[#allocation2 + $0xb8] sm:$0xff] %vm4264, %v4201
        %4289 = vst.msk [vmem:[#allocation2 + $0xc0] sm:$0xff] %vm4264, %v4206
        %4290 = vst.msk [vmem:[#allocation2 + $0xc8] sm:$0xff] %vm4264, %v4211
        %4291 = vst.msk [vmem:[#allocation2 + $0xd0] sm:$0xff] %vm4264, %v4216
        %4292 = vst.msk [vmem:[#allocation2 + $0xd8] sm:$0xff] %vm4264, %v4221
        %4293 = vst.msk [vmem:[#allocation2 + $0xe0] sm:$0xff] %vm4264, %v4226
        %4294 = vst.msk [vmem:[#allocation2 + $0xe8] sm:$0xff] %vm4264, %v4231
        %4295 = vst.msk [vmem:[#allocation2 + $0xf0] sm:$0xff] %vm4264, %v4236
        %4296 = vst.msk [vmem:[#allocation2 + $0xf8] sm:$0xff] %vm4264, %v4241
        %4297 = vst.msk [vmem:[#allocation2 + $0x100] sm:$0xff] %vm4264, %v4246
        %4298 = vst.msk [vmem:[#allocation2 + $0x108] sm:$0xff] %vm4264, %v4251
        %4299 = vst.msk [vmem:[#allocation2 + $0x110] sm:$0xff] %vm4264, %v4256
        %4300 = vst.msk [vmem:[#allocation2 + $0x118] sm:$0xff] %vm4264, %v4261
        %v4301 = vld [vmem:[#allocation2] sm:$0xff]
        %v4302 = vld [vmem:[#allocation2 + $0x8] sm:$0xff]
        %v4303 = vld [vmem:[#allocation2 + $0x10] sm:$0xff]
        %v4304 = vld [vmem:[#allocation2 + $0x18] sm:$0xff]
        %v4305 = vld [vmem:[%s57] sm:$0xff]
        %v4306 = vld [vmem:[%s57 + $0x8] sm:$0xff]
        %v4307 = vld [vmem:[%s57 + $0x10] sm:$0xff]
        %v4308 = vld [vmem:[%s57 + $0x18] sm:$0xff]
        %v4309 = vld [vmem:[%s57 + $0x20] sm:$0xff]
        %v4310 = vld [vmem:[%s57 + $0x28] sm:$0xff]
        %v4311 = vld [vmem:[%s57 + $0x30] sm:$0x1]
        %v4312 = vld [vmem:[#allocation2 + $0x20] sm:$0xff]
        %v4313 = vld [vmem:[#allocation2 + $0x28] sm:$0xff]
        %v4314 = vld [vmem:[#allocation2 + $0x30] sm:$0xff]
        %v4315 = vld [vmem:[#allocation2 + $0x38] sm:$0xff]
        %s4316 = scalar_lea.vmem %s57, 56
        %v4317 = vld [vmem:[%s4316] sm:$0xff]
        %v4318 = vld [vmem:[%s4316 + $0x8] sm:$0xff]
        %v4319 = vld [vmem:[%s4316 + $0x10] sm:$0xff]
        %v4320 = vld [vmem:[%s4316 + $0x18] sm:$0xff]
        %v4321 = vld [vmem:[%s4316 + $0x20] sm:$0xff]
        %v4322 = vld [vmem:[%s4316 + $0x28] sm:$0xff]
        %v4323 = vld [vmem:[%s4316 + $0x30] sm:$0x1]
        %v4325 = vsel %vm4264, %v4312, 0
        %v4328 = vsel %vm4264, %v4313, 0
        %v4331 = vsel %vm4264, %v4314, 0
        %v4334 = vsel %vm4264, %v4315, 0
        %vm4336 = vcmask 1040384
        %v4338 = vsel %vm4336, %v4323, 0
        %4340 = vmatprep.subr.mxu0 0.0
        %4341 = vmatpush1.msra.mxu0 %v4317
        %4342 = vmatprep.subr.mxu0 0.0
        %4343 = vmatpush1.msra.mxu0 %v4318
        %4344 = vmatprep.subr.mxu0 0.0
        %4345 = vmatpush1.msra.mxu0 %v4319
        %4346 = vmatprep.subr.mxu0 0.0
        %4347 = vmatpush1.msra.mxu0 %v4320
        %4348 = vmatprep.subr.mxu0 0.0
        %4349 = vmatpush1.msra.mxu0 %v4321
        %4350 = vmatprep.subr.mxu0 0.0
        %4351 = vmatpush1.msra.mxu0 %v4322
        %4352 = vmatprep.subr.mxu0 0.0
        %4353 = vmatpush1.msra.mxu0 %v4338
        %4354 = vmatprep.subr.mxu0 0.0
        %4355 = vmatpush1.msra.mxu0 0.0
        %4356 = vmatprep.subr.mxu0 0.0
        %4357 = vmatpush1.msra.mxu0 0.0
        %4358 = vmatprep.subr.mxu0 0.0
        %4359 = vmatpush1.msra.mxu0 0.0
        %4360 = vmatprep.subr.mxu0 0.0
        %4361 = vmatpush1.msra.mxu0 0.0
        %4362 = vmatprep.subr.mxu0 0.0
        %4363 = vmatpush1.msra.mxu0 0.0
        %4364 = vmatprep.subr.mxu0 0.0
        %4365 = vmatpush1.msra.mxu0 0.0
        %4366 = vmatprep.subr.mxu0 0.0
        %4367 = vmatpush1.msra.mxu0 0.0
        %4368 = vmatprep.subr.mxu0 0.0
        %4369 = vmatpush1.msra.mxu0 0.0
        %4370 = vmatprep.subr.mxu0 0.0
        %4371 = vmatpush1.msra.mxu0 0.0
        %4372 = vmatprep.subr.mxu0 0.0
        %4373 = vmatpush1.msra.mxu0 0.0
        %4374 = vmatprep.subr.mxu0 0.0
        %4375 = vmatpush1.msra.mxu0 0.0
        %4376 = vmatprep.subr.mxu0 0.0
        %4377 = vmatpush1.msra.mxu0 0.0
        %4378 = vmatprep.subr.mxu0 0.0
        %4379 = vmatpush1.msra.mxu0 0.0
        %4380 = vmatprep.subr.mxu0 0.0
        %4381 = vmatpush1.msra.mxu0 0.0
        %4382 = vmatprep.subr.mxu0 0.0
        %4383 = vmatpush1.msra.mxu0 0.0
        %4384 = vmatprep.subr.mxu0 0.0
        %4385 = vmatpush1.msra.mxu0 0.0
        %4386 = vmatprep.subr.mxu0 0.0
        %4387 = vmatpush1.msra.mxu0 0.0
        %4388 = vmatprep.subr.mxu0 0.0
        %4389 = vmatpush1.msra.mxu0 0.0
        %4390 = vmatprep.subr.mxu0 0.0
        %4391 = vmatpush1.msra.mxu0 0.0
        %4392 = vmatprep.subr.mxu0 0.0
        %4393 = vmatpush1.msra.mxu0 0.0
        %4394 = vmatprep.subr.mxu0 0.0
        %4395 = vmatpush1.msra.mxu0 0.0
        %4396 = vmatprep.subr.mxu0 0.0
        %4397 = vmatpush1.msra.mxu0 0.0
        %4398 = vmatprep.subr.mxu0 0.0
        %4399 = vmatpush1.msra.mxu0 0.0
        %4400 = vmatprep.subr.mxu0 0.0
        %4401 = vmatpush1.msra.mxu0 0.0
        %4402 = vmatprep.subr.mxu0 0.0
        %4403 = vmatpush1.msra.mxu0 0.0
        %4404 = vmatprep.mubr.f32.mxu0 0.0
        %4405 = vmatmul.mubr.f32.gmra.mrb[0].mxu0 %v4325
        %v4406 = vpop.f32.mrb[0].mxu0
        %v4407 = vadd.f32 0.0, %v4406
        %v4408 = vpop.f32.mrb[0].mxu0
        %4409 = vmatprep.mubr.f32.mxu0 0.0
        %4410 = vmatmul.mubr.f32.gmra.mrb[0].mxu0 %v4328
        %v4411 = vpop.f32.mrb[0].mxu0
        %v4412 = vadd.f32 0.0, %v4411
        %v4413 = vpop.f32.mrb[0].mxu0
        %4414 = vmatprep.mubr.f32.mxu0 0.0
        %4415 = vmatmul.mubr.f32.gmra.mrb[0].mxu0 %v4331
        %v4416 = vpop.f32.mrb[0].mxu0
        %v4417 = vadd.f32 0.0, %v4416
        %v4418 = vpop.f32.mrb[0].mxu0
        %4419 = vmatprep.mubr.f32.mxu0 0.0
        %4420 = vmatmul.mubr.f32.gmra.mrb[0].mxu0 %v4334
        %v4421 = vpop.f32.mrb[0].mxu0
        %v4422 = vadd.f32 0.0, %v4421
        %v4423 = vpop.f32.mrb[0].mxu0
        %4424 = vdwg.mxu0
        %v4426 = vsel %vm4264, %v4301, 0
        %v4429 = vsel %vm4264, %v4302, 0
        %v4432 = vsel %vm4264, %v4303, 0
        %v4435 = vsel %vm4264, %v4304, 0
        %v4438 = vsel %vm4336, %v4311, 0
        %4440 = vmatprep.subr.mxu0 0.0
        %4441 = vmatpush1.msra.mxu0 %v4305
        %4442 = vmatprep.subr.mxu0 0.0
        %4443 = vmatpush1.msra.mxu0 %v4306
        %4444 = vmatprep.subr.mxu0 0.0
        %4445 = vmatpush1.msra.mxu0 %v4307
        %4446 = vmatprep.subr.mxu0 0.0
        %4447 = vmatpush1.msra.mxu0 %v4308
        %4448 = vmatprep.subr.mxu0 0.0
        %4449 = vmatpush1.msra.mxu0 %v4309
        %4450 = vmatprep.subr.mxu0 0.0
        %4451 = vmatpush1.msra.mxu0 %v4310
        %4452 = vmatprep.subr.mxu0 0.0
        %4453 = vmatpush1.msra.mxu0 %v4438
        %4454 = vmatprep.subr.mxu0 0.0
        %4455 = vmatpush1.msra.mxu0 0.0
        %4456 = vmatprep.subr.mxu0 0.0
        %4457 = vmatpush1.msra.mxu0 0.0
        %4458 = vmatprep.subr.mxu0 0.0
        %4459 = vmatpush1.msra.mxu0 0.0
        %4460 = vmatprep.subr.mxu0 0.0
        %4461 = vmatpush1.msra.mxu0 0.0
        %4462 = vmatprep.subr.mxu0 0.0
        %4463 = vmatpush1.msra.mxu0 0.0
        %4464 = vmatprep.subr.mxu0 0.0
        %4465 = vmatpush1.msra.mxu0 0.0
        %4466 = vmatprep.subr.mxu0 0.0
        %4467 = vmatpush1.msra.mxu0 0.0
        %4468 = vmatprep.subr.mxu0 0.0
        %4469 = vmatpush1.msra.mxu0 0.0
        %4470 = vmatprep.subr.mxu0 0.0
        %4471 = vmatpush1.msra.mxu0 0.0
        %4472 = vmatprep.subr.mxu0 0.0
        %4473 = vmatpush1.msra.mxu0 0.0
        %4474 = vmatprep.subr.mxu0 0.0
        %4475 = vmatpush1.msra.mxu0 0.0
        %4476 = vmatprep.subr.mxu0 0.0
        %4477 = vmatpush1.msra.mxu0 0.0
        %4478 = vmatprep.subr.mxu0 0.0
        %4479 = vmatpush1.msra.mxu0 0.0
        %4480 = vmatprep.subr.mxu0 0.0
        %4481 = vmatpush1.msra.mxu0 0.0
        %4482 = vmatprep.subr.mxu0 0.0
        %4483 = vmatpush1.msra.mxu0 0.0
        %4484 = vmatprep.subr.mxu0 0.0
        %4485 = vmatpush1.msra.mxu0 0.0
        %4486 = vmatprep.subr.mxu0 0.0
        %4487 = vmatpush1.msra.mxu0 0.0
        %4488 = vmatprep.subr.mxu0 0.0
        %4489 = vmatpush1.msra.mxu0 0.0
        %4490 = vmatprep.subr.mxu0 0.0
        %4491 = vmatpush1.msra.mxu0 0.0
        %4492 = vmatprep.subr.mxu0 0.0
        %4493 = vmatpush1.msra.mxu0 0.0
        %4494 = vmatprep.subr.mxu0 0.0
        %4495 = vmatpush1.msra.mxu0 0.0
        %4496 = vmatprep.subr.mxu0 0.0
        %4497 = vmatpush1.msra.mxu0 0.0
        %4498 = vmatprep.subr.mxu0 0.0
        %4499 = vmatpush1.msra.mxu0 0.0
        %4500 = vmatprep.subr.mxu0 0.0
        %4501 = vmatpush1.msra.mxu0 0.0
        %4502 = vmatprep.subr.mxu0 0.0
        %4503 = vmatpush1.msra.mxu0 0.0
        %4504 = vmatprep.mubr.f32.mxu0 0.0
        %4505 = vmatmul.mubr.f32.gmra.mrb[0].mxu0 %v4426
        %v4506 = vpop.f32.mrb[0].mxu0
        %v4507 = vadd.f32 %v4407, %v4506
        %v4508 = vpop.f32.mrb[0].mxu0
        %4509 = vmatprep.mubr.f32.mxu0 0.0
        %4510 = vmatmul.mubr.f32.gmra.mrb[0].mxu0 %v4429
        %v4511 = vpop.f32.mrb[0].mxu0
        %v4512 = vadd.f32 %v4412, %v4511
        %v4513 = vpop.f32.mrb[0].mxu0
        %4514 = vmatprep.mubr.f32.mxu0 0.0
        %4515 = vmatmul.mubr.f32.gmra.mrb[0].mxu0 %v4432
        %v4516 = vpop.f32.mrb[0].mxu0
        %v4517 = vadd.f32 %v4417, %v4516
        %v4518 = vpop.f32.mrb[0].mxu0
        %4519 = vmatprep.mubr.f32.mxu0 0.0
        %4520 = vmatmul.mubr.f32.gmra.mrb[0].mxu0 %v4435
        %v4521 = vpop.f32.mrb[0].mxu0
        %v4522 = vadd.f32 %v4422, %v4521
        %v4523 = vpop.f32.mrb[0].mxu0
        %4524 = vdwg.mxu0
        %v4525 = vld [vmem:[#allocation2 + $0x40] sm:$0xff]
        %v4526 = vld [vmem:[#allocation2 + $0x48] sm:$0xff]
        %v4527 = vld [vmem:[#allocation2 + $0x50] sm:$0xff]
        %v4528 = vld [vmem:[#allocation2 + $0x58] sm:$0xff]
        %s4529 = scalar_lea.vmem %s57, 112
        %v4530 = vld [vmem:[%s4529] sm:$0xff]
        %v4531 = vld [vmem:[%s4529 + $0x8] sm:$0xff]
        %v4532 = vld [vmem:[%s4529 + $0x10] sm:$0xff]
        %v4533 = vld [vmem:[%s4529 + $0x18] sm:$0xff]
        %v4534 = vld [vmem:[%s4529 + $0x20] sm:$0xff]
        %v4535 = vld [vmem:[%s4529 + $0x28] sm:$0xff]
        %v4536 = vld [vmem:[%s4529 + $0x30] sm:$0x1]
        %v4538 = vsel %vm4264, %v4525, 0
        %v4541 = vsel %vm4264, %v4526, 0
        %v4544 = vsel %vm4264, %v4527, 0
        %v4547 = vsel %vm4264, %v4528, 0
        %v4550 = vsel %vm4336, %v4536, 0
        %4552 = vmatprep.subr.mxu0 0.0
        %4553 = vmatpush1.msra.mxu0 %v4530
        %4554 = vmatprep.subr.mxu0 0.0
        %4555 = vmatpush1.msra.mxu0 %v4531
        %4556 = vmatprep.subr.mxu0 0.0
        %4557 = vmatpush1.msra.mxu0 %v4532
        %4558 = vmatprep.subr.mxu0 0.0
        %4559 = vmatpush1.msra.mxu0 %v4533
        %4560 = vmatprep.subr.mxu0 0.0
        %4561 = vmatpush1.msra.mxu0 %v4534
        %4562 = vmatprep.subr.mxu0 0.0
        %4563 = vmatpush1.msra.mxu0 %v4535
        %4564 = vmatprep.subr.mxu0 0.0
        %4565 = vmatpush1.msra.mxu0 %v4550
        %4566 = vmatprep.subr.mxu0 0.0
        %4567 = vmatpush1.msra.mxu0 0.0
        %4568 = vmatprep.subr.mxu0 0.0
        %4569 = vmatpush1.msra.mxu0 0.0
        %4570 = vmatprep.subr.mxu0 0.0
        %4571 = vmatpush1.msra.mxu0 0.0
        %4572 = vmatprep.subr.mxu0 0.0
        %4573 = vmatpush1.msra.mxu0 0.0
        %4574 = vmatprep.subr.mxu0 0.0
        %4575 = vmatpush1.msra.mxu0 0.0
        %4576 = vmatprep.subr.mxu0 0.0
        %4577 = vmatpush1.msra.mxu0 0.0
        %4578 = vmatprep.subr.mxu0 0.0
        %4579 = vmatpush1.msra.mxu0 0.0
        %4580 = vmatprep.subr.mxu0 0.0
        %4581 = vmatpush1.msra.mxu0 0.0
        %4582 = vmatprep.subr.mxu0 0.0
        %4583 = vmatpush1.msra.mxu0 0.0
        %4584 = vmatprep.subr.mxu0 0.0
        %4585 = vmatpush1.msra.mxu0 0.0
        %4586 = vmatprep.subr.mxu0 0.0
        %4587 = vmatpush1.msra.mxu0 0.0
        %4588 = vmatprep.subr.mxu0 0.0
        %4589 = vmatpush1.msra.mxu0 0.0
        %4590 = vmatprep.subr.mxu0 0.0
        %4591 = vmatpush1.msra.mxu0 0.0
        %4592 = vmatprep.subr.mxu0 0.0
        %4593 = vmatpush1.msra.mxu0 0.0
        %4594 = vmatprep.subr.mxu0 0.0
        %4595 = vmatpush1.msra.mxu0 0.0
        %4596 = vmatprep.subr.mxu0 0.0
        %4597 = vmatpush1.msra.mxu0 0.0
        %4598 = vmatprep.subr.mxu0 0.0
        %4599 = vmatpush1.msra.mxu0 0.0
        %4600 = vmatprep.subr.mxu0 0.0
        %4601 = vmatpush1.msra.mxu0 0.0
        %4602 = vmatprep.subr.mxu0 0.0
        %4603 = vmatpush1.msra.mxu0 0.0
        %4604 = vmatprep.subr.mxu0 0.0
        %4605 = vmatpush1.msra.mxu0 0.0
        %4606 = vmatprep.subr.mxu0 0.0
        %4607 = vmatpush1.msra.mxu0 0.0
        %4608 = vmatprep.subr.mxu0 0.0
        %4609 = vmatpush1.msra.mxu0 0.0
        %4610 = vmatprep.subr.mxu0 0.0
        %4611 = vmatpush1.msra.mxu0 0.0
        %4612 = vmatprep.subr.mxu0 0.0
        %4613 = vmatpush1.msra.mxu0 0.0
        %4614 = vmatprep.subr.mxu0 0.0
        %4615 = vmatpush1.msra.mxu0 0.0
        %4616 = vmatprep.mubr.f32.mxu0 0.0
        %4617 = vmatmul.mubr.f32.gmra.mrb[0].mxu0 %v4538
        %v4618 = vpop.f32.mrb[0].mxu0
        %v4619 = vadd.f32 0.0, %v4618
        %v4620 = vpop.f32.mrb[0].mxu0
        %4621 = vmatprep.mubr.f32.mxu0 0.0
        %4622 = vmatmul.mubr.f32.gmra.mrb[0].mxu0 %v4541
        %v4623 = vpop.f32.mrb[0].mxu0
        %v4624 = vadd.f32 0.0, %v4623
        %v4625 = vpop.f32.mrb[0].mxu0
        %4626 = vmatprep.mubr.f32.mxu0 0.0
        %4627 = vmatmul.mubr.f32.gmra.mrb[0].mxu0 %v4544
        %v4628 = vpop.f32.mrb[0].mxu0
        %v4629 = vadd.f32 0.0, %v4628
        %v4630 = vpop.f32.mrb[0].mxu0
        %4631 = vmatprep.mubr.f32.mxu0 0.0
        %4632 = vmatmul.mubr.f32.gmra.mrb[0].mxu0 %v4547
        %v4633 = vpop.f32.mrb[0].mxu0
        %v4634 = vadd.f32 0.0, %v4633
        %v4635 = vpop.f32.mrb[0].mxu0
        %4636 = vdwg.mxu0
        %v4637 = vadd.f32 %v4507, %v4619
        %v4638 = vadd.f32 %v4512, %v4624
        %v4639 = vadd.f32 %v4517, %v4629
        %v4640 = vadd.f32 %v4522, %v4634
        %v4641 = vld [vmem:[#allocation2 + $0x60] sm:$0xff]
        %v4642 = vld [vmem:[#allocation2 + $0x68] sm:$0xff]
        %v4643 = vld [vmem:[#allocation2 + $0x70] sm:$0xff]
        %v4644 = vld [vmem:[#allocation2 + $0x78] sm:$0xff]
        %s4645 = scalar_lea.vmem %s57, 168
        %v4646 = vld [vmem:[%s4645] sm:$0xff]
        %v4647 = vld [vmem:[%s4645 + $0x8] sm:$0xff]
        %v4648 = vld [vmem:[%s4645 + $0x10] sm:$0xff]
        %v4649 = vld [vmem:[%s4645 + $0x18] sm:$0xff]
        %v4650 = vld [vmem:[%s4645 + $0x20] sm:$0xff]
        %v4651 = vld [vmem:[%s4645 + $0x28] sm:$0xff]
        %v4652 = vld [vmem:[%s4645 + $0x30] sm:$0x1]
        %v4654 = vsel %vm4264, %v4641, 0
        %v4657 = vsel %vm4264, %v4642, 0
        %v4660 = vsel %vm4264, %v4643, 0
        %v4663 = vsel %vm4264, %v4644, 0
        %v4666 = vsel %vm4336, %v4652, 0
        %4668 = vmatprep.subr.mxu0 0.0
        %4669 = vmatpush1.msra.mxu0 %v4646
        %4670 = vmatprep.subr.mxu0 0.0
        %4671 = vmatpush1.msra.mxu0 %v4647
        %4672 = vmatprep.subr.mxu0 0.0
        %4673 = vmatpush1.msra.mxu0 %v4648
        %4674 = vmatprep.subr.mxu0 0.0
        %4675 = vmatpush1.msra.mxu0 %v4649
        %4676 = vmatprep.subr.mxu0 0.0
        %4677 = vmatpush1.msra.mxu0 %v4650
        %4678 = vmatprep.subr.mxu0 0.0
        %4679 = vmatpush1.msra.mxu0 %v4651
        %4680 = vmatprep.subr.mxu0 0.0
        %4681 = vmatpush1.msra.mxu0 %v4666
        %4682 = vmatprep.subr.mxu0 0.0
        %4683 = vmatpush1.msra.mxu0 0.0
        %4684 = vmatprep.subr.mxu0 0.0
        %4685 = vmatpush1.msra.mxu0 0.0
        %4686 = vmatprep.subr.mxu0 0.0
        %4687 = vmatpush1.msra.mxu0 0.0
        %4688 = vmatprep.subr.mxu0 0.0
        %4689 = vmatpush1.msra.mxu0 0.0
        %4690 = vmatprep.subr.mxu0 0.0
        %4691 = vmatpush1.msra.mxu0 0.0
        %4692 = vmatprep.subr.mxu0 0.0
        %4693 = vmatpush1.msra.mxu0 0.0
        %4694 = vmatprep.subr.mxu0 0.0
        %4695 = vmatpush1.msra.mxu0 0.0
        %4696 = vmatprep.subr.mxu0 0.0
        %4697 = vmatpush1.msra.mxu0 0.0
        %4698 = vmatprep.subr.mxu0 0.0
        %4699 = vmatpush1.msra.mxu0 0.0
        %4700 = vmatprep.subr.mxu0 0.0
        %4701 = vmatpush1.msra.mxu0 0.0
        %4702 = vmatprep.subr.mxu0 0.0
        %4703 = vmatpush1.msra.mxu0 0.0
        %4704 = vmatprep.subr.mxu0 0.0
        %4705 = vmatpush1.msra.mxu0 0.0
        %4706 = vmatprep.subr.mxu0 0.0
        %4707 = vmatpush1.msra.mxu0 0.0
        %4708 = vmatprep.subr.mxu0 0.0
        %4709 = vmatpush1.msra.mxu0 0.0
        %4710 = vmatprep.subr.mxu0 0.0
        %4711 = vmatpush1.msra.mxu0 0.0
        %4712 = vmatprep.subr.mxu0 0.0
        %4713 = vmatpush1.msra.mxu0 0.0
        %4714 = vmatprep.subr.mxu0 0.0
        %4715 = vmatpush1.msra.mxu0 0.0
        %4716 = vmatprep.subr.mxu0 0.0
        %4717 = vmatpush1.msra.mxu0 0.0
        %4718 = vmatprep.subr.mxu0 0.0
        %4719 = vmatpush1.msra.mxu0 0.0
        %4720 = vmatprep.subr.mxu0 0.0
        %4721 = vmatpush1.msra.mxu0 0.0
        %4722 = vmatprep.subr.mxu0 0.0
        %4723 = vmatpush1.msra.mxu0 0.0
        %4724 = vmatprep.subr.mxu0 0.0
        %4725 = vmatpush1.msra.mxu0 0.0
        %4726 = vmatprep.subr.mxu0 0.0
        %4727 = vmatpush1.msra.mxu0 0.0
        %4728 = vmatprep.subr.mxu0 0.0
        %4729 = vmatpush1.msra.mxu0 0.0
        %4730 = vmatprep.subr.mxu0 0.0
        %4731 = vmatpush1.msra.mxu0 0.0
        %4732 = vmatprep.mubr.f32.mxu0 0.0
        %4733 = vmatmul.mubr.f32.gmra.mrb[0].mxu0 %v4654
        %v4734 = vpop.f32.mrb[0].mxu0
        %v4735 = vadd.f32 0.0, %v4734
        %v4736 = vpop.f32.mrb[0].mxu0
        %4737 = vmatprep.mubr.f32.mxu0 0.0
        %4738 = vmatmul.mubr.f32.gmra.mrb[0].mxu0 %v4657
        %v4739 = vpop.f32.mrb[0].mxu0
        %v4740 = vadd.f32 0.0, %v4739
        %v4741 = vpop.f32.mrb[0].mxu0
        %4742 = vmatprep.mubr.f32.mxu0 0.0
        %4743 = vmatmul.mubr.f32.gmra.mrb[0].mxu0 %v4660
        %v4744 = vpop.f32.mrb[0].mxu0
        %v4745 = vadd.f32 0.0, %v4744
        %v4746 = vpop.f32.mrb[0].mxu0
        %4747 = vmatprep.mubr.f32.mxu0 0.0
        %4748 = vmatmul.mubr.f32.gmra.mrb[0].mxu0 %v4663
        %v4749 = vpop.f32.mrb[0].mxu0
        %v4750 = vadd.f32 0.0, %v4749
        %v4751 = vpop.f32.mrb[0].mxu0
        %4752 = vdwg.mxu0
        %v4753 = vadd.f32 %v4637, %v4735
        %v4754 = vadd.f32 %v4638, %v4740
        %v4755 = vadd.f32 %v4639, %v4745
        %v4756 = vadd.f32 %v4640, %v4750
        %v4757 = vld [vmem:[#allocation2 + $0x80] sm:$0xff]
        %v4758 = vld [vmem:[#allocation2 + $0x88] sm:$0xff]
        %v4759 = vld [vmem:[#allocation2 + $0x90] sm:$0xff]
        %v4760 = vld [vmem:[#allocation2 + $0x98] sm:$0xff]
        %s4761 = scalar_lea.vmem %s57, 224
        %v4762 = vld [vmem:[%s4761] sm:$0xff]
        %v4763 = vld [vmem:[%s4761 + $0x8] sm:$0xff]
        %v4764 = vld [vmem:[%s4761 + $0x10] sm:$0xff]
        %v4765 = vld [vmem:[%s4761 + $0x18] sm:$0xff]
        %v4766 = vld [vmem:[%s4761 + $0x20] sm:$0xff]
        %v4767 = vld [vmem:[%s4761 + $0x28] sm:$0xff]
        %v4768 = vld [vmem:[%s4761 + $0x30] sm:$0x1]
        %v4770 = vsel %vm4264, %v4757, 0
        %v4773 = vsel %vm4264, %v4758, 0
        %v4776 = vsel %vm4264, %v4759, 0
        %v4779 = vsel %vm4264, %v4760, 0
        %v4782 = vsel %vm4336, %v4768, 0
        %4784 = vmatprep.subr.mxu0 0.0
        %4785 = vmatpush1.msra.mxu0 %v4762
        %4786 = vmatprep.subr.mxu0 0.0
        %4787 = vmatpush1.msra.mxu0 %v4763
        %4788 = vmatprep.subr.mxu0 0.0
        %4789 = vmatpush1.msra.mxu0 %v4764
        %4790 = vmatprep.subr.mxu0 0.0
        %4791 = vmatpush1.msra.mxu0 %v4765
        %4792 = vmatprep.subr.mxu0 0.0
        %4793 = vmatpush1.msra.mxu0 %v4766
        %4794 = vmatprep.subr.mxu0 0.0
        %4795 = vmatpush1.msra.mxu0 %v4767
        %4796 = vmatprep.subr.mxu0 0.0
        %4797 = vmatpush1.msra.mxu0 %v4782
        %4798 = vmatprep.subr.mxu0 0.0
        %4799 = vmatpush1.msra.mxu0 0.0
        %4800 = vmatprep.subr.mxu0 0.0
        %4801 = vmatpush1.msra.mxu0 0.0
        %4802 = vmatprep.subr.mxu0 0.0
        %4803 = vmatpush1.msra.mxu0 0.0
        %4804 = vmatprep.subr.mxu0 0.0
        %4805 = vmatpush1.msra.mxu0 0.0
        %4806 = vmatprep.subr.mxu0 0.0
        %4807 = vmatpush1.msra.mxu0 0.0
        %4808 = vmatprep.subr.mxu0 0.0
        %4809 = vmatpush1.msra.mxu0 0.0
        %4810 = vmatprep.subr.mxu0 0.0
        %4811 = vmatpush1.msra.mxu0 0.0
        %4812 = vmatprep.subr.mxu0 0.0
        %4813 = vmatpush1.msra.mxu0 0.0
        %4814 = vmatprep.subr.mxu0 0.0
        %4815 = vmatpush1.msra.mxu0 0.0
        %4816 = vmatprep.subr.mxu0 0.0
        %4817 = vmatpush1.msra.mxu0 0.0
        %4818 = vmatprep.subr.mxu0 0.0
        %4819 = vmatpush1.msra.mxu0 0.0
        %4820 = vmatprep.subr.mxu0 0.0
        %4821 = vmatpush1.msra.mxu0 0.0
        %4822 = vmatprep.subr.mxu0 0.0
        %4823 = vmatpush1.msra.mxu0 0.0
        %4824 = vmatprep.subr.mxu0 0.0
        %4825 = vmatpush1.msra.mxu0 0.0
        %4826 = vmatprep.subr.mxu0 0.0
        %4827 = vmatpush1.msra.mxu0 0.0
        %4828 = vmatprep.subr.mxu0 0.0
        %4829 = vmatpush1.msra.mxu0 0.0
        %4830 = vmatprep.subr.mxu0 0.0
        %4831 = vmatpush1.msra.mxu0 0.0
        %4832 = vmatprep.subr.mxu0 0.0
        %4833 = vmatpush1.msra.mxu0 0.0
        %4834 = vmatprep.subr.mxu0 0.0
        %4835 = vmatpush1.msra.mxu0 0.0
        %4836 = vmatprep.subr.mxu0 0.0
        %4837 = vmatpush1.msra.mxu0 0.0
        %4838 = vmatprep.subr.mxu0 0.0
        %4839 = vmatpush1.msra.mxu0 0.0
        %4840 = vmatprep.subr.mxu0 0.0
        %4841 = vmatpush1.msra.mxu0 0.0
        %4842 = vmatprep.subr.mxu0 0.0
        %4843 = vmatpush1.msra.mxu0 0.0
        %4844 = vmatprep.subr.mxu0 0.0
        %4845 = vmatpush1.msra.mxu0 0.0
        %4846 = vmatprep.subr.mxu0 0.0
        %4847 = vmatpush1.msra.mxu0 0.0
        %4848 = vmatprep.mubr.f32.mxu0 0.0
        %4849 = vmatmul.mubr.f32.gmra.mrb[0].mxu0 %v4770
        %v4850 = vpop.f32.mrb[0].mxu0
        %v4851 = vadd.f32 0.0, %v4850
        %v4852 = vpop.f32.mrb[0].mxu0
        %4853 = vmatprep.mubr.f32.mxu0 0.0
        %4854 = vmatmul.mubr.f32.gmra.mrb[0].mxu0 %v4773
        %v4855 = vpop.f32.mrb[0].mxu0
        %v4856 = vadd.f32 0.0, %v4855
        %v4857 = vpop.f32.mrb[0].mxu0
        %4858 = vmatprep.mubr.f32.mxu0 0.0
        %4859 = vmatmul.mubr.f32.gmra.mrb[0].mxu0 %v4776
        %v4860 = vpop.f32.mrb[0].mxu0
        %v4861 = vadd.f32 0.0, %v4860
        %v4862 = vpop.f32.mrb[0].mxu0
        %4863 = vmatprep.mubr.f32.mxu0 0.0
        %4864 = vmatmul.mubr.f32.gmra.mrb[0].mxu0 %v4779
        %v4865 = vpop.f32.mrb[0].mxu0
        %v4866 = vadd.f32 0.0, %v4865
        %v4867 = vpop.f32.mrb[0].mxu0
        %4868 = vdwg.mxu0
        %v4869 = vadd.f32 %v4753, %v4851
        %v4870 = vadd.f32 %v4754, %v4856
        %v4871 = vadd.f32 %v4755, %v4861
        %v4872 = vadd.f32 %v4756, %v4866
        %v4873 = vld [vmem:[#allocation2 + $0xa0] sm:$0xff]
        %v4874 = vld [vmem:[#allocation2 + $0xa8] sm:$0xff]
        %v4875 = vld [vmem:[#allocation2 + $0xb0] sm:$0xff]
        %v4876 = vld [vmem:[#allocation2 + $0xb8] sm:$0xff]
        %s4877 = scalar_lea.vmem %s57, 280
        %v4878 = vld [vmem:[%s4877] sm:$0xff]
        %v4879 = vld [vmem:[%s4877 + $0x8] sm:$0xff]
        %v4880 = vld [vmem:[%s4877 + $0x10] sm:$0xff]
        %v4881 = vld [vmem:[%s4877 + $0x18] sm:$0xff]
        %v4882 = vld [vmem:[%s4877 + $0x20] sm:$0xff]
        %v4883 = vld [vmem:[%s4877 + $0x28] sm:$0xff]
        %v4884 = vld [vmem:[%s4877 + $0x30] sm:$0x1]
        %v4886 = vsel %vm4264, %v4873, 0
        %v4889 = vsel %vm4264, %v4874, 0
        %v4892 = vsel %vm4264, %v4875, 0
        %v4895 = vsel %vm4264, %v4876, 0
        %v4898 = vsel %vm4336, %v4884, 0
        %4900 = vmatprep.subr.mxu0 0.0
        %4901 = vmatpush1.msra.mxu0 %v4878
        %4902 = vmatprep.subr.mxu0 0.0
        %4903 = vmatpush1.msra.mxu0 %v4879
        %4904 = vmatprep.subr.mxu0 0.0
        %4905 = vmatpush1.msra.mxu0 %v4880
        %4906 = vmatprep.subr.mxu0 0.0
        %4907 = vmatpush1.msra.mxu0 %v4881
        %4908 = vmatprep.subr.mxu0 0.0
        %4909 = vmatpush1.msra.mxu0 %v4882
        %4910 = vmatprep.subr.mxu0 0.0
        %4911 = vmatpush1.msra.mxu0 %v4883
        %4912 = vmatprep.subr.mxu0 0.0
        %4913 = vmatpush1.msra.mxu0 %v4898
        %4914 = vmatprep.subr.mxu0 0.0
        %4915 = vmatpush1.msra.mxu0 0.0
        %4916 = vmatprep.subr.mxu0 0.0
        %4917 = vmatpush1.msra.mxu0 0.0
        %4918 = vmatprep.subr.mxu0 0.0
        %4919 = vmatpush1.msra.mxu0 0.0
        %4920 = vmatprep.subr.mxu0 0.0
        %4921 = vmatpush1.msra.mxu0 0.0
        %4922 = vmatprep.subr.mxu0 0.0
        %4923 = vmatpush1.msra.mxu0 0.0
        %4924 = vmatprep.subr.mxu0 0.0
        %4925 = vmatpush1.msra.mxu0 0.0
        %4926 = vmatprep.subr.mxu0 0.0
        %4927 = vmatpush1.msra.mxu0 0.0
        %4928 = vmatprep.subr.mxu0 0.0
        %4929 = vmatpush1.msra.mxu0 0.0
        %4930 = vmatprep.subr.mxu0 0.0
        %4931 = vmatpush1.msra.mxu0 0.0
        %4932 = vmatprep.subr.mxu0 0.0
        %4933 = vmatpush1.msra.mxu0 0.0
        %4934 = vmatprep.subr.mxu0 0.0
        %4935 = vmatpush1.msra.mxu0 0.0
        %4936 = vmatprep.subr.mxu0 0.0
        %4937 = vmatpush1.msra.mxu0 0.0
        %4938 = vmatprep.subr.mxu0 0.0
        %4939 = vmatpush1.msra.mxu0 0.0
        %4940 = vmatprep.subr.mxu0 0.0
        %4941 = vmatpush1.msra.mxu0 0.0
        %4942 = vmatprep.subr.mxu0 0.0
        %4943 = vmatpush1.msra.mxu0 0.0
        %4944 = vmatprep.subr.mxu0 0.0
        %4945 = vmatpush1.msra.mxu0 0.0
        %4946 = vmatprep.subr.mxu0 0.0
        %4947 = vmatpush1.msra.mxu0 0.0
        %4948 = vmatprep.subr.mxu0 0.0
        %4949 = vmatpush1.msra.mxu0 0.0
        %4950 = vmatprep.subr.mxu0 0.0
        %4951 = vmatpush1.msra.mxu0 0.0
        %4952 = vmatprep.subr.mxu0 0.0
        %4953 = vmatpush1.msra.mxu0 0.0
        %4954 = vmatprep.subr.mxu0 0.0
        %4955 = vmatpush1.msra.mxu0 0.0
        %4956 = vmatprep.subr.mxu0 0.0
        %4957 = vmatpush1.msra.mxu0 0.0
        %4958 = vmatprep.subr.mxu0 0.0
        %4959 = vmatpush1.msra.mxu0 0.0
        %4960 = vmatprep.subr.mxu0 0.0
        %4961 = vmatpush1.msra.mxu0 0.0
        %4962 = vmatprep.subr.mxu0 0.0
        %4963 = vmatpush1.msra.mxu0 0.0
        %4964 = vmatprep.mubr.f32.mxu0 0.0
        %4965 = vmatmul.mubr.f32.gmra.mrb[0].mxu0 %v4886
        %v4966 = vpop.f32.mrb[0].mxu0
        %v4967 = vadd.f32 0.0, %v4966
        %v4968 = vpop.f32.mrb[0].mxu0
        %4969 = vmatprep.mubr.f32.mxu0 0.0
        %4970 = vmatmul.mubr.f32.gmra.mrb[0].mxu0 %v4889
        %v4971 = vpop.f32.mrb[0].mxu0
        %v4972 = vadd.f32 0.0, %v4971
        %v4973 = vpop.f32.mrb[0].mxu0
        %4974 = vmatprep.mubr.f32.mxu0 0.0
        %4975 = vmatmul.mubr.f32.gmra.mrb[0].mxu0 %v4892
        %v4976 = vpop.f32.mrb[0].mxu0
        %v4977 = vadd.f32 0.0, %v4976
        %v4978 = vpop.f32.mrb[0].mxu0
        %4979 = vmatprep.mubr.f32.mxu0 0.0
        %4980 = vmatmul.mubr.f32.gmra.mrb[0].mxu0 %v4895
        %v4981 = vpop.f32.mrb[0].mxu0
        %v4982 = vadd.f32 0.0, %v4981
        %v4983 = vpop.f32.mrb[0].mxu0
        %4984 = vdwg.mxu0
        %v4985 = vadd.f32 %v4869, %v4967
        %v4986 = vadd.f32 %v4870, %v4972
        %v4987 = vadd.f32 %v4871, %v4977
        %v4988 = vadd.f32 %v4872, %v4982
        %v4989 = vld [vmem:[#allocation2 + $0xc0] sm:$0xff]
        %v4990 = vld [vmem:[#allocation2 + $0xc8] sm:$0xff]
        %v4991 = vld [vmem:[#allocation2 + $0xd0] sm:$0xff]
        %v4992 = vld [vmem:[#allocation2 + $0xd8] sm:$0xff]
        %s4993 = scalar_lea.vmem %s57, 336
        %v4994 = vld [vmem:[%s4993] sm:$0xff]
        %v4995 = vld [vmem:[%s4993 + $0x8] sm:$0xff]
        %v4996 = vld [vmem:[%s4993 + $0x10] sm:$0xff]
        %v4997 = vld [vmem:[%s4993 + $0x18] sm:$0xff]
        %v4998 = vld [vmem:[%s4993 + $0x20] sm:$0xff]
        %v4999 = vld [vmem:[%s4993 + $0x28] sm:$0xff]
        %v5000 = vld [vmem:[%s4993 + $0x30] sm:$0x1]
        %v5002 = vsel %vm4264, %v4989, 0
        %v5005 = vsel %vm4264, %v4990, 0
        %v5008 = vsel %vm4264, %v4991, 0
        %v5011 = vsel %vm4264, %v4992, 0
        %v5014 = vsel %vm4336, %v5000, 0
        %5016 = vmatprep.subr.mxu0 0.0
        %5017 = vmatpush1.msra.mxu0 %v4994
        %5018 = vmatprep.subr.mxu0 0.0
        %5019 = vmatpush1.msra.mxu0 %v4995
        %5020 = vmatprep.subr.mxu0 0.0
        %5021 = vmatpush1.msra.mxu0 %v4996
        %5022 = vmatprep.subr.mxu0 0.0
        %5023 = vmatpush1.msra.mxu0 %v4997
        %5024 = vmatprep.subr.mxu0 0.0
        %5025 = vmatpush1.msra.mxu0 %v4998
        %5026 = vmatprep.subr.mxu0 0.0
        %5027 = vmatpush1.msra.mxu0 %v4999
        %5028 = vmatprep.subr.mxu0 0.0
        %5029 = vmatpush1.msra.mxu0 %v5014
        %5030 = vmatprep.subr.mxu0 0.0
        %5031 = vmatpush1.msra.mxu0 0.0
        %5032 = vmatprep.subr.mxu0 0.0
        %5033 = vmatpush1.msra.mxu0 0.0
        %5034 = vmatprep.subr.mxu0 0.0
        %5035 = vmatpush1.msra.mxu0 0.0
        %5036 = vmatprep.subr.mxu0 0.0
        %5037 = vmatpush1.msra.mxu0 0.0
        %5038 = vmatprep.subr.mxu0 0.0
        %5039 = vmatpush1.msra.mxu0 0.0
        %5040 = vmatprep.subr.mxu0 0.0
        %5041 = vmatpush1.msra.mxu0 0.0
        %5042 = vmatprep.subr.mxu0 0.0
        %5043 = vmatpush1.msra.mxu0 0.0
        %5044 = vmatprep.subr.mxu0 0.0
        %5045 = vmatpush1.msra.mxu0 0.0
        %5046 = vmatprep.subr.mxu0 0.0
        %5047 = vmatpush1.msra.mxu0 0.0
        %5048 = vmatprep.subr.mxu0 0.0
        %5049 = vmatpush1.msra.mxu0 0.0
        %5050 = vmatprep.subr.mxu0 0.0
        %5051 = vmatpush1.msra.mxu0 0.0
        %5052 = vmatprep.subr.mxu0 0.0
        %5053 = vmatpush1.msra.mxu0 0.0
        %5054 = vmatprep.subr.mxu0 0.0
        %5055 = vmatpush1.msra.mxu0 0.0
        %5056 = vmatprep.subr.mxu0 0.0
        %5057 = vmatpush1.msra.mxu0 0.0
        %5058 = vmatprep.subr.mxu0 0.0
        %5059 = vmatpush1.msra.mxu0 0.0
        %5060 = vmatprep.subr.mxu0 0.0
        %5061 = vmatpush1.msra.mxu0 0.0
        %5062 = vmatprep.subr.mxu0 0.0
        %5063 = vmatpush1.msra.mxu0 0.0
        %5064 = vmatprep.subr.mxu0 0.0
        %5065 = vmatpush1.msra.mxu0 0.0
        %5066 = vmatprep.subr.mxu0 0.0
        %5067 = vmatpush1.msra.mxu0 0.0
        %5068 = vmatprep.subr.mxu0 0.0
        %5069 = vmatpush1.msra.mxu0 0.0
        %5070 = vmatprep.subr.mxu0 0.0
        %5071 = vmatpush1.msra.mxu0 0.0
        %5072 = vmatprep.subr.mxu0 0.0
        %5073 = vmatpush1.msra.mxu0 0.0
        %5074 = vmatprep.subr.mxu0 0.0
        %5075 = vmatpush1.msra.mxu0 0.0
        %5076 = vmatprep.subr.mxu0 0.0
        %5077 = vmatpush1.msra.mxu0 0.0
        %5078 = vmatprep.subr.mxu0 0.0
        %5079 = vmatpush1.msra.mxu0 0.0
        %5080 = vmatprep.mubr.f32.mxu0 0.0
        %5081 = vmatmul.mubr.f32.gmra.mrb[0].mxu0 %v5002
        %v5082 = vpop.f32.mrb[0].mxu0
        %v5083 = vadd.f32 0.0, %v5082
        %v5084 = vpop.f32.mrb[0].mxu0
        %5085 = vmatprep.mubr.f32.mxu0 0.0
        %5086 = vmatmul.mubr.f32.gmra.mrb[0].mxu0 %v5005
        %v5087 = vpop.f32.mrb[0].mxu0
        %v5088 = vadd.f32 0.0, %v5087
        %v5089 = vpop.f32.mrb[0].mxu0
        %5090 = vmatprep.mubr.f32.mxu0 0.0
        %5091 = vmatmul.mubr.f32.gmra.mrb[0].mxu0 %v5008
        %v5092 = vpop.f32.mrb[0].mxu0
        %v5093 = vadd.f32 0.0, %v5092
        %v5094 = vpop.f32.mrb[0].mxu0
        %5095 = vmatprep.mubr.f32.mxu0 0.0
        %5096 = vmatmul.mubr.f32.gmra.mrb[0].mxu0 %v5011
        %v5097 = vpop.f32.mrb[0].mxu0
        %v5098 = vadd.f32 0.0, %v5097
        %v5099 = vpop.f32.mrb[0].mxu0
        %5100 = vdwg.mxu0
        %v5101 = vadd.f32 %v4985, %v5083
        %v5102 = vadd.f32 %v4986, %v5088
        %v5103 = vadd.f32 %v4987, %v5093
        %v5104 = vadd.f32 %v4988, %v5098
        %v5105 = vld [vmem:[#allocation2 + $0xe0] sm:$0xff]
        %v5106 = vld [vmem:[#allocation2 + $0xe8] sm:$0xff]
        %v5107 = vld [vmem:[#allocation2 + $0xf0] sm:$0xff]
        %v5108 = vld [vmem:[#allocation2 + $0xf8] sm:$0xff]
        %s5109 = scalar_lea.vmem %s57, 392
        %v5110 = vld [vmem:[%s5109] sm:$0xff]
        %v5111 = vld [vmem:[%s5109 + $0x8] sm:$0xff]
        %v5112 = vld [vmem:[%s5109 + $0x10] sm:$0xff]
        %v5113 = vld [vmem:[%s5109 + $0x18] sm:$0xff]
        %v5114 = vld [vmem:[%s5109 + $0x20] sm:$0xff]
        %v5115 = vld [vmem:[%s5109 + $0x28] sm:$0xff]
        %v5116 = vld [vmem:[%s5109 + $0x30] sm:$0x1]
        %v5118 = vsel %vm4264, %v5105, 0
        %v5121 = vsel %vm4264, %v5106, 0
        %v5124 = vsel %vm4264, %v5107, 0
        %v5127 = vsel %vm4264, %v5108, 0
        %v5130 = vsel %vm4336, %v5116, 0
        %5132 = vmatprep.subr.mxu0 0.0
        %5133 = vmatpush1.msra.mxu0 %v5110
        %5134 = vmatprep.subr.mxu0 0.0
        %5135 = vmatpush1.msra.mxu0 %v5111
        %5136 = vmatprep.subr.mxu0 0.0
        %5137 = vmatpush1.msra.mxu0 %v5112
        %5138 = vmatprep.subr.mxu0 0.0
        %5139 = vmatpush1.msra.mxu0 %v5113
        %5140 = vmatprep.subr.mxu0 0.0
        %5141 = vmatpush1.msra.mxu0 %v5114
        %5142 = vmatprep.subr.mxu0 0.0
        %5143 = vmatpush1.msra.mxu0 %v5115
        %5144 = vmatprep.subr.mxu0 0.0
        %5145 = vmatpush1.msra.mxu0 %v5130
        %5146 = vmatprep.subr.mxu0 0.0
        %5147 = vmatpush1.msra.mxu0 0.0
        %5148 = vmatprep.subr.mxu0 0.0
        %5149 = vmatpush1.msra.mxu0 0.0
        %5150 = vmatprep.subr.mxu0 0.0
        %5151 = vmatpush1.msra.mxu0 0.0
        %5152 = vmatprep.subr.mxu0 0.0
        %5153 = vmatpush1.msra.mxu0 0.0
        %5154 = vmatprep.subr.mxu0 0.0
        %5155 = vmatpush1.msra.mxu0 0.0
        %5156 = vmatprep.subr.mxu0 0.0
        %5157 = vmatpush1.msra.mxu0 0.0
        %5158 = vmatprep.subr.mxu0 0.0
        %5159 = vmatpush1.msra.mxu0 0.0
        %5160 = vmatprep.subr.mxu0 0.0
        %5161 = vmatpush1.msra.mxu0 0.0
        %5162 = vmatprep.subr.mxu0 0.0
        %5163 = vmatpush1.msra.mxu0 0.0
        %5164 = vmatprep.subr.mxu0 0.0
        %5165 = vmatpush1.msra.mxu0 0.0
        %5166 = vmatprep.subr.mxu0 0.0
        %5167 = vmatpush1.msra.mxu0 0.0
        %5168 = vmatprep.subr.mxu0 0.0
        %5169 = vmatpush1.msra.mxu0 0.0
        %5170 = vmatprep.subr.mxu0 0.0
        %5171 = vmatpush1.msra.mxu0 0.0
        %5172 = vmatprep.subr.mxu0 0.0
        %5173 = vmatpush1.msra.mxu0 0.0
        %5174 = vmatprep.subr.mxu0 0.0
        %5175 = vmatpush1.msra.mxu0 0.0
        %5176 = vmatprep.subr.mxu0 0.0
        %5177 = vmatpush1.msra.mxu0 0.0
        %5178 = vmatprep.subr.mxu0 0.0
        %5179 = vmatpush1.msra.mxu0 0.0
        %5180 = vmatprep.subr.mxu0 0.0
        %5181 = vmatpush1.msra.mxu0 0.0
        %5182 = vmatprep.subr.mxu0 0.0
        %5183 = vmatpush1.msra.mxu0 0.0
        %5184 = vmatprep.subr.mxu0 0.0
        %5185 = vmatpush1.msra.mxu0 0.0
        %5186 = vmatprep.subr.mxu0 0.0
        %5187 = vmatpush1.msra.mxu0 0.0
        %5188 = vmatprep.subr.mxu0 0.0
        %5189 = vmatpush1.msra.mxu0 0.0
        %5190 = vmatprep.subr.mxu0 0.0
        %5191 = vmatpush1.msra.mxu0 0.0
        %5192 = vmatprep.subr.mxu0 0.0
        %5193 = vmatpush1.msra.mxu0 0.0
        %5194 = vmatprep.subr.mxu0 0.0
        %5195 = vmatpush1.msra.mxu0 0.0
        %5196 = vmatprep.mubr.f32.mxu0 0.0
        %5197 = vmatmul.mubr.f32.gmra.mrb[0].mxu0 %v5118
        %v5198 = vpop.f32.mrb[0].mxu0
        %v5199 = vadd.f32 0.0, %v5198
        %v5200 = vpop.f32.mrb[0].mxu0
        %5201 = vmatprep.mubr.f32.mxu0 0.0
        %5202 = vmatmul.mubr.f32.gmra.mrb[0].mxu0 %v5121
        %v5203 = vpop.f32.mrb[0].mxu0
        %v5204 = vadd.f32 0.0, %v5203
        %v5205 = vpop.f32.mrb[0].mxu0
        %5206 = vmatprep.mubr.f32.mxu0 0.0
        %5207 = vmatmul.mubr.f32.gmra.mrb[0].mxu0 %v5124
        %v5208 = vpop.f32.mrb[0].mxu0
        %v5209 = vadd.f32 0.0, %v5208
        %v5210 = vpop.f32.mrb[0].mxu0
        %5211 = vmatprep.mubr.f32.mxu0 0.0
        %5212 = vmatmul.mubr.f32.gmra.mrb[0].mxu0 %v5127
        %v5213 = vpop.f32.mrb[0].mxu0
        %v5214 = vadd.f32 0.0, %v5213
        %v5215 = vpop.f32.mrb[0].mxu0
        %5216 = vdwg.mxu0
        %v5217 = vadd.f32 %v5101, %v5199
        %v5218 = vadd.f32 %v5102, %v5204
        %v5219 = vadd.f32 %v5103, %v5209
        %v5220 = vadd.f32 %v5104, %v5214
        %v5221 = vld [vmem:[#allocation2 + $0x100] sm:$0xff]
        %v5222 = vld [vmem:[#allocation2 + $0x108] sm:$0xff]
        %v5223 = vld [vmem:[#allocation2 + $0x110] sm:$0xff]
        %v5224 = vld [vmem:[#allocation2 + $0x118] sm:$0xff]
        %s5225 = scalar_lea.vmem %s57, 448
        %v5226 = vld [vmem:[%s5225] sm:$0xff]
        %v5227 = vld [vmem:[%s5225 + $0x8] sm:$0xff]
        %v5228 = vld [vmem:[%s5225 + $0x10] sm:$0xff]
        %v5229 = vld [vmem:[%s5225 + $0x18] sm:$0xff]
        %v5230 = vld [vmem:[%s5225 + $0x20] sm:$0xff]
        %v5231 = vld [vmem:[%s5225 + $0x28] sm:$0xff]
        %v5232 = vld [vmem:[%s5225 + $0x30] sm:$0x1]
        %v5234 = vsel %vm4264, %v5221, 0
        %v5237 = vsel %vm4264, %v5222, 0
        %v5240 = vsel %vm4264, %v5223, 0
        %v5243 = vsel %vm4264, %v5224, 0
        %v5246 = vsel %vm4336, %v5232, 0
        %5248 = vmatprep.subr.mxu0 0.0
        %5249 = vmatpush1.msra.mxu0 %v5226
        %5250 = vmatprep.subr.mxu0 0.0
        %5251 = vmatpush1.msra.mxu0 %v5227
        %5252 = vmatprep.subr.mxu0 0.0
        %5253 = vmatpush1.msra.mxu0 %v5228
        %5254 = vmatprep.subr.mxu0 0.0
        %5255 = vmatpush1.msra.mxu0 %v5229
        %5256 = vmatprep.subr.mxu0 0.0
        %5257 = vmatpush1.msra.mxu0 %v5230
        %5258 = vmatprep.subr.mxu0 0.0
        %5259 = vmatpush1.msra.mxu0 %v5231
        %5260 = vmatprep.subr.mxu0 0.0
        %5261 = vmatpush1.msra.mxu0 %v5246
        %5262 = vmatprep.subr.mxu0 0.0
        %5263 = vmatpush1.msra.mxu0 0.0
        %5264 = vmatprep.subr.mxu0 0.0
        %5265 = vmatpush1.msra.mxu0 0.0
        %5266 = vmatprep.subr.mxu0 0.0
        %5267 = vmatpush1.msra.mxu0 0.0
        %5268 = vmatprep.subr.mxu0 0.0
        %5269 = vmatpush1.msra.mxu0 0.0
        %5270 = vmatprep.subr.mxu0 0.0
        %5271 = vmatpush1.msra.mxu0 0.0
        %5272 = vmatprep.subr.mxu0 0.0
        %5273 = vmatpush1.msra.mxu0 0.0
        %5274 = vmatprep.subr.mxu0 0.0
        %5275 = vmatpush1.msra.mxu0 0.0
        %5276 = vmatprep.subr.mxu0 0.0
        %5277 = vmatpush1.msra.mxu0 0.0
        %5278 = vmatprep.subr.mxu0 0.0
        %5279 = vmatpush1.msra.mxu0 0.0
        %5280 = vmatprep.subr.mxu0 0.0
        %5281 = vmatpush1.msra.mxu0 0.0
        %5282 = vmatprep.subr.mxu0 0.0
        %5283 = vmatpush1.msra.mxu0 0.0
        %5284 = vmatprep.subr.mxu0 0.0
        %5285 = vmatpush1.msra.mxu0 0.0
        %5286 = vmatprep.subr.mxu0 0.0
        %5287 = vmatpush1.msra.mxu0 0.0
        %5288 = vmatprep.subr.mxu0 0.0
        %5289 = vmatpush1.msra.mxu0 0.0
        %5290 = vmatprep.subr.mxu0 0.0
        %5291 = vmatpush1.msra.mxu0 0.0
        %5292 = vmatprep.subr.mxu0 0.0
        %5293 = vmatpush1.msra.mxu0 0.0
        %5294 = vmatprep.subr.mxu0 0.0
        %5295 = vmatpush1.msra.mxu0 0.0
        %5296 = vmatprep.subr.mxu0 0.0
        %5297 = vmatpush1.msra.mxu0 0.0
        %5298 = vmatprep.subr.mxu0 0.0
        %5299 = vmatpush1.msra.mxu0 0.0
        %5300 = vmatprep.subr.mxu0 0.0
        %5301 = vmatpush1.msra.mxu0 0.0
        %5302 = vmatprep.subr.mxu0 0.0
        %5303 = vmatpush1.msra.mxu0 0.0
        %5304 = vmatprep.subr.mxu0 0.0
        %5305 = vmatpush1.msra.mxu0 0.0
        %5306 = vmatprep.subr.mxu0 0.0
        %5307 = vmatpush1.msra.mxu0 0.0
        %5308 = vmatprep.subr.mxu0 0.0
        %5309 = vmatpush1.msra.mxu0 0.0
        %5310 = vmatprep.subr.mxu0 0.0
        %5311 = vmatpush1.msra.mxu0 0.0
        %5312 = vmatprep.mubr.f32.mxu0 0.0
        %5313 = vmatmul.mubr.f32.gmra.mrb[0].mxu0 %v5234
        %v5314 = vpop.f32.mrb[0].mxu0
        %v5315 = vadd.f32 0.0, %v5314
        %v5316 = vpop.f32.mrb[0].mxu0
        %5317 = vmatprep.mubr.f32.mxu0 0.0
        %5318 = vmatmul.mubr.f32.gmra.mrb[0].mxu0 %v5237
        %v5319 = vpop.f32.mrb[0].mxu0
        %v5320 = vadd.f32 0.0, %v5319
        %v5321 = vpop.f32.mrb[0].mxu0
        %5322 = vmatprep.mubr.f32.mxu0 0.0
        %5323 = vmatmul.mubr.f32.gmra.mrb[0].mxu0 %v5240
        %v5324 = vpop.f32.mrb[0].mxu0
        %v5325 = vadd.f32 0.0, %v5324
        %v5326 = vpop.f32.mrb[0].mxu0
        %5327 = vmatprep.mubr.f32.mxu0 0.0
        %5328 = vmatmul.mubr.f32.gmra.mrb[0].mxu0 %v5243
        %v5329 = vpop.f32.mrb[0].mxu0
        %v5330 = vadd.f32 0.0, %v5329
        %v5331 = vpop.f32.mrb[0].mxu0
        %5332 = vdwg.mxu0
        %v5333 = vadd.f32 %v5217, %v5315
        %v5334 = vadd.f32 %v5218, %v5320
        %v5335 = vadd.f32 %v5219, %v5325
        %v5336 = vadd.f32 %v5220, %v5330
        %v5337 = vld [vmem:[%s1 + $0x360] sm:$0xff]
        %v5338 = vld [vmem:[%s1 + $0x368] sm:$0xff]
        %v5339 = vld [vmem:[%s1 + $0x370] sm:$0xff]
        %v5340 = vld [vmem:[%s1 + $0x378] sm:$0xff]
        %v5341 = vld [vmem:[%s926] sm:$0xff]
        %v5342 = vld [vmem:[%s926 + $0x8] sm:$0xff]
        %v5343 = vld [vmem:[%s926 + $0x10] sm:$0xff]
        %v5344 = vld [vmem:[%s926 + $0x18] sm:$0xff]
        %v5345 = vsel %vm4264, %v5337, 0.0
        %5346 = vadd.xlane.f32.xlu0 %v5345
        %v5347 = vpop.xlane.xlu0 %5346
        %v5348 = vsel %vm4264, %v5338, 0.0
        %5349 = vadd.xlane.f32.xlu0 %v5348
        %v5350 = vpop.xlane.xlu0 %5349
        %v5351 = vsel %vm4264, %v5339, 0.0
        %5352 = vadd.xlane.f32.xlu0 %v5351
        %v5353 = vpop.xlane.xlu0 %5352
        %v5354 = vsel %vm4264, %v5340, 0.0
        %5355 = vadd.xlane.f32.xlu0 %v5354
        %v5356 = vpop.xlane.xlu0 %5355
        %v5357 = vmul.f32 %v5347, 0.020408163
        %v5358 = vmul.f32 %v5350, 0.020408163
        %v5359 = vmul.f32 %v5353, 0.020408163
        %v5360 = vmul.f32 %v5356, 0.020408163
        %v5361 = vsub.f32 %v5337, %v5357
        %v5362 = vsub.f32 %v5338, %v5358
        %v5363 = vsub.f32 %v5339, %v5359
        %v5364 = vsub.f32 %v5340, %v5360
        %v5365 = vmul.f32 %v5361, %v5361
        %v5366 = vmul.f32 %v5362, %v5362
        %v5367 = vmul.f32 %v5363, %v5363
        %v5368 = vmul.f32 %v5364, %v5364
        %v5369 = vsel %vm4264, %v5365, 0.0
        %5370 = vadd.xlane.f32.xlu0 %v5369
        %v5371 = vpop.xlane.xlu0 %5370
        %v5372 = vsel %vm4264, %v5366, 0.0
        %5373 = vadd.xlane.f32.xlu0 %v5372
        %v5374 = vpop.xlane.xlu0 %5373
        %v5375 = vsel %vm4264, %v5367, 0.0
        %5376 = vadd.xlane.f32.xlu0 %v5375
        %v5377 = vpop.xlane.xlu0 %5376
        %v5378 = vsel %vm4264, %v5368, 0.0
        %5379 = vadd.xlane.f32.xlu0 %v5378
        %v5380 = vpop.xlane.xlu0 %5379
        %v5381 = vmul.f32 %v5371, 0.020408163
        %v5382 = vmul.f32 %v5374, 0.020408163
        %v5383 = vmul.f32 %v5377, 0.020408163
        %v5384 = vmul.f32 %v5380, 0.020408163
        %v5385 = vadd.f32 %v5381, 1e-05
        %v5386 = vadd.f32 %v5382, 1e-05
        %v5387 = vadd.f32 %v5383, 1e-05
        %v5388 = vadd.f32 %v5384, 1e-05
        %v5389 = vrsqrt.pop %v5385
        %v5390 = vrsqrt.pop %v5386
        %v5391 = vrsqrt.pop %v5387
        %v5392 = vrsqrt.pop %v5388
        %v5393 = vmul.f32 %v5389, %v5341
        %v5394 = vmul.f32 %v5390, %v5342
        %v5395 = vmul.f32 %v5391, %v5343
        %v5396 = vmul.f32 %v5392, %v5344
        %5398 = vset.pattern.permute.xlu0 0
        %5399 = vperm.xlu0 %5398, %v5393
        %v5400 = vpop.permute.xlu0 %5399
        %5403 = vset.pattern.permute.xlu0 0
        %5404 = vperm.xlu0 %5403, %v5394
        %v5405 = vpop.permute.xlu0 %5404
        %5408 = vset.pattern.permute.xlu0 0
        %5409 = vperm.xlu0 %5408, %v5395
        %v5410 = vpop.permute.xlu0 %5409
        %5413 = vset.pattern.permute.xlu0 0
        %5414 = vperm.xlu0 %5413, %v5396
        %v5415 = vpop.permute.xlu0 %5414
        %v5417 = vmul.f32 %v5361, %v5400
        %v5418 = vmul.f32 %v5362, %v5405
        %v5419 = vmul.f32 %v5363, %v5410
        %v5420 = vmul.f32 %v5364, %v5415
        %5422 = vset.pattern.permute.xlu0 1
        %5423 = vperm.xlu0 %5422, %v5341
        %v5424 = vpop.permute.xlu0 %5423
        %5427 = vset.pattern.permute.xlu0 1
        %5428 = vperm.xlu0 %5427, %v5342
        %v5429 = vpop.permute.xlu0 %5428
        %5432 = vset.pattern.permute.xlu0 1
        %5433 = vperm.xlu0 %5432, %v5343
        %v5434 = vpop.permute.xlu0 %5433
        %5437 = vset.pattern.permute.xlu0 1
        %5438 = vperm.xlu0 %5437, %v5344
        %v5439 = vpop.permute.xlu0 %5438
        %v5441 = vadd.f32 %v5417, %v5424
        %v5442 = vadd.f32 %v5418, %v5429
        %v5443 = vadd.f32 %v5419, %v5434
        %v5444 = vadd.f32 %v5420, %v5439
        %5445 = vst.msk [vmem:[%s932] sm:$0xff] %vm4264, %v5441
        %5446 = vst.msk [vmem:[%s932 + $0x8] sm:$0xff] %vm4264, %v5442
        %5447 = vst.msk [vmem:[%s932 + $0x10] sm:$0xff] %vm4264, %v5443
        %5448 = vst.msk [vmem:[%s932 + $0x18] sm:$0xff] %vm4264, %v5444
        %v5449 = vld [vmem:[%s3] sm:$0xff]
        %v5450 = vld [vmem:[%s3 + $0x8] sm:$0xff]
        %v5451 = vld [vmem:[%s3 + $0x10] sm:$0xff]
        %v5452 = vld [vmem:[%s3 + $0x18] sm:$0xff]
        %v5453 = vld [vmem:[%s926 + $0x20] sm:$0xff]
        %v5454 = vld [vmem:[%s926 + $0x28] sm:$0xff]
        %v5455 = vld [vmem:[%s926 + $0x30] sm:$0xff]
        %v5456 = vld [vmem:[%s926 + $0x38] sm:$0xff]
        %v5457 = vsel %vm4264, %v5449, 0.0
        %5458 = vadd.xlane.f32.xlu0 %v5457
        %v5459 = vpop.xlane.xlu0 %5458
        %v5460 = vsel %vm4264, %v5450, 0.0
        %5461 = vadd.xlane.f32.xlu0 %v5460
        %v5462 = vpop.xlane.xlu0 %5461
        %v5463 = vsel %vm4264, %v5451, 0.0
        %5464 = vadd.xlane.f32.xlu0 %v5463
        %v5465 = vpop.xlane.xlu0 %5464
        %v5466 = vsel %vm4264, %v5452, 0.0
        %5467 = vadd.xlane.f32.xlu0 %v5466
        %v5468 = vpop.xlane.xlu0 %5467
        %v5469 = vmul.f32 %v5459, 0.020408163
        %v5470 = vmul.f32 %v5462, 0.020408163
        %v5471 = vmul.f32 %v5465, 0.020408163
        %v5472 = vmul.f32 %v5468, 0.020408163
        %v5473 = vsub.f32 %v5449, %v5469
        %v5474 = vsub.f32 %v5450, %v5470
        %v5475 = vsub.f32 %v5451, %v5471
        %v5476 = vsub.f32 %v5452, %v5472
        %v5477 = vmul.f32 %v5473, %v5473
        %v5478 = vmul.f32 %v5474, %v5474
        %v5479 = vmul.f32 %v5475, %v5475
        %v5480 = vmul.f32 %v5476, %v5476
        %v5481 = vsel %vm4264, %v5477, 0.0
        %5482 = vadd.xlane.f32.xlu0 %v5481
        %v5483 = vpop.xlane.xlu0 %5482
        %v5484 = vsel %vm4264, %v5478, 0.0
        %5485 = vadd.xlane.f32.xlu0 %v5484
        %v5486 = vpop.xlane.xlu0 %5485
        %v5487 = vsel %vm4264, %v5479, 0.0
        %5488 = vadd.xlane.f32.xlu0 %v5487
        %v5489 = vpop.xlane.xlu0 %5488
        %v5490 = vsel %vm4264, %v5480, 0.0
        %5491 = vadd.xlane.f32.xlu0 %v5490
        %v5492 = vpop.xlane.xlu0 %5491
        %v5493 = vmul.f32 %v5483, 0.020408163
        %v5494 = vmul.f32 %v5486, 0.020408163
        %v5495 = vmul.f32 %v5489, 0.020408163
        %v5496 = vmul.f32 %v5492, 0.020408163
        %v5497 = vadd.f32 %v5493, 1e-05
        %v5498 = vadd.f32 %v5494, 1e-05
        %v5499 = vadd.f32 %v5495, 1e-05
        %v5500 = vadd.f32 %v5496, 1e-05
        %v5501 = vrsqrt.pop %v5497
        %v5502 = vrsqrt.pop %v5498
        %v5503 = vrsqrt.pop %v5499
        %v5504 = vrsqrt.pop %v5500
        %v5505 = vmul.f32 %v5501, %v5453
        %v5506 = vmul.f32 %v5502, %v5454
        %v5507 = vmul.f32 %v5503, %v5455
        %v5508 = vmul.f32 %v5504, %v5456
        %5510 = vset.pattern.permute.xlu0 0
        %5511 = vperm.xlu0 %5510, %v5505
        %v5512 = vpop.permute.xlu0 %5511
        %5515 = vset.pattern.permute.xlu0 0
        %5516 = vperm.xlu0 %5515, %v5506
        %v5517 = vpop.permute.xlu0 %5516
        %5520 = vset.pattern.permute.xlu0 0
        %5521 = vperm.xlu0 %5520, %v5507
        %v5522 = vpop.permute.xlu0 %5521
        %5525 = vset.pattern.permute.xlu0 0
        %5526 = vperm.xlu0 %5525, %v5508
        %v5527 = vpop.permute.xlu0 %5526
        %v5529 = vmul.f32 %v5473, %v5512
        %v5530 = vmul.f32 %v5474, %v5517
        %v5531 = vmul.f32 %v5475, %v5522
        %v5532 = vmul.f32 %v5476, %v5527
        %5534 = vset.pattern.permute.xlu0 1
        %5535 = vperm.xlu0 %5534, %v5453
        %v5536 = vpop.permute.xlu0 %5535
        %5539 = vset.pattern.permute.xlu0 1
        %5540 = vperm.xlu0 %5539, %v5454
        %v5541 = vpop.permute.xlu0 %5540
        %5544 = vset.pattern.permute.xlu0 1
        %5545 = vperm.xlu0 %5544, %v5455
        %v5546 = vpop.permute.xlu0 %5545
        %5549 = vset.pattern.permute.xlu0 1
        %5550 = vperm.xlu0 %5549, %v5456
        %v5551 = vpop.permute.xlu0 %5550
        %v5553 = vadd.f32 %v5529, %v5536
        %v5554 = vadd.f32 %v5530, %v5541
        %v5555 = vadd.f32 %v5531, %v5546
        %v5556 = vadd.f32 %v5532, %v5551
        %5557 = vst.msk [vmem:[%s932 + $0x20] sm:$0xff] %vm4264, %v5553
        %5558 = vst.msk [vmem:[%s932 + $0x28] sm:$0xff] %vm4264, %v5554
        %5559 = vst.msk [vmem:[%s932 + $0x30] sm:$0xff] %vm4264, %v5555
        %5560 = vst.msk [vmem:[%s932 + $0x38] sm:$0xff] %vm4264, %v5556
        %v5561 = vld [vmem:[%s5] sm:$0xff]
        %v5562 = vld [vmem:[%s5 + $0x8] sm:$0xff]
        %v5563 = vld [vmem:[%s5 + $0x10] sm:$0xff]
        %v5564 = vld [vmem:[%s5 + $0x18] sm:$0xff]
        %v5565 = vld [vmem:[%s926 + $0x40] sm:$0xff]
        %v5566 = vld [vmem:[%s926 + $0x48] sm:$0xff]
        %v5567 = vld [vmem:[%s926 + $0x50] sm:$0xff]
        %v5568 = vld [vmem:[%s926 + $0x58] sm:$0xff]
        %v5569 = vsel %vm4264, %v5561, 0.0
        %5570 = vadd.xlane.f32.xlu0 %v5569
        %v5571 = vpop.xlane.xlu0 %5570
        %v5572 = vsel %vm4264, %v5562, 0.0
        %5573 = vadd.xlane.f32.xlu0 %v5572
        %v5574 = vpop.xlane.xlu0 %5573
        %v5575 = vsel %vm4264, %v5563, 0.0
        %5576 = vadd.xlane.f32.xlu0 %v5575
        %v5577 = vpop.xlane.xlu0 %5576
        %v5578 = vsel %vm4264, %v5564, 0.0
        %5579 = vadd.xlane.f32.xlu0 %v5578
        %v5580 = vpop.xlane.xlu0 %5579
        %v5581 = vmul.f32 %v5571, 0.020408163
        %v5582 = vmul.f32 %v5574, 0.020408163
        %v5583 = vmul.f32 %v5577, 0.020408163
        %v5584 = vmul.f32 %v5580, 0.020408163
        %v5585 = vsub.f32 %v5561, %v5581
        %v5586 = vsub.f32 %v5562, %v5582
        %v5587 = vsub.f32 %v5563, %v5583
        %v5588 = vsub.f32 %v5564, %v5584
        %v5589 = vmul.f32 %v5585, %v5585
        %v5590 = vmul.f32 %v5586, %v5586
        %v5591 = vmul.f32 %v5587, %v5587
        %v5592 = vmul.f32 %v5588, %v5588
        %v5593 = vsel %vm4264, %v5589, 0.0
        %5594 = vadd.xlane.f32.xlu0 %v5593
        %v5595 = vpop.xlane.xlu0 %5594
        %v5596 = vsel %vm4264, %v5590, 0.0
        %5597 = vadd.xlane.f32.xlu0 %v5596
        %v5598 = vpop.xlane.xlu0 %5597
        %v5599 = vsel %vm4264, %v5591, 0.0
        %5600 = vadd.xlane.f32.xlu0 %v5599
        %v5601 = vpop.xlane.xlu0 %5600
        %v5602 = vsel %vm4264, %v5592, 0.0
        %5603 = vadd.xlane.f32.xlu0 %v5602
        %v5604 = vpop.xlane.xlu0 %5603
        %v5605 = vmul.f32 %v5595, 0.020408163
        %v5606 = vmul.f32 %v5598, 0.020408163
        %v5607 = vmul.f32 %v5601, 0.020408163
        %v5608 = vmul.f32 %v5604, 0.020408163
        %v5609 = vadd.f32 %v5605, 1e-05
        %v5610 = vadd.f32 %v5606, 1e-05
        %v5611 = vadd.f32 %v5607, 1e-05
        %v5612 = vadd.f32 %v5608, 1e-05
        %v5613 = vrsqrt.pop %v5609
        %v5614 = vrsqrt.pop %v5610
        %v5615 = vrsqrt.pop %v5611
        %v5616 = vrsqrt.pop %v5612
        %v5617 = vmul.f32 %v5613, %v5565
        %v5618 = vmul.f32 %v5614, %v5566
        %v5619 = vmul.f32 %v5615, %v5567
        %v5620 = vmul.f32 %v5616, %v5568
        %5622 = vset.pattern.permute.xlu0 0
        %5623 = vperm.xlu0 %5622, %v5617
        %v5624 = vpop.permute.xlu0 %5623
        %5627 = vset.pattern.permute.xlu0 0
        %5628 = vperm.xlu0 %5627, %v5618
        %v5629 = vpop.permute.xlu0 %5628
        %5632 = vset.pattern.permute.xlu0 0
        %5633 = vperm.xlu0 %5632, %v5619
        %v5634 = vpop.permute.xlu0 %5633
        %5637 = vset.pattern.permute.xlu0 0
        %5638 = vperm.xlu0 %5637, %v5620
        %v5639 = vpop.permute.xlu0 %5638
        %v5641 = vmul.f32 %v5585, %v5624
        %v5642 = vmul.f32 %v5586, %v5629
        %v5643 = vmul.f32 %v5587, %v5634
        %v5644 = vmul.f32 %v5588, %v5639
        %5646 = vset.pattern.permute.xlu0 1
        %5647 = vperm.xlu0 %5646, %v5565
        %v5648 = vpop.permute.xlu0 %5647
        %5651 = vset.pattern.permute.xlu0 1
        %5652 = vperm.xlu0 %5651, %v5566
        %v5653 = vpop.permute.xlu0 %5652
        %5656 = vset.pattern.permute.xlu0 1
        %5657 = vperm.xlu0 %5656, %v5567
        %v5658 = vpop.permute.xlu0 %5657
        %5661 = vset.pattern.permute.xlu0 1
        %5662 = vperm.xlu0 %5661, %v5568
        %v5663 = vpop.permute.xlu0 %5662
        %v5665 = vadd.f32 %v5641, %v5648
        %v5666 = vadd.f32 %v5642, %v5653
        %v5667 = vadd.f32 %v5643, %v5658
        %v5668 = vadd.f32 %v5644, %v5663
        %5669 = vst.msk [vmem:[%s932 + $0x40] sm:$0xff] %vm4264, %v5665
        %5670 = vst.msk [vmem:[%s932 + $0x48] sm:$0xff] %vm4264, %v5666
        %5671 = vst.msk [vmem:[%s932 + $0x50] sm:$0xff] %vm4264, %v5667
        %5672 = vst.msk [vmem:[%s932 + $0x58] sm:$0xff] %vm4264, %v5668
        %v5673 = vld [vmem:[%s7] sm:$0xff]
        %v5674 = vld [vmem:[%s7 + $0x8] sm:$0xff]
        %v5675 = vld [vmem:[%s7 + $0x10] sm:$0xff]
        %v5676 = vld [vmem:[%s7 + $0x18] sm:$0xff]
        %v5677 = vld [vmem:[%s926 + $0x60] sm:$0xff]
        %v5678 = vld [vmem:[%s926 + $0x68] sm:$0xff]
        %v5679 = vld [vmem:[%s926 + $0x70] sm:$0xff]
        %v5680 = vld [vmem:[%s926 + $0x78] sm:$0xff]
        %v5681 = vsel %vm4264, %v5673, 0.0
        %5682 = vadd.xlane.f32.xlu0 %v5681
        %v5683 = vpop.xlane.xlu0 %5682
        %v5684 = vsel %vm4264, %v5674, 0.0
        %5685 = vadd.xlane.f32.xlu0 %v5684
        %v5686 = vpop.xlane.xlu0 %5685
        %v5687 = vsel %vm4264, %v5675, 0.0
        %5688 = vadd.xlane.f32.xlu0 %v5687
        %v5689 = vpop.xlane.xlu0 %5688
        %v5690 = vsel %vm4264, %v5676, 0.0
        %5691 = vadd.xlane.f32.xlu0 %v5690
        %v5692 = vpop.xlane.xlu0 %5691
        %v5693 = vmul.f32 %v5683, 0.020408163
        %v5694 = vmul.f32 %v5686, 0.020408163
        %v5695 = vmul.f32 %v5689, 0.020408163
        %v5696 = vmul.f32 %v5692, 0.020408163
        %v5697 = vsub.f32 %v5673, %v5693
        %v5698 = vsub.f32 %v5674, %v5694
        %v5699 = vsub.f32 %v5675, %v5695
        %v5700 = vsub.f32 %v5676, %v5696
        %v5701 = vmul.f32 %v5697, %v5697
        %v5702 = vmul.f32 %v5698, %v5698
        %v5703 = vmul.f32 %v5699, %v5699
        %v5704 = vmul.f32 %v5700, %v5700
        %v5705 = vsel %vm4264, %v5701, 0.0
        %5706 = vadd.xlane.f32.xlu0 %v5705
        %v5707 = vpop.xlane.xlu0 %5706
        %v5708 = vsel %vm4264, %v5702, 0.0
        %5709 = vadd.xlane.f32.xlu0 %v5708
        %v5710 = vpop.xlane.xlu0 %5709
        %v5711 = vsel %vm4264, %v5703, 0.0
        %5712 = vadd.xlane.f32.xlu0 %v5711
        %v5713 = vpop.xlane.xlu0 %5712
        %v5714 = vsel %vm4264, %v5704, 0.0
        %5715 = vadd.xlane.f32.xlu0 %v5714
        %v5716 = vpop.xlane.xlu0 %5715
        %v5717 = vmul.f32 %v5707, 0.020408163
        %v5718 = vmul.f32 %v5710, 0.020408163
        %v5719 = vmul.f32 %v5713, 0.020408163
        %v5720 = vmul.f32 %v5716, 0.020408163
        %v5721 = vadd.f32 %v5717, 1e-05
        %v5722 = vadd.f32 %v5718, 1e-05
        %v5723 = vadd.f32 %v5719, 1e-05
        %v5724 = vadd.f32 %v5720, 1e-05
        %v5725 = vrsqrt.pop %v5721
        %v5726 = vrsqrt.pop %v5722
        %v5727 = vrsqrt.pop %v5723
        %v5728 = vrsqrt.pop %v5724
        %v5729 = vmul.f32 %v5725, %v5677
        %v5730 = vmul.f32 %v5726, %v5678
        %v5731 = vmul.f32 %v5727, %v5679
        %v5732 = vmul.f32 %v5728, %v5680
        %5734 = vset.pattern.permute.xlu0 0
        %5735 = vperm.xlu0 %5734, %v5729
        %v5736 = vpop.permute.xlu0 %5735
        %5739 = vset.pattern.permute.xlu0 0
        %5740 = vperm.xlu0 %5739, %v5730
        %v5741 = vpop.permute.xlu0 %5740
        %5744 = vset.pattern.permute.xlu0 0
        %5745 = vperm.xlu0 %5744, %v5731
        %v5746 = vpop.permute.xlu0 %5745
        %5749 = vset.pattern.permute.xlu0 0
        %5750 = vperm.xlu0 %5749, %v5732
        %v5751 = vpop.permute.xlu0 %5750
        %v5753 = vmul.f32 %v5697, %v5736
        %v5754 = vmul.f32 %v5698, %v5741
        %v5755 = vmul.f32 %v5699, %v5746
        %v5756 = vmul.f32 %v5700, %v5751
        %5758 = vset.pattern.permute.xlu0 1
        %5759 = vperm.xlu0 %5758, %v5677
        %v5760 = vpop.permute.xlu0 %5759
        %5763 = vset.pattern.permute.xlu0 1
        %5764 = vperm.xlu0 %5763, %v5678
        %v5765 = vpop.permute.xlu0 %5764
        %5768 = vset.pattern.permute.xlu0 1
        %5769 = vperm.xlu0 %5768, %v5679
        %v5770 = vpop.permute.xlu0 %5769
        %5773 = vset.pattern.permute.xlu0 1
        %5774 = vperm.xlu0 %5773, %v5680
        %v5775 = vpop.permute.xlu0 %5774
        %v5777 = vadd.f32 %v5753, %v5760
        %v5778 = vadd.f32 %v5754, %v5765
        %v5779 = vadd.f32 %v5755, %v5770
        %v5780 = vadd.f32 %v5756, %v5775
        %5781 = vst.msk [vmem:[%s932 + $0x60] sm:$0xff] %vm4264, %v5777
        %5782 = vst.msk [vmem:[%s932 + $0x68] sm:$0xff] %vm4264, %v5778
        %5783 = vst.msk [vmem:[%s932 + $0x70] sm:$0xff] %vm4264, %v5779
        %5784 = vst.msk [vmem:[%s932 + $0x78] sm:$0xff] %vm4264, %v5780
        %v5785 = vld [vmem:[%s9] sm:$0xff]
        %v5786 = vld [vmem:[%s9 + $0x8] sm:$0xff]
        %v5787 = vld [vmem:[%s9 + $0x10] sm:$0xff]
        %v5788 = vld [vmem:[%s9 + $0x18] sm:$0xff]
        %v5789 = vld [vmem:[%s926 + $0x80] sm:$0xff]
        %v5790 = vld [vmem:[%s926 + $0x88] sm:$0xff]
        %v5791 = vld [vmem:[%s926 + $0x90] sm:$0xff]
        %v5792 = vld [vmem:[%s926 + $0x98] sm:$0xff]
        %v5793 = vsel %vm4264, %v5785, 0.0
        %5794 = vadd.xlane.f32.xlu0 %v5793
        %v5795 = vpop.xlane.xlu0 %5794
        %v5796 = vsel %vm4264, %v5786, 0.0
        %5797 = vadd.xlane.f32.xlu0 %v5796
        %v5798 = vpop.xlane.xlu0 %5797
        %v5799 = vsel %vm4264, %v5787, 0.0
        %5800 = vadd.xlane.f32.xlu0 %v5799
        %v5801 = vpop.xlane.xlu0 %5800
        %v5802 = vsel %vm4264, %v5788, 0.0
        %5803 = vadd.xlane.f32.xlu0 %v5802
        %v5804 = vpop.xlane.xlu0 %5803
        %v5805 = vmul.f32 %v5795, 0.020408163
        %v5806 = vmul.f32 %v5798, 0.020408163
        %v5807 = vmul.f32 %v5801, 0.020408163
        %v5808 = vmul.f32 %v5804, 0.020408163
        %v5809 = vsub.f32 %v5785, %v5805
        %v5810 = vsub.f32 %v5786, %v5806
        %v5811 = vsub.f32 %v5787, %v5807
        %v5812 = vsub.f32 %v5788, %v5808
        %v5813 = vmul.f32 %v5809, %v5809
        %v5814 = vmul.f32 %v5810, %v5810
        %v5815 = vmul.f32 %v5811, %v5811
        %v5816 = vmul.f32 %v5812, %v5812
        %v5817 = vsel %vm4264, %v5813, 0.0
        %5818 = vadd.xlane.f32.xlu0 %v5817
        %v5819 = vpop.xlane.xlu0 %5818
        %v5820 = vsel %vm4264, %v5814, 0.0
        %5821 = vadd.xlane.f32.xlu0 %v5820
        %v5822 = vpop.xlane.xlu0 %5821
        %v5823 = vsel %vm4264, %v5815, 0.0
        %5824 = vadd.xlane.f32.xlu0 %v5823
        %v5825 = vpop.xlane.xlu0 %5824
        %v5826 = vsel %vm4264, %v5816, 0.0
        %5827 = vadd.xlane.f32.xlu0 %v5826
        %v5828 = vpop.xlane.xlu0 %5827
        %v5829 = vmul.f32 %v5819, 0.020408163
        %v5830 = vmul.f32 %v5822, 0.020408163
        %v5831 = vmul.f32 %v5825, 0.020408163
        %v5832 = vmul.f32 %v5828, 0.020408163
        %v5833 = vadd.f32 %v5829, 1e-05
        %v5834 = vadd.f32 %v5830, 1e-05
        %v5835 = vadd.f32 %v5831, 1e-05
        %v5836 = vadd.f32 %v5832, 1e-05
        %v5837 = vrsqrt.pop %v5833
        %v5838 = vrsqrt.pop %v5834
        %v5839 = vrsqrt.pop %v5835
        %v5840 = vrsqrt.pop %v5836
        %v5841 = vmul.f32 %v5837, %v5789
        %v5842 = vmul.f32 %v5838, %v5790
        %v5843 = vmul.f32 %v5839, %v5791
        %v5844 = vmul.f32 %v5840, %v5792
        %5846 = vset.pattern.permute.xlu0 0
        %5847 = vperm.xlu0 %5846, %v5841
        %v5848 = vpop.permute.xlu0 %5847
        %5851 = vset.pattern.permute.xlu0 0
        %5852 = vperm.xlu0 %5851, %v5842
        %v5853 = vpop.permute.xlu0 %5852
        %5856 = vset.pattern.permute.xlu0 0
        %5857 = vperm.xlu0 %5856, %v5843
        %v5858 = vpop.permute.xlu0 %5857
        %5861 = vset.pattern.permute.xlu0 0
        %5862 = vperm.xlu0 %5861, %v5844
        %v5863 = vpop.permute.xlu0 %5862
        %v5865 = vmul.f32 %v5809, %v5848
        %v5866 = vmul.f32 %v5810, %v5853
        %v5867 = vmul.f32 %v5811, %v5858
        %v5868 = vmul.f32 %v5812, %v5863
        %5870 = vset.pattern.permute.xlu0 1
        %5871 = vperm.xlu0 %5870, %v5789
        %v5872 = vpop.permute.xlu0 %5871
        %5875 = vset.pattern.permute.xlu0 1
        %5876 = vperm.xlu0 %5875, %v5790
        %v5877 = vpop.permute.xlu0 %5876
        %5880 = vset.pattern.permute.xlu0 1
        %5881 = vperm.xlu0 %5880, %v5791
        %v5882 = vpop.permute.xlu0 %5881
        %5885 = vset.pattern.permute.xlu0 1
        %5886 = vperm.xlu0 %5885, %v5792
        %v5887 = vpop.permute.xlu0 %5886
        %v5889 = vadd.f32 %v5865, %v5872
        %v5890 = vadd.f32 %v5866, %v5877
        %v5891 = vadd.f32 %v5867, %v5882
        %v5892 = vadd.f32 %v5868, %v5887
        %5893 = vst.msk [vmem:[%s932 + $0x80] sm:$0xff] %vm4264, %v5889
        %5894 = vst.msk [vmem:[%s932 + $0x88] sm:$0xff] %vm4264, %v5890
        %5895 = vst.msk [vmem:[%s932 + $0x90] sm:$0xff] %vm4264, %v5891
        %5896 = vst.msk [vmem:[%s932 + $0x98] sm:$0xff] %vm4264, %v5892
        %v5897 = vld [vmem:[%s11] sm:$0xff]
        %v5898 = vld [vmem:[%s11 + $0x8] sm:$0xff]
        %v5899 = vld [vmem:[%s11 + $0x10] sm:$0xff]
        %v5900 = vld [vmem:[%s11 + $0x18] sm:$0xff]
        %v5901 = vld [vmem:[%s926 + $0xa0] sm:$0xff]
        %v5902 = vld [vmem:[%s926 + $0xa8] sm:$0xff]
        %v5903 = vld [vmem:[%s926 + $0xb0] sm:$0xff]
        %v5904 = vld [vmem:[%s926 + $0xb8] sm:$0xff]
        %v5905 = vsel %vm4264, %v5897, 0.0
        %5906 = vadd.xlane.f32.xlu0 %v5905
        %v5907 = vpop.xlane.xlu0 %5906
        %v5908 = vsel %vm4264, %v5898, 0.0
        %5909 = vadd.xlane.f32.xlu0 %v5908
        %v5910 = vpop.xlane.xlu0 %5909
        %v5911 = vsel %vm4264, %v5899, 0.0
        %5912 = vadd.xlane.f32.xlu0 %v5911
        %v5913 = vpop.xlane.xlu0 %5912
        %v5914 = vsel %vm4264, %v5900, 0.0
        %5915 = vadd.xlane.f32.xlu0 %v5914
        %v5916 = vpop.xlane.xlu0 %5915
        %v5917 = vmul.f32 %v5907, 0.020408163
        %v5918 = vmul.f32 %v5910, 0.020408163
        %v5919 = vmul.f32 %v5913, 0.020408163
        %v5920 = vmul.f32 %v5916, 0.020408163
        %v5921 = vsub.f32 %v5897, %v5917
        %v5922 = vsub.f32 %v5898, %v5918
        %v5923 = vsub.f32 %v5899, %v5919
        %v5924 = vsub.f32 %v5900, %v5920
        %v5925 = vmul.f32 %v5921, %v5921
        %v5926 = vmul.f32 %v5922, %v5922
        %v5927 = vmul.f32 %v5923, %v5923
        %v5928 = vmul.f32 %v5924, %v5924
        %v5929 = vsel %vm4264, %v5925, 0.0
        %5930 = vadd.xlane.f32.xlu0 %v5929
        %v5931 = vpop.xlane.xlu0 %5930
        %v5932 = vsel %vm4264, %v5926, 0.0
        %5933 = vadd.xlane.f32.xlu0 %v5932
        %v5934 = vpop.xlane.xlu0 %5933
        %v5935 = vsel %vm4264, %v5927, 0.0
        %5936 = vadd.xlane.f32.xlu0 %v5935
        %v5937 = vpop.xlane.xlu0 %5936
        %v5938 = vsel %vm4264, %v5928, 0.0
        %5939 = vadd.xlane.f32.xlu0 %v5938
        %v5940 = vpop.xlane.xlu0 %5939
        %v5941 = vmul.f32 %v5931, 0.020408163
        %v5942 = vmul.f32 %v5934, 0.020408163
        %v5943 = vmul.f32 %v5937, 0.020408163
        %v5944 = vmul.f32 %v5940, 0.020408163
        %v5945 = vadd.f32 %v5941, 1e-05
        %v5946 = vadd.f32 %v5942, 1e-05
        %v5947 = vadd.f32 %v5943, 1e-05
        %v5948 = vadd.f32 %v5944, 1e-05
        %v5949 = vrsqrt.pop %v5945
        %v5950 = vrsqrt.pop %v5946
        %v5951 = vrsqrt.pop %v5947
        %v5952 = vrsqrt.pop %v5948
        %v5953 = vmul.f32 %v5949, %v5901
        %v5954 = vmul.f32 %v5950, %v5902
        %v5955 = vmul.f32 %v5951, %v5903
        %v5956 = vmul.f32 %v5952, %v5904
        %5958 = vset.pattern.permute.xlu0 0
        %5959 = vperm.xlu0 %5958, %v5953
        %v5960 = vpop.permute.xlu0 %5959
        %5963 = vset.pattern.permute.xlu0 0
        %5964 = vperm.xlu0 %5963, %v5954
        %v5965 = vpop.permute.xlu0 %5964
        %5968 = vset.pattern.permute.xlu0 0
        %5969 = vperm.xlu0 %5968, %v5955
        %v5970 = vpop.permute.xlu0 %5969
        %5973 = vset.pattern.permute.xlu0 0
        %5974 = vperm.xlu0 %5973, %v5956
        %v5975 = vpop.permute.xlu0 %5974
        %v5977 = vmul.f32 %v5921, %v5960
        %v5978 = vmul.f32 %v5922, %v5965
        %v5979 = vmul.f32 %v5923, %v5970
        %v5980 = vmul.f32 %v5924, %v5975
        %5982 = vset.pattern.permute.xlu0 1
        %5983 = vperm.xlu0 %5982, %v5901
        %v5984 = vpop.permute.xlu0 %5983
        %5987 = vset.pattern.permute.xlu0 1
        %5988 = vperm.xlu0 %5987, %v5902
        %v5989 = vpop.permute.xlu0 %5988
        %5992 = vset.pattern.permute.xlu0 1
        %5993 = vperm.xlu0 %5992, %v5903
        %v5994 = vpop.permute.xlu0 %5993
        %5997 = vset.pattern.permute.xlu0 1
        %5998 = vperm.xlu0 %5997, %v5904
        %v5999 = vpop.permute.xlu0 %5998
        %v6001 = vadd.f32 %v5977, %v5984
        %v6002 = vadd.f32 %v5978, %v5989
        %v6003 = vadd.f32 %v5979, %v5994
        %v6004 = vadd.f32 %v5980, %v5999
        %6005 = vst.msk [vmem:[%s932 + $0xa0] sm:$0xff] %vm4264, %v6001
        %6006 = vst.msk [vmem:[%s932 + $0xa8] sm:$0xff] %vm4264, %v6002
        %6007 = vst.msk [vmem:[%s932 + $0xb0] sm:$0xff] %vm4264, %v6003
        %6008 = vst.msk [vmem:[%s932 + $0xb8] sm:$0xff] %vm4264, %v6004
        %v6009 = vld [vmem:[%s13] sm:$0xff]
        %v6010 = vld [vmem:[%s13 + $0x8] sm:$0xff]
        %v6011 = vld [vmem:[%s13 + $0x10] sm:$0xff]
        %v6012 = vld [vmem:[%s13 + $0x18] sm:$0xff]
        %v6013 = vld [vmem:[%s926 + $0xc0] sm:$0xff]
        %v6014 = vld [vmem:[%s926 + $0xc8] sm:$0xff]
        %v6015 = vld [vmem:[%s926 + $0xd0] sm:$0xff]
        %v6016 = vld [vmem:[%s926 + $0xd8] sm:$0xff]
        %v6017 = vsel %vm4264, %v6009, 0.0
        %6018 = vadd.xlane.f32.xlu0 %v6017
        %v6019 = vpop.xlane.xlu0 %6018
        %v6020 = vsel %vm4264, %v6010, 0.0
        %6021 = vadd.xlane.f32.xlu0 %v6020
        %v6022 = vpop.xlane.xlu0 %6021
        %v6023 = vsel %vm4264, %v6011, 0.0
        %6024 = vadd.xlane.f32.xlu0 %v6023
        %v6025 = vpop.xlane.xlu0 %6024
        %v6026 = vsel %vm4264, %v6012, 0.0
        %6027 = vadd.xlane.f32.xlu0 %v6026
        %v6028 = vpop.xlane.xlu0 %6027
        %v6029 = vmul.f32 %v6019, 0.020408163
        %v6030 = vmul.f32 %v6022, 0.020408163
        %v6031 = vmul.f32 %v6025, 0.020408163
        %v6032 = vmul.f32 %v6028, 0.020408163
        %v6033 = vsub.f32 %v6009, %v6029
        %v6034 = vsub.f32 %v6010, %v6030
        %v6035 = vsub.f32 %v6011, %v6031
        %v6036 = vsub.f32 %v6012, %v6032
        %v6037 = vmul.f32 %v6033, %v6033
        %v6038 = vmul.f32 %v6034, %v6034
        %v6039 = vmul.f32 %v6035, %v6035
        %v6040 = vmul.f32 %v6036, %v6036
        %v6041 = vsel %vm4264, %v6037, 0.0
        %6042 = vadd.xlane.f32.xlu0 %v6041
        %v6043 = vpop.xlane.xlu0 %6042
        %v6044 = vsel %vm4264, %v6038, 0.0
        %6045 = vadd.xlane.f32.xlu0 %v6044
        %v6046 = vpop.xlane.xlu0 %6045
        %v6047 = vsel %vm4264, %v6039, 0.0
        %6048 = vadd.xlane.f32.xlu0 %v6047
        %v6049 = vpop.xlane.xlu0 %6048
        %v6050 = vsel %vm4264, %v6040, 0.0
        %6051 = vadd.xlane.f32.xlu0 %v6050
        %v6052 = vpop.xlane.xlu0 %6051
        %v6053 = vmul.f32 %v6043, 0.020408163
        %v6054 = vmul.f32 %v6046, 0.020408163
        %v6055 = vmul.f32 %v6049, 0.020408163
        %v6056 = vmul.f32 %v6052, 0.020408163
        %v6057 = vadd.f32 %v6053, 1e-05
        %v6058 = vadd.f32 %v6054, 1e-05
        %v6059 = vadd.f32 %v6055, 1e-05
        %v6060 = vadd.f32 %v6056, 1e-05
        %v6061 = vrsqrt.pop %v6057
        %v6062 = vrsqrt.pop %v6058
        %v6063 = vrsqrt.pop %v6059
        %v6064 = vrsqrt.pop %v6060
        %v6065 = vmul.f32 %v6061, %v6013
        %v6066 = vmul.f32 %v6062, %v6014
        %v6067 = vmul.f32 %v6063, %v6015
        %v6068 = vmul.f32 %v6064, %v6016
        %6070 = vset.pattern.permute.xlu0 0
        %6071 = vperm.xlu0 %6070, %v6065
        %v6072 = vpop.permute.xlu0 %6071
        %6075 = vset.pattern.permute.xlu0 0
        %6076 = vperm.xlu0 %6075, %v6066
        %v6077 = vpop.permute.xlu0 %6076
        %6080 = vset.pattern.permute.xlu0 0
        %6081 = vperm.xlu0 %6080, %v6067
        %v6082 = vpop.permute.xlu0 %6081
        %6085 = vset.pattern.permute.xlu0 0
        %6086 = vperm.xlu0 %6085, %v6068
        %v6087 = vpop.permute.xlu0 %6086
        %v6089 = vmul.f32 %v6033, %v6072
        %v6090 = vmul.f32 %v6034, %v6077
        %v6091 = vmul.f32 %v6035, %v6082
        %v6092 = vmul.f32 %v6036, %v6087
        %6094 = vset.pattern.permute.xlu0 1
        %6095 = vperm.xlu0 %6094, %v6013
        %v6096 = vpop.permute.xlu0 %6095
        %6099 = vset.pattern.permute.xlu0 1
        %6100 = vperm.xlu0 %6099, %v6014
        %v6101 = vpop.permute.xlu0 %6100
        %6104 = vset.pattern.permute.xlu0 1
        %6105 = vperm.xlu0 %6104, %v6015
        %v6106 = vpop.permute.xlu0 %6105
        %6109 = vset.pattern.permute.xlu0 1
        %6110 = vperm.xlu0 %6109, %v6016
        %v6111 = vpop.permute.xlu0 %6110
        %v6113 = vadd.f32 %v6089, %v6096
        %v6114 = vadd.f32 %v6090, %v6101
        %v6115 = vadd.f32 %v6091, %v6106
        %v6116 = vadd.f32 %v6092, %v6111
        %6117 = vst.msk [vmem:[%s932 + $0xc0] sm:$0xff] %vm4264, %v6113
        %6118 = vst.msk [vmem:[%s932 + $0xc8] sm:$0xff] %vm4264, %v6114
        %6119 = vst.msk [vmem:[%s932 + $0xd0] sm:$0xff] %vm4264, %v6115
        %6120 = vst.msk [vmem:[%s932 + $0xd8] sm:$0xff] %vm4264, %v6116
        %v6121 = vld [vmem:[%s15] sm:$0xff]
        %v6122 = vld [vmem:[%s15 + $0x8] sm:$0xff]
        %v6123 = vld [vmem:[%s15 + $0x10] sm:$0xff]
        %v6124 = vld [vmem:[%s15 + $0x18] sm:$0xff]
        %v6125 = vld [vmem:[%s926 + $0xe0] sm:$0xff]
        %v6126 = vld [vmem:[%s926 + $0xe8] sm:$0xff]
        %v6127 = vld [vmem:[%s926 + $0xf0] sm:$0xff]
        %v6128 = vld [vmem:[%s926 + $0xf8] sm:$0xff]
        %v6129 = vsel %vm4264, %v6121, 0.0
        %6130 = vadd.xlane.f32.xlu0 %v6129
        %v6131 = vpop.xlane.xlu0 %6130
        %v6132 = vsel %vm4264, %v6122, 0.0
        %6133 = vadd.xlane.f32.xlu0 %v6132
        %v6134 = vpop.xlane.xlu0 %6133
        %v6135 = vsel %vm4264, %v6123, 0.0
        %6136 = vadd.xlane.f32.xlu0 %v6135
        %v6137 = vpop.xlane.xlu0 %6136
        %v6138 = vsel %vm4264, %v6124, 0.0
        %6139 = vadd.xlane.f32.xlu0 %v6138
        %v6140 = vpop.xlane.xlu0 %6139
        %v6141 = vmul.f32 %v6131, 0.020408163
        %v6142 = vmul.f32 %v6134, 0.020408163
        %v6143 = vmul.f32 %v6137, 0.020408163
        %v6144 = vmul.f32 %v6140, 0.020408163
        %v6145 = vsub.f32 %v6121, %v6141
        %v6146 = vsub.f32 %v6122, %v6142
        %v6147 = vsub.f32 %v6123, %v6143
        %v6148 = vsub.f32 %v6124, %v6144
        %v6149 = vmul.f32 %v6145, %v6145
        %v6150 = vmul.f32 %v6146, %v6146
        %v6151 = vmul.f32 %v6147, %v6147
        %v6152 = vmul.f32 %v6148, %v6148
        %v6153 = vsel %vm4264, %v6149, 0.0
        %6154 = vadd.xlane.f32.xlu0 %v6153
        %v6155 = vpop.xlane.xlu0 %6154
        %v6156 = vsel %vm4264, %v6150, 0.0
        %6157 = vadd.xlane.f32.xlu0 %v6156
        %v6158 = vpop.xlane.xlu0 %6157
        %v6159 = vsel %vm4264, %v6151, 0.0
        %6160 = vadd.xlane.f32.xlu0 %v6159
        %v6161 = vpop.xlane.xlu0 %6160
        %v6162 = vsel %vm4264, %v6152, 0.0
        %6163 = vadd.xlane.f32.xlu0 %v6162
        %v6164 = vpop.xlane.xlu0 %6163
        %v6165 = vmul.f32 %v6155, 0.020408163
        %v6166 = vmul.f32 %v6158, 0.020408163
        %v6167 = vmul.f32 %v6161, 0.020408163
        %v6168 = vmul.f32 %v6164, 0.020408163
        %v6169 = vadd.f32 %v6165, 1e-05
        %v6170 = vadd.f32 %v6166, 1e-05
        %v6171 = vadd.f32 %v6167, 1e-05
        %v6172 = vadd.f32 %v6168, 1e-05
        %v6173 = vrsqrt.pop %v6169
        %v6174 = vrsqrt.pop %v6170
        %v6175 = vrsqrt.pop %v6171
        %v6176 = vrsqrt.pop %v6172
        %v6177 = vmul.f32 %v6173, %v6125
        %v6178 = vmul.f32 %v6174, %v6126
        %v6179 = vmul.f32 %v6175, %v6127
        %v6180 = vmul.f32 %v6176, %v6128
        %6182 = vset.pattern.permute.xlu0 0
        %6183 = vperm.xlu0 %6182, %v6177
        %v6184 = vpop.permute.xlu0 %6183
        %6187 = vset.pattern.permute.xlu0 0
        %6188 = vperm.xlu0 %6187, %v6178
        %v6189 = vpop.permute.xlu0 %6188
        %6192 = vset.pattern.permute.xlu0 0
        %6193 = vperm.xlu0 %6192, %v6179
        %v6194 = vpop.permute.xlu0 %6193
        %6197 = vset.pattern.permute.xlu0 0
        %6198 = vperm.xlu0 %6197, %v6180
        %v6199 = vpop.permute.xlu0 %6198
        %v6201 = vmul.f32 %v6145, %v6184
        %v6202 = vmul.f32 %v6146, %v6189
        %v6203 = vmul.f32 %v6147, %v6194
        %v6204 = vmul.f32 %v6148, %v6199
        %6206 = vset.pattern.permute.xlu0 1
        %6207 = vperm.xlu0 %6206, %v6125
        %v6208 = vpop.permute.xlu0 %6207
        %6211 = vset.pattern.permute.xlu0 1
        %6212 = vperm.xlu0 %6211, %v6126
        %v6213 = vpop.permute.xlu0 %6212
        %6216 = vset.pattern.permute.xlu0 1
        %6217 = vperm.xlu0 %6216, %v6127
        %v6218 = vpop.permute.xlu0 %6217
        %6221 = vset.pattern.permute.xlu0 1
        %6222 = vperm.xlu0 %6221, %v6128
        %v6223 = vpop.permute.xlu0 %6222
        %v6225 = vadd.f32 %v6201, %v6208
        %v6226 = vadd.f32 %v6202, %v6213
        %v6227 = vadd.f32 %v6203, %v6218
        %v6228 = vadd.f32 %v6204, %v6223
        %6229 = vst.msk [vmem:[%s932 + $0xe0] sm:$0xff] %vm4264, %v6225
        %6230 = vst.msk [vmem:[%s932 + $0xe8] sm:$0xff] %vm4264, %v6226
        %6231 = vst.msk [vmem:[%s932 + $0xf0] sm:$0xff] %vm4264, %v6227
        %6232 = vst.msk [vmem:[%s932 + $0xf8] sm:$0xff] %vm4264, %v6228
        %v6233 = vld [vmem:[%s17] sm:$0xff]
        %v6234 = vld [vmem:[%s17 + $0x8] sm:$0xff]
        %v6235 = vld [vmem:[%s17 + $0x10] sm:$0xff]
        %v6236 = vld [vmem:[%s17 + $0x18] sm:$0xff]
        %v6237 = vld [vmem:[%s926 + $0x100] sm:$0xff]
        %v6238 = vld [vmem:[%s926 + $0x108] sm:$0xff]
        %v6239 = vld [vmem:[%s926 + $0x110] sm:$0xff]
        %v6240 = vld [vmem:[%s926 + $0x118] sm:$0xff]
        %v6241 = vsel %vm4264, %v6233, 0.0
        %6242 = vadd.xlane.f32.xlu0 %v6241
        %v6243 = vpop.xlane.xlu0 %6242
        %v6244 = vsel %vm4264, %v6234, 0.0
        %6245 = vadd.xlane.f32.xlu0 %v6244
        %v6246 = vpop.xlane.xlu0 %6245
        %v6247 = vsel %vm4264, %v6235, 0.0
        %6248 = vadd.xlane.f32.xlu0 %v6247
        %v6249 = vpop.xlane.xlu0 %6248
        %v6250 = vsel %vm4264, %v6236, 0.0
        %6251 = vadd.xlane.f32.xlu0 %v6250
        %v6252 = vpop.xlane.xlu0 %6251
        %v6253 = vmul.f32 %v6243, 0.020408163
        %v6254 = vmul.f32 %v6246, 0.020408163
        %v6255 = vmul.f32 %v6249, 0.020408163
        %v6256 = vmul.f32 %v6252, 0.020408163
        %v6257 = vsub.f32 %v6233, %v6253
        %v6258 = vsub.f32 %v6234, %v6254
        %v6259 = vsub.f32 %v6235, %v6255
        %v6260 = vsub.f32 %v6236, %v6256
        %v6261 = vmul.f32 %v6257, %v6257
        %v6262 = vmul.f32 %v6258, %v6258
        %v6263 = vmul.f32 %v6259, %v6259
        %v6264 = vmul.f32 %v6260, %v6260
        %v6265 = vsel %vm4264, %v6261, 0.0
        %6266 = vadd.xlane.f32.xlu0 %v6265
        %v6267 = vpop.xlane.xlu0 %6266
        %v6268 = vsel %vm4264, %v6262, 0.0
        %6269 = vadd.xlane.f32.xlu0 %v6268
        %v6270 = vpop.xlane.xlu0 %6269
        %v6271 = vsel %vm4264, %v6263, 0.0
        %6272 = vadd.xlane.f32.xlu0 %v6271
        %v6273 = vpop.xlane.xlu0 %6272
        %v6274 = vsel %vm4264, %v6264, 0.0
        %6275 = vadd.xlane.f32.xlu0 %v6274
        %v6276 = vpop.xlane.xlu0 %6275
        %v6277 = vmul.f32 %v6267, 0.020408163
        %v6278 = vmul.f32 %v6270, 0.020408163
        %v6279 = vmul.f32 %v6273, 0.020408163
        %v6280 = vmul.f32 %v6276, 0.020408163
        %v6281 = vadd.f32 %v6277, 1e-05
        %v6282 = vadd.f32 %v6278, 1e-05
        %v6283 = vadd.f32 %v6279, 1e-05
        %v6284 = vadd.f32 %v6280, 1e-05
        %v6285 = vrsqrt.pop %v6281
        %v6286 = vrsqrt.pop %v6282
        %v6287 = vrsqrt.pop %v6283
        %v6288 = vrsqrt.pop %v6284
        %v6289 = vmul.f32 %v6285, %v6237
        %v6290 = vmul.f32 %v6286, %v6238
        %v6291 = vmul.f32 %v6287, %v6239
        %v6292 = vmul.f32 %v6288, %v6240
        %6294 = vset.pattern.permute.xlu0 0
        %6295 = vperm.xlu0 %6294, %v6289
        %v6296 = vpop.permute.xlu0 %6295
        %6299 = vset.pattern.permute.xlu0 0
        %6300 = vperm.xlu0 %6299, %v6290
        %v6301 = vpop.permute.xlu0 %6300
        %6304 = vset.pattern.permute.xlu0 0
        %6305 = vperm.xlu0 %6304, %v6291
        %v6306 = vpop.permute.xlu0 %6305
        %6309 = vset.pattern.permute.xlu0 0
        %6310 = vperm.xlu0 %6309, %v6292
        %v6311 = vpop.permute.xlu0 %6310
        %v6313 = vmul.f32 %v6257, %v6296
        %v6314 = vmul.f32 %v6258, %v6301
        %v6315 = vmul.f32 %v6259, %v6306
        %v6316 = vmul.f32 %v6260, %v6311
        %6318 = vset.pattern.permute.xlu0 1
        %6319 = vperm.xlu0 %6318, %v6237
        %v6320 = vpop.permute.xlu0 %6319
        %6323 = vset.pattern.permute.xlu0 1
        %6324 = vperm.xlu0 %6323, %v6238
        %v6325 = vpop.permute.xlu0 %6324
        %6328 = vset.pattern.permute.xlu0 1
        %6329 = vperm.xlu0 %6328, %v6239
        %v6330 = vpop.permute.xlu0 %6329
        %6333 = vset.pattern.permute.xlu0 1
        %6334 = vperm.xlu0 %6333, %v6240
        %v6335 = vpop.permute.xlu0 %6334
        %v6337 = vadd.f32 %v6313, %v6320
        %v6338 = vadd.f32 %v6314, %v6325
        %v6339 = vadd.f32 %v6315, %v6330
        %v6340 = vadd.f32 %v6316, %v6335
        %6341 = vst.msk [vmem:[%s932 + $0x100] sm:$0xff] %vm4264, %v6337
        %6342 = vst.msk [vmem:[%s932 + $0x108] sm:$0xff] %vm4264, %v6338
        %6343 = vst.msk [vmem:[%s932 + $0x110] sm:$0xff] %vm4264, %v6339
        %6344 = vst.msk [vmem:[%s932 + $0x118] sm:$0xff] %vm4264, %v6340
        %v6345 = vld [vmem:[%s19] sm:$0xff]
        %v6346 = vld [vmem:[%s19 + $0x8] sm:$0xff]
        %v6347 = vld [vmem:[%s19 + $0x10] sm:$0xff]
        %v6348 = vld [vmem:[%s19 + $0x18] sm:$0xff]
        %v6349 = vld [vmem:[%s926 + $0x120] sm:$0xff]
        %v6350 = vld [vmem:[%s926 + $0x128] sm:$0xff]
        %v6351 = vld [vmem:[%s926 + $0x130] sm:$0xff]
        %v6352 = vld [vmem:[%s926 + $0x138] sm:$0xff]
        %v6353 = vsel %vm4264, %v6345, 0.0
        %6354 = vadd.xlane.f32.xlu0 %v6353
        %v6355 = vpop.xlane.xlu0 %6354
        %v6356 = vsel %vm4264, %v6346, 0.0
        %6357 = vadd.xlane.f32.xlu0 %v6356
        %v6358 = vpop.xlane.xlu0 %6357
        %v6359 = vsel %vm4264, %v6347, 0.0
        %6360 = vadd.xlane.f32.xlu0 %v6359
        %v6361 = vpop.xlane.xlu0 %6360
        %v6362 = vsel %vm4264, %v6348, 0.0
        %6363 = vadd.xlane.f32.xlu0 %v6362
        %v6364 = vpop.xlane.xlu0 %6363
        %v6365 = vmul.f32 %v6355, 0.020408163
        %v6366 = vmul.f32 %v6358, 0.020408163
        %v6367 = vmul.f32 %v6361, 0.020408163
        %v6368 = vmul.f32 %v6364, 0.020408163
        %v6369 = vsub.f32 %v6345, %v6365
        %v6370 = vsub.f32 %v6346, %v6366
        %v6371 = vsub.f32 %v6347, %v6367
        %v6372 = vsub.f32 %v6348, %v6368
        %v6373 = vmul.f32 %v6369, %v6369
        %v6374 = vmul.f32 %v6370, %v6370
        %v6375 = vmul.f32 %v6371, %v6371
        %v6376 = vmul.f32 %v6372, %v6372
        %v6377 = vsel %vm4264, %v6373, 0.0
        %6378 = vadd.xlane.f32.xlu0 %v6377
        %v6379 = vpop.xlane.xlu0 %6378
        %v6380 = vsel %vm4264, %v6374, 0.0
        %6381 = vadd.xlane.f32.xlu0 %v6380
        %v6382 = vpop.xlane.xlu0 %6381
        %v6383 = vsel %vm4264, %v6375, 0.0
        %6384 = vadd.xlane.f32.xlu0 %v6383
        %v6385 = vpop.xlane.xlu0 %6384
        %v6386 = vsel %vm4264, %v6376, 0.0
        %6387 = vadd.xlane.f32.xlu0 %v6386
        %v6388 = vpop.xlane.xlu0 %6387
        %v6389 = vmul.f32 %v6379, 0.020408163
        %v6390 = vmul.f32 %v6382, 0.020408163
        %v6391 = vmul.f32 %v6385, 0.020408163
        %v6392 = vmul.f32 %v6388, 0.020408163
        %v6393 = vadd.f32 %v6389, 1e-05
        %v6394 = vadd.f32 %v6390, 1e-05
        %v6395 = vadd.f32 %v6391, 1e-05
        %v6396 = vadd.f32 %v6392, 1e-05
        %v6397 = vrsqrt.pop %v6393
        %v6398 = vrsqrt.pop %v6394
        %v6399 = vrsqrt.pop %v6395
        %v6400 = vrsqrt.pop %v6396
        %v6401 = vmul.f32 %v6397, %v6349
        %v6402 = vmul.f32 %v6398, %v6350
        %v6403 = vmul.f32 %v6399, %v6351
        %v6404 = vmul.f32 %v6400, %v6352
        %6406 = vset.pattern.permute.xlu0 0
        %6407 = vperm.xlu0 %6406, %v6401
        %v6408 = vpop.permute.xlu0 %6407
        %6411 = vset.pattern.permute.xlu0 0
        %6412 = vperm.xlu0 %6411, %v6402
        %v6413 = vpop.permute.xlu0 %6412
        %6416 = vset.pattern.permute.xlu0 0
        %6417 = vperm.xlu0 %6416, %v6403
        %v6418 = vpop.permute.xlu0 %6417
        %6421 = vset.pattern.permute.xlu0 0
        %6422 = vperm.xlu0 %6421, %v6404
        %v6423 = vpop.permute.xlu0 %6422
        %v6425 = vmul.f32 %v6369, %v6408
        %v6426 = vmul.f32 %v6370, %v6413
        %v6427 = vmul.f32 %v6371, %v6418
        %v6428 = vmul.f32 %v6372, %v6423
        %6430 = vset.pattern.permute.xlu0 1
        %6431 = vperm.xlu0 %6430, %v6349
        %v6432 = vpop.permute.xlu0 %6431
        %6435 = vset.pattern.permute.xlu0 1
        %6436 = vperm.xlu0 %6435, %v6350
        %v6437 = vpop.permute.xlu0 %6436
        %6440 = vset.pattern.permute.xlu0 1
        %6441 = vperm.xlu0 %6440, %v6351
        %v6442 = vpop.permute.xlu0 %6441
        %6445 = vset.pattern.permute.xlu0 1
        %6446 = vperm.xlu0 %6445, %v6352
        %v6447 = vpop.permute.xlu0 %6446
        %v6449 = vadd.f32 %v6425, %v6432
        %v6450 = vadd.f32 %v6426, %v6437
        %v6451 = vadd.f32 %v6427, %v6442
        %v6452 = vadd.f32 %v6428, %v6447
        %6453 = vst.msk [vmem:[%s932 + $0x120] sm:$0xff] %vm4264, %v6449
        %6454 = vst.msk [vmem:[%s932 + $0x128] sm:$0xff] %vm4264, %v6450
        %6455 = vst.msk [vmem:[%s932 + $0x130] sm:$0xff] %vm4264, %v6451
        %6456 = vst.msk [vmem:[%s932 + $0x138] sm:$0xff] %vm4264, %v6452
        %v6457 = vld [vmem:[%s21] sm:$0xff]
        %v6458 = vld [vmem:[%s21 + $0x8] sm:$0xff]
        %v6459 = vld [vmem:[%s21 + $0x10] sm:$0xff]
        %v6460 = vld [vmem:[%s21 + $0x18] sm:$0xff]
        %v6461 = vld [vmem:[%s926 + $0x140] sm:$0xff]
        %v6462 = vld [vmem:[%s926 + $0x148] sm:$0xff]
        %v6463 = vld [vmem:[%s926 + $0x150] sm:$0xff]
        %v6464 = vld [vmem:[%s926 + $0x158] sm:$0xff]
        %v6465 = vsel %vm4264, %v6457, 0.0
        %6466 = vadd.xlane.f32.xlu0 %v6465
        %v6467 = vpop.xlane.xlu0 %6466
        %v6468 = vsel %vm4264, %v6458, 0.0
        %6469 = vadd.xlane.f32.xlu0 %v6468
        %v6470 = vpop.xlane.xlu0 %6469
        %v6471 = vsel %vm4264, %v6459, 0.0
        %6472 = vadd.xlane.f32.xlu0 %v6471
        %v6473 = vpop.xlane.xlu0 %6472
        %v6474 = vsel %vm4264, %v6460, 0.0
        %6475 = vadd.xlane.f32.xlu0 %v6474
        %v6476 = vpop.xlane.xlu0 %6475
        %v6477 = vmul.f32 %v6467, 0.020408163
        %v6478 = vmul.f32 %v6470, 0.020408163
        %v6479 = vmul.f32 %v6473, 0.020408163
        %v6480 = vmul.f32 %v6476, 0.020408163
        %v6481 = vsub.f32 %v6457, %v6477
        %v6482 = vsub.f32 %v6458, %v6478
        %v6483 = vsub.f32 %v6459, %v6479
        %v6484 = vsub.f32 %v6460, %v6480
        %v6485 = vmul.f32 %v6481, %v6481
        %v6486 = vmul.f32 %v6482, %v6482
        %v6487 = vmul.f32 %v6483, %v6483
        %v6488 = vmul.f32 %v6484, %v6484
        %v6489 = vsel %vm4264, %v6485, 0.0
        %6490 = vadd.xlane.f32.xlu0 %v6489
        %v6491 = vpop.xlane.xlu0 %6490
        %v6492 = vsel %vm4264, %v6486, 0.0
        %6493 = vadd.xlane.f32.xlu0 %v6492
        %v6494 = vpop.xlane.xlu0 %6493
        %v6495 = vsel %vm4264, %v6487, 0.0
        %6496 = vadd.xlane.f32.xlu0 %v6495
        %v6497 = vpop.xlane.xlu0 %6496
        %v6498 = vsel %vm4264, %v6488, 0.0
        %6499 = vadd.xlane.f32.xlu0 %v6498
        %v6500 = vpop.xlane.xlu0 %6499
        %v6501 = vmul.f32 %v6491, 0.020408163
        %v6502 = vmul.f32 %v6494, 0.020408163
        %v6503 = vmul.f32 %v6497, 0.020408163
        %v6504 = vmul.f32 %v6500, 0.020408163
        %v6505 = vadd.f32 %v6501, 1e-05
        %v6506 = vadd.f32 %v6502, 1e-05
        %v6507 = vadd.f32 %v6503, 1e-05
        %v6508 = vadd.f32 %v6504, 1e-05
        %v6509 = vrsqrt.pop %v6505
        %v6510 = vrsqrt.pop %v6506
        %v6511 = vrsqrt.pop %v6507
        %v6512 = vrsqrt.pop %v6508
        %v6513 = vmul.f32 %v6509, %v6461
        %v6514 = vmul.f32 %v6510, %v6462
        %v6515 = vmul.f32 %v6511, %v6463
        %v6516 = vmul.f32 %v6512, %v6464
        %6518 = vset.pattern.permute.xlu0 0
        %6519 = vperm.xlu0 %6518, %v6513
        %v6520 = vpop.permute.xlu0 %6519
        %6523 = vset.pattern.permute.xlu0 0
        %6524 = vperm.xlu0 %6523, %v6514
        %v6525 = vpop.permute.xlu0 %6524
        %6528 = vset.pattern.permute.xlu0 0
        %6529 = vperm.xlu0 %6528, %v6515
        %v6530 = vpop.permute.xlu0 %6529
        %6533 = vset.pattern.permute.xlu0 0
        %6534 = vperm.xlu0 %6533, %v6516
        %v6535 = vpop.permute.xlu0 %6534
        %v6537 = vmul.f32 %v6481, %v6520
        %v6538 = vmul.f32 %v6482, %v6525
        %v6539 = vmul.f32 %v6483, %v6530
        %v6540 = vmul.f32 %v6484, %v6535
        %6542 = vset.pattern.permute.xlu0 1
        %6543 = vperm.xlu0 %6542, %v6461
        %v6544 = vpop.permute.xlu0 %6543
        %6547 = vset.pattern.permute.xlu0 1
        %6548 = vperm.xlu0 %6547, %v6462
        %v6549 = vpop.permute.xlu0 %6548
        %6552 = vset.pattern.permute.xlu0 1
        %6553 = vperm.xlu0 %6552, %v6463
        %v6554 = vpop.permute.xlu0 %6553
        %6557 = vset.pattern.permute.xlu0 1
        %6558 = vperm.xlu0 %6557, %v6464
        %v6559 = vpop.permute.xlu0 %6558
        %v6561 = vadd.f32 %v6537, %v6544
        %v6562 = vadd.f32 %v6538, %v6549
        %v6563 = vadd.f32 %v6539, %v6554
        %v6564 = vadd.f32 %v6540, %v6559
        %6565 = vst.msk [vmem:[%s932 + $0x140] sm:$0xff] %vm4264, %v6561
        %6566 = vst.msk [vmem:[%s932 + $0x148] sm:$0xff] %vm4264, %v6562
        %6567 = vst.msk [vmem:[%s932 + $0x150] sm:$0xff] %vm4264, %v6563
        %6568 = vst.msk [vmem:[%s932 + $0x158] sm:$0xff] %vm4264, %v6564
        %v6569 = vld [vmem:[%s23] sm:$0xff]
        %v6570 = vld [vmem:[%s23 + $0x8] sm:$0xff]
        %v6571 = vld [vmem:[%s23 + $0x10] sm:$0xff]
        %v6572 = vld [vmem:[%s23 + $0x18] sm:$0xff]
        %v6573 = vld [vmem:[%s926 + $0x160] sm:$0xff]
        %v6574 = vld [vmem:[%s926 + $0x168] sm:$0xff]
        %v6575 = vld [vmem:[%s926 + $0x170] sm:$0xff]
        %v6576 = vld [vmem:[%s926 + $0x178] sm:$0xff]
        %v6577 = vsel %vm4264, %v6569, 0.0
        %6578 = vadd.xlane.f32.xlu0 %v6577
        %v6579 = vpop.xlane.xlu0 %6578
        %v6580 = vsel %vm4264, %v6570, 0.0
        %6581 = vadd.xlane.f32.xlu0 %v6580
        %v6582 = vpop.xlane.xlu0 %6581
        %v6583 = vsel %vm4264, %v6571, 0.0
        %6584 = vadd.xlane.f32.xlu0 %v6583
        %v6585 = vpop.xlane.xlu0 %6584
        %v6586 = vsel %vm4264, %v6572, 0.0
        %6587 = vadd.xlane.f32.xlu0 %v6586
        %v6588 = vpop.xlane.xlu0 %6587
        %v6589 = vmul.f32 %v6579, 0.020408163
        %v6590 = vmul.f32 %v6582, 0.020408163
        %v6591 = vmul.f32 %v6585, 0.020408163
        %v6592 = vmul.f32 %v6588, 0.020408163
        %v6593 = vsub.f32 %v6569, %v6589
        %v6594 = vsub.f32 %v6570, %v6590
        %v6595 = vsub.f32 %v6571, %v6591
        %v6596 = vsub.f32 %v6572, %v6592
        %v6597 = vmul.f32 %v6593, %v6593
        %v6598 = vmul.f32 %v6594, %v6594
        %v6599 = vmul.f32 %v6595, %v6595
        %v6600 = vmul.f32 %v6596, %v6596
        %v6601 = vsel %vm4264, %v6597, 0.0
        %6602 = vadd.xlane.f32.xlu0 %v6601
        %v6603 = vpop.xlane.xlu0 %6602
        %v6604 = vsel %vm4264, %v6598, 0.0
        %6605 = vadd.xlane.f32.xlu0 %v6604
        %v6606 = vpop.xlane.xlu0 %6605
        %v6607 = vsel %vm4264, %v6599, 0.0
        %6608 = vadd.xlane.f32.xlu0 %v6607
        %v6609 = vpop.xlane.xlu0 %6608
        %v6610 = vsel %vm4264, %v6600, 0.0
        %6611 = vadd.xlane.f32.xlu0 %v6610
        %v6612 = vpop.xlane.xlu0 %6611
        %v6613 = vmul.f32 %v6603, 0.020408163
        %v6614 = vmul.f32 %v6606, 0.020408163
        %v6615 = vmul.f32 %v6609, 0.020408163
        %v6616 = vmul.f32 %v6612, 0.020408163
        %v6617 = vadd.f32 %v6613, 1e-05
        %v6618 = vadd.f32 %v6614, 1e-05
        %v6619 = vadd.f32 %v6615, 1e-05
        %v6620 = vadd.f32 %v6616, 1e-05
        %v6621 = vrsqrt.pop %v6617
        %v6622 = vrsqrt.pop %v6618
        %v6623 = vrsqrt.pop %v6619
        %v6624 = vrsqrt.pop %v6620
        %v6625 = vmul.f32 %v6621, %v6573
        %v6626 = vmul.f32 %v6622, %v6574
        %v6627 = vmul.f32 %v6623, %v6575
        %v6628 = vmul.f32 %v6624, %v6576
        %6630 = vset.pattern.permute.xlu0 0
        %6631 = vperm.xlu0 %6630, %v6625
        %v6632 = vpop.permute.xlu0 %6631
        %6635 = vset.pattern.permute.xlu0 0
        %6636 = vperm.xlu0 %6635, %v6626
        %v6637 = vpop.permute.xlu0 %6636
        %6640 = vset.pattern.permute.xlu0 0
        %6641 = vperm.xlu0 %6640, %v6627
        %v6642 = vpop.permute.xlu0 %6641
        %6645 = vset.pattern.permute.xlu0 0
        %6646 = vperm.xlu0 %6645, %v6628
        %v6647 = vpop.permute.xlu0 %6646
        %v6649 = vmul.f32 %v6593, %v6632
        %v6650 = vmul.f32 %v6594, %v6637
        %v6651 = vmul.f32 %v6595, %v6642
        %v6652 = vmul.f32 %v6596, %v6647
        %6654 = vset.pattern.permute.xlu0 1
        %6655 = vperm.xlu0 %6654, %v6573
        %v6656 = vpop.permute.xlu0 %6655
        %6659 = vset.pattern.permute.xlu0 1
        %6660 = vperm.xlu0 %6659, %v6574
        %v6661 = vpop.permute.xlu0 %6660
        %6664 = vset.pattern.permute.xlu0 1
        %6665 = vperm.xlu0 %6664, %v6575
        %v6666 = vpop.permute.xlu0 %6665
        %6669 = vset.pattern.permute.xlu0 1
        %6670 = vperm.xlu0 %6669, %v6576
        %v6671 = vpop.permute.xlu0 %6670
        %v6673 = vadd.f32 %v6649, %v6656
        %v6674 = vadd.f32 %v6650, %v6661
        %v6675 = vadd.f32 %v6651, %v6666
        %v6676 = vadd.f32 %v6652, %v6671
        %6677 = vst.msk [vmem:[%s932 + $0x160] sm:$0xff] %vm4264, %v6673
        %6678 = vst.msk [vmem:[%s932 + $0x168] sm:$0xff] %vm4264, %v6674
        %6679 = vst.msk [vmem:[%s932 + $0x170] sm:$0xff] %vm4264, %v6675
        %6680 = vst.msk [vmem:[%s932 + $0x178] sm:$0xff] %vm4264, %v6676
        %v6681 = vld [vmem:[%s25] sm:$0xff]
        %v6682 = vld [vmem:[%s25 + $0x8] sm:$0xff]
        %v6683 = vld [vmem:[%s25 + $0x10] sm:$0xff]
        %v6684 = vld [vmem:[%s25 + $0x18] sm:$0xff]
        %v6685 = vld [vmem:[%s926 + $0x180] sm:$0xff]
        %v6686 = vld [vmem:[%s926 + $0x188] sm:$0xff]
        %v6687 = vld [vmem:[%s926 + $0x190] sm:$0xff]
        %v6688 = vld [vmem:[%s926 + $0x198] sm:$0xff]
        %v6689 = vsel %vm4264, %v6681, 0.0
        %6690 = vadd.xlane.f32.xlu0 %v6689
        %v6691 = vpop.xlane.xlu0 %6690
        %v6692 = vsel %vm4264, %v6682, 0.0
        %6693 = vadd.xlane.f32.xlu0 %v6692
        %v6694 = vpop.xlane.xlu0 %6693
        %v6695 = vsel %vm4264, %v6683, 0.0
        %6696 = vadd.xlane.f32.xlu0 %v6695
        %v6697 = vpop.xlane.xlu0 %6696
        %v6698 = vsel %vm4264, %v6684, 0.0
        %6699 = vadd.xlane.f32.xlu0 %v6698
        %v6700 = vpop.xlane.xlu0 %6699
        %v6701 = vmul.f32 %v6691, 0.020408163
        %v6702 = vmul.f32 %v6694, 0.020408163
        %v6703 = vmul.f32 %v6697, 0.020408163
        %v6704 = vmul.f32 %v6700, 0.020408163
        %v6705 = vsub.f32 %v6681, %v6701
        %v6706 = vsub.f32 %v6682, %v6702
        %v6707 = vsub.f32 %v6683, %v6703
        %v6708 = vsub.f32 %v6684, %v6704
        %v6709 = vmul.f32 %v6705, %v6705
        %v6710 = vmul.f32 %v6706, %v6706
        %v6711 = vmul.f32 %v6707, %v6707
        %v6712 = vmul.f32 %v6708, %v6708
        %v6713 = vsel %vm4264, %v6709, 0.0
        %6714 = vadd.xlane.f32.xlu0 %v6713
        %v6715 = vpop.xlane.xlu0 %6714
        %v6716 = vsel %vm4264, %v6710, 0.0
        %6717 = vadd.xlane.f32.xlu0 %v6716
        %v6718 = vpop.xlane.xlu0 %6717
        %v6719 = vsel %vm4264, %v6711, 0.0
        %6720 = vadd.xlane.f32.xlu0 %v6719
        %v6721 = vpop.xlane.xlu0 %6720
        %v6722 = vsel %vm4264, %v6712, 0.0
        %6723 = vadd.xlane.f32.xlu0 %v6722
        %v6724 = vpop.xlane.xlu0 %6723
        %v6725 = vmul.f32 %v6715, 0.020408163
        %v6726 = vmul.f32 %v6718, 0.020408163
        %v6727 = vmul.f32 %v6721, 0.020408163
        %v6728 = vmul.f32 %v6724, 0.020408163
        %v6729 = vadd.f32 %v6725, 1e-05
        %v6730 = vadd.f32 %v6726, 1e-05
        %v6731 = vadd.f32 %v6727, 1e-05
        %v6732 = vadd.f32 %v6728, 1e-05
        %v6733 = vrsqrt.pop %v6729
        %v6734 = vrsqrt.pop %v6730
        %v6735 = vrsqrt.pop %v6731
        %v6736 = vrsqrt.pop %v6732
        %v6737 = vmul.f32 %v6733, %v6685
        %v6738 = vmul.f32 %v6734, %v6686
        %v6739 = vmul.f32 %v6735, %v6687
        %v6740 = vmul.f32 %v6736, %v6688
        %6742 = vset.pattern.permute.xlu0 0
        %6743 = vperm.xlu0 %6742, %v6737
        %v6744 = vpop.permute.xlu0 %6743
        %6747 = vset.pattern.permute.xlu0 0
        %6748 = vperm.xlu0 %6747, %v6738
        %v6749 = vpop.permute.xlu0 %6748
        %6752 = vset.pattern.permute.xlu0 0
        %6753 = vperm.xlu0 %6752, %v6739
        %v6754 = vpop.permute.xlu0 %6753
        %6757 = vset.pattern.permute.xlu0 0
        %6758 = vperm.xlu0 %6757, %v6740
        %v6759 = vpop.permute.xlu0 %6758
        %v6761 = vmul.f32 %v6705, %v6744
        %v6762 = vmul.f32 %v6706, %v6749
        %v6763 = vmul.f32 %v6707, %v6754
        %v6764 = vmul.f32 %v6708, %v6759
        %6766 = vset.pattern.permute.xlu0 1
        %6767 = vperm.xlu0 %6766, %v6685
        %v6768 = vpop.permute.xlu0 %6767
        %6771 = vset.pattern.permute.xlu0 1
        %6772 = vperm.xlu0 %6771, %v6686
        %v6773 = vpop.permute.xlu0 %6772
        %6776 = vset.pattern.permute.xlu0 1
        %6777 = vperm.xlu0 %6776, %v6687
        %v6778 = vpop.permute.xlu0 %6777
        %6781 = vset.pattern.permute.xlu0 1
        %6782 = vperm.xlu0 %6781, %v6688
        %v6783 = vpop.permute.xlu0 %6782
        %v6785 = vadd.f32 %v6761, %v6768
        %v6786 = vadd.f32 %v6762, %v6773
        %v6787 = vadd.f32 %v6763, %v6778
        %v6788 = vadd.f32 %v6764, %v6783
        %6789 = vst.msk [vmem:[%s932 + $0x180] sm:$0xff] %vm4264, %v6785
        %6790 = vst.msk [vmem:[%s932 + $0x188] sm:$0xff] %vm4264, %v6786
        %6791 = vst.msk [vmem:[%s932 + $0x190] sm:$0xff] %vm4264, %v6787
        %6792 = vst.msk [vmem:[%s932 + $0x198] sm:$0xff] %vm4264, %v6788
        %v6793 = vld [vmem:[%s27] sm:$0xff]
        %v6794 = vld [vmem:[%s27 + $0x8] sm:$0xff]
        %v6795 = vld [vmem:[%s27 + $0x10] sm:$0xff]
        %v6796 = vld [vmem:[%s27 + $0x18] sm:$0xff]
        %v6797 = vld [vmem:[%s926 + $0x1a0] sm:$0xff]
        %v6798 = vld [vmem:[%s926 + $0x1a8] sm:$0xff]
        %v6799 = vld [vmem:[%s926 + $0x1b0] sm:$0xff]
        %v6800 = vld [vmem:[%s926 + $0x1b8] sm:$0xff]
        %v6801 = vsel %vm4264, %v6793, 0.0
        %6802 = vadd.xlane.f32.xlu0 %v6801
        %v6803 = vpop.xlane.xlu0 %6802
        %v6804 = vsel %vm4264, %v6794, 0.0
        %6805 = vadd.xlane.f32.xlu0 %v6804
        %v6806 = vpop.xlane.xlu0 %6805
        %v6807 = vsel %vm4264, %v6795, 0.0
        %6808 = vadd.xlane.f32.xlu0 %v6807
        %v6809 = vpop.xlane.xlu0 %6808
        %v6810 = vsel %vm4264, %v6796, 0.0
        %6811 = vadd.xlane.f32.xlu0 %v6810
        %v6812 = vpop.xlane.xlu0 %6811
        %v6813 = vmul.f32 %v6803, 0.020408163
        %v6814 = vmul.f32 %v6806, 0.020408163
        %v6815 = vmul.f32 %v6809, 0.020408163
        %v6816 = vmul.f32 %v6812, 0.020408163
        %v6817 = vsub.f32 %v6793, %v6813
        %v6818 = vsub.f32 %v6794, %v6814
        %v6819 = vsub.f32 %v6795, %v6815
        %v6820 = vsub.f32 %v6796, %v6816
        %v6821 = vmul.f32 %v6817, %v6817
        %v6822 = vmul.f32 %v6818, %v6818
        %v6823 = vmul.f32 %v6819, %v6819
        %v6824 = vmul.f32 %v6820, %v6820
        %v6825 = vsel %vm4264, %v6821, 0.0
        %6826 = vadd.xlane.f32.xlu0 %v6825
        %v6827 = vpop.xlane.xlu0 %6826
        %v6828 = vsel %vm4264, %v6822, 0.0
        %6829 = vadd.xlane.f32.xlu0 %v6828
        %v6830 = vpop.xlane.xlu0 %6829
        %v6831 = vsel %vm4264, %v6823, 0.0
        %6832 = vadd.xlane.f32.xlu0 %v6831
        %v6833 = vpop.xlane.xlu0 %6832
        %v6834 = vsel %vm4264, %v6824, 0.0
        %6835 = vadd.xlane.f32.xlu0 %v6834
        %v6836 = vpop.xlane.xlu0 %6835
        %v6837 = vmul.f32 %v6827, 0.020408163
        %v6838 = vmul.f32 %v6830, 0.020408163
        %v6839 = vmul.f32 %v6833, 0.020408163
        %v6840 = vmul.f32 %v6836, 0.020408163
        %v6841 = vadd.f32 %v6837, 1e-05
        %v6842 = vadd.f32 %v6838, 1e-05
        %v6843 = vadd.f32 %v6839, 1e-05
        %v6844 = vadd.f32 %v6840, 1e-05
        %v6845 = vrsqrt.pop %v6841
        %v6846 = vrsqrt.pop %v6842
        %v6847 = vrsqrt.pop %v6843
        %v6848 = vrsqrt.pop %v6844
        %v6849 = vmul.f32 %v6845, %v6797
        %v6850 = vmul.f32 %v6846, %v6798
        %v6851 = vmul.f32 %v6847, %v6799
        %v6852 = vmul.f32 %v6848, %v6800
        %6854 = vset.pattern.permute.xlu0 0
        %6855 = vperm.xlu0 %6854, %v6849
        %v6856 = vpop.permute.xlu0 %6855
        %6859 = vset.pattern.permute.xlu0 0
        %6860 = vperm.xlu0 %6859, %v6850
        %v6861 = vpop.permute.xlu0 %6860
        %6864 = vset.pattern.permute.xlu0 0
        %6865 = vperm.xlu0 %6864, %v6851
        %v6866 = vpop.permute.xlu0 %6865
        %6869 = vset.pattern.permute.xlu0 0
        %6870 = vperm.xlu0 %6869, %v6852
        %v6871 = vpop.permute.xlu0 %6870
        %v6873 = vmul.f32 %v6817, %v6856
        %v6874 = vmul.f32 %v6818, %v6861
        %v6875 = vmul.f32 %v6819, %v6866
        %v6876 = vmul.f32 %v6820, %v6871
        %6878 = vset.pattern.permute.xlu0 1
        %6879 = vperm.xlu0 %6878, %v6797
        %v6880 = vpop.permute.xlu0 %6879
        %6883 = vset.pattern.permute.xlu0 1
        %6884 = vperm.xlu0 %6883, %v6798
        %v6885 = vpop.permute.xlu0 %6884
        %6888 = vset.pattern.permute.xlu0 1
        %6889 = vperm.xlu0 %6888, %v6799
        %v6890 = vpop.permute.xlu0 %6889
        %6893 = vset.pattern.permute.xlu0 1
        %6894 = vperm.xlu0 %6893, %v6800
        %v6895 = vpop.permute.xlu0 %6894
        %v6897 = vadd.f32 %v6873, %v6880
        %v6898 = vadd.f32 %v6874, %v6885
        %v6899 = vadd.f32 %v6875, %v6890
        %v6900 = vadd.f32 %v6876, %v6895
        %6901 = vst.msk [vmem:[%s932 + $0x1a0] sm:$0xff] %vm4264, %v6897
        %6902 = vst.msk [vmem:[%s932 + $0x1a8] sm:$0xff] %vm4264, %v6898
        %6903 = vst.msk [vmem:[%s932 + $0x1b0] sm:$0xff] %vm4264, %v6899
        %6904 = vst.msk [vmem:[%s932 + $0x1b8] sm:$0xff] %vm4264, %v6900
        %v6905 = vld [vmem:[%s29] sm:$0xff]
        %v6906 = vld [vmem:[%s29 + $0x8] sm:$0xff]
        %v6907 = vld [vmem:[%s29 + $0x10] sm:$0xff]
        %v6908 = vld [vmem:[%s29 + $0x18] sm:$0xff]
        %v6909 = vld [vmem:[%s926 + $0x1c0] sm:$0xff]
        %v6910 = vld [vmem:[%s926 + $0x1c8] sm:$0xff]
        %v6911 = vld [vmem:[%s926 + $0x1d0] sm:$0xff]
        %v6912 = vld [vmem:[%s926 + $0x1d8] sm:$0xff]
        %v6913 = vsel %vm4264, %v6905, 0.0
        %6914 = vadd.xlane.f32.xlu0 %v6913
        %v6915 = vpop.xlane.xlu0 %6914
        %v6916 = vsel %vm4264, %v6906, 0.0
        %6917 = vadd.xlane.f32.xlu0 %v6916
        %v6918 = vpop.xlane.xlu0 %6917
        %v6919 = vsel %vm4264, %v6907, 0.0
        %6920 = vadd.xlane.f32.xlu0 %v6919
        %v6921 = vpop.xlane.xlu0 %6920
        %v6922 = vsel %vm4264, %v6908, 0.0
        %6923 = vadd.xlane.f32.xlu0 %v6922
        %v6924 = vpop.xlane.xlu0 %6923
        %v6925 = vmul.f32 %v6915, 0.020408163
        %v6926 = vmul.f32 %v6918, 0.020408163
        %v6927 = vmul.f32 %v6921, 0.020408163
        %v6928 = vmul.f32 %v6924, 0.020408163
        %v6929 = vsub.f32 %v6905, %v6925
        %v6930 = vsub.f32 %v6906, %v6926
        %v6931 = vsub.f32 %v6907, %v6927
        %v6932 = vsub.f32 %v6908, %v6928
        %v6933 = vmul.f32 %v6929, %v6929
        %v6934 = vmul.f32 %v6930, %v6930
        %v6935 = vmul.f32 %v6931, %v6931
        %v6936 = vmul.f32 %v6932, %v6932
        %v6937 = vsel %vm4264, %v6933, 0.0
        %6938 = vadd.xlane.f32.xlu0 %v6937
        %v6939 = vpop.xlane.xlu0 %6938
        %v6940 = vsel %vm4264, %v6934, 0.0
        %6941 = vadd.xlane.f32.xlu0 %v6940
        %v6942 = vpop.xlane.xlu0 %6941
        %v6943 = vsel %vm4264, %v6935, 0.0
        %6944 = vadd.xlane.f32.xlu0 %v6943
        %v6945 = vpop.xlane.xlu0 %6944
        %v6946 = vsel %vm4264, %v6936, 0.0
        %6947 = vadd.xlane.f32.xlu0 %v6946
        %v6948 = vpop.xlane.xlu0 %6947
        %v6949 = vmul.f32 %v6939, 0.020408163
        %v6950 = vmul.f32 %v6942, 0.020408163
        %v6951 = vmul.f32 %v6945, 0.020408163
        %v6952 = vmul.f32 %v6948, 0.020408163
        %v6953 = vadd.f32 %v6949, 1e-05
        %v6954 = vadd.f32 %v6950, 1e-05
        %v6955 = vadd.f32 %v6951, 1e-05
        %v6956 = vadd.f32 %v6952, 1e-05
        %v6957 = vrsqrt.pop %v6953
        %v6958 = vrsqrt.pop %v6954
        %v6959 = vrsqrt.pop %v6955
        %v6960 = vrsqrt.pop %v6956
        %v6961 = vmul.f32 %v6957, %v6909
        %v6962 = vmul.f32 %v6958, %v6910
        %v6963 = vmul.f32 %v6959, %v6911
        %v6964 = vmul.f32 %v6960, %v6912
        %6966 = vset.pattern.permute.xlu0 0
        %6967 = vperm.xlu0 %6966, %v6961
        %v6968 = vpop.permute.xlu0 %6967
        %6971 = vset.pattern.permute.xlu0 0
        %6972 = vperm.xlu0 %6971, %v6962
        %v6973 = vpop.permute.xlu0 %6972
        %6976 = vset.pattern.permute.xlu0 0
        %6977 = vperm.xlu0 %6976, %v6963
        %v6978 = vpop.permute.xlu0 %6977
        %6981 = vset.pattern.permute.xlu0 0
        %6982 = vperm.xlu0 %6981, %v6964
        %v6983 = vpop.permute.xlu0 %6982
        %v6985 = vmul.f32 %v6929, %v6968
        %v6986 = vmul.f32 %v6930, %v6973
        %v6987 = vmul.f32 %v6931, %v6978
        %v6988 = vmul.f32 %v6932, %v6983
        %6990 = vset.pattern.permute.xlu0 1
        %6991 = vperm.xlu0 %6990, %v6909
        %v6992 = vpop.permute.xlu0 %6991
        %6995 = vset.pattern.permute.xlu0 1
        %6996 = vperm.xlu0 %6995, %v6910
        %v6997 = vpop.permute.xlu0 %6996
        %7000 = vset.pattern.permute.xlu0 1
        %7001 = vperm.xlu0 %7000, %v6911
        %v7002 = vpop.permute.xlu0 %7001
        %7005 = vset.pattern.permute.xlu0 1
        %7006 = vperm.xlu0 %7005, %v6912
        %v7007 = vpop.permute.xlu0 %7006
        %v7009 = vadd.f32 %v6985, %v6992
        %v7010 = vadd.f32 %v6986, %v6997
        %v7011 = vadd.f32 %v6987, %v7002
        %v7012 = vadd.f32 %v6988, %v7007
        %7013 = vst.msk [vmem:[%s932 + $0x1c0] sm:$0xff] %vm4264, %v7009
        %7014 = vst.msk [vmem:[%s932 + $0x1c8] sm:$0xff] %vm4264, %v7010
        %7015 = vst.msk [vmem:[%s932 + $0x1d0] sm:$0xff] %vm4264, %v7011
        %7016 = vst.msk [vmem:[%s932 + $0x1d8] sm:$0xff] %vm4264, %v7012
        %v7017 = vld [vmem:[%s31] sm:$0xff]
        %v7018 = vld [vmem:[%s31 + $0x8] sm:$0xff]
        %v7019 = vld [vmem:[%s31 + $0x10] sm:$0xff]
        %v7020 = vld [vmem:[%s31 + $0x18] sm:$0xff]
        %v7021 = vld [vmem:[%s926 + $0x1e0] sm:$0xff]
        %v7022 = vld [vmem:[%s926 + $0x1e8] sm:$0xff]
        %v7023 = vld [vmem:[%s926 + $0x1f0] sm:$0xff]
        %v7024 = vld [vmem:[%s926 + $0x1f8] sm:$0xff]
        %v7025 = vsel %vm4264, %v7017, 0.0
        %7026 = vadd.xlane.f32.xlu0 %v7025
        %v7027 = vpop.xlane.xlu0 %7026
        %v7028 = vsel %vm4264, %v7018, 0.0
        %7029 = vadd.xlane.f32.xlu0 %v7028
        %v7030 = vpop.xlane.xlu0 %7029
        %v7031 = vsel %vm4264, %v7019, 0.0
        %7032 = vadd.xlane.f32.xlu0 %v7031
        %v7033 = vpop.xlane.xlu0 %7032
        %v7034 = vsel %vm4264, %v7020, 0.0
        %7035 = vadd.xlane.f32.xlu0 %v7034
        %v7036 = vpop.xlane.xlu0 %7035
        %v7037 = vmul.f32 %v7027, 0.020408163
        %v7038 = vmul.f32 %v7030, 0.020408163
        %v7039 = vmul.f32 %v7033, 0.020408163
        %v7040 = vmul.f32 %v7036, 0.020408163
        %v7041 = vsub.f32 %v7017, %v7037
        %v7042 = vsub.f32 %v7018, %v7038
        %v7043 = vsub.f32 %v7019, %v7039
        %v7044 = vsub.f32 %v7020, %v7040
        %v7045 = vmul.f32 %v7041, %v7041
        %v7046 = vmul.f32 %v7042, %v7042
        %v7047 = vmul.f32 %v7043, %v7043
        %v7048 = vmul.f32 %v7044, %v7044
        %v7049 = vsel %vm4264, %v7045, 0.0
        %7050 = vadd.xlane.f32.xlu0 %v7049
        %v7051 = vpop.xlane.xlu0 %7050
        %v7052 = vsel %vm4264, %v7046, 0.0
        %7053 = vadd.xlane.f32.xlu0 %v7052
        %v7054 = vpop.xlane.xlu0 %7053
        %v7055 = vsel %vm4264, %v7047, 0.0
        %7056 = vadd.xlane.f32.xlu0 %v7055
        %v7057 = vpop.xlane.xlu0 %7056
        %v7058 = vsel %vm4264, %v7048, 0.0
        %7059 = vadd.xlane.f32.xlu0 %v7058
        %v7060 = vpop.xlane.xlu0 %7059
        %v7061 = vmul.f32 %v7051, 0.020408163
        %v7062 = vmul.f32 %v7054, 0.020408163
        %v7063 = vmul.f32 %v7057, 0.020408163
        %v7064 = vmul.f32 %v7060, 0.020408163
        %v7065 = vadd.f32 %v7061, 1e-05
        %v7066 = vadd.f32 %v7062, 1e-05
        %v7067 = vadd.f32 %v7063, 1e-05
        %v7068 = vadd.f32 %v7064, 1e-05
        %v7069 = vrsqrt.pop %v7065
        %v7070 = vrsqrt.pop %v7066
        %v7071 = vrsqrt.pop %v7067
        %v7072 = vrsqrt.pop %v7068
        %v7073 = vmul.f32 %v7069, %v7021
        %v7074 = vmul.f32 %v7070, %v7022
        %v7075 = vmul.f32 %v7071, %v7023
        %v7076 = vmul.f32 %v7072, %v7024
        %7078 = vset.pattern.permute.xlu0 0
        %7079 = vperm.xlu0 %7078, %v7073
        %v7080 = vpop.permute.xlu0 %7079
        %7083 = vset.pattern.permute.xlu0 0
        %7084 = vperm.xlu0 %7083, %v7074
        %v7085 = vpop.permute.xlu0 %7084
        %7088 = vset.pattern.permute.xlu0 0
        %7089 = vperm.xlu0 %7088, %v7075
        %v7090 = vpop.permute.xlu0 %7089
        %7093 = vset.pattern.permute.xlu0 0
        %7094 = vperm.xlu0 %7093, %v7076
        %v7095 = vpop.permute.xlu0 %7094
        %v7097 = vmul.f32 %v7041, %v7080
        %v7098 = vmul.f32 %v7042, %v7085
        %v7099 = vmul.f32 %v7043, %v7090
        %v7100 = vmul.f32 %v7044, %v7095
        %7102 = vset.pattern.permute.xlu0 1
        %7103 = vperm.xlu0 %7102, %v7021
        %v7104 = vpop.permute.xlu0 %7103
        %7107 = vset.pattern.permute.xlu0 1
        %7108 = vperm.xlu0 %7107, %v7022
        %v7109 = vpop.permute.xlu0 %7108
        %7112 = vset.pattern.permute.xlu0 1
        %7113 = vperm.xlu0 %7112, %v7023
        %v7114 = vpop.permute.xlu0 %7113
        %7117 = vset.pattern.permute.xlu0 1
        %7118 = vperm.xlu0 %7117, %v7024
        %v7119 = vpop.permute.xlu0 %7118
        %v7121 = vadd.f32 %v7097, %v7104
        %v7122 = vadd.f32 %v7098, %v7109
        %v7123 = vadd.f32 %v7099, %v7114
        %v7124 = vadd.f32 %v7100, %v7119
        %7125 = vst.msk [vmem:[%s932 + $0x1e0] sm:$0xff] %vm4264, %v7121
        %7126 = vst.msk [vmem:[%s932 + $0x1e8] sm:$0xff] %vm4264, %v7122
        %7127 = vst.msk [vmem:[%s932 + $0x1f0] sm:$0xff] %vm4264, %v7123
        %7128 = vst.msk [vmem:[%s932 + $0x1f8] sm:$0xff] %vm4264, %v7124
        %v7129 = vld [vmem:[%s33] sm:$0xff]
        %v7130 = vld [vmem:[%s33 + $0x8] sm:$0xff]
        %v7131 = vld [vmem:[%s33 + $0x10] sm:$0xff]
        %v7132 = vld [vmem:[%s33 + $0x18] sm:$0xff]
        %v7133 = vld [vmem:[%s926 + $0x200] sm:$0xff]
        %v7134 = vld [vmem:[%s926 + $0x208] sm:$0xff]
        %v7135 = vld [vmem:[%s926 + $0x210] sm:$0xff]
        %v7136 = vld [vmem:[%s926 + $0x218] sm:$0xff]
        %v7137 = vsel %vm4264, %v7129, 0.0
        %7138 = vadd.xlane.f32.xlu0 %v7137
        %v7139 = vpop.xlane.xlu0 %7138
        %v7140 = vsel %vm4264, %v7130, 0.0
        %7141 = vadd.xlane.f32.xlu0 %v7140
        %v7142 = vpop.xlane.xlu0 %7141
        %v7143 = vsel %vm4264, %v7131, 0.0
        %7144 = vadd.xlane.f32.xlu0 %v7143
        %v7145 = vpop.xlane.xlu0 %7144
        %v7146 = vsel %vm4264, %v7132, 0.0
        %7147 = vadd.xlane.f32.xlu0 %v7146
        %v7148 = vpop.xlane.xlu0 %7147
        %v7149 = vmul.f32 %v7139, 0.020408163
        %v7150 = vmul.f32 %v7142, 0.020408163
        %v7151 = vmul.f32 %v7145, 0.020408163
        %v7152 = vmul.f32 %v7148, 0.020408163
        %v7153 = vsub.f32 %v7129, %v7149
        %v7154 = vsub.f32 %v7130, %v7150
        %v7155 = vsub.f32 %v7131, %v7151
        %v7156 = vsub.f32 %v7132, %v7152
        %v7157 = vmul.f32 %v7153, %v7153
        %v7158 = vmul.f32 %v7154, %v7154
        %v7159 = vmul.f32 %v7155, %v7155
        %v7160 = vmul.f32 %v7156, %v7156
        %v7161 = vsel %vm4264, %v7157, 0.0
        %7162 = vadd.xlane.f32.xlu0 %v7161
        %v7163 = vpop.xlane.xlu0 %7162
        %v7164 = vsel %vm4264, %v7158, 0.0
        %7165 = vadd.xlane.f32.xlu0 %v7164
        %v7166 = vpop.xlane.xlu0 %7165
        %v7167 = vsel %vm4264, %v7159, 0.0
        %7168 = vadd.xlane.f32.xlu0 %v7167
        %v7169 = vpop.xlane.xlu0 %7168
        %v7170 = vsel %vm4264, %v7160, 0.0
        %7171 = vadd.xlane.f32.xlu0 %v7170
        %v7172 = vpop.xlane.xlu0 %7171
        %v7173 = vmul.f32 %v7163, 0.020408163
        %v7174 = vmul.f32 %v7166, 0.020408163
        %v7175 = vmul.f32 %v7169, 0.020408163
        %v7176 = vmul.f32 %v7172, 0.020408163
        %v7177 = vadd.f32 %v7173, 1e-05
        %v7178 = vadd.f32 %v7174, 1e-05
        %v7179 = vadd.f32 %v7175, 1e-05
        %v7180 = vadd.f32 %v7176, 1e-05
        %v7181 = vrsqrt.pop %v7177
        %v7182 = vrsqrt.pop %v7178
        %v7183 = vrsqrt.pop %v7179
        %v7184 = vrsqrt.pop %v7180
        %v7185 = vmul.f32 %v7181, %v7133
        %v7186 = vmul.f32 %v7182, %v7134
        %v7187 = vmul.f32 %v7183, %v7135
        %v7188 = vmul.f32 %v7184, %v7136
        %7190 = vset.pattern.permute.xlu0 0
        %7191 = vperm.xlu0 %7190, %v7185
        %v7192 = vpop.permute.xlu0 %7191
        %7195 = vset.pattern.permute.xlu0 0
        %7196 = vperm.xlu0 %7195, %v7186
        %v7197 = vpop.permute.xlu0 %7196
        %7200 = vset.pattern.permute.xlu0 0
        %7201 = vperm.xlu0 %7200, %v7187
        %v7202 = vpop.permute.xlu0 %7201
        %7205 = vset.pattern.permute.xlu0 0
        %7206 = vperm.xlu0 %7205, %v7188
        %v7207 = vpop.permute.xlu0 %7206
        %v7209 = vmul.f32 %v7153, %v7192
        %v7210 = vmul.f32 %v7154, %v7197
        %v7211 = vmul.f32 %v7155, %v7202
        %v7212 = vmul.f32 %v7156, %v7207
        %7214 = vset.pattern.permute.xlu0 1
        %7215 = vperm.xlu0 %7214, %v7133
        %v7216 = vpop.permute.xlu0 %7215
        %7219 = vset.pattern.permute.xlu0 1
        %7220 = vperm.xlu0 %7219, %v7134
        %v7221 = vpop.permute.xlu0 %7220
        %7224 = vset.pattern.permute.xlu0 1
        %7225 = vperm.xlu0 %7224, %v7135
        %v7226 = vpop.permute.xlu0 %7225
        %7229 = vset.pattern.permute.xlu0 1
        %7230 = vperm.xlu0 %7229, %v7136
        %v7231 = vpop.permute.xlu0 %7230
        %v7233 = vadd.f32 %v7209, %v7216
        %v7234 = vadd.f32 %v7210, %v7221
        %v7235 = vadd.f32 %v7211, %v7226
        %v7236 = vadd.f32 %v7212, %v7231
        %7237 = vst.msk [vmem:[%s932 + $0x200] sm:$0xff] %vm4264, %v7233
        %7238 = vst.msk [vmem:[%s932 + $0x208] sm:$0xff] %vm4264, %v7234
        %7239 = vst.msk [vmem:[%s932 + $0x210] sm:$0xff] %vm4264, %v7235
        %7240 = vst.msk [vmem:[%s932 + $0x218] sm:$0xff] %vm4264, %v7236
        %v7241 = vld [vmem:[%s35] sm:$0xff]
        %v7242 = vld [vmem:[%s35 + $0x8] sm:$0xff]
        %v7243 = vld [vmem:[%s35 + $0x10] sm:$0xff]
        %v7244 = vld [vmem:[%s35 + $0x18] sm:$0xff]
        %v7245 = vld [vmem:[%s926 + $0x220] sm:$0xff]
        %v7246 = vld [vmem:[%s926 + $0x228] sm:$0xff]
        %v7247 = vld [vmem:[%s926 + $0x230] sm:$0xff]
        %v7248 = vld [vmem:[%s926 + $0x238] sm:$0xff]
        %v7249 = vsel %vm4264, %v7241, 0.0
        %7250 = vadd.xlane.f32.xlu0 %v7249
        %v7251 = vpop.xlane.xlu0 %7250
        %v7252 = vsel %vm4264, %v7242, 0.0
        %7253 = vadd.xlane.f32.xlu0 %v7252
        %v7254 = vpop.xlane.xlu0 %7253
        %v7255 = vsel %vm4264, %v7243, 0.0
        %7256 = vadd.xlane.f32.xlu0 %v7255
        %v7257 = vpop.xlane.xlu0 %7256
        %v7258 = vsel %vm4264, %v7244, 0.0
        %7259 = vadd.xlane.f32.xlu0 %v7258
        %v7260 = vpop.xlane.xlu0 %7259
        %v7261 = vmul.f32 %v7251, 0.020408163
        %v7262 = vmul.f32 %v7254, 0.020408163
        %v7263 = vmul.f32 %v7257, 0.020408163
        %v7264 = vmul.f32 %v7260, 0.020408163
        %v7265 = vsub.f32 %v7241, %v7261
        %v7266 = vsub.f32 %v7242, %v7262
        %v7267 = vsub.f32 %v7243, %v7263
        %v7268 = vsub.f32 %v7244, %v7264
        %v7269 = vmul.f32 %v7265, %v7265
        %v7270 = vmul.f32 %v7266, %v7266
        %v7271 = vmul.f32 %v7267, %v7267
        %v7272 = vmul.f32 %v7268, %v7268
        %v7273 = vsel %vm4264, %v7269, 0.0
        %7274 = vadd.xlane.f32.xlu0 %v7273
        %v7275 = vpop.xlane.xlu0 %7274
        %v7276 = vsel %vm4264, %v7270, 0.0
        %7277 = vadd.xlane.f32.xlu0 %v7276
        %v7278 = vpop.xlane.xlu0 %7277
        %v7279 = vsel %vm4264, %v7271, 0.0
        %7280 = vadd.xlane.f32.xlu0 %v7279
        %v7281 = vpop.xlane.xlu0 %7280
        %v7282 = vsel %vm4264, %v7272, 0.0
        %7283 = vadd.xlane.f32.xlu0 %v7282
        %v7284 = vpop.xlane.xlu0 %7283
        %v7285 = vmul.f32 %v7275, 0.020408163
        %v7286 = vmul.f32 %v7278, 0.020408163
        %v7287 = vmul.f32 %v7281, 0.020408163
        %v7288 = vmul.f32 %v7284, 0.020408163
        %v7289 = vadd.f32 %v7285, 1e-05
        %v7290 = vadd.f32 %v7286, 1e-05
        %v7291 = vadd.f32 %v7287, 1e-05
        %v7292 = vadd.f32 %v7288, 1e-05
        %v7293 = vrsqrt.pop %v7289
        %v7294 = vrsqrt.pop %v7290
        %v7295 = vrsqrt.pop %v7291
        %v7296 = vrsqrt.pop %v7292
        %v7297 = vmul.f32 %v7293, %v7245
        %v7298 = vmul.f32 %v7294, %v7246
        %v7299 = vmul.f32 %v7295, %v7247
        %v7300 = vmul.f32 %v7296, %v7248
        %7302 = vset.pattern.permute.xlu0 0
        %7303 = vperm.xlu0 %7302, %v7297
        %v7304 = vpop.permute.xlu0 %7303
        %7307 = vset.pattern.permute.xlu0 0
        %7308 = vperm.xlu0 %7307, %v7298
        %v7309 = vpop.permute.xlu0 %7308
        %7312 = vset.pattern.permute.xlu0 0
        %7313 = vperm.xlu0 %7312, %v7299
        %v7314 = vpop.permute.xlu0 %7313
        %7317 = vset.pattern.permute.xlu0 0
        %7318 = vperm.xlu0 %7317, %v7300
        %v7319 = vpop.permute.xlu0 %7318
        %v7321 = vmul.f32 %v7265, %v7304
        %v7322 = vmul.f32 %v7266, %v7309
        %v7323 = vmul.f32 %v7267, %v7314
        %v7324 = vmul.f32 %v7268, %v7319
        %7326 = vset.pattern.permute.xlu0 1
        %7327 = vperm.xlu0 %7326, %v7245
        %v7328 = vpop.permute.xlu0 %7327
        %7331 = vset.pattern.permute.xlu0 1
        %7332 = vperm.xlu0 %7331, %v7246
        %v7333 = vpop.permute.xlu0 %7332
        %7336 = vset.pattern.permute.xlu0 1
        %7337 = vperm.xlu0 %7336, %v7247
        %v7338 = vpop.permute.xlu0 %7337
        %7341 = vset.pattern.permute.xlu0 1
        %7342 = vperm.xlu0 %7341, %v7248
        %v7343 = vpop.permute.xlu0 %7342
        %v7345 = vadd.f32 %v7321, %v7328
        %v7346 = vadd.f32 %v7322, %v7333
        %v7347 = vadd.f32 %v7323, %v7338
        %v7348 = vadd.f32 %v7324, %v7343
        %7349 = vst.msk [vmem:[%s932 + $0x220] sm:$0xff] %vm4264, %v7345
        %7350 = vst.msk [vmem:[%s932 + $0x228] sm:$0xff] %vm4264, %v7346
        %7351 = vst.msk [vmem:[%s932 + $0x230] sm:$0xff] %vm4264, %v7347
        %7352 = vst.msk [vmem:[%s932 + $0x238] sm:$0xff] %vm4264, %v7348
        %v7353 = vld [vmem:[%s37] sm:$0xff]
        %v7354 = vld [vmem:[%s37 + $0x8] sm:$0xff]
        %v7355 = vld [vmem:[%s37 + $0x10] sm:$0xff]
        %v7356 = vld [vmem:[%s37 + $0x18] sm:$0xff]
        %v7357 = vld [vmem:[%s926 + $0x240] sm:$0xff]
        %v7358 = vld [vmem:[%s926 + $0x248] sm:$0xff]
        %v7359 = vld [vmem:[%s926 + $0x250] sm:$0xff]
        %v7360 = vld [vmem:[%s926 + $0x258] sm:$0xff]
        %v7361 = vsel %vm4264, %v7353, 0.0
        %7362 = vadd.xlane.f32.xlu0 %v7361
        %v7363 = vpop.xlane.xlu0 %7362
        %v7364 = vsel %vm4264, %v7354, 0.0
        %7365 = vadd.xlane.f32.xlu0 %v7364
        %v7366 = vpop.xlane.xlu0 %7365
        %v7367 = vsel %vm4264, %v7355, 0.0
        %7368 = vadd.xlane.f32.xlu0 %v7367
        %v7369 = vpop.xlane.xlu0 %7368
        %v7370 = vsel %vm4264, %v7356, 0.0
        %7371 = vadd.xlane.f32.xlu0 %v7370
        %v7372 = vpop.xlane.xlu0 %7371
        %v7373 = vmul.f32 %v7363, 0.020408163
        %v7374 = vmul.f32 %v7366, 0.020408163
        %v7375 = vmul.f32 %v7369, 0.020408163
        %v7376 = vmul.f32 %v7372, 0.020408163
        %v7377 = vsub.f32 %v7353, %v7373
        %v7378 = vsub.f32 %v7354, %v7374
        %v7379 = vsub.f32 %v7355, %v7375
        %v7380 = vsub.f32 %v7356, %v7376
        %v7381 = vmul.f32 %v7377, %v7377
        %v7382 = vmul.f32 %v7378, %v7378
        %v7383 = vmul.f32 %v7379, %v7379
        %v7384 = vmul.f32 %v7380, %v7380
        %v7385 = vsel %vm4264, %v7381, 0.0
        %7386 = vadd.xlane.f32.xlu0 %v7385
        %v7387 = vpop.xlane.xlu0 %7386
        %v7388 = vsel %vm4264, %v7382, 0.0
        %7389 = vadd.xlane.f32.xlu0 %v7388
        %v7390 = vpop.xlane.xlu0 %7389
        %v7391 = vsel %vm4264, %v7383, 0.0
        %7392 = vadd.xlane.f32.xlu0 %v7391
        %v7393 = vpop.xlane.xlu0 %7392
        %v7394 = vsel %vm4264, %v7384, 0.0
        %7395 = vadd.xlane.f32.xlu0 %v7394
        %v7396 = vpop.xlane.xlu0 %7395
        %v7397 = vmul.f32 %v7387, 0.020408163
        %v7398 = vmul.f32 %v7390, 0.020408163
        %v7399 = vmul.f32 %v7393, 0.020408163
        %v7400 = vmul.f32 %v7396, 0.020408163
        %v7401 = vadd.f32 %v7397, 1e-05
        %v7402 = vadd.f32 %v7398, 1e-05
        %v7403 = vadd.f32 %v7399, 1e-05
        %v7404 = vadd.f32 %v7400, 1e-05
        %v7405 = vrsqrt.pop %v7401
        %v7406 = vrsqrt.pop %v7402
        %v7407 = vrsqrt.pop %v7403
        %v7408 = vrsqrt.pop %v7404
        %v7409 = vmul.f32 %v7405, %v7357
        %v7410 = vmul.f32 %v7406, %v7358
        %v7411 = vmul.f32 %v7407, %v7359
        %v7412 = vmul.f32 %v7408, %v7360
        %7414 = vset.pattern.permute.xlu0 0
        %7415 = vperm.xlu0 %7414, %v7409
        %v7416 = vpop.permute.xlu0 %7415
        %7419 = vset.pattern.permute.xlu0 0
        %7420 = vperm.xlu0 %7419, %v7410
        %v7421 = vpop.permute.xlu0 %7420
        %7424 = vset.pattern.permute.xlu0 0
        %7425 = vperm.xlu0 %7424, %v7411
        %v7426 = vpop.permute.xlu0 %7425
        %7429 = vset.pattern.permute.xlu0 0
        %7430 = vperm.xlu0 %7429, %v7412
        %v7431 = vpop.permute.xlu0 %7430
        %v7433 = vmul.f32 %v7377, %v7416
        %v7434 = vmul.f32 %v7378, %v7421
        %v7435 = vmul.f32 %v7379, %v7426
        %v7436 = vmul.f32 %v7380, %v7431
        %7438 = vset.pattern.permute.xlu0 1
        %7439 = vperm.xlu0 %7438, %v7357
        %v7440 = vpop.permute.xlu0 %7439
        %7443 = vset.pattern.permute.xlu0 1
        %7444 = vperm.xlu0 %7443, %v7358
        %v7445 = vpop.permute.xlu0 %7444
        %7448 = vset.pattern.permute.xlu0 1
        %7449 = vperm.xlu0 %7448, %v7359
        %v7450 = vpop.permute.xlu0 %7449
        %7453 = vset.pattern.permute.xlu0 1
        %7454 = vperm.xlu0 %7453, %v7360
        %v7455 = vpop.permute.xlu0 %7454
        %v7457 = vadd.f32 %v7433, %v7440
        %v7458 = vadd.f32 %v7434, %v7445
        %v7459 = vadd.f32 %v7435, %v7450
        %v7460 = vadd.f32 %v7436, %v7455
        %7461 = vst.msk [vmem:[%s932 + $0x240] sm:$0xff] %vm4264, %v7457
        %7462 = vst.msk [vmem:[%s932 + $0x248] sm:$0xff] %vm4264, %v7458
        %7463 = vst.msk [vmem:[%s932 + $0x250] sm:$0xff] %vm4264, %v7459
        %7464 = vst.msk [vmem:[%s932 + $0x258] sm:$0xff] %vm4264, %v7460
        %v7465 = vld [vmem:[%s39] sm:$0xff]
        %v7466 = vld [vmem:[%s39 + $0x8] sm:$0xff]
        %v7467 = vld [vmem:[%s39 + $0x10] sm:$0xff]
        %v7468 = vld [vmem:[%s39 + $0x18] sm:$0xff]
        %v7469 = vld [vmem:[%s926 + $0x260] sm:$0xff]
        %v7470 = vld [vmem:[%s926 + $0x268] sm:$0xff]
        %v7471 = vld [vmem:[%s926 + $0x270] sm:$0xff]
        %v7472 = vld [vmem:[%s926 + $0x278] sm:$0xff]
        %v7473 = vsel %vm4264, %v7465, 0.0
        %7474 = vadd.xlane.f32.xlu0 %v7473
        %v7475 = vpop.xlane.xlu0 %7474
        %v7476 = vsel %vm4264, %v7466, 0.0
        %7477 = vadd.xlane.f32.xlu0 %v7476
        %v7478 = vpop.xlane.xlu0 %7477
        %v7479 = vsel %vm4264, %v7467, 0.0
        %7480 = vadd.xlane.f32.xlu0 %v7479
        %v7481 = vpop.xlane.xlu0 %7480
        %v7482 = vsel %vm4264, %v7468, 0.0
        %7483 = vadd.xlane.f32.xlu0 %v7482
        %v7484 = vpop.xlane.xlu0 %7483
        %v7485 = vmul.f32 %v7475, 0.020408163
        %v7486 = vmul.f32 %v7478, 0.020408163
        %v7487 = vmul.f32 %v7481, 0.020408163
        %v7488 = vmul.f32 %v7484, 0.020408163
        %v7489 = vsub.f32 %v7465, %v7485
        %v7490 = vsub.f32 %v7466, %v7486
        %v7491 = vsub.f32 %v7467, %v7487
        %v7492 = vsub.f32 %v7468, %v7488
        %v7493 = vmul.f32 %v7489, %v7489
        %v7494 = vmul.f32 %v7490, %v7490
        %v7495 = vmul.f32 %v7491, %v7491
        %v7496 = vmul.f32 %v7492, %v7492
        %v7497 = vsel %vm4264, %v7493, 0.0
        %7498 = vadd.xlane.f32.xlu0 %v7497
        %v7499 = vpop.xlane.xlu0 %7498
        %v7500 = vsel %vm4264, %v7494, 0.0
        %7501 = vadd.xlane.f32.xlu0 %v7500
        %v7502 = vpop.xlane.xlu0 %7501
        %v7503 = vsel %vm4264, %v7495, 0.0
        %7504 = vadd.xlane.f32.xlu0 %v7503
        %v7505 = vpop.xlane.xlu0 %7504
        %v7506 = vsel %vm4264, %v7496, 0.0
        %7507 = vadd.xlane.f32.xlu0 %v7506
        %v7508 = vpop.xlane.xlu0 %7507
        %v7509 = vmul.f32 %v7499, 0.020408163
        %v7510 = vmul.f32 %v7502, 0.020408163
        %v7511 = vmul.f32 %v7505, 0.020408163
        %v7512 = vmul.f32 %v7508, 0.020408163
        %v7513 = vadd.f32 %v7509, 1e-05
        %v7514 = vadd.f32 %v7510, 1e-05
        %v7515 = vadd.f32 %v7511, 1e-05
        %v7516 = vadd.f32 %v7512, 1e-05
        %v7517 = vrsqrt.pop %v7513
        %v7518 = vrsqrt.pop %v7514
        %v7519 = vrsqrt.pop %v7515
        %v7520 = vrsqrt.pop %v7516
        %v7521 = vmul.f32 %v7517, %v7469
        %v7522 = vmul.f32 %v7518, %v7470
        %v7523 = vmul.f32 %v7519, %v7471
        %v7524 = vmul.f32 %v7520, %v7472
        %7526 = vset.pattern.permute.xlu0 0
        %7527 = vperm.xlu0 %7526, %v7521
        %v7528 = vpop.permute.xlu0 %7527
        %7531 = vset.pattern.permute.xlu0 0
        %7532 = vperm.xlu0 %7531, %v7522
        %v7533 = vpop.permute.xlu0 %7532
        %7536 = vset.pattern.permute.xlu0 0
        %7537 = vperm.xlu0 %7536, %v7523
        %v7538 = vpop.permute.xlu0 %7537
        %7541 = vset.pattern.permute.xlu0 0
        %7542 = vperm.xlu0 %7541, %v7524
        %v7543 = vpop.permute.xlu0 %7542
        %v7545 = vmul.f32 %v7489, %v7528
        %v7546 = vmul.f32 %v7490, %v7533
        %v7547 = vmul.f32 %v7491, %v7538
        %v7548 = vmul.f32 %v7492, %v7543
        %7550 = vset.pattern.permute.xlu0 1
        %7551 = vperm.xlu0 %7550, %v7469
        %v7552 = vpop.permute.xlu0 %7551
        %7555 = vset.pattern.permute.xlu0 1
        %7556 = vperm.xlu0 %7555, %v7470
        %v7557 = vpop.permute.xlu0 %7556
        %7560 = vset.pattern.permute.xlu0 1
        %7561 = vperm.xlu0 %7560, %v7471
        %v7562 = vpop.permute.xlu0 %7561
        %7565 = vset.pattern.permute.xlu0 1
        %7566 = vperm.xlu0 %7565, %v7472
        %v7567 = vpop.permute.xlu0 %7566
        %v7569 = vadd.f32 %v7545, %v7552
        %v7570 = vadd.f32 %v7546, %v7557
        %v7571 = vadd.f32 %v7547, %v7562
        %v7572 = vadd.f32 %v7548, %v7567
        %7573 = vst.msk [vmem:[%s932 + $0x260] sm:$0xff] %vm4264, %v7569
        %7574 = vst.msk [vmem:[%s932 + $0x268] sm:$0xff] %vm4264, %v7570
        %7575 = vst.msk [vmem:[%s932 + $0x270] sm:$0xff] %vm4264, %v7571
        %7576 = vst.msk [vmem:[%s932 + $0x278] sm:$0xff] %vm4264, %v7572
        %v7577 = vld [vmem:[%s41] sm:$0xff]
        %v7578 = vld [vmem:[%s41 + $0x8] sm:$0xff]
        %v7579 = vld [vmem:[%s41 + $0x10] sm:$0xff]
        %v7580 = vld [vmem:[%s41 + $0x18] sm:$0xff]
        %v7581 = vld [vmem:[%s926 + $0x280] sm:$0xff]
        %v7582 = vld [vmem:[%s926 + $0x288] sm:$0xff]
        %v7583 = vld [vmem:[%s926 + $0x290] sm:$0xff]
        %v7584 = vld [vmem:[%s926 + $0x298] sm:$0xff]
        %v7585 = vsel %vm4264, %v7577, 0.0
        %7586 = vadd.xlane.f32.xlu0 %v7585
        %v7587 = vpop.xlane.xlu0 %7586
        %v7588 = vsel %vm4264, %v7578, 0.0
        %7589 = vadd.xlane.f32.xlu0 %v7588
        %v7590 = vpop.xlane.xlu0 %7589
        %v7591 = vsel %vm4264, %v7579, 0.0
        %7592 = vadd.xlane.f32.xlu0 %v7591
        %v7593 = vpop.xlane.xlu0 %7592
        %v7594 = vsel %vm4264, %v7580, 0.0
        %7595 = vadd.xlane.f32.xlu0 %v7594
        %v7596 = vpop.xlane.xlu0 %7595
        %v7597 = vmul.f32 %v7587, 0.020408163
        %v7598 = vmul.f32 %v7590, 0.020408163
        %v7599 = vmul.f32 %v7593, 0.020408163
        %v7600 = vmul.f32 %v7596, 0.020408163
        %v7601 = vsub.f32 %v7577, %v7597
        %v7602 = vsub.f32 %v7578, %v7598
        %v7603 = vsub.f32 %v7579, %v7599
        %v7604 = vsub.f32 %v7580, %v7600
        %v7605 = vmul.f32 %v7601, %v7601
        %v7606 = vmul.f32 %v7602, %v7602
        %v7607 = vmul.f32 %v7603, %v7603
        %v7608 = vmul.f32 %v7604, %v7604
        %v7609 = vsel %vm4264, %v7605, 0.0
        %7610 = vadd.xlane.f32.xlu0 %v7609
        %v7611 = vpop.xlane.xlu0 %7610
        %v7612 = vsel %vm4264, %v7606, 0.0
        %7613 = vadd.xlane.f32.xlu0 %v7612
        %v7614 = vpop.xlane.xlu0 %7613
        %v7615 = vsel %vm4264, %v7607, 0.0
        %7616 = vadd.xlane.f32.xlu0 %v7615
        %v7617 = vpop.xlane.xlu0 %7616
        %v7618 = vsel %vm4264, %v7608, 0.0
        %7619 = vadd.xlane.f32.xlu0 %v7618
        %v7620 = vpop.xlane.xlu0 %7619
        %v7621 = vmul.f32 %v7611, 0.020408163
        %v7622 = vmul.f32 %v7614, 0.020408163
        %v7623 = vmul.f32 %v7617, 0.020408163
        %v7624 = vmul.f32 %v7620, 0.020408163
        %v7625 = vadd.f32 %v7621, 1e-05
        %v7626 = vadd.f32 %v7622, 1e-05
        %v7627 = vadd.f32 %v7623, 1e-05
        %v7628 = vadd.f32 %v7624, 1e-05
        %v7629 = vrsqrt.pop %v7625
        %v7630 = vrsqrt.pop %v7626
        %v7631 = vrsqrt.pop %v7627
        %v7632 = vrsqrt.pop %v7628
        %v7633 = vmul.f32 %v7629, %v7581
        %v7634 = vmul.f32 %v7630, %v7582
        %v7635 = vmul.f32 %v7631, %v7583
        %v7636 = vmul.f32 %v7632, %v7584
        %7638 = vset.pattern.permute.xlu0 0
        %7639 = vperm.xlu0 %7638, %v7633
        %v7640 = vpop.permute.xlu0 %7639
        %7643 = vset.pattern.permute.xlu0 0
        %7644 = vperm.xlu0 %7643, %v7634
        %v7645 = vpop.permute.xlu0 %7644
        %7648 = vset.pattern.permute.xlu0 0
        %7649 = vperm.xlu0 %7648, %v7635
        %v7650 = vpop.permute.xlu0 %7649
        %7653 = vset.pattern.permute.xlu0 0
        %7654 = vperm.xlu0 %7653, %v7636
        %v7655 = vpop.permute.xlu0 %7654
        %v7657 = vmul.f32 %v7601, %v7640
        %v7658 = vmul.f32 %v7602, %v7645
        %v7659 = vmul.f32 %v7603, %v7650
        %v7660 = vmul.f32 %v7604, %v7655
        %7662 = vset.pattern.permute.xlu0 1
        %7663 = vperm.xlu0 %7662, %v7581
        %v7664 = vpop.permute.xlu0 %7663
        %7667 = vset.pattern.permute.xlu0 1
        %7668 = vperm.xlu0 %7667, %v7582
        %v7669 = vpop.permute.xlu0 %7668
        %7672 = vset.pattern.permute.xlu0 1
        %7673 = vperm.xlu0 %7672, %v7583
        %v7674 = vpop.permute.xlu0 %7673
        %7677 = vset.pattern.permute.xlu0 1
        %7678 = vperm.xlu0 %7677, %v7584
        %v7679 = vpop.permute.xlu0 %7678
        %v7681 = vadd.f32 %v7657, %v7664
        %v7682 = vadd.f32 %v7658, %v7669
        %v7683 = vadd.f32 %v7659, %v7674
        %v7684 = vadd.f32 %v7660, %v7679
        %7685 = vst.msk [vmem:[%s932 + $0x280] sm:$0xff] %vm4264, %v7681
        %7686 = vst.msk [vmem:[%s932 + $0x288] sm:$0xff] %vm4264, %v7682
        %7687 = vst.msk [vmem:[%s932 + $0x290] sm:$0xff] %vm4264, %v7683
        %7688 = vst.msk [vmem:[%s932 + $0x298] sm:$0xff] %vm4264, %v7684
        %v7689 = vld [vmem:[%s43] sm:$0xff]
        %v7690 = vld [vmem:[%s43 + $0x8] sm:$0xff]
        %v7691 = vld [vmem:[%s43 + $0x10] sm:$0xff]
        %v7692 = vld [vmem:[%s43 + $0x18] sm:$0xff]
        %v7693 = vld [vmem:[%s926 + $0x2a0] sm:$0xff]
        %v7694 = vld [vmem:[%s926 + $0x2a8] sm:$0xff]
        %v7695 = vld [vmem:[%s926 + $0x2b0] sm:$0xff]
        %v7696 = vld [vmem:[%s926 + $0x2b8] sm:$0xff]
        %v7697 = vsel %vm4264, %v7689, 0.0
        %7698 = vadd.xlane.f32.xlu0 %v7697
        %v7699 = vpop.xlane.xlu0 %7698
        %v7700 = vsel %vm4264, %v7690, 0.0
        %7701 = vadd.xlane.f32.xlu0 %v7700
        %v7702 = vpop.xlane.xlu0 %7701
        %v7703 = vsel %vm4264, %v7691, 0.0
        %7704 = vadd.xlane.f32.xlu0 %v7703
        %v7705 = vpop.xlane.xlu0 %7704
        %v7706 = vsel %vm4264, %v7692, 0.0
        %7707 = vadd.xlane.f32.xlu0 %v7706
        %v7708 = vpop.xlane.xlu0 %7707
        %v7709 = vmul.f32 %v7699, 0.020408163
        %v7710 = vmul.f32 %v7702, 0.020408163
        %v7711 = vmul.f32 %v7705, 0.020408163
        %v7712 = vmul.f32 %v7708, 0.020408163
        %v7713 = vsub.f32 %v7689, %v7709
        %v7714 = vsub.f32 %v7690, %v7710
        %v7715 = vsub.f32 %v7691, %v7711
        %v7716 = vsub.f32 %v7692, %v7712
        %v7717 = vmul.f32 %v7713, %v7713
        %v7718 = vmul.f32 %v7714, %v7714
        %v7719 = vmul.f32 %v7715, %v7715
        %v7720 = vmul.f32 %v7716, %v7716
        %v7721 = vsel %vm4264, %v7717, 0.0
        %7722 = vadd.xlane.f32.xlu0 %v7721
        %v7723 = vpop.xlane.xlu0 %7722
        %v7724 = vsel %vm4264, %v7718, 0.0
        %7725 = vadd.xlane.f32.xlu0 %v7724
        %v7726 = vpop.xlane.xlu0 %7725
        %v7727 = vsel %vm4264, %v7719, 0.0
        %7728 = vadd.xlane.f32.xlu0 %v7727
        %v7729 = vpop.xlane.xlu0 %7728
        %v7730 = vsel %vm4264, %v7720, 0.0
        %7731 = vadd.xlane.f32.xlu0 %v7730
        %v7732 = vpop.xlane.xlu0 %7731
        %v7733 = vmul.f32 %v7723, 0.020408163
        %v7734 = vmul.f32 %v7726, 0.020408163
        %v7735 = vmul.f32 %v7729, 0.020408163
        %v7736 = vmul.f32 %v7732, 0.020408163
        %v7737 = vadd.f32 %v7733, 1e-05
        %v7738 = vadd.f32 %v7734, 1e-05
        %v7739 = vadd.f32 %v7735, 1e-05
        %v7740 = vadd.f32 %v7736, 1e-05
        %v7741 = vrsqrt.pop %v7737
        %v7742 = vrsqrt.pop %v7738
        %v7743 = vrsqrt.pop %v7739
        %v7744 = vrsqrt.pop %v7740
        %v7745 = vmul.f32 %v7741, %v7693
        %v7746 = vmul.f32 %v7742, %v7694
        %v7747 = vmul.f32 %v7743, %v7695
        %v7748 = vmul.f32 %v7744, %v7696
        %7750 = vset.pattern.permute.xlu0 0
        %7751 = vperm.xlu0 %7750, %v7745
        %v7752 = vpop.permute.xlu0 %7751
        %7755 = vset.pattern.permute.xlu0 0
        %7756 = vperm.xlu0 %7755, %v7746
        %v7757 = vpop.permute.xlu0 %7756
        %7760 = vset.pattern.permute.xlu0 0
        %7761 = vperm.xlu0 %7760, %v7747
        %v7762 = vpop.permute.xlu0 %7761
        %7765 = vset.pattern.permute.xlu0 0
        %7766 = vperm.xlu0 %7765, %v7748
        %v7767 = vpop.permute.xlu0 %7766
        %v7769 = vmul.f32 %v7713, %v7752
        %v7770 = vmul.f32 %v7714, %v7757
        %v7771 = vmul.f32 %v7715, %v7762
        %v7772 = vmul.f32 %v7716, %v7767
        %7774 = vset.pattern.permute.xlu0 1
        %7775 = vperm.xlu0 %7774, %v7693
        %v7776 = vpop.permute.xlu0 %7775
        %7779 = vset.pattern.permute.xlu0 1
        %7780 = vperm.xlu0 %7779, %v7694
        %v7781 = vpop.permute.xlu0 %7780
        %7784 = vset.pattern.permute.xlu0 1
        %7785 = vperm.xlu0 %7784, %v7695
        %v7786 = vpop.permute.xlu0 %7785
        %7789 = vset.pattern.permute.xlu0 1
        %7790 = vperm.xlu0 %7789, %v7696
        %v7791 = vpop.permute.xlu0 %7790
        %v7793 = vadd.f32 %v7769, %v7776
        %v7794 = vadd.f32 %v7770, %v7781
        %v7795 = vadd.f32 %v7771, %v7786
        %v7796 = vadd.f32 %v7772, %v7791
        %7797 = vst.msk [vmem:[%s932 + $0x2a0] sm:$0xff] %vm4264, %v7793
        %7798 = vst.msk [vmem:[%s932 + $0x2a8] sm:$0xff] %vm4264, %v7794
        %7799 = vst.msk [vmem:[%s932 + $0x2b0] sm:$0xff] %vm4264, %v7795
        %7800 = vst.msk [vmem:[%s932 + $0x2b8] sm:$0xff] %vm4264, %v7796
        %v7801 = vld [vmem:[%s45] sm:$0xff]
        %v7802 = vld [vmem:[%s45 + $0x8] sm:$0xff]
        %v7803 = vld [vmem:[%s45 + $0x10] sm:$0xff]
        %v7804 = vld [vmem:[%s45 + $0x18] sm:$0xff]
        %v7805 = vld [vmem:[%s926 + $0x2c0] sm:$0xff]
        %v7806 = vld [vmem:[%s926 + $0x2c8] sm:$0xff]
        %v7807 = vld [vmem:[%s926 + $0x2d0] sm:$0xff]
        %v7808 = vld [vmem:[%s926 + $0x2d8] sm:$0xff]
        %v7809 = vsel %vm4264, %v7801, 0.0
        %7810 = vadd.xlane.f32.xlu0 %v7809
        %v7811 = vpop.xlane.xlu0 %7810
        %v7812 = vsel %vm4264, %v7802, 0.0
        %7813 = vadd.xlane.f32.xlu0 %v7812
        %v7814 = vpop.xlane.xlu0 %7813
        %v7815 = vsel %vm4264, %v7803, 0.0
        %7816 = vadd.xlane.f32.xlu0 %v7815
        %v7817 = vpop.xlane.xlu0 %7816
        %v7818 = vsel %vm4264, %v7804, 0.0
        %7819 = vadd.xlane.f32.xlu0 %v7818
        %v7820 = vpop.xlane.xlu0 %7819
        %v7821 = vmul.f32 %v7811, 0.020408163
        %v7822 = vmul.f32 %v7814, 0.020408163
        %v7823 = vmul.f32 %v7817, 0.020408163
        %v7824 = vmul.f32 %v7820, 0.020408163
        %v7825 = vsub.f32 %v7801, %v7821
        %v7826 = vsub.f32 %v7802, %v7822
        %v7827 = vsub.f32 %v7803, %v7823
        %v7828 = vsub.f32 %v7804, %v7824
        %v7829 = vmul.f32 %v7825, %v7825
        %v7830 = vmul.f32 %v7826, %v7826
        %v7831 = vmul.f32 %v7827, %v7827
        %v7832 = vmul.f32 %v7828, %v7828
        %v7833 = vsel %vm4264, %v7829, 0.0
        %7834 = vadd.xlane.f32.xlu0 %v7833
        %v7835 = vpop.xlane.xlu0 %7834
        %v7836 = vsel %vm4264, %v7830, 0.0
        %7837 = vadd.xlane.f32.xlu0 %v7836
        %v7838 = vpop.xlane.xlu0 %7837
        %v7839 = vsel %vm4264, %v7831, 0.0
        %7840 = vadd.xlane.f32.xlu0 %v7839
        %v7841 = vpop.xlane.xlu0 %7840
        %v7842 = vsel %vm4264, %v7832, 0.0
        %7843 = vadd.xlane.f32.xlu0 %v7842
        %v7844 = vpop.xlane.xlu0 %7843
        %v7845 = vmul.f32 %v7835, 0.020408163
        %v7846 = vmul.f32 %v7838, 0.020408163
        %v7847 = vmul.f32 %v7841, 0.020408163
        %v7848 = vmul.f32 %v7844, 0.020408163
        %v7849 = vadd.f32 %v7845, 1e-05
        %v7850 = vadd.f32 %v7846, 1e-05
        %v7851 = vadd.f32 %v7847, 1e-05
        %v7852 = vadd.f32 %v7848, 1e-05
        %v7853 = vrsqrt.pop %v7849
        %v7854 = vrsqrt.pop %v7850
        %v7855 = vrsqrt.pop %v7851
        %v7856 = vrsqrt.pop %v7852
        %v7857 = vmul.f32 %v7853, %v7805
        %v7858 = vmul.f32 %v7854, %v7806
        %v7859 = vmul.f32 %v7855, %v7807
        %v7860 = vmul.f32 %v7856, %v7808
        %7862 = vset.pattern.permute.xlu0 0
        %7863 = vperm.xlu0 %7862, %v7857
        %v7864 = vpop.permute.xlu0 %7863
        %7867 = vset.pattern.permute.xlu0 0
        %7868 = vperm.xlu0 %7867, %v7858
        %v7869 = vpop.permute.xlu0 %7868
        %7872 = vset.pattern.permute.xlu0 0
        %7873 = vperm.xlu0 %7872, %v7859
        %v7874 = vpop.permute.xlu0 %7873
        %7877 = vset.pattern.permute.xlu0 0
        %7878 = vperm.xlu0 %7877, %v7860
        %v7879 = vpop.permute.xlu0 %7878
        %v7881 = vmul.f32 %v7825, %v7864
        %v7882 = vmul.f32 %v7826, %v7869
        %v7883 = vmul.f32 %v7827, %v7874
        %v7884 = vmul.f32 %v7828, %v7879
        %7886 = vset.pattern.permute.xlu0 1
        %7887 = vperm.xlu0 %7886, %v7805
        %v7888 = vpop.permute.xlu0 %7887
        %7891 = vset.pattern.permute.xlu0 1
        %7892 = vperm.xlu0 %7891, %v7806
        %v7893 = vpop.permute.xlu0 %7892
        %7896 = vset.pattern.permute.xlu0 1
        %7897 = vperm.xlu0 %7896, %v7807
        %v7898 = vpop.permute.xlu0 %7897
        %7901 = vset.pattern.permute.xlu0 1
        %7902 = vperm.xlu0 %7901, %v7808
        %v7903 = vpop.permute.xlu0 %7902
        %v7905 = vadd.f32 %v7881, %v7888
        %v7906 = vadd.f32 %v7882, %v7893
        %v7907 = vadd.f32 %v7883, %v7898
        %v7908 = vadd.f32 %v7884, %v7903
        %7909 = vst.msk [vmem:[%s932 + $0x2c0] sm:$0xff] %vm4264, %v7905
        %7910 = vst.msk [vmem:[%s932 + $0x2c8] sm:$0xff] %vm4264, %v7906
        %7911 = vst.msk [vmem:[%s932 + $0x2d0] sm:$0xff] %vm4264, %v7907
        %7912 = vst.msk [vmem:[%s932 + $0x2d8] sm:$0xff] %vm4264, %v7908
        %v7913 = vld [vmem:[%s47] sm:$0xff]
        %v7914 = vld [vmem:[%s47 + $0x8] sm:$0xff]
        %v7915 = vld [vmem:[%s47 + $0x10] sm:$0xff]
        %v7916 = vld [vmem:[%s47 + $0x18] sm:$0xff]
        %v7917 = vld [vmem:[%s926 + $0x2e0] sm:$0xff]
        %v7918 = vld [vmem:[%s926 + $0x2e8] sm:$0xff]
        %v7919 = vld [vmem:[%s926 + $0x2f0] sm:$0xff]
        %v7920 = vld [vmem:[%s926 + $0x2f8] sm:$0xff]
        %v7921 = vsel %vm4264, %v7913, 0.0
        %7922 = vadd.xlane.f32.xlu0 %v7921
        %v7923 = vpop.xlane.xlu0 %7922
        %v7924 = vsel %vm4264, %v7914, 0.0
        %7925 = vadd.xlane.f32.xlu0 %v7924
        %v7926 = vpop.xlane.xlu0 %7925
        %v7927 = vsel %vm4264, %v7915, 0.0
        %7928 = vadd.xlane.f32.xlu0 %v7927
        %v7929 = vpop.xlane.xlu0 %7928
        %v7930 = vsel %vm4264, %v7916, 0.0
        %7931 = vadd.xlane.f32.xlu0 %v7930
        %v7932 = vpop.xlane.xlu0 %7931
        %v7933 = vmul.f32 %v7923, 0.020408163
        %v7934 = vmul.f32 %v7926, 0.020408163
        %v7935 = vmul.f32 %v7929, 0.020408163
        %v7936 = vmul.f32 %v7932, 0.020408163
        %v7937 = vsub.f32 %v7913, %v7933
        %v7938 = vsub.f32 %v7914, %v7934
        %v7939 = vsub.f32 %v7915, %v7935
        %v7940 = vsub.f32 %v7916, %v7936
        %v7941 = vmul.f32 %v7937, %v7937
        %v7942 = vmul.f32 %v7938, %v7938
        %v7943 = vmul.f32 %v7939, %v7939
        %v7944 = vmul.f32 %v7940, %v7940
        %v7945 = vsel %vm4264, %v7941, 0.0
        %7946 = vadd.xlane.f32.xlu0 %v7945
        %v7947 = vpop.xlane.xlu0 %7946
        %v7948 = vsel %vm4264, %v7942, 0.0
        %7949 = vadd.xlane.f32.xlu0 %v7948
        %v7950 = vpop.xlane.xlu0 %7949
        %v7951 = vsel %vm4264, %v7943, 0.0
        %7952 = vadd.xlane.f32.xlu0 %v7951
        %v7953 = vpop.xlane.xlu0 %7952
        %v7954 = vsel %vm4264, %v7944, 0.0
        %7955 = vadd.xlane.f32.xlu0 %v7954
        %v7956 = vpop.xlane.xlu0 %7955
        %v7957 = vmul.f32 %v7947, 0.020408163
        %v7958 = vmul.f32 %v7950, 0.020408163
        %v7959 = vmul.f32 %v7953, 0.020408163
        %v7960 = vmul.f32 %v7956, 0.020408163
        %v7961 = vadd.f32 %v7957, 1e-05
        %v7962 = vadd.f32 %v7958, 1e-05
        %v7963 = vadd.f32 %v7959, 1e-05
        %v7964 = vadd.f32 %v7960, 1e-05
        %v7965 = vrsqrt.pop %v7961
        %v7966 = vrsqrt.pop %v7962
        %v7967 = vrsqrt.pop %v7963
        %v7968 = vrsqrt.pop %v7964
        %v7969 = vmul.f32 %v7965, %v7917
        %v7970 = vmul.f32 %v7966, %v7918
        %v7971 = vmul.f32 %v7967, %v7919
        %v7972 = vmul.f32 %v7968, %v7920
        %7974 = vset.pattern.permute.xlu0 0
        %7975 = vperm.xlu0 %7974, %v7969
        %v7976 = vpop.permute.xlu0 %7975
        %7979 = vset.pattern.permute.xlu0 0
        %7980 = vperm.xlu0 %7979, %v7970
        %v7981 = vpop.permute.xlu0 %7980
        %7984 = vset.pattern.permute.xlu0 0
        %7985 = vperm.xlu0 %7984, %v7971
        %v7986 = vpop.permute.xlu0 %7985
        %7989 = vset.pattern.permute.xlu0 0
        %7990 = vperm.xlu0 %7989, %v7972
        %v7991 = vpop.permute.xlu0 %7990
        %v7993 = vmul.f32 %v7937, %v7976
        %v7994 = vmul.f32 %v7938, %v7981
        %v7995 = vmul.f32 %v7939, %v7986
        %v7996 = vmul.f32 %v7940, %v7991
        %7998 = vset.pattern.permute.xlu0 1
        %7999 = vperm.xlu0 %7998, %v7917
        %v8000 = vpop.permute.xlu0 %7999
        %8003 = vset.pattern.permute.xlu0 1
        %8004 = vperm.xlu0 %8003, %v7918
        %v8005 = vpop.permute.xlu0 %8004
        %8008 = vset.pattern.permute.xlu0 1
        %8009 = vperm.xlu0 %8008, %v7919
        %v8010 = vpop.permute.xlu0 %8009
        %8013 = vset.pattern.permute.xlu0 1
        %8014 = vperm.xlu0 %8013, %v7920
        %v8015 = vpop.permute.xlu0 %8014
        %v8017 = vadd.f32 %v7993, %v8000
        %v8018 = vadd.f32 %v7994, %v8005
        %v8019 = vadd.f32 %v7995, %v8010
        %v8020 = vadd.f32 %v7996, %v8015
        %8021 = vst.msk [vmem:[%s932 + $0x2e0] sm:$0xff] %vm4264, %v8017
        %8022 = vst.msk [vmem:[%s932 + $0x2e8] sm:$0xff] %vm4264, %v8018
        %8023 = vst.msk [vmem:[%s932 + $0x2f0] sm:$0xff] %vm4264, %v8019
        %8024 = vst.msk [vmem:[%s932 + $0x2f8] sm:$0xff] %vm4264, %v8020
        %v8025 = vld [vmem:[%s49] sm:$0xff]
        %v8026 = vld [vmem:[%s49 + $0x8] sm:$0xff]
        %v8027 = vld [vmem:[%s49 + $0x10] sm:$0xff]
        %v8028 = vld [vmem:[%s49 + $0x18] sm:$0xff]
        %v8029 = vld [vmem:[%s926 + $0x300] sm:$0xff]
        %v8030 = vld [vmem:[%s926 + $0x308] sm:$0xff]
        %v8031 = vld [vmem:[%s926 + $0x310] sm:$0xff]
        %v8032 = vld [vmem:[%s926 + $0x318] sm:$0xff]
        %v8033 = vsel %vm4264, %v8025, 0.0
        %8034 = vadd.xlane.f32.xlu0 %v8033
        %v8035 = vpop.xlane.xlu0 %8034
        %v8036 = vsel %vm4264, %v8026, 0.0
        %8037 = vadd.xlane.f32.xlu0 %v8036
        %v8038 = vpop.xlane.xlu0 %8037
        %v8039 = vsel %vm4264, %v8027, 0.0
        %8040 = vadd.xlane.f32.xlu0 %v8039
        %v8041 = vpop.xlane.xlu0 %8040
        %v8042 = vsel %vm4264, %v8028, 0.0
        %8043 = vadd.xlane.f32.xlu0 %v8042
        %v8044 = vpop.xlane.xlu0 %8043
        %v8045 = vmul.f32 %v8035, 0.020408163
        %v8046 = vmul.f32 %v8038, 0.020408163
        %v8047 = vmul.f32 %v8041, 0.020408163
        %v8048 = vmul.f32 %v8044, 0.020408163
        %v8049 = vsub.f32 %v8025, %v8045
        %v8050 = vsub.f32 %v8026, %v8046
        %v8051 = vsub.f32 %v8027, %v8047
        %v8052 = vsub.f32 %v8028, %v8048
        %v8053 = vmul.f32 %v8049, %v8049
        %v8054 = vmul.f32 %v8050, %v8050
        %v8055 = vmul.f32 %v8051, %v8051
        %v8056 = vmul.f32 %v8052, %v8052
        %v8057 = vsel %vm4264, %v8053, 0.0
        %8058 = vadd.xlane.f32.xlu0 %v8057
        %v8059 = vpop.xlane.xlu0 %8058
        %v8060 = vsel %vm4264, %v8054, 0.0
        %8061 = vadd.xlane.f32.xlu0 %v8060
        %v8062 = vpop.xlane.xlu0 %8061
        %v8063 = vsel %vm4264, %v8055, 0.0
        %8064 = vadd.xlane.f32.xlu0 %v8063
        %v8065 = vpop.xlane.xlu0 %8064
        %v8066 = vsel %vm4264, %v8056, 0.0
        %8067 = vadd.xlane.f32.xlu0 %v8066
        %v8068 = vpop.xlane.xlu0 %8067
        %v8069 = vmul.f32 %v8059, 0.020408163
        %v8070 = vmul.f32 %v8062, 0.020408163
        %v8071 = vmul.f32 %v8065, 0.020408163
        %v8072 = vmul.f32 %v8068, 0.020408163
        %v8073 = vadd.f32 %v8069, 1e-05
        %v8074 = vadd.f32 %v8070, 1e-05
        %v8075 = vadd.f32 %v8071, 1e-05
        %v8076 = vadd.f32 %v8072, 1e-05
        %v8077 = vrsqrt.pop %v8073
        %v8078 = vrsqrt.pop %v8074
        %v8079 = vrsqrt.pop %v8075
        %v8080 = vrsqrt.pop %v8076
        %v8081 = vmul.f32 %v8077, %v8029
        %v8082 = vmul.f32 %v8078, %v8030
        %v8083 = vmul.f32 %v8079, %v8031
        %v8084 = vmul.f32 %v8080, %v8032
        %8086 = vset.pattern.permute.xlu0 0
        %8087 = vperm.xlu0 %8086, %v8081
        %v8088 = vpop.permute.xlu0 %8087
        %8091 = vset.pattern.permute.xlu0 0
        %8092 = vperm.xlu0 %8091, %v8082
        %v8093 = vpop.permute.xlu0 %8092
        %8096 = vset.pattern.permute.xlu0 0
        %8097 = vperm.xlu0 %8096, %v8083
        %v8098 = vpop.permute.xlu0 %8097
        %8101 = vset.pattern.permute.xlu0 0
        %8102 = vperm.xlu0 %8101, %v8084
        %v8103 = vpop.permute.xlu0 %8102
        %v8105 = vmul.f32 %v8049, %v8088
        %v8106 = vmul.f32 %v8050, %v8093
        %v8107 = vmul.f32 %v8051, %v8098
        %v8108 = vmul.f32 %v8052, %v8103
        %8110 = vset.pattern.permute.xlu0 1
        %8111 = vperm.xlu0 %8110, %v8029
        %v8112 = vpop.permute.xlu0 %8111
        %8115 = vset.pattern.permute.xlu0 1
        %8116 = vperm.xlu0 %8115, %v8030
        %v8117 = vpop.permute.xlu0 %8116
        %8120 = vset.pattern.permute.xlu0 1
        %8121 = vperm.xlu0 %8120, %v8031
        %v8122 = vpop.permute.xlu0 %8121
        %8125 = vset.pattern.permute.xlu0 1
        %8126 = vperm.xlu0 %8125, %v8032
        %v8127 = vpop.permute.xlu0 %8126
        %v8129 = vadd.f32 %v8105, %v8112
        %v8130 = vadd.f32 %v8106, %v8117
        %v8131 = vadd.f32 %v8107, %v8122
        %v8132 = vadd.f32 %v8108, %v8127
        %8133 = vst.msk [vmem:[%s932 + $0x300] sm:$0xff] %vm4264, %v8129
        %8134 = vst.msk [vmem:[%s932 + $0x308] sm:$0xff] %vm4264, %v8130
        %8135 = vst.msk [vmem:[%s932 + $0x310] sm:$0xff] %vm4264, %v8131
        %8136 = vst.msk [vmem:[%s932 + $0x318] sm:$0xff] %vm4264, %v8132
        %v8137 = vld [vmem:[%s926 + $0x320] sm:$0xff]
        %v8138 = vld [vmem:[%s926 + $0x328] sm:$0xff]
        %v8139 = vld [vmem:[%s926 + $0x330] sm:$0xff]
        %v8140 = vld [vmem:[%s926 + $0x338] sm:$0xff]
        %v8141 = vsel %vm4264, %v5333, 0.0
        %8142 = vadd.xlane.f32.xlu0 %v8141
        %v8143 = vpop.xlane.xlu0 %8142
        %v8144 = vsel %vm4264, %v5334, 0.0
        %8145 = vadd.xlane.f32.xlu0 %v8144
        %v8146 = vpop.xlane.xlu0 %8145
        %v8147 = vsel %vm4264, %v5335, 0.0
        %8148 = vadd.xlane.f32.xlu0 %v8147
        %v8149 = vpop.xlane.xlu0 %8148
        %v8150 = vsel %vm4264, %v5336, 0.0
        %8151 = vadd.xlane.f32.xlu0 %v8150
        %v8152 = vpop.xlane.xlu0 %8151
        %v8153 = vmul.f32 %v8143, 0.020408163
        %v8154 = vmul.f32 %v8146, 0.020408163
        %v8155 = vmul.f32 %v8149, 0.020408163
        %v8156 = vmul.f32 %v8152, 0.020408163
        %v8157 = vsub.f32 %v5333, %v8153
        %v8158 = vsub.f32 %v5334, %v8154
        %v8159 = vsub.f32 %v5335, %v8155
        %v8160 = vsub.f32 %v5336, %v8156
        %v8161 = vmul.f32 %v8157, %v8157
        %v8162 = vmul.f32 %v8158, %v8158
        %v8163 = vmul.f32 %v8159, %v8159
        %v8164 = vmul.f32 %v8160, %v8160
        %v8165 = vsel %vm4264, %v8161, 0.0
        %8166 = vadd.xlane.f32.xlu0 %v8165
        %v8167 = vpop.xlane.xlu0 %8166
        %v8168 = vsel %vm4264, %v8162, 0.0
        %8169 = vadd.xlane.f32.xlu0 %v8168
        %v8170 = vpop.xlane.xlu0 %8169
        %v8171 = vsel %vm4264, %v8163, 0.0
        %8172 = vadd.xlane.f32.xlu0 %v8171
        %v8173 = vpop.xlane.xlu0 %8172
        %v8174 = vsel %vm4264, %v8164, 0.0
        %8175 = vadd.xlane.f32.xlu0 %v8174
        %v8176 = vpop.xlane.xlu0 %8175
        %v8177 = vmul.f32 %v8167, 0.020408163
        %v8178 = vmul.f32 %v8170, 0.020408163
        %v8179 = vmul.f32 %v8173, 0.020408163
        %v8180 = vmul.f32 %v8176, 0.020408163
        %v8181 = vadd.f32 %v8177, 1e-05
        %v8182 = vadd.f32 %v8178, 1e-05
        %v8183 = vadd.f32 %v8179, 1e-05
        %v8184 = vadd.f32 %v8180, 1e-05
        %v8185 = vrsqrt.pop %v8181
        %v8186 = vrsqrt.pop %v8182
        %v8187 = vrsqrt.pop %v8183
        %v8188 = vrsqrt.pop %v8184
        %v8189 = vmul.f32 %v8185, %v8137
        %v8190 = vmul.f32 %v8186, %v8138
        %v8191 = vmul.f32 %v8187, %v8139
        %v8192 = vmul.f32 %v8188, %v8140
        %8194 = vset.pattern.permute.xlu0 0
        %8195 = vperm.xlu0 %8194, %v8189
        %v8196 = vpop.permute.xlu0 %8195
        %8199 = vset.pattern.permute.xlu0 0
        %8200 = vperm.xlu0 %8199, %v8190
        %v8201 = vpop.permute.xlu0 %8200
        %8204 = vset.pattern.permute.xlu0 0
        %8205 = vperm.xlu0 %8204, %v8191
        %v8206 = vpop.permute.xlu0 %8205
        %8209 = vset.pattern.permute.xlu0 0
        %8210 = vperm.xlu0 %8209, %v8192
        %v8211 = vpop.permute.xlu0 %8210
        %v8213 = vmul.f32 %v8157, %v8196
        %v8214 = vmul.f32 %v8158, %v8201
        %v8215 = vmul.f32 %v8159, %v8206
        %v8216 = vmul.f32 %v8160, %v8211
        %8218 = vset.pattern.permute.xlu0 1
        %8219 = vperm.xlu0 %8218, %v8137
        %v8220 = vpop.permute.xlu0 %8219
        %8223 = vset.pattern.permute.xlu0 1
        %8224 = vperm.xlu0 %8223, %v8138
        %v8225 = vpop.permute.xlu0 %8224
        %8228 = vset.pattern.permute.xlu0 1
        %8229 = vperm.xlu0 %8228, %v8139
        %v8230 = vpop.permute.xlu0 %8229
        %8233 = vset.pattern.permute.xlu0 1
        %8234 = vperm.xlu0 %8233, %v8140
        %v8235 = vpop.permute.xlu0 %8234
        %v8237 = vadd.f32 %v8213, %v8220
        %v8238 = vadd.f32 %v8214, %v8225
        %v8239 = vadd.f32 %v8215, %v8230
        %v8240 = vadd.f32 %v8216, %v8235
        %8241 = vst.msk [vmem:[%s932 + $0x320] sm:$0xff] %vm4264, %v8237
        %8242 = vst.msk [vmem:[%s932 + $0x328] sm:$0xff] %vm4264, %v8238
        %8243 = vst.msk [vmem:[%s932 + $0x330] sm:$0xff] %vm4264, %v8239
        %8244 = vst.msk [vmem:[%s932 + $0x338] sm:$0xff] %vm4264, %v8240
        %v8245 = vld [vmem:[%s51] sm:$0xff]
        %v8246 = vld [vmem:[%s51 + $0x8] sm:$0xff]
        %v8247 = vld [vmem:[%s51 + $0x10] sm:$0xff]
        %v8248 = vld [vmem:[%s51 + $0x18] sm:$0xff]
        %v8249 = vld [vmem:[%s926 + $0x340] sm:$0xff]
        %v8250 = vld [vmem:[%s926 + $0x348] sm:$0xff]
        %v8251 = vld [vmem:[%s926 + $0x350] sm:$0xff]
        %v8252 = vld [vmem:[%s926 + $0x358] sm:$0xff]
        %v8253 = vsel %vm4264, %v8245, 0.0
        %8254 = vadd.xlane.f32.xlu0 %v8253
        %v8255 = vpop.xlane.xlu0 %8254
        %v8256 = vsel %vm4264, %v8246, 0.0
        %8257 = vadd.xlane.f32.xlu0 %v8256
        %v8258 = vpop.xlane.xlu0 %8257
        %v8259 = vsel %vm4264, %v8247, 0.0
        %8260 = vadd.xlane.f32.xlu0 %v8259
        %v8261 = vpop.xlane.xlu0 %8260
        %v8262 = vsel %vm4264, %v8248, 0.0
        %8263 = vadd.xlane.f32.xlu0 %v8262
        %v8264 = vpop.xlane.xlu0 %8263
        %v8265 = vmul.f32 %v8255, 0.020408163
        %v8266 = vmul.f32 %v8258, 0.020408163
        %v8267 = vmul.f32 %v8261, 0.020408163
        %v8268 = vmul.f32 %v8264, 0.020408163
        %v8269 = vsub.f32 %v8245, %v8265
        %v8270 = vsub.f32 %v8246, %v8266
        %v8271 = vsub.f32 %v8247, %v8267
        %v8272 = vsub.f32 %v8248, %v8268
        %v8273 = vmul.f32 %v8269, %v8269
        %v8274 = vmul.f32 %v8270, %v8270
        %v8275 = vmul.f32 %v8271, %v8271
        %v8276 = vmul.f32 %v8272, %v8272
        %v8277 = vsel %vm4264, %v8273, 0.0
        %8278 = vadd.xlane.f32.xlu0 %v8277
        %v8279 = vpop.xlane.xlu0 %8278
        %v8280 = vsel %vm4264, %v8274, 0.0
        %8281 = vadd.xlane.f32.xlu0 %v8280
        %v8282 = vpop.xlane.xlu0 %8281
        %v8283 = vsel %vm4264, %v8275, 0.0
        %8284 = vadd.xlane.f32.xlu0 %v8283
        %v8285 = vpop.xlane.xlu0 %8284
        %v8286 = vsel %vm4264, %v8276, 0.0
        %8287 = vadd.xlane.f32.xlu0 %v8286
        %v8288 = vpop.xlane.xlu0 %8287
        %v8289 = vmul.f32 %v8279, 0.020408163
        %v8290 = vmul.f32 %v8282, 0.020408163
        %v8291 = vmul.f32 %v8285, 0.020408163
        %v8292 = vmul.f32 %v8288, 0.020408163
        %v8293 = vadd.f32 %v8289, 1e-05
        %v8294 = vadd.f32 %v8290, 1e-05
        %v8295 = vadd.f32 %v8291, 1e-05
        %v8296 = vadd.f32 %v8292, 1e-05
        %v8297 = vrsqrt.pop %v8293
        %v8298 = vrsqrt.pop %v8294
        %v8299 = vrsqrt.pop %v8295
        %v8300 = vrsqrt.pop %v8296
        %v8301 = vmul.f32 %v8297, %v8249
        %v8302 = vmul.f32 %v8298, %v8250
        %v8303 = vmul.f32 %v8299, %v8251
        %v8304 = vmul.f32 %v8300, %v8252
        %8306 = vset.pattern.permute.xlu0 0
        %8307 = vperm.xlu0 %8306, %v8301
        %v8308 = vpop.permute.xlu0 %8307
        %8311 = vset.pattern.permute.xlu0 0
        %8312 = vperm.xlu0 %8311, %v8302
        %v8313 = vpop.permute.xlu0 %8312
        %8316 = vset.pattern.permute.xlu0 0
        %8317 = vperm.xlu0 %8316, %v8303
        %v8318 = vpop.permute.xlu0 %8317
        %8321 = vset.pattern.permute.xlu0 0
        %8322 = vperm.xlu0 %8321, %v8304
        %v8323 = vpop.permute.xlu0 %8322
        %v8325 = vmul.f32 %v8269, %v8308
        %v8326 = vmul.f32 %v8270, %v8313
        %v8327 = vmul.f32 %v8271, %v8318
        %v8328 = vmul.f32 %v8272, %v8323
        %8330 = vset.pattern.permute.xlu0 1
        %8331 = vperm.xlu0 %8330, %v8249
        %v8332 = vpop.permute.xlu0 %8331
        %8335 = vset.pattern.permute.xlu0 1
        %8336 = vperm.xlu0 %8335, %v8250
        %v8337 = vpop.permute.xlu0 %8336
        %8340 = vset.pattern.permute.xlu0 1
        %8341 = vperm.xlu0 %8340, %v8251
        %v8342 = vpop.permute.xlu0 %8341
        %8345 = vset.pattern.permute.xlu0 1
        %8346 = vperm.xlu0 %8345, %v8252
        %v8347 = vpop.permute.xlu0 %8346
        %v8349 = vadd.f32 %v8325, %v8332
        %v8350 = vadd.f32 %v8326, %v8337
        %v8351 = vadd.f32 %v8327, %v8342
        %v8352 = vadd.f32 %v8328, %v8347
        %8353 = vst.msk [vmem:[%s932 + $0x340] sm:$0xff] %vm4264, %v8349
        %8354 = vst.msk [vmem:[%s932 + $0x348] sm:$0xff] %vm4264, %v8350
        %8355 = vst.msk [vmem:[%s932 + $0x350] sm:$0xff] %vm4264, %v8351
        %8356 = vst.msk [vmem:[%s932 + $0x358] sm:$0xff] %vm4264, %v8352
      $region148: #{forward.1} parent=139 // pred_fallthru
        _
      %s8357 = smul.u32 108, %s72
      %p8358 = scmp.lt.s32.totalorder %s8357, 215
      %s8359 = scalar_select %p8358, %s8357, 215
      %s8360 = smul.addr %s8359, 8
      %s8361 = scalar_lea.vmem %s61, %s8360
      // Predicated region
      $region149: #{forward.1} parent=139 // pred_check
        %p8362 = pneg %p725
      $region150: #{forward.1} parent=139 // pred_check_branch
        %8364 = sbr.rel (%p8362) target = $region152
      $region151: #{forward.1} parent=139 // pred_region
        %s8365 = smul.u32 108, %s72
      $region152: #{forward.1} parent=139 // pred_fallthru
        _
    $region140: #{forward.1} parent=5 // pred_fallthru
      _
    %p8366 = scmp.le.s32.totalorder 2, %s67
    // Predicated region
    $region153: #{forward.1} parent=5 // pred_check
      %p8367 = pneg %p8366
    $region154: #{forward.1} parent=5 // pred_check_branch
      %8369 = sbr.rel (%p8367) target = $region156
    $region155: #{forward.1} parent=5 // pred_region
      %s8370 = ssub.s32 %s67, 2
      // Predicated region
      $region157: #{forward.1} parent=155 // pred_check
        %p8371 = pneg %p731
      $region158: #{forward.1} parent=155 // pred_check_branch
        %8373 = sbr.rel (%p8371) target = $region160
      $region159: #{forward.1} parent=155 // pred_region
        %s8374 = smul.u32 108, %s73
        %p8375 = scmp.lt.s32.totalorder %s8374, 215
        %s8376 = scalar_select %p8375, %s8374, 215
        %s8377 = smul.addr %s8376, 8
        %s8378 = scalar_lea.vmem %s61, %s8377
      $region160: #{forward.1} parent=155 // pred_fallthru
        _
    $region156: #{forward.1} parent=5 // pred_fallthru
      _
  $region6: #{forward.1} parent=0 // loop_footer
    %s71 = sadd.s32 1, %s67
  $region7: #{forward.1} parent=0 // loop_footer_branch
    %66 = sbr.rel target = $region3
  $region8: #{forward.1} parent=0 // loop_exit
    _

</llo_original>
